<compile_context>
chip_gen: v6e
topology: v6e:2x2x1
jax: 0.10.0
libtpu: 0.0.40
codegen_flags: <defaults>
</compile_context>

<pallas_src>
import jax
import jax.numpy as jnp
import numpy as np
from jax.experimental import pallas as pl
from jax.experimental.pallas import tpu as pltpu

CHANNELS = (64, 32, 16)  # default channels of the PyTorch Decoder


# ---------------------------------------------------------------------------
# constant helper matrices (host-side, trace-time constants)
# ---------------------------------------------------------------------------
def _upsample_scatter(H, W):
    """sel[k, R, m]: scatter phase-k (k = 2*di + dj) ConvTranspose outputs into
    the flattened 2x-upsampled image (row stride 2W, 16 extra zero pad rows)."""
    Wu = 2 * W
    Lup = 2 * H * Wu + 16
    sel = np.zeros((4, Lup, H * W), np.float32)
    for r in range(2 * H):
        for s in range(Wu):
            k = 2 * (r % 2) + (s % 2)
            sel[k, r * Wu + s, (r // 2) * W + (s // 2)] = 1.0
    return sel


def _valid_gather(H, W):
    """gat[t, R]: gather the valid (q < W2) entries of the padded-width conv2
    output into a compact row-major (H2*W2, C) matrix."""
    Wu = 2 * W
    H2, W2 = 2 * H - 4, 2 * W - 4
    gat = np.zeros((H2 * W2, H2 * Wu), np.float32)
    for p in range(H2):
        for q in range(W2):
            gat[p * W2 + q, p * Wu + q] = 1.0
    return gat


def center_crop_nhwc(feat, H, W):
    # matches torchvision CenterCrop offset convention
    _, h, w, _ = feat.shape
    top = int(round((h - H) / 2.0))
    left = int(round((w - W) / 2.0))
    return feat[:, top:top + H, left:left + W, :]


# ---------------------------------------------------------------------------
# One decoder stage, computed entirely inside the kernel.
#   xf       : (H*W, Cin) value     -- flattened stage input
#   enc_ref  : (1, Lup, Cout) ref   -- cropped skip feature, flat + zero padded
#   returns  : (H2*W2, Cout) value  -- flattened stage output
# ---------------------------------------------------------------------------
def _stage_compute(xf, enc_ref, sel_ref, gat_ref, wt_ref, bup_ref,
                   w1u_ref, w1e_ref, b1_ref, w2_ref, b2_ref,
                   up_ref, h_ref, H, W):
    C = wt_ref.shape[3]          # stage output channels
    Wu = 2 * W                   # padded row stride (multiple of 8)
    Lup = 2 * H * Wu + 16        # flat length of the upsampled image (+pad)
    Lh = (2 * H - 2) * Wu + 8    # flat length of the conv1 output (+pad)
    Lo = (2 * H - 4) * Wu        # flat length of the conv2 output

    # --- ConvTranspose2d(k=2, s=2): 4 phase matmuls + constant scatter matmuls
    up = jnp.broadcast_to(bup_ref[...], (Lup, C))
    for di in range(2):
        for dj in range(2):
            ph = jnp.dot(xf, wt_ref[di, dj], preferred_element_type=jnp.float32)
            up = up + jnp.dot(sel_ref[2 * di + dj], ph,
                              preferred_element_type=jnp.float32)
    up_ref[...] = up

    # --- conv1 (3x3, VALID) on concat([up, enc]) via split weights, then ReLU
    acc = jnp.broadcast_to(b1_ref[...], (Lh, C))
    for ky in range(3):
        for kx in range(3):
            off = ky * Wu + kx
            acc = acc + jnp.dot(up_ref[off:off + Lh, :], w1u_ref[ky, kx],
                                preferred_element_type=jnp.float32)
            acc = acc + jnp.dot(enc_ref[0, off:off + Lh, :], w1e_ref[ky, kx],
                                preferred_element_type=jnp.float32)
    h_ref[...] = jnp.maximum(acc, 0.0)

    # --- conv2 (3x3, VALID)
    acc2 = jnp.broadcast_to(b2_ref[...], (Lo, C))
    for ky in range(3):
        for kx in range(3):
            off = ky * Wu + kx
            acc2 = acc2 + jnp.dot(h_ref[off:off + Lo, :], w2_ref[ky, kx],
                                  preferred_element_type=jnp.float32)

    # --- compact the padded-width rows -> row-major (H2*W2, C)
    return jnp.dot(gat_ref[...], acc2, preferred_element_type=jnp.float32)


# ---------------------------------------------------------------------------
# Decoder forward: ONE fused pallas_call for all stages.
# ---------------------------------------------------------------------------
def decoder_forward_nhwc(x, enc_features, params):
    """x: (N,H,W,C0) f32; enc_features[i]: (N,He,We,CHANNELS[i+1]) f32."""
    N, H0, W0, C0 = x.shape
    n_stages = len(CHANNELS) - 1

    # ---- wrapper-side prep (cheap one-time XLA glue) ----
    x_flat = x.reshape(N, H0 * W0, C0)
    enc_flats, stage_consts, stage_dims = [], [], []
    Hc, Wc = H0, W0
    for i in range(n_stages):
        Cout = CHANNELS[i + 1]
        Hu, Wu = 2 * Hc, 2 * Wc
        enc = center_crop_nhwc(enc_features[i], Hu, Wu)
        encf = jnp.pad(enc.reshape(N, Hu * Wu, Cout), ((0, 0), (0, 16), (0, 0)))
        enc_flats.append(encf)

        sel = jnp.asarray(_upsample_scatter(Hc, Wc))
        gat = jnp.asarray(_valid_gather(Hc, Wc))
        wt = jnp.transpose(params[f"up{i}_w"], (2, 3, 0, 1))   # (2,2,Cin,Cout)
        bup = params[f"up{i}_b"].reshape(1, Cout)
        w1 = params[f"blk{i}_w1"]                               # (3,3,2*Cout,Cout) HWIO
        w1u, w1e = w1[:, :, :Cout, :], w1[:, :, Cout:, :]       # concat([up, enc])
        b1 = params[f"blk{i}_b1"].reshape(1, Cout)
        w2 = params[f"blk{i}_w2"]
        b2 = params[f"blk{i}_b2"].reshape(1, Cout)
        stage_consts.append((sel, gat, wt, bup, w1u, w1e, b1, w2, b2))
        stage_dims.append((Hc, Wc))
        Hc, Wc = 2 * Hc - 4, 2 * Wc - 4

    H_out, W_out, C_out = Hc, Wc, CHANNELS[-1]

    # ---- the single fused kernel ----
    def kernel(*refs):
        x_ref = refs[0]
        enc_refs = refs[1:1 + n_stages]
        prm = refs[1 + n_stages:1 + n_stages + 9 * n_stages]
        o_ref = refs[1 + n_stages + 9 * n_stages]
        scratch = refs[2 + n_stages + 9 * n_stages:]

        xf = x_ref[0]                                   # (H*W, Cin)
        for i in range(n_stages):
            Hs, Ws = stage_dims[i]
            xf = _stage_compute(xf, enc_refs[i], *prm[9 * i:9 * i + 9],
                                scratch[2 * i], scratch[2 * i + 1], Hs, Ws)
        o_ref[0] = xf.astype(o_ref.dtype)

    def _batched_spec(arr):
        blk = (1,) + arr.shape[1:]
        return pl.BlockSpec(blk, lambda n: (n,) + (0,) * (arr.ndim - 1))

    def _const_spec(arr):
        nd = arr.ndim
        return pl.BlockSpec(arr.shape, lambda n, _nd=nd: (0,) * _nd)

    flat_params = [a for sc in stage_consts for a in sc]
    in_specs = [_batched_spec(x_flat)]
    in_specs += [_batched_spec(e) for e in enc_flats]
    in_specs += [_const_spec(a) for a in flat_params]

    scratch_shapes = []
    for i, (Hs, Ws) in enumerate(stage_dims):
        C = CHANNELS[i + 1]
        scratch_shapes.append(pltpu.VMEM((4 * Hs * Ws + 16, C), jnp.float32))
        scratch_shapes.append(pltpu.VMEM(((2 * Hs - 2) * 2 * Ws + 8, C),
                                         jnp.float32))

    y = pl.pallas_call(
        kernel,
        out_shape=jax.ShapeDtypeStruct((N, H_out * W_out, C_out), jnp.float32),
        grid=(N,),
        in_specs=in_specs,
        out_specs=pl.BlockSpec((1, H_out * W_out, C_out), lambda n: (n, 0, 0)),
        scratch_shapes=scratch_shapes,
        compiler_params=pltpu.CompilerParams(
            dimension_semantics=("parallel",)),
    )(x_flat, *enc_flats, *flat_params)

    return y.reshape(N, H_out, W_out, C_out)


def decoder_forward_nchw(x_nchw, enc_features_nchw, params):
    x = jnp.transpose(x_nchw, (0, 2, 3, 1))
    encs = [jnp.transpose(e, (0, 2, 3, 1)) for e in enc_features_nchw]
    y = decoder_forward_nhwc(x, encs, params)
    return jnp.transpose(y, (0, 3, 1, 2))


# ---------------------------------------------------------------------------
# Pure-JAX reference (numerical verification)
# ---------------------------------------------------------------------------
def _ref_conv_transpose(x, w_pt, b):
    N, H, W, Cin = x.shape
    Cout = w_pt.shape[1]
    y = jnp.einsum("nijc,copq->nipjqo", x, w_pt)
    return y.reshape(N, 2 * H, 2 * W, Cout) + b


def _ref_conv3x3(x, w_hwio, b):
    y = jax.lax.conv_general_dilated(
        x, w_hwio, (1, 1), "VALID",
        dimension_numbers=("NHWC", "HWIO", "NHWC"))
    return y + b


def ref_decoder_nhwc(x, enc_features, params):
    for i in range(len(CHANNELS) - 1):
        x = _ref_conv_transpose(x, params[f"up{i}_w"], params[f"up{i}_b"])
        e = center_crop_nhwc(enc_features[i], x.shape[1], x.shape[2])
        x = jnp.concatenate([x, e], axis=-1)
        x = jnp.maximum(
            _ref_conv3x3(x, params[f"blk{i}_w1"], params[f"blk{i}_b1"]), 0.0)
        x = _ref_conv3x3(x, params[f"blk{i}_w2"], params[f"blk{i}_b2"])
    return x


# ---------------------------------------------------------------------------
# Params / main
# ---------------------------------------------------------------------------
def make_params(key):
    """Deterministic parameter init (shapes match nn.Module __init__)."""
    params = {}
    keys = jax.random.split(key, 16)
    ki = iter(range(16))

    def u(k, shape, fan_in):
        bound = 1.0 / np.sqrt(fan_in)
        return jax.random.uniform(k, shape, jnp.float32, -bound, bound)

    for i in range(len(CHANNELS) - 1):
        cin, cout = CHANNELS[i], CHANNELS[i + 1]
        # ConvTranspose2d(cin, cout, 2, 2): weight (cin, cout, 2, 2)
        params[f"up{i}_w"] = u(keys[next(ki)], (cin, cout, 2, 2), cin * 4)
        params[f"up{i}_b"] = u(keys[next(ki)], (cout,), cin * 4)
        # Block(cin, cout): conv1 Conv2d(cin, cout, 3), conv2 Conv2d(cout, cout, 3)
        # stored HWIO
        params[f"blk{i}_w1"] = u(keys[next(ki)], (3, 3, cin, cout), cin * 9)
        params[f"blk{i}_b1"] = u(keys[next(ki)], (cout,), cin * 9)
        params[f"blk{i}_w2"] = u(keys[next(ki)], (3, 3, cout, cout), cout * 9)
        params[f"blk{i}_b2"] = u(keys[next(ki)], (cout,), cout * 9)
    return params


if __name__ == "__main__":
    key = jax.random.PRNGKey(0)
    kp, kx, ke0, ke1 = jax.random.split(key, 4)
    params = make_params(kp)

    # Inputs in PyTorch NCHW convention (small shapes):
    #   x:            (2, 64, 4, 4)
    #   encFeatures:  [(2, 32, 10, 10), (2, 16, 12, 12)]
    x_nchw = jax.random.normal(kx, (2, CHANNELS[0], 4, 4), jnp.float32)
    enc0 = jax.random.normal(ke0, (2, CHANNELS[1], 10, 10), jnp.float32)
    enc1 = jax.random.normal(ke1, (2, CHANNELS[2], 12, 12), jnp.float32)

    fwd = jax.jit(decoder_forward_nchw)
    out = jax.block_until_ready(fwd(x_nchw, [enc0, enc1], params))
    assert out.shape == (2, CHANNELS[-1], 4, 4), out.shape

    # Verify against a pure-JAX reference implementation.
    ref = ref_decoder_nhwc(
        jnp.transpose(x_nchw, (0, 2, 3, 1)),
        [jnp.transpose(enc0, (0, 2, 3, 1)), jnp.transpose(enc1, (0, 2, 3, 1))],
        params)
    ref = jnp.transpose(ref, (0, 3, 1, 2))
    np.testing.assert_allclose(np.asarray(out), np.asarray(ref),
                               rtol=1e-4, atol=1e-4)

    print("KERNEL_OK")
</pallas_src>

<mosaic_0001>
module attributes {stable_mosaic.version = 11 : i64} {
  func.func @kernel(%arg0: i32, %arg1: memref<1x16x64xf32, #tpu.memory_space<vmem>>, %arg2: memref<1x80x32xf32, #tpu.memory_space<vmem>>, %arg3: memref<1x80x16xf32, #tpu.memory_space<vmem>>, %arg4: memref<4x80x16xf32, #tpu.memory_space<vmem>>, %arg5: memref<16x32xf32, #tpu.memory_space<vmem>>, %arg6: memref<2x2x64x32xf32, #tpu.memory_space<vmem>>, %arg7: memref<1x32xf32, #tpu.memory_space<vmem>>, %arg8: memref<3x3x32x32xf32, #tpu.memory_space<vmem>>, %arg9: memref<3x3x32x32xf32, #tpu.memory_space<vmem>>, %arg10: memref<1x32xf32, #tpu.memory_space<vmem>>, %arg11: memref<3x3x32x32xf32, #tpu.memory_space<vmem>>, %arg12: memref<1x32xf32, #tpu.memory_space<vmem>>, %arg13: memref<4x80x16xf32, #tpu.memory_space<vmem>>, %arg14: memref<16x32xf32, #tpu.memory_space<vmem>>, %arg15: memref<2x2x32x16xf32, #tpu.memory_space<vmem>>, %arg16: memref<1x16xf32, #tpu.memory_space<vmem>>, %arg17: memref<3x3x16x16xf32, #tpu.memory_space<vmem>>, %arg18: memref<3x3x16x16xf32, #tpu.memory_space<vmem>>, %arg19: memref<1x16xf32, #tpu.memory_space<vmem>>, %arg20: memref<3x3x16x16xf32, #tpu.memory_space<vmem>>, %arg21: memref<1x16xf32, #tpu.memory_space<vmem>>, %arg22: memref<1x16x16xf32, #tpu.memory_space<vmem>>, %arg23: memref<80x32xf32, #tpu.memory_space<vmem>>, %arg24: memref<56x32xf32, #tpu.memory_space<vmem>>, %arg25: memref<80x16xf32, #tpu.memory_space<vmem>>, %arg26: memref<56x16xf32, #tpu.memory_space<vmem>>) attributes {dimension_semantics = [#tpu.dimension_semantics<parallel>], iteration_bounds = array<i64: 2>, scalar_prefetch = 0 : i64, scratch_operands = 4 : i64, tpu.core_type = #tpu.core_type<tc>, window_params = [{transform_indices = @transform_0, window_bounds = array<i64: 1, 16, 64>}, {transform_indices = @transform_1, window_bounds = array<i64: 1, 80, 32>}, {transform_indices = @transform_2, window_bounds = array<i64: 1, 80, 16>}, {pipeline_mode = #tpu.pipeline_mode<synchronous>, transform_indices = @transform_3, window_bounds = array<i64: 4, 80, 16>}, {pipeline_mode = #tpu.pipeline_mode<synchronous>, transform_indices = @transform_4, window_bounds = array<i64: 16, 32>}, {pipeline_mode = #tpu.pipeline_mode<synchronous>, transform_indices = @transform_5, window_bounds = array<i64: 2, 2, 64, 32>}, {pipeline_mode = #tpu.pipeline_mode<synchronous>, transform_indices = @transform_6, window_bounds = array<i64: 1, 32>}, {pipeline_mode = #tpu.pipeline_mode<synchronous>, transform_indices = @transform_7, window_bounds = array<i64: 3, 3, 32, 32>}, {pipeline_mode = #tpu.pipeline_mode<synchronous>, transform_indices = @transform_8, window_bounds = array<i64: 3, 3, 32, 32>}, {pipeline_mode = #tpu.pipeline_mode<synchronous>, transform_indices = @transform_9, window_bounds = array<i64: 1, 32>}, {pipeline_mode = #tpu.pipeline_mode<synchronous>, transform_indices = @transform_10, window_bounds = array<i64: 3, 3, 32, 32>}, {pipeline_mode = #tpu.pipeline_mode<synchronous>, transform_indices = @transform_11, window_bounds = array<i64: 1, 32>}, {pipeline_mode = #tpu.pipeline_mode<synchronous>, transform_indices = @transform_12, window_bounds = array<i64: 4, 80, 16>}, {pipeline_mode = #tpu.pipeline_mode<synchronous>, transform_indices = @transform_13, window_bounds = array<i64: 16, 32>}, {pipeline_mode = #tpu.pipeline_mode<synchronous>, transform_indices = @transform_14, window_bounds = array<i64: 2, 2, 32, 16>}, {pipeline_mode = #tpu.pipeline_mode<synchronous>, transform_indices = @transform_15, window_bounds = array<i64: 1, 16>}, {pipeline_mode = #tpu.pipeline_mode<synchronous>, transform_indices = @transform_16, window_bounds = array<i64: 3, 3, 16, 16>}, {pipeline_mode = #tpu.pipeline_mode<synchronous>, transform_indices = @transform_17, window_bounds = array<i64: 3, 3, 16, 16>}, {pipeline_mode = #tpu.pipeline_mode<synchronous>, transform_indices = @transform_18, window_bounds = array<i64: 1, 16>}, {pipeline_mode = #tpu.pipeline_mode<synchronous>, transform_indices = @transform_19, window_bounds = array<i64: 3, 3, 16, 16>}, {pipeline_mode = #tpu.pipeline_mode<synchronous>, transform_indices = @transform_20, window_bounds = array<i64: 1, 16>}, {transform_indices = @transform_21, window_bounds = array<i64: 1, 16, 16>}]} {
    %c0 = arith.constant 0 : index
    %c0_0 = arith.constant 0 : index
    %c0_1 = arith.constant 0 : index
    %0 = vector.load %arg1[%c0, %c0_0, %c0_1] : memref<1x16x64xf32, #tpu.memory_space<vmem>>, vector<1x16x64xf32>
    %1 = vector.shape_cast %0 : vector<1x16x64xf32> to vector<16x64xf32>
    %c0_2 = arith.constant 0 : index
    %c0_3 = arith.constant 0 : index
    %2 = vector.load %arg7[%c0_2, %c0_3] : memref<1x32xf32, #tpu.memory_space<vmem>>, vector<1x32xf32>
    %3 = vector.shape_cast %2 : vector<1x32xf32> to vector<1x32xf32>
    %4 = vector.broadcast %3 : vector<1x32xf32> to vector<80x32xf32>
    %c0_4 = arith.constant 0 : index
    %c0_5 = arith.constant 0 : index
    %c0_6 = arith.constant 0 : index
    %c0_7 = arith.constant 0 : index
    %5 = vector.load %arg6[%c0_4, %c0_5, %c0_6, %c0_7] : memref<2x2x64x32xf32, #tpu.memory_space<vmem>>, vector<1x1x64x32xf32>
    %6 = vector.shape_cast %5 : vector<1x1x64x32xf32> to vector<64x32xf32>
    %cst = arith.constant dense<0.000000e+00> : vector<16x32xf32>
    %7 = tpu.matmul %1, %6, %cst {dimension_numbers = #tpu.dot_dimension_numbers<[1], [0], [0], [1], [0, 0, 1, 1], [], []>} : vector<16x64xf32>, vector<64x32xf32>, vector<16x32xf32> -> vector<16x32xf32>
    %c0_8 = arith.constant 0 : index
    %c0_9 = arith.constant 0 : index
    %c0_10 = arith.constant 0 : index
    %8 = vector.load %arg4[%c0_8, %c0_9, %c0_10] : memref<4x80x16xf32, #tpu.memory_space<vmem>>, vector<1x80x16xf32>
    %9 = vector.shape_cast %8 : vector<1x80x16xf32> to vector<80x16xf32>
    %cst_11 = arith.constant dense<0.000000e+00> : vector<80x32xf32>
    %10 = tpu.matmul %9, %7, %cst_11 {dimension_numbers = #tpu.dot_dimension_numbers<[1], [0], [0], [1], [0, 0, 1, 1], [], []>} : vector<80x16xf32>, vector<16x32xf32>, vector<80x32xf32> -> vector<80x32xf32>
    %11 = arith.addf %4, %10 : vector<80x32xf32>
    %c0_12 = arith.constant 0 : index
    %c1 = arith.constant 1 : index
    %c0_13 = arith.constant 0 : index
    %c0_14 = arith.constant 0 : index
    %12 = vector.load %arg6[%c0_12, %c1, %c0_13, %c0_14] : memref<2x2x64x32xf32, #tpu.memory_space<vmem>>, vector<1x1x64x32xf32>
    %13 = vector.shape_cast %12 : vector<1x1x64x32xf32> to vector<64x32xf32>
    %cst_15 = arith.constant dense<0.000000e+00> : vector<16x32xf32>
    %14 = tpu.matmul %1, %13, %cst_15 {dimension_numbers = #tpu.dot_dimension_numbers<[1], [0], [0], [1], [0, 0, 1, 1], [], []>} : vector<16x64xf32>, vector<64x32xf32>, vector<16x32xf32> -> vector<16x32xf32>
    %c1_16 = arith.constant 1 : index
    %c0_17 = arith.constant 0 : index
    %c0_18 = arith.constant 0 : index
    %15 = vector.load %arg4[%c1_16, %c0_17, %c0_18] : memref<4x80x16xf32, #tpu.memory_space<vmem>>, vector<1x80x16xf32>
    %16 = vector.shape_cast %15 : vector<1x80x16xf32> to vector<80x16xf32>
    %cst_19 = arith.constant dense<0.000000e+00> : vector<80x32xf32>
    %17 = tpu.matmul %16, %14, %cst_19 {dimension_numbers = #tpu.dot_dimension_numbers<[1], [0], [0], [1], [0, 0, 1, 1], [], []>} : vector<80x16xf32>, vector<16x32xf32>, vector<80x32xf32> -> vector<80x32xf32>
    %18 = arith.addf %11, %17 : vector<80x32xf32>
    %c1_20 = arith.constant 1 : index
    %c0_21 = arith.constant 0 : index
    %c0_22 = arith.constant 0 : index
    %c0_23 = arith.constant 0 : index
    %19 = vector.load %arg6[%c1_20, %c0_21, %c0_22, %c0_23] : memref<2x2x64x32xf32, #tpu.memory_space<vmem>>, vector<1x1x64x32xf32>
    %20 = vector.shape_cast %19 : vector<1x1x64x32xf32> to vector<64x32xf32>
    %cst_24 = arith.constant dense<0.000000e+00> : vector<16x32xf32>
    %21 = tpu.matmul %1, %20, %cst_24 {dimension_numbers = #tpu.dot_dimension_numbers<[1], [0], [0], [1], [0, 0, 1, 1], [], []>} : vector<16x64xf32>, vector<64x32xf32>, vector<16x32xf32> -> vector<16x32xf32>
    %c2 = arith.constant 2 : index
    %c0_25 = arith.constant 0 : index
    %c0_26 = arith.constant 0 : index
    %22 = vector.load %arg4[%c2, %c0_25, %c0_26] : memref<4x80x16xf32, #tpu.memory_space<vmem>>, vector<1x80x16xf32>
    %23 = vector.shape_cast %22 : vector<1x80x16xf32> to vector<80x16xf32>
    %cst_27 = arith.constant dense<0.000000e+00> : vector<80x32xf32>
    %24 = tpu.matmul %23, %21, %cst_27 {dimension_numbers = #tpu.dot_dimension_numbers<[1], [0], [0], [1], [0, 0, 1, 1], [], []>} : vector<80x16xf32>, vector<16x32xf32>, vector<80x32xf32> -> vector<80x32xf32>
    %25 = arith.addf %18, %24 : vector<80x32xf32>
    %c1_28 = arith.constant 1 : index
    %c1_29 = arith.constant 1 : index
    %c0_30 = arith.constant 0 : index
    %c0_31 = arith.constant 0 : index
    %26 = vector.load %arg6[%c1_28, %c1_29, %c0_30, %c0_31] : memref<2x2x64x32xf32, #tpu.memory_space<vmem>>, vector<1x1x64x32xf32>
    %27 = vector.shape_cast %26 : vector<1x1x64x32xf32> to vector<64x32xf32>
    %cst_32 = arith.constant dense<0.000000e+00> : vector<16x32xf32>
    %28 = tpu.matmul %1, %27, %cst_32 {dimension_numbers = #tpu.dot_dimension_numbers<[1], [0], [0], [1], [0, 0, 1, 1], [], []>} : vector<16x64xf32>, vector<64x32xf32>, vector<16x32xf32> -> vector<16x32xf32>
    %c3 = arith.constant 3 : index
    %c0_33 = arith.constant 0 : index
    %c0_34 = arith.constant 0 : index
    %29 = vector.load %arg4[%c3, %c0_33, %c0_34] : memref<4x80x16xf32, #tpu.memory_space<vmem>>, vector<1x80x16xf32>
    %30 = vector.shape_cast %29 : vector<1x80x16xf32> to vector<80x16xf32>
    %cst_35 = arith.constant dense<0.000000e+00> : vector<80x32xf32>
    %31 = tpu.matmul %30, %28, %cst_35 {dimension_numbers = #tpu.dot_dimension_numbers<[1], [0], [0], [1], [0, 0, 1, 1], [], []>} : vector<80x16xf32>, vector<16x32xf32>, vector<80x32xf32> -> vector<80x32xf32>
    %32 = arith.addf %25, %31 : vector<80x32xf32>
    %c0_36 = arith.constant 0 : index
    %c0_37 = arith.constant 0 : index
    %33 = vector.load %arg23[%c0_36, %c0_37] : memref<80x32xf32, #tpu.memory_space<vmem>>, vector<80x32xf32>
    tpu.vector_store %arg23[%c0_36, %c0_37], %32 {strides = array<i32>} : memref<80x32xf32, #tpu.memory_space<vmem>>, vector<80x32xf32>,
    %c0_38 = arith.constant 0 : index
    %c0_39 = arith.constant 0 : index
    %34 = vector.load %arg10[%c0_38, %c0_39] : memref<1x32xf32, #tpu.memory_space<vmem>>, vector<1x32xf32>
    %35 = vector.shape_cast %34 : vector<1x32xf32> to vector<1x32xf32>
    %36 = vector.broadcast %35 : vector<1x32xf32> to vector<56x32xf32>
    %c0_40 = arith.constant 0 : index
    %c0_41 = arith.constant 0 : index
    %37 = vector.load %arg23[%c0_40, %c0_41] : memref<80x32xf32, #tpu.memory_space<vmem>>, vector<56x32xf32>
    %c0_42 = arith.constant 0 : index
    %c0_43 = arith.constant 0 : index
    %c0_44 = arith.constant 0 : index
    %c0_45 = arith.constant 0 : index
    %38 = vector.load %arg8[%c0_42, %c0_43, %c0_44, %c0_45] : memref<3x3x32x32xf32, #tpu.memory_space<vmem>>, vector<1x1x32x32xf32>
    %39 = vector.shape_cast %38 : vector<1x1x32x32xf32> to vector<32x32xf32>
    %cst_46 = arith.constant dense<0.000000e+00> : vector<56x32xf32>
    %40 = tpu.matmul %37, %39, %cst_46 {dimension_numbers = #tpu.dot_dimension_numbers<[1], [0], [0], [1], [0, 0, 1, 1], [], []>} : vector<56x32xf32>, vector<32x32xf32>, vector<56x32xf32> -> vector<56x32xf32>
    %41 = arith.addf %36, %40 : vector<56x32xf32>
    %c0_47 = arith.constant 0 : index
    %c0_48 = arith.constant 0 : index
    %c0_49 = arith.constant 0 : index
    %42 = vector.load %arg2[%c0_47, %c0_48, %c0_49] : memref<1x80x32xf32, #tpu.memory_space<vmem>>, vector<1x56x32xf32>
    %43 = vector.shape_cast %42 : vector<1x56x32xf32> to vector<56x32xf32>
    %c0_50 = arith.constant 0 : index
    %c0_51 = arith.constant 0 : index
    %c0_52 = arith.constant 0 : index
    %c0_53 = arith.constant 0 : index
    %44 = vector.load %arg9[%c0_50, %c0_51, %c0_52, %c0_53] : memref<3x3x32x32xf32, #tpu.memory_space<vmem>>, vector<1x1x32x32xf32>
    %45 = vector.shape_cast %44 : vector<1x1x32x32xf32> to vector<32x32xf32>
    %cst_54 = arith.constant dense<0.000000e+00> : vector<56x32xf32>
    %46 = tpu.matmul %43, %45, %cst_54 {dimension_numbers = #tpu.dot_dimension_numbers<[1], [0], [0], [1], [0, 0, 1, 1], [], []>} : vector<56x32xf32>, vector<32x32xf32>, vector<56x32xf32> -> vector<56x32xf32>
    %47 = arith.addf %41, %46 : vector<56x32xf32>
    %c1_55 = arith.constant 1 : index
    %c0_56 = arith.constant 0 : index
    %48 = vector.load %arg23[%c1_55, %c0_56] : memref<80x32xf32, #tpu.memory_space<vmem>>, vector<56x32xf32>
    %c0_57 = arith.constant 0 : index
    %c1_58 = arith.constant 1 : index
    %c0_59 = arith.constant 0 : index
    %c0_60 = arith.constant 0 : index
    %49 = vector.load %arg8[%c0_57, %c1_58, %c0_59, %c0_60] : memref<3x3x32x32xf32, #tpu.memory_space<vmem>>, vector<1x1x32x32xf32>
    %50 = vector.shape_cast %49 : vector<1x1x32x32xf32> to vector<32x32xf32>
    %cst_61 = arith.constant dense<0.000000e+00> : vector<56x32xf32>
    %51 = tpu.matmul %48, %50, %cst_61 {dimension_numbers = #tpu.dot_dimension_numbers<[1], [0], [0], [1], [0, 0, 1, 1], [], []>} : vector<56x32xf32>, vector<32x32xf32>, vector<56x32xf32> -> vector<56x32xf32>
    %52 = arith.addf %47, %51 : vector<56x32xf32>
    %c0_62 = arith.constant 0 : index
    %c1_63 = arith.constant 1 : index
    %c0_64 = arith.constant 0 : index
    %53 = vector.load %arg2[%c0_62, %c1_63, %c0_64] : memref<1x80x32xf32, #tpu.memory_space<vmem>>, vector<1x56x32xf32>
    %54 = vector.shape_cast %53 : vector<1x56x32xf32> to vector<56x32xf32>
    %c0_65 = arith.constant 0 : index
    %c1_66 = arith.constant 1 : index
    %c0_67 = arith.constant 0 : index
    %c0_68 = arith.constant 0 : index
    %55 = vector.load %arg9[%c0_65, %c1_66, %c0_67, %c0_68] : memref<3x3x32x32xf32, #tpu.memory_space<vmem>>, vector<1x1x32x32xf32>
    %56 = vector.shape_cast %55 : vector<1x1x32x32xf32> to vector<32x32xf32>
    %cst_69 = arith.constant dense<0.000000e+00> : vector<56x32xf32>
    %57 = tpu.matmul %54, %56, %cst_69 {dimension_numbers = #tpu.dot_dimension_numbers<[1], [0], [0], [1], [0, 0, 1, 1], [], []>} : vector<56x32xf32>, vector<32x32xf32>, vector<56x32xf32> -> vector<56x32xf32>
    %58 = arith.addf %52, %57 : vector<56x32xf32>
    %c2_70 = arith.constant 2 : index
    %c0_71 = arith.constant 0 : index
    %59 = vector.load %arg23[%c2_70, %c0_71] : memref<80x32xf32, #tpu.memory_space<vmem>>, vector<56x32xf32>
    %c0_72 = arith.constant 0 : index
    %c2_73 = arith.constant 2 : index
    %c0_74 = arith.constant 0 : index
    %c0_75 = arith.constant 0 : index
    %60 = vector.load %arg8[%c0_72, %c2_73, %c0_74, %c0_75] : memref<3x3x32x32xf32, #tpu.memory_space<vmem>>, vector<1x1x32x32xf32>
    %61 = vector.shape_cast %60 : vector<1x1x32x32xf32> to vector<32x32xf32>
    %cst_76 = arith.constant dense<0.000000e+00> : vector<56x32xf32>
    %62 = tpu.matmul %59, %61, %cst_76 {dimension_numbers = #tpu.dot_dimension_numbers<[1], [0], [0], [1], [0, 0, 1, 1], [], []>} : vector<56x32xf32>, vector<32x32xf32>, vector<56x32xf32> -> vector<56x32xf32>
    %63 = arith.addf %58, %62 : vector<56x32xf32>
    %c0_77 = arith.constant 0 : index
    %c2_78 = arith.constant 2 : index
    %c0_79 = arith.constant 0 : index
    %64 = vector.load %arg2[%c0_77, %c2_78, %c0_79] : memref<1x80x32xf32, #tpu.memory_space<vmem>>, vector<1x56x32xf32>
    %65 = vector.shape_cast %64 : vector<1x56x32xf32> to vector<56x32xf32>
    %c0_80 = arith.constant 0 : index
    %c2_81 = arith.constant 2 : index
    %c0_82 = arith.constant 0 : index
    %c0_83 = arith.constant 0 : index
    %66 = vector.load %arg9[%c0_80, %c2_81, %c0_82, %c0_83] : memref<3x3x32x32xf32, #tpu.memory_space<vmem>>, vector<1x1x32x32xf32>
    %67 = vector.shape_cast %66 : vector<1x1x32x32xf32> to vector<32x32xf32>
    %cst_84 = arith.constant dense<0.000000e+00> : vector<56x32xf32>
    %68 = tpu.matmul %65, %67, %cst_84 {dimension_numbers = #tpu.dot_dimension_numbers<[1], [0], [0], [1], [0, 0, 1, 1], [], []>} : vector<56x32xf32>, vector<32x32xf32>, vector<56x32xf32> -> vector<56x32xf32>
    %69 = arith.addf %63, %68 : vector<56x32xf32>
    %c8 = arith.constant 8 : index
    %c0_85 = arith.constant 0 : index
    %70 = vector.load %arg23[%c8, %c0_85] : memref<80x32xf32, #tpu.memory_space<vmem>>, vector<56x32xf32>
    %c1_86 = arith.constant 1 : index
    %c0_87 = arith.constant 0 : index
    %c0_88 = arith.constant 0 : index
    %c0_89 = arith.constant 0 : index
    %71 = vector.load %arg8[%c1_86, %c0_87, %c0_88, %c0_89] : memref<3x3x32x32xf32, #tpu.memory_space<vmem>>, vector<1x1x32x32xf32>
    %72 = vector.shape_cast %71 : vector<1x1x32x32xf32> to vector<32x32xf32>
    %cst_90 = arith.constant dense<0.000000e+00> : vector<56x32xf32>
    %73 = tpu.matmul %70, %72, %cst_90 {dimension_numbers = #tpu.dot_dimension_numbers<[1], [0], [0], [1], [0, 0, 1, 1], [], []>} : vector<56x32xf32>, vector<32x32xf32>, vector<56x32xf32> -> vector<56x32xf32>
    %74 = arith.addf %69, %73 : vector<56x32xf32>
    %c0_91 = arith.constant 0 : index
    %c8_92 = arith.constant 8 : index
    %c0_93 = arith.constant 0 : index
    %75 = vector.load %arg2[%c0_91, %c8_92, %c0_93] : memref<1x80x32xf32, #tpu.memory_space<vmem>>, vector<1x56x32xf32>
    %76 = vector.shape_cast %75 : vector<1x56x32xf32> to vector<56x32xf32>
    %c1_94 = arith.constant 1 : index
    %c0_95 = arith.constant 0 : index
    %c0_96 = arith.constant 0 : index
    %c0_97 = arith.constant 0 : index
    %77 = vector.load %arg9[%c1_94, %c0_95, %c0_96, %c0_97] : memref<3x3x32x32xf32, #tpu.memory_space<vmem>>, vector<1x1x32x32xf32>
    %78 = vector.shape_cast %77 : vector<1x1x32x32xf32> to vector<32x32xf32>
    %cst_98 = arith.constant dense<0.000000e+00> : vector<56x32xf32>
    %79 = tpu.matmul %76, %78, %cst_98 {dimension_numbers = #tpu.dot_dimension_numbers<[1], [0], [0], [1], [0, 0, 1, 1], [], []>} : vector<56x32xf32>, vector<32x32xf32>, vector<56x32xf32> -> vector<56x32xf32>
    %80 = arith.addf %74, %79 : vector<56x32xf32>
    %c9 = arith.constant 9 : index
    %c0_99 = arith.constant 0 : index
    %81 = vector.load %arg23[%c9, %c0_99] : memref<80x32xf32, #tpu.memory_space<vmem>>, vector<56x32xf32>
    %c1_100 = arith.constant 1 : index
    %c1_101 = arith.constant 1 : index
    %c0_102 = arith.constant 0 : index
    %c0_103 = arith.constant 0 : index
    %82 = vector.load %arg8[%c1_100, %c1_101, %c0_102, %c0_103] : memref<3x3x32x32xf32, #tpu.memory_space<vmem>>, vector<1x1x32x32xf32>
    %83 = vector.shape_cast %82 : vector<1x1x32x32xf32> to vector<32x32xf32>
    %cst_104 = arith.constant dense<0.000000e+00> : vector<56x32xf32>
    %84 = tpu.matmul %81, %83, %cst_104 {dimension_numbers = #tpu.dot_dimension_numbers<[1], [0], [0], [1], [0, 0, 1, 1], [], []>} : vector<56x32xf32>, vector<32x32xf32>, vector<56x32xf32> -> vector<56x32xf32>
    %85 = arith.addf %80, %84 : vector<56x32xf32>
    %c0_105 = arith.constant 0 : index
    %c9_106 = arith.constant 9 : index
    %c0_107 = arith.constant 0 : index
    %86 = vector.load %arg2[%c0_105, %c9_106, %c0_107] : memref<1x80x32xf32, #tpu.memory_space<vmem>>, vector<1x56x32xf32>
    %87 = vector.shape_cast %86 : vector<1x56x32xf32> to vector<56x32xf32>
    %c1_108 = arith.constant 1 : index
    %c1_109 = arith.constant 1 : index
    %c0_110 = arith.constant 0 : index
    %c0_111 = arith.constant 0 : index
    %88 = vector.load %arg9[%c1_108, %c1_109, %c0_110, %c0_111] : memref<3x3x32x32xf32, #tpu.memory_space<vmem>>, vector<1x1x32x32xf32>
    %89 = vector.shape_cast %88 : vector<1x1x32x32xf32> to vector<32x32xf32>
    %cst_112 = arith.constant dense<0.000000e+00> : vector<56x32xf32>
    %90 = tpu.matmul %87, %89, %cst_112 {dimension_numbers = #tpu.dot_dimension_numbers<[1], [0], [0], [1], [0, 0, 1, 1], [], []>} : vector<56x32xf32>, vector<32x32xf32>, vector<56x32xf32> -> vector<56x32xf32>
    %91 = arith.addf %85, %90 : vector<56x32xf32>
    %c10 = arith.constant 10 : index
    %c0_113 = arith.constant 0 : index
    %92 = vector.load %arg23[%c10, %c0_113] : memref<80x32xf32, #tpu.memory_space<vmem>>, vector<56x32xf32>
    %c1_114 = arith.constant 1 : index
    %c2_115 = arith.constant 2 : index
    %c0_116 = arith.constant 0 : index
    %c0_117 = arith.constant 0 : index
    %93 = vector.load %arg8[%c1_114, %c2_115, %c0_116, %c0_117] : memref<3x3x32x32xf32, #tpu.memory_space<vmem>>, vector<1x1x32x32xf32>
    %94 = vector.shape_cast %93 : vector<1x1x32x32xf32> to vector<32x32xf32>
    %cst_118 = arith.constant dense<0.000000e+00> : vector<56x32xf32>
    %95 = tpu.matmul %92, %94, %cst_118 {dimension_numbers = #tpu.dot_dimension_numbers<[1], [0], [0], [1], [0, 0, 1, 1], [], []>} : vector<56x32xf32>, vector<32x32xf32>, vector<56x32xf32> -> vector<56x32xf32>
    %96 = arith.addf %91, %95 : vector<56x32xf32>
    %c0_119 = arith.constant 0 : index
    %c10_120 = arith.constant 10 : index
    %c0_121 = arith.constant 0 : index
    %97 = vector.load %arg2[%c0_119, %c10_120, %c0_121] : memref<1x80x32xf32, #tpu.memory_space<vmem>>, vector<1x56x32xf32>
    %98 = vector.shape_cast %97 : vector<1x56x32xf32> to vector<56x32xf32>
    %c1_122 = arith.constant 1 : index
    %c2_123 = arith.constant 2 : index
    %c0_124 = arith.constant 0 : index
    %c0_125 = arith.constant 0 : index
    %99 = vector.load %arg9[%c1_122, %c2_123, %c0_124, %c0_125] : memref<3x3x32x32xf32, #tpu.memory_space<vmem>>, vector<1x1x32x32xf32>
    %100 = vector.shape_cast %99 : vector<1x1x32x32xf32> to vector<32x32xf32>
    %cst_126 = arith.constant dense<0.000000e+00> : vector<56x32xf32>
    %101 = tpu.matmul %98, %100, %cst_126 {dimension_numbers = #tpu.dot_dimension_numbers<[1], [0], [0], [1], [0, 0, 1, 1], [], []>} : vector<56x32xf32>, vector<32x32xf32>, vector<56x32xf32> -> vector<56x32xf32>
    %102 = arith.addf %96, %101 : vector<56x32xf32>
    %c16 = arith.constant 16 : index
    %c0_127 = arith.constant 0 : index
    %103 = vector.load %arg23[%c16, %c0_127] : memref<80x32xf32, #tpu.memory_space<vmem>>, vector<56x32xf32>
    %c2_128 = arith.constant 2 : index
    %c0_129 = arith.constant 0 : index
    %c0_130 = arith.constant 0 : index
    %c0_131 = arith.constant 0 : index
    %104 = vector.load %arg8[%c2_128, %c0_129, %c0_130, %c0_131] : memref<3x3x32x32xf32, #tpu.memory_space<vmem>>, vector<1x1x32x32xf32>
    %105 = vector.shape_cast %104 : vector<1x1x32x32xf32> to vector<32x32xf32>
    %cst_132 = arith.constant dense<0.000000e+00> : vector<56x32xf32>
    %106 = tpu.matmul %103, %105, %cst_132 {dimension_numbers = #tpu.dot_dimension_numbers<[1], [0], [0], [1], [0, 0, 1, 1], [], []>} : vector<56x32xf32>, vector<32x32xf32>, vector<56x32xf32> -> vector<56x32xf32>
    %107 = arith.addf %102, %106 : vector<56x32xf32>
    %c0_133 = arith.constant 0 : index
    %c16_134 = arith.constant 16 : index
    %c0_135 = arith.constant 0 : index
    %108 = vector.load %arg2[%c0_133, %c16_134, %c0_135] : memref<1x80x32xf32, #tpu.memory_space<vmem>>, vector<1x56x32xf32>
    %109 = vector.shape_cast %108 : vector<1x56x32xf32> to vector<56x32xf32>
    %c2_136 = arith.constant 2 : index
    %c0_137 = arith.constant 0 : index
    %c0_138 = arith.constant 0 : index
    %c0_139 = arith.constant 0 : index
    %110 = vector.load %arg9[%c2_136, %c0_137, %c0_138, %c0_139] : memref<3x3x32x32xf32, #tpu.memory_space<vmem>>, vector<1x1x32x32xf32>
    %111 = vector.shape_cast %110 : vector<1x1x32x32xf32> to vector<32x32xf32>
    %cst_140 = arith.constant dense<0.000000e+00> : vector<56x32xf32>
    %112 = tpu.matmul %109, %111, %cst_140 {dimension_numbers = #tpu.dot_dimension_numbers<[1], [0], [0], [1], [0, 0, 1, 1], [], []>} : vector<56x32xf32>, vector<32x32xf32>, vector<56x32xf32> -> vector<56x32xf32>
    %113 = arith.addf %107, %112 : vector<56x32xf32>
    %c17 = arith.constant 17 : index
    %c0_141 = arith.constant 0 : index
    %114 = vector.load %arg23[%c17, %c0_141] : memref<80x32xf32, #tpu.memory_space<vmem>>, vector<56x32xf32>
    %c2_142 = arith.constant 2 : index
    %c1_143 = arith.constant 1 : index
    %c0_144 = arith.constant 0 : index
    %c0_145 = arith.constant 0 : index
    %115 = vector.load %arg8[%c2_142, %c1_143, %c0_144, %c0_145] : memref<3x3x32x32xf32, #tpu.memory_space<vmem>>, vector<1x1x32x32xf32>
    %116 = vector.shape_cast %115 : vector<1x1x32x32xf32> to vector<32x32xf32>
    %cst_146 = arith.constant dense<0.000000e+00> : vector<56x32xf32>
    %117 = tpu.matmul %114, %116, %cst_146 {dimension_numbers = #tpu.dot_dimension_numbers<[1], [0], [0], [1], [0, 0, 1, 1], [], []>} : vector<56x32xf32>, vector<32x32xf32>, vector<56x32xf32> -> vector<56x32xf32>
    %118 = arith.addf %113, %117 : vector<56x32xf32>
    %c0_147 = arith.constant 0 : index
    %c17_148 = arith.constant 17 : index
    %c0_149 = arith.constant 0 : index
    %119 = vector.load %arg2[%c0_147, %c17_148, %c0_149] : memref<1x80x32xf32, #tpu.memory_space<vmem>>, vector<1x56x32xf32>
    %120 = vector.shape_cast %119 : vector<1x56x32xf32> to vector<56x32xf32>
    %c2_150 = arith.constant 2 : index
    %c1_151 = arith.constant 1 : index
    %c0_152 = arith.constant 0 : index
    %c0_153 = arith.constant 0 : index
    %121 = vector.load %arg9[%c2_150, %c1_151, %c0_152, %c0_153] : memref<3x3x32x32xf32, #tpu.memory_space<vmem>>, vector<1x1x32x32xf32>
    %122 = vector.shape_cast %121 : vector<1x1x32x32xf32> to vector<32x32xf32>
    %cst_154 = arith.constant dense<0.000000e+00> : vector<56x32xf32>
    %123 = tpu.matmul %120, %122, %cst_154 {dimension_numbers = #tpu.dot_dimension_numbers<[1], [0], [0], [1], [0, 0, 1, 1], [], []>} : vector<56x32xf32>, vector<32x32xf32>, vector<56x32xf32> -> vector<56x32xf32>
    %124 = arith.addf %118, %123 : vector<56x32xf32>
    %c18 = arith.constant 18 : index
    %c0_155 = arith.constant 0 : index
    %125 = vector.load %arg23[%c18, %c0_155] : memref<80x32xf32, #tpu.memory_space<vmem>>, vector<56x32xf32>
    %c2_156 = arith.constant 2 : index
    %c2_157 = arith.constant 2 : index
    %c0_158 = arith.constant 0 : index
    %c0_159 = arith.constant 0 : index
    %126 = vector.load %arg8[%c2_156, %c2_157, %c0_158, %c0_159] : memref<3x3x32x32xf32, #tpu.memory_space<vmem>>, vector<1x1x32x32xf32>
    %127 = vector.shape_cast %126 : vector<1x1x32x32xf32> to vector<32x32xf32>
    %cst_160 = arith.constant dense<0.000000e+00> : vector<56x32xf32>
    %128 = tpu.matmul %125, %127, %cst_160 {dimension_numbers = #tpu.dot_dimension_numbers<[1], [0], [0], [1], [0, 0, 1, 1], [], []>} : vector<56x32xf32>, vector<32x32xf32>, vector<56x32xf32> -> vector<56x32xf32>
    %129 = arith.addf %124, %128 : vector<56x32xf32>
    %c0_161 = arith.constant 0 : index
    %c18_162 = arith.constant 18 : index
    %c0_163 = arith.constant 0 : index
    %130 = vector.load %arg2[%c0_161, %c18_162, %c0_163] : memref<1x80x32xf32, #tpu.memory_space<vmem>>, vector<1x56x32xf32>
    %131 = vector.shape_cast %130 : vector<1x56x32xf32> to vector<56x32xf32>
    %c2_164 = arith.constant 2 : index
    %c2_165 = arith.constant 2 : index
    %c0_166 = arith.constant 0 : index
    %c0_167 = arith.constant 0 : index
    %132 = vector.load %arg9[%c2_164, %c2_165, %c0_166, %c0_167] : memref<3x3x32x32xf32, #tpu.memory_space<vmem>>, vector<1x1x32x32xf32>
    %133 = vector.shape_cast %132 : vector<1x1x32x32xf32> to vector<32x32xf32>
    %cst_168 = arith.constant dense<0.000000e+00> : vector<56x32xf32>
    %134 = tpu.matmul %131, %133, %cst_168 {dimension_numbers = #tpu.dot_dimension_numbers<[1], [0], [0], [1], [0, 0, 1, 1], [], []>} : vector<56x32xf32>, vector<32x32xf32>, vector<56x32xf32> -> vector<56x32xf32>
    %135 = arith.addf %129, %134 : vector<56x32xf32>
    %cst_169 = arith.constant 0.000000e+00 : f32
    %136 = vector.broadcast %cst_169 : f32 to vector<56x32xf32>
    %137 = arith.maximumf %135, %136 : vector<56x32xf32>
    %c0_170 = arith.constant 0 : index
    %c0_171 = arith.constant 0 : index
    %138 = vector.load %arg24[%c0_170, %c0_171] : memref<56x32xf32, #tpu.memory_space<vmem>>, vector<56x32xf32>
    tpu.vector_store %arg24[%c0_170, %c0_171], %137 {strides = array<i32>} : memref<56x32xf32, #tpu.memory_space<vmem>>, vector<56x32xf32>,
    %c0_172 = arith.constant 0 : index
    %c0_173 = arith.constant 0 : index
    %139 = vector.load %arg12[%c0_172, %c0_173] : memref<1x32xf32, #tpu.memory_space<vmem>>, vector<1x32xf32>
    %140 = vector.shape_cast %139 : vector<1x32xf32> to vector<1x32xf32>
    %141 = vector.broadcast %140 : vector<1x32xf32> to vector<32x32xf32>
    %c0_174 = arith.constant 0 : index
    %c0_175 = arith.constant 0 : index
    %142 = vector.load %arg24[%c0_174, %c0_175] : memref<56x32xf32, #tpu.memory_space<vmem>>, vector<32x32xf32>
    %c0_176 = arith.constant 0 : index
    %c0_177 = arith.constant 0 : index
    %c0_178 = arith.constant 0 : index
    %c0_179 = arith.constant 0 : index
    %143 = vector.load %arg11[%c0_176, %c0_177, %c0_178, %c0_179] : memref<3x3x32x32xf32, #tpu.memory_space<vmem>>, vector<1x1x32x32xf32>
    %144 = vector.shape_cast %143 : vector<1x1x32x32xf32> to vector<32x32xf32>
    %cst_180 = arith.constant dense<0.000000e+00> : vector<32x32xf32>
    %145 = tpu.matmul %142, %144, %cst_180 {dimension_numbers = #tpu.dot_dimension_numbers<[1], [0], [0], [1], [0, 0, 1, 1], [], []>} : vector<32x32xf32>, vector<32x32xf32>, vector<32x32xf32> -> vector<32x32xf32>
    %146 = arith.addf %141, %145 : vector<32x32xf32>
    %c1_181 = arith.constant 1 : index
    %c0_182 = arith.constant 0 : index
    %147 = vector.load %arg24[%c1_181, %c0_182] : memref<56x32xf32, #tpu.memory_space<vmem>>, vector<32x32xf32>
    %c0_183 = arith.constant 0 : index
    %c1_184 = arith.constant 1 : index
    %c0_185 = arith.constant 0 : index
    %c0_186 = arith.constant 0 : index
    %148 = vector.load %arg11[%c0_183, %c1_184, %c0_185, %c0_186] : memref<3x3x32x32xf32, #tpu.memory_space<vmem>>, vector<1x1x32x32xf32>
    %149 = vector.shape_cast %148 : vector<1x1x32x32xf32> to vector<32x32xf32>
    %cst_187 = arith.constant dense<0.000000e+00> : vector<32x32xf32>
    %150 = tpu.matmul %147, %149, %cst_187 {dimension_numbers = #tpu.dot_dimension_numbers<[1], [0], [0], [1], [0, 0, 1, 1], [], []>} : vector<32x32xf32>, vector<32x32xf32>, vector<32x32xf32> -> vector<32x32xf32>
    %151 = arith.addf %146, %150 : vector<32x32xf32>
    %c2_188 = arith.constant 2 : index
    %c0_189 = arith.constant 0 : index
    %152 = vector.load %arg24[%c2_188, %c0_189] : memref<56x32xf32, #tpu.memory_space<vmem>>, vector<32x32xf32>
    %c0_190 = arith.constant 0 : index
    %c2_191 = arith.constant 2 : index
    %c0_192 = arith.constant 0 : index
    %c0_193 = arith.constant 0 : index
    %153 = vector.load %arg11[%c0_190, %c2_191, %c0_192, %c0_193] : memref<3x3x32x32xf32, #tpu.memory_space<vmem>>, vector<1x1x32x32xf32>
    %154 = vector.shape_cast %153 : vector<1x1x32x32xf32> to vector<32x32xf32>
    %cst_194 = arith.constant dense<0.000000e+00> : vector<32x32xf32>
    %155 = tpu.matmul %152, %154, %cst_194 {dimension_numbers = #tpu.dot_dimension_numbers<[1], [0], [0], [1], [0, 0, 1, 1], [], []>} : vector<32x32xf32>, vector<32x32xf32>, vector<32x32xf32> -> vector<32x32xf32>
    %156 = arith.addf %151, %155 : vector<32x32xf32>
    %c8_195 = arith.constant 8 : index
    %c0_196 = arith.constant 0 : index
    %157 = vector.load %arg24[%c8_195, %c0_196] : memref<56x32xf32, #tpu.memory_space<vmem>>, vector<32x32xf32>
    %c1_197 = arith.constant 1 : index
    %c0_198 = arith.constant 0 : index
    %c0_199 = arith.constant 0 : index
    %c0_200 = arith.constant 0 : index
    %158 = vector.load %arg11[%c1_197, %c0_198, %c0_199, %c0_200] : memref<3x3x32x32xf32, #tpu.memory_space<vmem>>, vector<1x1x32x32xf32>
    %159 = vector.shape_cast %158 : vector<1x1x32x32xf32> to vector<32x32xf32>
    %cst_201 = arith.constant dense<0.000000e+00> : vector<32x32xf32>
    %160 = tpu.matmul %157, %159, %cst_201 {dimension_numbers = #tpu.dot_dimension_numbers<[1], [0], [0], [1], [0, 0, 1, 1], [], []>} : vector<32x32xf32>, vector<32x32xf32>, vector<32x32xf32> -> vector<32x32xf32>
    %161 = arith.addf %156, %160 : vector<32x32xf32>
    %c9_202 = arith.constant 9 : index
    %c0_203 = arith.constant 0 : index
    %162 = vector.load %arg24[%c9_202, %c0_203] : memref<56x32xf32, #tpu.memory_space<vmem>>, vector<32x32xf32>
    %c1_204 = arith.constant 1 : index
    %c1_205 = arith.constant 1 : index
    %c0_206 = arith.constant 0 : index
    %c0_207 = arith.constant 0 : index
    %163 = vector.load %arg11[%c1_204, %c1_205, %c0_206, %c0_207] : memref<3x3x32x32xf32, #tpu.memory_space<vmem>>, vector<1x1x32x32xf32>
    %164 = vector.shape_cast %163 : vector<1x1x32x32xf32> to vector<32x32xf32>
    %cst_208 = arith.constant dense<0.000000e+00> : vector<32x32xf32>
    %165 = tpu.matmul %162, %164, %cst_208 {dimension_numbers = #tpu.dot_dimension_numbers<[1], [0], [0], [1], [0, 0, 1, 1], [], []>} : vector<32x32xf32>, vector<32x32xf32>, vector<32x32xf32> -> vector<32x32xf32>
    %166 = arith.addf %161, %165 : vector<32x32xf32>
    %c10_209 = arith.constant 10 : index
    %c0_210 = arith.constant 0 : index
    %167 = vector.load %arg24[%c10_209, %c0_210] : memref<56x32xf32, #tpu.memory_space<vmem>>, vector<32x32xf32>
    %c1_211 = arith.constant 1 : index
    %c2_212 = arith.constant 2 : index
    %c0_213 = arith.constant 0 : index
    %c0_214 = arith.constant 0 : index
    %168 = vector.load %arg11[%c1_211, %c2_212, %c0_213, %c0_214] : memref<3x3x32x32xf32, #tpu.memory_space<vmem>>, vector<1x1x32x32xf32>
    %169 = vector.shape_cast %168 : vector<1x1x32x32xf32> to vector<32x32xf32>
    %cst_215 = arith.constant dense<0.000000e+00> : vector<32x32xf32>
    %170 = tpu.matmul %167, %169, %cst_215 {dimension_numbers = #tpu.dot_dimension_numbers<[1], [0], [0], [1], [0, 0, 1, 1], [], []>} : vector<32x32xf32>, vector<32x32xf32>, vector<32x32xf32> -> vector<32x32xf32>
    %171 = arith.addf %166, %170 : vector<32x32xf32>
    %c16_216 = arith.constant 16 : index
    %c0_217 = arith.constant 0 : index
    %172 = vector.load %arg24[%c16_216, %c0_217] : memref<56x32xf32, #tpu.memory_space<vmem>>, vector<32x32xf32>
    %c2_218 = arith.constant 2 : index
    %c0_219 = arith.constant 0 : index
    %c0_220 = arith.constant 0 : index
    %c0_221 = arith.constant 0 : index
    %173 = vector.load %arg11[%c2_218, %c0_219, %c0_220, %c0_221] : memref<3x3x32x32xf32, #tpu.memory_space<vmem>>, vector<1x1x32x32xf32>
    %174 = vector.shape_cast %173 : vector<1x1x32x32xf32> to vector<32x32xf32>
    %cst_222 = arith.constant dense<0.000000e+00> : vector<32x32xf32>
    %175 = tpu.matmul %172, %174, %cst_222 {dimension_numbers = #tpu.dot_dimension_numbers<[1], [0], [0], [1], [0, 0, 1, 1], [], []>} : vector<32x32xf32>, vector<32x32xf32>, vector<32x32xf32> -> vector<32x32xf32>
    %176 = arith.addf %171, %175 : vector<32x32xf32>
    %c17_223 = arith.constant 17 : index
    %c0_224 = arith.constant 0 : index
    %177 = vector.load %arg24[%c17_223, %c0_224] : memref<56x32xf32, #tpu.memory_space<vmem>>, vector<32x32xf32>
    %c2_225 = arith.constant 2 : index
    %c1_226 = arith.constant 1 : index
    %c0_227 = arith.constant 0 : index
    %c0_228 = arith.constant 0 : index
    %178 = vector.load %arg11[%c2_225, %c1_226, %c0_227, %c0_228] : memref<3x3x32x32xf32, #tpu.memory_space<vmem>>, vector<1x1x32x32xf32>
    %179 = vector.shape_cast %178 : vector<1x1x32x32xf32> to vector<32x32xf32>
    %cst_229 = arith.constant dense<0.000000e+00> : vector<32x32xf32>
    %180 = tpu.matmul %177, %179, %cst_229 {dimension_numbers = #tpu.dot_dimension_numbers<[1], [0], [0], [1], [0, 0, 1, 1], [], []>} : vector<32x32xf32>, vector<32x32xf32>, vector<32x32xf32> -> vector<32x32xf32>
    %181 = arith.addf %176, %180 : vector<32x32xf32>
    %c18_230 = arith.constant 18 : index
    %c0_231 = arith.constant 0 : index
    %182 = vector.load %arg24[%c18_230, %c0_231] : memref<56x32xf32, #tpu.memory_space<vmem>>, vector<32x32xf32>
    %c2_232 = arith.constant 2 : index
    %c2_233 = arith.constant 2 : index
    %c0_234 = arith.constant 0 : index
    %c0_235 = arith.constant 0 : index
    %183 = vector.load %arg11[%c2_232, %c2_233, %c0_234, %c0_235] : memref<3x3x32x32xf32, #tpu.memory_space<vmem>>, vector<1x1x32x32xf32>
    %184 = vector.shape_cast %183 : vector<1x1x32x32xf32> to vector<32x32xf32>
    %cst_236 = arith.constant dense<0.000000e+00> : vector<32x32xf32>
    %185 = tpu.matmul %182, %184, %cst_236 {dimension_numbers = #tpu.dot_dimension_numbers<[1], [0], [0], [1], [0, 0, 1, 1], [], []>} : vector<32x32xf32>, vector<32x32xf32>, vector<32x32xf32> -> vector<32x32xf32>
    %186 = arith.addf %181, %185 : vector<32x32xf32>
    %c0_237 = arith.constant 0 : index
    %c0_238 = arith.constant 0 : index
    %187 = vector.load %arg5[%c0_237, %c0_238] : memref<16x32xf32, #tpu.memory_space<vmem>>, vector<16x32xf32>
    %cst_239 = arith.constant dense<0.000000e+00> : vector<16x32xf32>
    %188 = tpu.matmul %187, %186, %cst_239 {dimension_numbers = #tpu.dot_dimension_numbers<[1], [0], [0], [1], [0, 0, 1, 1], [], []>} : vector<16x32xf32>, vector<32x32xf32>, vector<16x32xf32> -> vector<16x32xf32>
    %c0_240 = arith.constant 0 : index
    %c0_241 = arith.constant 0 : index
    %189 = vector.load %arg16[%c0_240, %c0_241] : memref<1x16xf32, #tpu.memory_space<vmem>>, vector<1x16xf32>
    %190 = vector.shape_cast %189 : vector<1x16xf32> to vector<1x16xf32>
    %191 = vector.broadcast %190 : vector<1x16xf32> to vector<80x16xf32>
    %c0_242 = arith.constant 0 : index
    %c0_243 = arith.constant 0 : index
    %c0_244 = arith.constant 0 : index
    %c0_245 = arith.constant 0 : index
    %192 = vector.load %arg15[%c0_242, %c0_243, %c0_244, %c0_245] : memref<2x2x32x16xf32, #tpu.memory_space<vmem>>, vector<1x1x32x16xf32>
    %193 = vector.shape_cast %192 : vector<1x1x32x16xf32> to vector<32x16xf32>
    %cst_246 = arith.constant dense<0.000000e+00> : vector<16x16xf32>
    %194 = tpu.matmul %188, %193, %cst_246 {dimension_numbers = #tpu.dot_dimension_numbers<[1], [0], [0], [1], [0, 0, 1, 1], [], []>} : vector<16x32xf32>, vector<32x16xf32>, vector<16x16xf32> -> vector<16x16xf32>
    %c0_247 = arith.constant 0 : index
    %c0_248 = arith.constant 0 : index
    %c0_249 = arith.constant 0 : index
    %195 = vector.load %arg13[%c0_247, %c0_248, %c0_249] : memref<4x80x16xf32, #tpu.memory_space<vmem>>, vector<1x80x16xf32>
    %196 = vector.shape_cast %195 : vector<1x80x16xf32> to vector<80x16xf32>
    %cst_250 = arith.constant dense<0.000000e+00> : vector<80x16xf32>
    %197 = tpu.matmul %196, %194, %cst_250 {dimension_numbers = #tpu.dot_dimension_numbers<[1], [0], [0], [1], [0, 0, 1, 1], [], []>} : vector<80x16xf32>, vector<16x16xf32>, vector<80x16xf32> -> vector<80x16xf32>
    %198 = arith.addf %191, %197 : vector<80x16xf32>
    %c0_251 = arith.constant 0 : index
    %c1_252 = arith.constant 1 : index
    %c0_253 = arith.constant 0 : index
    %c0_254 = arith.constant 0 : index
    %199 = vector.load %arg15[%c0_251, %c1_252, %c0_253, %c0_254] : memref<2x2x32x16xf32, #tpu.memory_space<vmem>>, vector<1x1x32x16xf32>
    %200 = vector.shape_cast %199 : vector<1x1x32x16xf32> to vector<32x16xf32>
    %cst_255 = arith.constant dense<0.000000e+00> : vector<16x16xf32>
    %201 = tpu.matmul %188, %200, %cst_255 {dimension_numbers = #tpu.dot_dimension_numbers<[1], [0], [0], [1], [0, 0, 1, 1], [], []>} : vector<16x32xf32>, vector<32x16xf32>, vector<16x16xf32> -> vector<16x16xf32>
    %c1_256 = arith.constant 1 : index
    %c0_257 = arith.constant 0 : index
    %c0_258 = arith.constant 0 : index
    %202 = vector.load %arg13[%c1_256, %c0_257, %c0_258] : memref<4x80x16xf32, #tpu.memory_space<vmem>>, vector<1x80x16xf32>
    %203 = vector.shape_cast %202 : vector<1x80x16xf32> to vector<80x16xf32>
    %cst_259 = arith.constant dense<0.000000e+00> : vector<80x16xf32>
    %204 = tpu.matmul %203, %201, %cst_259 {dimension_numbers = #tpu.dot_dimension_numbers<[1], [0], [0], [1], [0, 0, 1, 1], [], []>} : vector<80x16xf32>, vector<16x16xf32>, vector<80x16xf32> -> vector<80x16xf32>
    %205 = arith.addf %198, %204 : vector<80x16xf32>
    %c1_260 = arith.constant 1 : index
    %c0_261 = arith.constant 0 : index
    %c0_262 = arith.constant 0 : index
    %c0_263 = arith.constant 0 : index
    %206 = vector.load %arg15[%c1_260, %c0_261, %c0_262, %c0_263] : memref<2x2x32x16xf32, #tpu.memory_space<vmem>>, vector<1x1x32x16xf32>
    %207 = vector.shape_cast %206 : vector<1x1x32x16xf32> to vector<32x16xf32>
    %cst_264 = arith.constant dense<0.000000e+00> : vector<16x16xf32>
    %208 = tpu.matmul %188, %207, %cst_264 {dimension_numbers = #tpu.dot_dimension_numbers<[1], [0], [0], [1], [0, 0, 1, 1], [], []>} : vector<16x32xf32>, vector<32x16xf32>, vector<16x16xf32> -> vector<16x16xf32>
    %c2_265 = arith.constant 2 : index
    %c0_266 = arith.constant 0 : index
    %c0_267 = arith.constant 0 : index
    %209 = vector.load %arg13[%c2_265, %c0_266, %c0_267] : memref<4x80x16xf32, #tpu.memory_space<vmem>>, vector<1x80x16xf32>
    %210 = vector.shape_cast %209 : vector<1x80x16xf32> to vector<80x16xf32>
    %cst_268 = arith.constant dense<0.000000e+00> : vector<80x16xf32>
    %211 = tpu.matmul %210, %208, %cst_268 {dimension_numbers = #tpu.dot_dimension_numbers<[1], [0], [0], [1], [0, 0, 1, 1], [], []>} : vector<80x16xf32>, vector<16x16xf32>, vector<80x16xf32> -> vector<80x16xf32>
    %212 = arith.addf %205, %211 : vector<80x16xf32>
    %c1_269 = arith.constant 1 : index
    %c1_270 = arith.constant 1 : index
    %c0_271 = arith.constant 0 : index
    %c0_272 = arith.constant 0 : index
    %213 = vector.load %arg15[%c1_269, %c1_270, %c0_271, %c0_272] : memref<2x2x32x16xf32, #tpu.memory_space<vmem>>, vector<1x1x32x16xf32>
    %214 = vector.shape_cast %213 : vector<1x1x32x16xf32> to vector<32x16xf32>
    %cst_273 = arith.constant dense<0.000000e+00> : vector<16x16xf32>
    %215 = tpu.matmul %188, %214, %cst_273 {dimension_numbers = #tpu.dot_dimension_numbers<[1], [0], [0], [1], [0, 0, 1, 1], [], []>} : vector<16x32xf32>, vector<32x16xf32>, vector<16x16xf32> -> vector<16x16xf32>
    %c3_274 = arith.constant 3 : index
    %c0_275 = arith.constant 0 : index
    %c0_276 = arith.constant 0 : index
    %216 = vector.load %arg13[%c3_274, %c0_275, %c0_276] : memref<4x80x16xf32, #tpu.memory_space<vmem>>, vector<1x80x16xf32>
    %217 = vector.shape_cast %216 : vector<1x80x16xf32> to vector<80x16xf32>
    %cst_277 = arith.constant dense<0.000000e+00> : vector<80x16xf32>
    %218 = tpu.matmul %217, %215, %cst_277 {dimension_numbers = #tpu.dot_dimension_numbers<[1], [0], [0], [1], [0, 0, 1, 1], [], []>} : vector<80x16xf32>, vector<16x16xf32>, vector<80x16xf32> -> vector<80x16xf32>
    %219 = arith.addf %212, %218 : vector<80x16xf32>
    %c0_278 = arith.constant 0 : index
    %c0_279 = arith.constant 0 : index
    %220 = vector.load %arg25[%c0_278, %c0_279] : memref<80x16xf32, #tpu.memory_space<vmem>>, vector<80x16xf32>
    tpu.vector_store %arg25[%c0_278, %c0_279], %219 {strides = array<i32>} : memref<80x16xf32, #tpu.memory_space<vmem>>, vector<80x16xf32>,
    %c0_280 = arith.constant 0 : index
    %c0_281 = arith.constant 0 : index
    %221 = vector.load %arg19[%c0_280, %c0_281] : memref<1x16xf32, #tpu.memory_space<vmem>>, vector<1x16xf32>
    %222 = vector.shape_cast %221 : vector<1x16xf32> to vector<1x16xf32>
    %223 = vector.broadcast %222 : vector<1x16xf32> to vector<56x16xf32>
    %c0_282 = arith.constant 0 : index
    %c0_283 = arith.constant 0 : index
    %224 = vector.load %arg25[%c0_282, %c0_283] : memref<80x16xf32, #tpu.memory_space<vmem>>, vector<56x16xf32>
    %c0_284 = arith.constant 0 : index
    %c0_285 = arith.constant 0 : index
    %c0_286 = arith.constant 0 : index
    %c0_287 = arith.constant 0 : index
    %225 = vector.load %arg17[%c0_284, %c0_285, %c0_286, %c0_287] : memref<3x3x16x16xf32, #tpu.memory_space<vmem>>, vector<1x1x16x16xf32>
    %226 = vector.shape_cast %225 : vector<1x1x16x16xf32> to vector<16x16xf32>
    %cst_288 = arith.constant dense<0.000000e+00> : vector<56x16xf32>
    %227 = tpu.matmul %224, %226, %cst_288 {dimension_numbers = #tpu.dot_dimension_numbers<[1], [0], [0], [1], [0, 0, 1, 1], [], []>} : vector<56x16xf32>, vector<16x16xf32>, vector<56x16xf32> -> vector<56x16xf32>
    %228 = arith.addf %223, %227 : vector<56x16xf32>
    %c0_289 = arith.constant 0 : index
    %c0_290 = arith.constant 0 : index
    %c0_291 = arith.constant 0 : index
    %229 = vector.load %arg3[%c0_289, %c0_290, %c0_291] : memref<1x80x16xf32, #tpu.memory_space<vmem>>, vector<1x56x16xf32>
    %230 = vector.shape_cast %229 : vector<1x56x16xf32> to vector<56x16xf32>
    %c0_292 = arith.constant 0 : index
    %c0_293 = arith.constant 0 : index
    %c0_294 = arith.constant 0 : index
    %c0_295 = arith.constant 0 : index
    %231 = vector.load %arg18[%c0_292, %c0_293, %c0_294, %c0_295] : memref<3x3x16x16xf32, #tpu.memory_space<vmem>>, vector<1x1x16x16xf32>
    %232 = vector.shape_cast %231 : vector<1x1x16x16xf32> to vector<16x16xf32>
    %cst_296 = arith.constant dense<0.000000e+00> : vector<56x16xf32>
    %233 = tpu.matmul %230, %232, %cst_296 {dimension_numbers = #tpu.dot_dimension_numbers<[1], [0], [0], [1], [0, 0, 1, 1], [], []>} : vector<56x16xf32>, vector<16x16xf32>, vector<56x16xf32> -> vector<56x16xf32>
    %234 = arith.addf %228, %233 : vector<56x16xf32>
    %c1_297 = arith.constant 1 : index
    %c0_298 = arith.constant 0 : index
    %235 = vector.load %arg25[%c1_297, %c0_298] : memref<80x16xf32, #tpu.memory_space<vmem>>, vector<56x16xf32>
    %c0_299 = arith.constant 0 : index
    %c1_300 = arith.constant 1 : index
    %c0_301 = arith.constant 0 : index
    %c0_302 = arith.constant 0 : index
    %236 = vector.load %arg17[%c0_299, %c1_300, %c0_301, %c0_302] : memref<3x3x16x16xf32, #tpu.memory_space<vmem>>, vector<1x1x16x16xf32>
    %237 = vector.shape_cast %236 : vector<1x1x16x16xf32> to vector<16x16xf32>
    %cst_303 = arith.constant dense<0.000000e+00> : vector<56x16xf32>
    %238 = tpu.matmul %235, %237, %cst_303 {dimension_numbers = #tpu.dot_dimension_numbers<[1], [0], [0], [1], [0, 0, 1, 1], [], []>} : vector<56x16xf32>, vector<16x16xf32>, vector<56x16xf32> -> vector<56x16xf32>
    %239 = arith.addf %234, %238 : vector<56x16xf32>
    %c0_304 = arith.constant 0 : index
    %c1_305 = arith.constant 1 : index
    %c0_306 = arith.constant 0 : index
    %240 = vector.load %arg3[%c0_304, %c1_305, %c0_306] : memref<1x80x16xf32, #tpu.memory_space<vmem>>, vector<1x56x16xf32>
    %241 = vector.shape_cast %240 : vector<1x56x16xf32> to vector<56x16xf32>
    %c0_307 = arith.constant 0 : index
    %c1_308 = arith.constant 1 : index
    %c0_309 = arith.constant 0 : index
    %c0_310 = arith.constant 0 : index
    %242 = vector.load %arg18[%c0_307, %c1_308, %c0_309, %c0_310] : memref<3x3x16x16xf32, #tpu.memory_space<vmem>>, vector<1x1x16x16xf32>
    %243 = vector.shape_cast %242 : vector<1x1x16x16xf32> to vector<16x16xf32>
    %cst_311 = arith.constant dense<0.000000e+00> : vector<56x16xf32>
    %244 = tpu.matmul %241, %243, %cst_311 {dimension_numbers = #tpu.dot_dimension_numbers<[1], [0], [0], [1], [0, 0, 1, 1], [], []>} : vector<56x16xf32>, vector<16x16xf32>, vector<56x16xf32> -> vector<56x16xf32>
    %245 = arith.addf %239, %244 : vector<56x16xf32>
    %c2_312 = arith.constant 2 : index
    %c0_313 = arith.constant 0 : index
    %246 = vector.load %arg25[%c2_312, %c0_313] : memref<80x16xf32, #tpu.memory_space<vmem>>, vector<56x16xf32>
    %c0_314 = arith.constant 0 : index
    %c2_315 = arith.constant 2 : index
    %c0_316 = arith.constant 0 : index
    %c0_317 = arith.constant 0 : index
    %247 = vector.load %arg17[%c0_314, %c2_315, %c0_316, %c0_317] : memref<3x3x16x16xf32, #tpu.memory_space<vmem>>, vector<1x1x16x16xf32>
    %248 = vector.shape_cast %247 : vector<1x1x16x16xf32> to vector<16x16xf32>
    %cst_318 = arith.constant dense<0.000000e+00> : vector<56x16xf32>
    %249 = tpu.matmul %246, %248, %cst_318 {dimension_numbers = #tpu.dot_dimension_numbers<[1], [0], [0], [1], [0, 0, 1, 1], [], []>} : vector<56x16xf32>, vector<16x16xf32>, vector<56x16xf32> -> vector<56x16xf32>
    %250 = arith.addf %245, %249 : vector<56x16xf32>
    %c0_319 = arith.constant 0 : index
    %c2_320 = arith.constant 2 : index
    %c0_321 = arith.constant 0 : index
    %251 = vector.load %arg3[%c0_319, %c2_320, %c0_321] : memref<1x80x16xf32, #tpu.memory_space<vmem>>, vector<1x56x16xf32>
    %252 = vector.shape_cast %251 : vector<1x56x16xf32> to vector<56x16xf32>
    %c0_322 = arith.constant 0 : index
    %c2_323 = arith.constant 2 : index
    %c0_324 = arith.constant 0 : index
    %c0_325 = arith.constant 0 : index
    %253 = vector.load %arg18[%c0_322, %c2_323, %c0_324, %c0_325] : memref<3x3x16x16xf32, #tpu.memory_space<vmem>>, vector<1x1x16x16xf32>
    %254 = vector.shape_cast %253 : vector<1x1x16x16xf32> to vector<16x16xf32>
    %cst_326 = arith.constant dense<0.000000e+00> : vector<56x16xf32>
    %255 = tpu.matmul %252, %254, %cst_326 {dimension_numbers = #tpu.dot_dimension_numbers<[1], [0], [0], [1], [0, 0, 1, 1], [], []>} : vector<56x16xf32>, vector<16x16xf32>, vector<56x16xf32> -> vector<56x16xf32>
    %256 = arith.addf %250, %255 : vector<56x16xf32>
    %c8_327 = arith.constant 8 : index
    %c0_328 = arith.constant 0 : index
    %257 = vector.load %arg25[%c8_327, %c0_328] : memref<80x16xf32, #tpu.memory_space<vmem>>, vector<56x16xf32>
    %c1_329 = arith.constant 1 : index
    %c0_330 = arith.constant 0 : index
    %c0_331 = arith.constant 0 : index
    %c0_332 = arith.constant 0 : index
    %258 = vector.load %arg17[%c1_329, %c0_330, %c0_331, %c0_332] : memref<3x3x16x16xf32, #tpu.memory_space<vmem>>, vector<1x1x16x16xf32>
    %259 = vector.shape_cast %258 : vector<1x1x16x16xf32> to vector<16x16xf32>
    %cst_333 = arith.constant dense<0.000000e+00> : vector<56x16xf32>
    %260 = tpu.matmul %257, %259, %cst_333 {dimension_numbers = #tpu.dot_dimension_numbers<[1], [0], [0], [1], [0, 0, 1, 1], [], []>} : vector<56x16xf32>, vector<16x16xf32>, vector<56x16xf32> -> vector<56x16xf32>
    %261 = arith.addf %256, %260 : vector<56x16xf32>
    %c0_334 = arith.constant 0 : index
    %c8_335 = arith.constant 8 : index
    %c0_336 = arith.constant 0 : index
    %262 = vector.load %arg3[%c0_334, %c8_335, %c0_336] : memref<1x80x16xf32, #tpu.memory_space<vmem>>, vector<1x56x16xf32>
    %263 = vector.shape_cast %262 : vector<1x56x16xf32> to vector<56x16xf32>
    %c1_337 = arith.constant 1 : index
    %c0_338 = arith.constant 0 : index
    %c0_339 = arith.constant 0 : index
    %c0_340 = arith.constant 0 : index
    %264 = vector.load %arg18[%c1_337, %c0_338, %c0_339, %c0_340] : memref<3x3x16x16xf32, #tpu.memory_space<vmem>>, vector<1x1x16x16xf32>
    %265 = vector.shape_cast %264 : vector<1x1x16x16xf32> to vector<16x16xf32>
    %cst_341 = arith.constant dense<0.000000e+00> : vector<56x16xf32>
    %266 = tpu.matmul %263, %265, %cst_341 {dimension_numbers = #tpu.dot_dimension_numbers<[1], [0], [0], [1], [0, 0, 1, 1], [], []>} : vector<56x16xf32>, vector<16x16xf32>, vector<56x16xf32> -> vector<56x16xf32>
    %267 = arith.addf %261, %266 : vector<56x16xf32>
    %c9_342 = arith.constant 9 : index
    %c0_343 = arith.constant 0 : index
    %268 = vector.load %arg25[%c9_342, %c0_343] : memref<80x16xf32, #tpu.memory_space<vmem>>, vector<56x16xf32>
    %c1_344 = arith.constant 1 : index
    %c1_345 = arith.constant 1 : index
    %c0_346 = arith.constant 0 : index
    %c0_347 = arith.constant 0 : index
    %269 = vector.load %arg17[%c1_344, %c1_345, %c0_346, %c0_347] : memref<3x3x16x16xf32, #tpu.memory_space<vmem>>, vector<1x1x16x16xf32>
    %270 = vector.shape_cast %269 : vector<1x1x16x16xf32> to vector<16x16xf32>
    %cst_348 = arith.constant dense<0.000000e+00> : vector<56x16xf32>
    %271 = tpu.matmul %268, %270, %cst_348 {dimension_numbers = #tpu.dot_dimension_numbers<[1], [0], [0], [1], [0, 0, 1, 1], [], []>} : vector<56x16xf32>, vector<16x16xf32>, vector<56x16xf32> -> vector<56x16xf32>
    %272 = arith.addf %267, %271 : vector<56x16xf32>
    %c0_349 = arith.constant 0 : index
    %c9_350 = arith.constant 9 : index
    %c0_351 = arith.constant 0 : index
    %273 = vector.load %arg3[%c0_349, %c9_350, %c0_351] : memref<1x80x16xf32, #tpu.memory_space<vmem>>, vector<1x56x16xf32>
    %274 = vector.shape_cast %273 : vector<1x56x16xf32> to vector<56x16xf32>
    %c1_352 = arith.constant 1 : index
    %c1_353 = arith.constant 1 : index
    %c0_354 = arith.constant 0 : index
    %c0_355 = arith.constant 0 : index
    %275 = vector.load %arg18[%c1_352, %c1_353, %c0_354, %c0_355] : memref<3x3x16x16xf32, #tpu.memory_space<vmem>>, vector<1x1x16x16xf32>
    %276 = vector.shape_cast %275 : vector<1x1x16x16xf32> to vector<16x16xf32>
    %cst_356 = arith.constant dense<0.000000e+00> : vector<56x16xf32>
    %277 = tpu.matmul %274, %276, %cst_356 {dimension_numbers = #tpu.dot_dimension_numbers<[1], [0], [0], [1], [0, 0, 1, 1], [], []>} : vector<56x16xf32>, vector<16x16xf32>, vector<56x16xf32> -> vector<56x16xf32>
    %278 = arith.addf %272, %277 : vector<56x16xf32>
    %c10_357 = arith.constant 10 : index
    %c0_358 = arith.constant 0 : index
    %279 = vector.load %arg25[%c10_357, %c0_358] : memref<80x16xf32, #tpu.memory_space<vmem>>, vector<56x16xf32>
    %c1_359 = arith.constant 1 : index
    %c2_360 = arith.constant 2 : index
    %c0_361 = arith.constant 0 : index
    %c0_362 = arith.constant 0 : index
    %280 = vector.load %arg17[%c1_359, %c2_360, %c0_361, %c0_362] : memref<3x3x16x16xf32, #tpu.memory_space<vmem>>, vector<1x1x16x16xf32>
    %281 = vector.shape_cast %280 : vector<1x1x16x16xf32> to vector<16x16xf32>
    %cst_363 = arith.constant dense<0.000000e+00> : vector<56x16xf32>
    %282 = tpu.matmul %279, %281, %cst_363 {dimension_numbers = #tpu.dot_dimension_numbers<[1], [0], [0], [1], [0, 0, 1, 1], [], []>} : vector<56x16xf32>, vector<16x16xf32>, vector<56x16xf32> -> vector<56x16xf32>
    %283 = arith.addf %278, %282 : vector<56x16xf32>
    %c0_364 = arith.constant 0 : index
    %c10_365 = arith.constant 10 : index
    %c0_366 = arith.constant 0 : index
    %284 = vector.load %arg3[%c0_364, %c10_365, %c0_366] : memref<1x80x16xf32, #tpu.memory_space<vmem>>, vector<1x56x16xf32>
    %285 = vector.shape_cast %284 : vector<1x56x16xf32> to vector<56x16xf32>
    %c1_367 = arith.constant 1 : index
    %c2_368 = arith.constant 2 : index
    %c0_369 = arith.constant 0 : index
    %c0_370 = arith.constant 0 : index
    %286 = vector.load %arg18[%c1_367, %c2_368, %c0_369, %c0_370] : memref<3x3x16x16xf32, #tpu.memory_space<vmem>>, vector<1x1x16x16xf32>
    %287 = vector.shape_cast %286 : vector<1x1x16x16xf32> to vector<16x16xf32>
    %cst_371 = arith.constant dense<0.000000e+00> : vector<56x16xf32>
    %288 = tpu.matmul %285, %287, %cst_371 {dimension_numbers = #tpu.dot_dimension_numbers<[1], [0], [0], [1], [0, 0, 1, 1], [], []>} : vector<56x16xf32>, vector<16x16xf32>, vector<56x16xf32> -> vector<56x16xf32>
    %289 = arith.addf %283, %288 : vector<56x16xf32>
    %c16_372 = arith.constant 16 : index
    %c0_373 = arith.constant 0 : index
    %290 = vector.load %arg25[%c16_372, %c0_373] : memref<80x16xf32, #tpu.memory_space<vmem>>, vector<56x16xf32>
    %c2_374 = arith.constant 2 : index
    %c0_375 = arith.constant 0 : index
    %c0_376 = arith.constant 0 : index
    %c0_377 = arith.constant 0 : index
    %291 = vector.load %arg17[%c2_374, %c0_375, %c0_376, %c0_377] : memref<3x3x16x16xf32, #tpu.memory_space<vmem>>, vector<1x1x16x16xf32>
    %292 = vector.shape_cast %291 : vector<1x1x16x16xf32> to vector<16x16xf32>
    %cst_378 = arith.constant dense<0.000000e+00> : vector<56x16xf32>
    %293 = tpu.matmul %290, %292, %cst_378 {dimension_numbers = #tpu.dot_dimension_numbers<[1], [0], [0], [1], [0, 0, 1, 1], [], []>} : vector<56x16xf32>, vector<16x16xf32>, vector<56x16xf32> -> vector<56x16xf32>
    %294 = arith.addf %289, %293 : vector<56x16xf32>
    %c0_379 = arith.constant 0 : index
    %c16_380 = arith.constant 16 : index
    %c0_381 = arith.constant 0 : index
    %295 = vector.load %arg3[%c0_379, %c16_380, %c0_381] : memref<1x80x16xf32, #tpu.memory_space<vmem>>, vector<1x56x16xf32>
    %296 = vector.shape_cast %295 : vector<1x56x16xf32> to vector<56x16xf32>
    %c2_382 = arith.constant 2 : index
    %c0_383 = arith.constant 0 : index
    %c0_384 = arith.constant 0 : index
    %c0_385 = arith.constant 0 : index
    %297 = vector.load %arg18[%c2_382, %c0_383, %c0_384, %c0_385] : memref<3x3x16x16xf32, #tpu.memory_space<vmem>>, vector<1x1x16x16xf32>
    %298 = vector.shape_cast %297 : vector<1x1x16x16xf32> to vector<16x16xf32>
    %cst_386 = arith.constant dense<0.000000e+00> : vector<56x16xf32>
    %299 = tpu.matmul %296, %298, %cst_386 {dimension_numbers = #tpu.dot_dimension_numbers<[1], [0], [0], [1], [0, 0, 1, 1], [], []>} : vector<56x16xf32>, vector<16x16xf32>, vector<56x16xf32> -> vector<56x16xf32>
    %300 = arith.addf %294, %299 : vector<56x16xf32>
    %c17_387 = arith.constant 17 : index
    %c0_388 = arith.constant 0 : index
    %301 = vector.load %arg25[%c17_387, %c0_388] : memref<80x16xf32, #tpu.memory_space<vmem>>, vector<56x16xf32>
    %c2_389 = arith.constant 2 : index
    %c1_390 = arith.constant 1 : index
    %c0_391 = arith.constant 0 : index
    %c0_392 = arith.constant 0 : index
    %302 = vector.load %arg17[%c2_389, %c1_390, %c0_391, %c0_392] : memref<3x3x16x16xf32, #tpu.memory_space<vmem>>, vector<1x1x16x16xf32>
    %303 = vector.shape_cast %302 : vector<1x1x16x16xf32> to vector<16x16xf32>
    %cst_393 = arith.constant dense<0.000000e+00> : vector<56x16xf32>
    %304 = tpu.matmul %301, %303, %cst_393 {dimension_numbers = #tpu.dot_dimension_numbers<[1], [0], [0], [1], [0, 0, 1, 1], [], []>} : vector<56x16xf32>, vector<16x16xf32>, vector<56x16xf32> -> vector<56x16xf32>
    %305 = arith.addf %300, %304 : vector<56x16xf32>
    %c0_394 = arith.constant 0 : index
    %c17_395 = arith.constant 17 : index
    %c0_396 = arith.constant 0 : index
    %306 = vector.load %arg3[%c0_394, %c17_395, %c0_396] : memref<1x80x16xf32, #tpu.memory_space<vmem>>, vector<1x56x16xf32>
    %307 = vector.shape_cast %306 : vector<1x56x16xf32> to vector<56x16xf32>
    %c2_397 = arith.constant 2 : index
    %c1_398 = arith.constant 1 : index
    %c0_399 = arith.constant 0 : index
    %c0_400 = arith.constant 0 : index
    %308 = vector.load %arg18[%c2_397, %c1_398, %c0_399, %c0_400] : memref<3x3x16x16xf32, #tpu.memory_space<vmem>>, vector<1x1x16x16xf32>
    %309 = vector.shape_cast %308 : vector<1x1x16x16xf32> to vector<16x16xf32>
    %cst_401 = arith.constant dense<0.000000e+00> : vector<56x16xf32>
    %310 = tpu.matmul %307, %309, %cst_401 {dimension_numbers = #tpu.dot_dimension_numbers<[1], [0], [0], [1], [0, 0, 1, 1], [], []>} : vector<56x16xf32>, vector<16x16xf32>, vector<56x16xf32> -> vector<56x16xf32>
    %311 = arith.addf %305, %310 : vector<56x16xf32>
    %c18_402 = arith.constant 18 : index
    %c0_403 = arith.constant 0 : index
    %312 = vector.load %arg25[%c18_402, %c0_403] : memref<80x16xf32, #tpu.memory_space<vmem>>, vector<56x16xf32>
    %c2_404 = arith.constant 2 : index
    %c2_405 = arith.constant 2 : index
    %c0_406 = arith.constant 0 : index
    %c0_407 = arith.constant 0 : index
    %313 = vector.load %arg17[%c2_404, %c2_405, %c0_406, %c0_407] : memref<3x3x16x16xf32, #tpu.memory_space<vmem>>, vector<1x1x16x16xf32>
    %314 = vector.shape_cast %313 : vector<1x1x16x16xf32> to vector<16x16xf32>
    %cst_408 = arith.constant dense<0.000000e+00> : vector<56x16xf32>
    %315 = tpu.matmul %312, %314, %cst_408 {dimension_numbers = #tpu.dot_dimension_numbers<[1], [0], [0], [1], [0, 0, 1, 1], [], []>} : vector<56x16xf32>, vector<16x16xf32>, vector<56x16xf32> -> vector<56x16xf32>
    %316 = arith.addf %311, %315 : vector<56x16xf32>
    %c0_409 = arith.constant 0 : index
    %c18_410 = arith.constant 18 : index
    %c0_411 = arith.constant 0 : index
    %317 = vector.load %arg3[%c0_409, %c18_410, %c0_411] : memref<1x80x16xf32, #tpu.memory_space<vmem>>, vector<1x56x16xf32>
    %318 = vector.shape_cast %317 : vector<1x56x16xf32> to vector<56x16xf32>
    %c2_412 = arith.constant 2 : index
    %c2_413 = arith.constant 2 : index
    %c0_414 = arith.constant 0 : index
    %c0_415 = arith.constant 0 : index
    %319 = vector.load %arg18[%c2_412, %c2_413, %c0_414, %c0_415] : memref<3x3x16x16xf32, #tpu.memory_space<vmem>>, vector<1x1x16x16xf32>
    %320 = vector.shape_cast %319 : vector<1x1x16x16xf32> to vector<16x16xf32>
    %cst_416 = arith.constant dense<0.000000e+00> : vector<56x16xf32>
    %321 = tpu.matmul %318, %320, %cst_416 {dimension_numbers = #tpu.dot_dimension_numbers<[1], [0], [0], [1], [0, 0, 1, 1], [], []>} : vector<56x16xf32>, vector<16x16xf32>, vector<56x16xf32> -> vector<56x16xf32>
    %322 = arith.addf %316, %321 : vector<56x16xf32>
    %cst_417 = arith.constant 0.000000e+00 : f32
    %323 = vector.broadcast %cst_417 : f32 to vector<56x16xf32>
    %324 = arith.maximumf %322, %323 : vector<56x16xf32>
    %c0_418 = arith.constant 0 : index
    %c0_419 = arith.constant 0 : index
    %325 = vector.load %arg26[%c0_418, %c0_419] : memref<56x16xf32, #tpu.memory_space<vmem>>, vector<56x16xf32>
    tpu.vector_store %arg26[%c0_418, %c0_419], %324 {strides = array<i32>} : memref<56x16xf32, #tpu.memory_space<vmem>>, vector<56x16xf32>,
    %c0_420 = arith.constant 0 : index
    %c0_421 = arith.constant 0 : index
    %326 = vector.load %arg21[%c0_420, %c0_421] : memref<1x16xf32, #tpu.memory_space<vmem>>, vector<1x16xf32>
    %327 = vector.shape_cast %326 : vector<1x16xf32> to vector<1x16xf32>
    %328 = vector.broadcast %327 : vector<1x16xf32> to vector<32x16xf32>
    %c0_422 = arith.constant 0 : index
    %c0_423 = arith.constant 0 : index
    %329 = vector.load %arg26[%c0_422, %c0_423] : memref<56x16xf32, #tpu.memory_space<vmem>>, vector<32x16xf32>
    %c0_424 = arith.constant 0 : index
    %c0_425 = arith.constant 0 : index
    %c0_426 = arith.constant 0 : index
    %c0_427 = arith.constant 0 : index
    %330 = vector.load %arg20[%c0_424, %c0_425, %c0_426, %c0_427] : memref<3x3x16x16xf32, #tpu.memory_space<vmem>>, vector<1x1x16x16xf32>
    %331 = vector.shape_cast %330 : vector<1x1x16x16xf32> to vector<16x16xf32>
    %cst_428 = arith.constant dense<0.000000e+00> : vector<32x16xf32>
    %332 = tpu.matmul %329, %331, %cst_428 {dimension_numbers = #tpu.dot_dimension_numbers<[1], [0], [0], [1], [0, 0, 1, 1], [], []>} : vector<32x16xf32>, vector<16x16xf32>, vector<32x16xf32> -> vector<32x16xf32>
    %333 = arith.addf %328, %332 : vector<32x16xf32>
    %c1_429 = arith.constant 1 : index
    %c0_430 = arith.constant 0 : index
    %334 = vector.load %arg26[%c1_429, %c0_430] : memref<56x16xf32, #tpu.memory_space<vmem>>, vector<32x16xf32>
    %c0_431 = arith.constant 0 : index
    %c1_432 = arith.constant 1 : index
    %c0_433 = arith.constant 0 : index
    %c0_434 = arith.constant 0 : index
    %335 = vector.load %arg20[%c0_431, %c1_432, %c0_433, %c0_434] : memref<3x3x16x16xf32, #tpu.memory_space<vmem>>, vector<1x1x16x16xf32>
    %336 = vector.shape_cast %335 : vector<1x1x16x16xf32> to vector<16x16xf32>
    %cst_435 = arith.constant dense<0.000000e+00> : vector<32x16xf32>
    %337 = tpu.matmul %334, %336, %cst_435 {dimension_numbers = #tpu.dot_dimension_numbers<[1], [0], [0], [1], [0, 0, 1, 1], [], []>} : vector<32x16xf32>, vector<16x16xf32>, vector<32x16xf32> -> vector<32x16xf32>
    %338 = arith.addf %333, %337 : vector<32x16xf32>
    %c2_436 = arith.constant 2 : index
    %c0_437 = arith.constant 0 : index
    %339 = vector.load %arg26[%c2_436, %c0_437] : memref<56x16xf32, #tpu.memory_space<vmem>>, vector<32x16xf32>
    %c0_438 = arith.constant 0 : index
    %c2_439 = arith.constant 2 : index
    %c0_440 = arith.constant 0 : index
    %c0_441 = arith.constant 0 : index
    %340 = vector.load %arg20[%c0_438, %c2_439, %c0_440, %c0_441] : memref<3x3x16x16xf32, #tpu.memory_space<vmem>>, vector<1x1x16x16xf32>
    %341 = vector.shape_cast %340 : vector<1x1x16x16xf32> to vector<16x16xf32>
    %cst_442 = arith.constant dense<0.000000e+00> : vector<32x16xf32>
    %342 = tpu.matmul %339, %341, %cst_442 {dimension_numbers = #tpu.dot_dimension_numbers<[1], [0], [0], [1], [0, 0, 1, 1], [], []>} : vector<32x16xf32>, vector<16x16xf32>, vector<32x16xf32> -> vector<32x16xf32>
    %343 = arith.addf %338, %342 : vector<32x16xf32>
    %c8_443 = arith.constant 8 : index
    %c0_444 = arith.constant 0 : index
    %344 = vector.load %arg26[%c8_443, %c0_444] : memref<56x16xf32, #tpu.memory_space<vmem>>, vector<32x16xf32>
    %c1_445 = arith.constant 1 : index
    %c0_446 = arith.constant 0 : index
    %c0_447 = arith.constant 0 : index
    %c0_448 = arith.constant 0 : index
    %345 = vector.load %arg20[%c1_445, %c0_446, %c0_447, %c0_448] : memref<3x3x16x16xf32, #tpu.memory_space<vmem>>, vector<1x1x16x16xf32>
    %346 = vector.shape_cast %345 : vector<1x1x16x16xf32> to vector<16x16xf32>
    %cst_449 = arith.constant dense<0.000000e+00> : vector<32x16xf32>
    %347 = tpu.matmul %344, %346, %cst_449 {dimension_numbers = #tpu.dot_dimension_numbers<[1], [0], [0], [1], [0, 0, 1, 1], [], []>} : vector<32x16xf32>, vector<16x16xf32>, vector<32x16xf32> -> vector<32x16xf32>
    %348 = arith.addf %343, %347 : vector<32x16xf32>
    %c9_450 = arith.constant 9 : index
    %c0_451 = arith.constant 0 : index
    %349 = vector.load %arg26[%c9_450, %c0_451] : memref<56x16xf32, #tpu.memory_space<vmem>>, vector<32x16xf32>
    %c1_452 = arith.constant 1 : index
    %c1_453 = arith.constant 1 : index
    %c0_454 = arith.constant 0 : index
    %c0_455 = arith.constant 0 : index
    %350 = vector.load %arg20[%c1_452, %c1_453, %c0_454, %c0_455] : memref<3x3x16x16xf32, #tpu.memory_space<vmem>>, vector<1x1x16x16xf32>
    %351 = vector.shape_cast %350 : vector<1x1x16x16xf32> to vector<16x16xf32>
    %cst_456 = arith.constant dense<0.000000e+00> : vector<32x16xf32>
    %352 = tpu.matmul %349, %351, %cst_456 {dimension_numbers = #tpu.dot_dimension_numbers<[1], [0], [0], [1], [0, 0, 1, 1], [], []>} : vector<32x16xf32>, vector<16x16xf32>, vector<32x16xf32> -> vector<32x16xf32>
    %353 = arith.addf %348, %352 : vector<32x16xf32>
    %c10_457 = arith.constant 10 : index
    %c0_458 = arith.constant 0 : index
    %354 = vector.load %arg26[%c10_457, %c0_458] : memref<56x16xf32, #tpu.memory_space<vmem>>, vector<32x16xf32>
    %c1_459 = arith.constant 1 : index
    %c2_460 = arith.constant 2 : index
    %c0_461 = arith.constant 0 : index
    %c0_462 = arith.constant 0 : index
    %355 = vector.load %arg20[%c1_459, %c2_460, %c0_461, %c0_462] : memref<3x3x16x16xf32, #tpu.memory_space<vmem>>, vector<1x1x16x16xf32>
    %356 = vector.shape_cast %355 : vector<1x1x16x16xf32> to vector<16x16xf32>
    %cst_463 = arith.constant dense<0.000000e+00> : vector<32x16xf32>
    %357 = tpu.matmul %354, %356, %cst_463 {dimension_numbers = #tpu.dot_dimension_numbers<[1], [0], [0], [1], [0, 0, 1, 1], [], []>} : vector<32x16xf32>, vector<16x16xf32>, vector<32x16xf32> -> vector<32x16xf32>
    %358 = arith.addf %353, %357 : vector<32x16xf32>
    %c16_464 = arith.constant 16 : index
    %c0_465 = arith.constant 0 : index
    %359 = vector.load %arg26[%c16_464, %c0_465] : memref<56x16xf32, #tpu.memory_space<vmem>>, vector<32x16xf32>
    %c2_466 = arith.constant 2 : index
    %c0_467 = arith.constant 0 : index
    %c0_468 = arith.constant 0 : index
    %c0_469 = arith.constant 0 : index
    %360 = vector.load %arg20[%c2_466, %c0_467, %c0_468, %c0_469] : memref<3x3x16x16xf32, #tpu.memory_space<vmem>>, vector<1x1x16x16xf32>
    %361 = vector.shape_cast %360 : vector<1x1x16x16xf32> to vector<16x16xf32>
    %cst_470 = arith.constant dense<0.000000e+00> : vector<32x16xf32>
    %362 = tpu.matmul %359, %361, %cst_470 {dimension_numbers = #tpu.dot_dimension_numbers<[1], [0], [0], [1], [0, 0, 1, 1], [], []>} : vector<32x16xf32>, vector<16x16xf32>, vector<32x16xf32> -> vector<32x16xf32>
    %363 = arith.addf %358, %362 : vector<32x16xf32>
    %c17_471 = arith.constant 17 : index
    %c0_472 = arith.constant 0 : index
    %364 = vector.load %arg26[%c17_471, %c0_472] : memref<56x16xf32, #tpu.memory_space<vmem>>, vector<32x16xf32>
    %c2_473 = arith.constant 2 : index
    %c1_474 = arith.constant 1 : index
    %c0_475 = arith.constant 0 : index
    %c0_476 = arith.constant 0 : index
    %365 = vector.load %arg20[%c2_473, %c1_474, %c0_475, %c0_476] : memref<3x3x16x16xf32, #tpu.memory_space<vmem>>, vector<1x1x16x16xf32>
    %366 = vector.shape_cast %365 : vector<1x1x16x16xf32> to vector<16x16xf32>
    %cst_477 = arith.constant dense<0.000000e+00> : vector<32x16xf32>
    %367 = tpu.matmul %364, %366, %cst_477 {dimension_numbers = #tpu.dot_dimension_numbers<[1], [0], [0], [1], [0, 0, 1, 1], [], []>} : vector<32x16xf32>, vector<16x16xf32>, vector<32x16xf32> -> vector<32x16xf32>
    %368 = arith.addf %363, %367 : vector<32x16xf32>
    %c18_478 = arith.constant 18 : index
    %c0_479 = arith.constant 0 : index
    %369 = vector.load %arg26[%c18_478, %c0_479] : memref<56x16xf32, #tpu.memory_space<vmem>>, vector<32x16xf32>
    %c2_480 = arith.constant 2 : index
    %c2_481 = arith.constant 2 : index
    %c0_482 = arith.constant 0 : index
    %c0_483 = arith.constant 0 : index
    %370 = vector.load %arg20[%c2_480, %c2_481, %c0_482, %c0_483] : memref<3x3x16x16xf32, #tpu.memory_space<vmem>>, vector<1x1x16x16xf32>
    %371 = vector.shape_cast %370 : vector<1x1x16x16xf32> to vector<16x16xf32>
    %cst_484 = arith.constant dense<0.000000e+00> : vector<32x16xf32>
    %372 = tpu.matmul %369, %371, %cst_484 {dimension_numbers = #tpu.dot_dimension_numbers<[1], [0], [0], [1], [0, 0, 1, 1], [], []>} : vector<32x16xf32>, vector<16x16xf32>, vector<32x16xf32> -> vector<32x16xf32>
    %373 = arith.addf %368, %372 : vector<32x16xf32>
    %c0_485 = arith.constant 0 : index
    %c0_486 = arith.constant 0 : index
    %374 = vector.load %arg14[%c0_485, %c0_486] : memref<16x32xf32, #tpu.memory_space<vmem>>, vector<16x32xf32>
    %cst_487 = arith.constant dense<0.000000e+00> : vector<16x16xf32>
    %375 = tpu.matmul %374, %373, %cst_487 {dimension_numbers = #tpu.dot_dimension_numbers<[1], [0], [0], [1], [0, 0, 1, 1], [], []>} : vector<16x32xf32>, vector<32x16xf32>, vector<16x16xf32> -> vector<16x16xf32>
    %c0_488 = arith.constant 0 : index
    %c0_489 = arith.constant 0 : index
    %c0_490 = arith.constant 0 : index
    %376 = vector.load %arg22[%c0_488, %c0_489, %c0_490] : memref<1x16x16xf32, #tpu.memory_space<vmem>>, vector<1x16x16xf32>
    %377 = vector.shape_cast %376 : vector<1x16x16xf32> to vector<16x16xf32>
    %378 = vector.shape_cast %375 : vector<16x16xf32> to vector<1x16x16xf32>
    tpu.vector_store %arg22[%c0_488, %c0_489, %c0_490], %378 {strides = array<i32>} : memref<1x16x16xf32, #tpu.memory_space<vmem>>, vector<1x16x16xf32>,
    return
  }
  func.func @transform_0(%arg0: i32) -> (i32, i32, i32) {
    %c0_i32 = arith.constant 0 : i32
    %c0_i32_0 = arith.constant 0 : i32
    %c0_i32_1 = arith.constant 0 : i32
    return %arg0, %c0_i32, %c0_i32_0 : i32, i32, i32
  }
  func.func @transform_1(%arg0: i32) -> (i32, i32, i32) {
    %c0_i32 = arith.constant 0 : i32
    %c0_i32_0 = arith.constant 0 : i32
    %c0_i32_1 = arith.constant 0 : i32
    return %arg0, %c0_i32, %c0_i32_0 : i32, i32, i32
  }
  func.func @transform_2(%arg0: i32) -> (i32, i32, i32) {
    %c0_i32 = arith.constant 0 : i32
    %c0_i32_0 = arith.constant 0 : i32
    %c0_i32_1 = arith.constant 0 : i32
    return %arg0, %c0_i32, %c0_i32_0 : i32, i32, i32
  }
  func.func @transform_3(%arg0: i32) -> (i32, i32, i32) {
    %c0_i32 = arith.constant 0 : i32
    %c0_i32_0 = arith.constant 0 : i32
    %c0_i32_1 = arith.constant 0 : i32
    %c0_i32_2 = arith.constant 0 : i32
    return %c0_i32, %c0_i32_0, %c0_i32_1 : i32, i32, i32
  }
  func.func @transform_4(%arg0: i32) -> (i32, i32) {
    %c0_i32 = arith.constant 0 : i32
    %c0_i32_0 = arith.constant 0 : i32
    %c0_i32_1 = arith.constant 0 : i32
    return %c0_i32, %c0_i32_0 : i32, i32
  }
  func.func @transform_5(%arg0: i32) -> (i32, i32, i32, i32) {
    %c0_i32 = arith.constant 0 : i32
    %c0_i32_0 = arith.constant 0 : i32
    %c0_i32_1 = arith.constant 0 : i32
    %c0_i32_2 = arith.constant 0 : i32
    %c0_i32_3 = arith.constant 0 : i32
    return %c0_i32, %c0_i32_0, %c0_i32_1, %c0_i32_2 : i32, i32, i32, i32
  }
  func.func @transform_6(%arg0: i32) -> (i32, i32) {
    %c0_i32 = arith.constant 0 : i32
    %c0_i32_0 = arith.constant 0 : i32
    %c0_i32_1 = arith.constant 0 : i32
    return %c0_i32, %c0_i32_0 : i32, i32
  }
  func.func @transform_7(%arg0: i32) -> (i32, i32, i32, i32) {
    %c0_i32 = arith.constant 0 : i32
    %c0_i32_0 = arith.constant 0 : i32
    %c0_i32_1 = arith.constant 0 : i32
    %c0_i32_2 = arith.constant 0 : i32
    %c0_i32_3 = arith.constant 0 : i32
    return %c0_i32, %c0_i32_0, %c0_i32_1, %c0_i32_2 : i32, i32, i32, i32
  }
  func.func @transform_8(%arg0: i32) -> (i32, i32, i32, i32) {
    %c0_i32 = arith.constant 0 : i32
    %c0_i32_0 = arith.constant 0 : i32
    %c0_i32_1 = arith.constant 0 : i32
    %c0_i32_2 = arith.constant 0 : i32
    %c0_i32_3 = arith.constant 0 : i32
    return %c0_i32, %c0_i32_0, %c0_i32_1, %c0_i32_2 : i32, i32, i32, i32
  }
  func.func @transform_9(%arg0: i32) -> (i32, i32) {
    %c0_i32 = arith.constant 0 : i32
    %c0_i32_0 = arith.constant 0 : i32
    %c0_i32_1 = arith.constant 0 : i32
    return %c0_i32, %c0_i32_0 : i32, i32
  }
  func.func @transform_10(%arg0: i32) -> (i32, i32, i32, i32) {
    %c0_i32 = arith.constant 0 : i32
    %c0_i32_0 = arith.constant 0 : i32
    %c0_i32_1 = arith.constant 0 : i32
    %c0_i32_2 = arith.constant 0 : i32
    %c0_i32_3 = arith.constant 0 : i32
    return %c0_i32, %c0_i32_0, %c0_i32_1, %c0_i32_2 : i32, i32, i32, i32
  }
  func.func @transform_11(%arg0: i32) -> (i32, i32) {
    %c0_i32 = arith.constant 0 : i32
    %c0_i32_0 = arith.constant 0 : i32
    %c0_i32_1 = arith.constant 0 : i32
    return %c0_i32, %c0_i32_0 : i32, i32
  }
  func.func @transform_12(%arg0: i32) -> (i32, i32, i32) {
    %c0_i32 = arith.constant 0 : i32
    %c0_i32_0 = arith.constant 0 : i32
    %c0_i32_1 = arith.constant 0 : i32
    %c0_i32_2 = arith.constant 0 : i32
    return %c0_i32, %c0_i32_0, %c0_i32_1 : i32, i32, i32
  }
  func.func @transform_13(%arg0: i32) -> (i32, i32) {
    %c0_i32 = arith.constant 0 : i32
    %c0_i32_0 = arith.constant 0 : i32
    %c0_i32_1 = arith.constant 0 : i32
    return %c0_i32, %c0_i32_0 : i32, i32
  }
  func.func @transform_14(%arg0: i32) -> (i32, i32, i32, i32) {
    %c0_i32 = arith.constant 0 : i32
    %c0_i32_0 = arith.constant 0 : i32
    %c0_i32_1 = arith.constant 0 : i32
    %c0_i32_2 = arith.constant 0 : i32
    %c0_i32_3 = arith.constant 0 : i32
    return %c0_i32, %c0_i32_0, %c0_i32_1, %c0_i32_2 : i32, i32, i32, i32
  }
  func.func @transform_15(%arg0: i32) -> (i32, i32) {
    %c0_i32 = arith.constant 0 : i32
    %c0_i32_0 = arith.constant 0 : i32
    %c0_i32_1 = arith.constant 0 : i32
    return %c0_i32, %c0_i32_0 : i32, i32
  }
  func.func @transform_16(%arg0: i32) -> (i32, i32, i32, i32) {
    %c0_i32 = arith.constant 0 : i32
    %c0_i32_0 = arith.constant 0 : i32
    %c0_i32_1 = arith.constant 0 : i32
    %c0_i32_2 = arith.constant 0 : i32
    %c0_i32_3 = arith.constant 0 : i32
    return %c0_i32, %c0_i32_0, %c0_i32_1, %c0_i32_2 : i32, i32, i32, i32
  }
  func.func @transform_17(%arg0: i32) -> (i32, i32, i32, i32) {
    %c0_i32 = arith.constant 0 : i32
    %c0_i32_0 = arith.constant 0 : i32
    %c0_i32_1 = arith.constant 0 : i32
    %c0_i32_2 = arith.constant 0 : i32
    %c0_i32_3 = arith.constant 0 : i32
    return %c0_i32, %c0_i32_0, %c0_i32_1, %c0_i32_2 : i32, i32, i32, i32
  }
  func.func @transform_18(%arg0: i32) -> (i32, i32) {
    %c0_i32 = arith.constant 0 : i32
    %c0_i32_0 = arith.constant 0 : i32
    %c0_i32_1 = arith.constant 0 : i32
    return %c0_i32, %c0_i32_0 : i32, i32
  }
  func.func @transform_19(%arg0: i32) -> (i32, i32, i32, i32) {
    %c0_i32 = arith.constant 0 : i32
    %c0_i32_0 = arith.constant 0 : i32
    %c0_i32_1 = arith.constant 0 : i32
    %c0_i32_2 = arith.constant 0 : i32
    %c0_i32_3 = arith.constant 0 : i32
    return %c0_i32, %c0_i32_0, %c0_i32_1, %c0_i32_2 : i32, i32, i32, i32
  }
  func.func @transform_20(%arg0: i32) -> (i32, i32) {
    %c0_i32 = arith.constant 0 : i32
    %c0_i32_0 = arith.constant 0 : i32
    %c0_i32_1 = arith.constant 0 : i32
    return %c0_i32, %c0_i32_0 : i32, i32
  }
  func.func @transform_21(%arg0: i32) -> (i32, i32, i32) {
    %c0_i32 = arith.constant 0 : i32
    %c0_i32_0 = arith.constant 0 : i32
    %c0_i32_1 = arith.constant 0 : i32
    return %arg0, %c0_i32, %c0_i32_0 : i32, i32, i32
  }
}

</mosaic_0001>

<llo_original>
// kernel: decoder_forward_nchw.1
$region0: #{decoder_forward_nchw.1}
  #allocation0 [shape = 'u32[]', space=smem, size = 0x4, offset = 0x4, fixed_abs, tag = 'smem constant byte address 0x4 - core index']
  #allocation1 [shape = 'u32[144,128]{1,0:T(1,128)}', space=vmem, size = 0x12000, scoped, tag = 'internal scratch']
  #allocation2 [shape = 'f32[80,32]{1,0:T(8,128)}', space=vmem, size = 0xa000, scoped, tag = 'scratch operand']
  #allocation3 [shape = 'f32[56,32]{1,0:T(8,128)}', space=vmem, size = 0x7000, scoped, tag = 'scratch operand']
  #allocation4 [shape = 'f32[80,16]{1,0:T(8,128)}', space=vmem, size = 0xa000, scoped, tag = 'scratch operand']
  #allocation5 [shape = 'f32[56,16]{1,0:T(8,128)}', space=vmem, size = 0x7000, scoped, tag = 'scratch operand']
  %s0 = inlined_call_operand.vmem [shape: f32[2,16,64], index: 0, kind: input, shape index: {}]
  %s1 = inlined_call_operand.vmem [shape: f32[2,80,32], index: 1, kind: input, shape index: {}]
  %s2 = inlined_call_operand.vmem [shape: f32[2,80,16], index: 2, kind: input, shape index: {}]
  %s3 = inlined_call_operand.vmem [shape: f32[4,80,16], index: 3, kind: input, shape index: {}, may-alias: {3,12}]
  %s4 = inlined_call_operand.vmem [shape: f32[16,32], index: 4, kind: input, shape index: {}, may-alias: {4,13}]
  %s5 = inlined_call_operand.vmem [shape: f32[2,2,64,32], index: 5, kind: input, shape index: {}]
  %s6 = inlined_call_operand.vmem [shape: f32[1,32], index: 6, kind: input, shape index: {}]
  %s7 = inlined_call_operand.vmem [shape: f32[3,3,32,32], index: 7, kind: input, shape index: {}]
  %s8 = inlined_call_operand.vmem [shape: f32[3,3,32,32], index: 8, kind: input, shape index: {}]
  %s9 = inlined_call_operand.vmem [shape: f32[1,32], index: 9, kind: input, shape index: {}]
  %s10 = inlined_call_operand.vmem [shape: f32[3,3,32,32], index: 10, kind: input, shape index: {}]
  %s11 = inlined_call_operand.vmem [shape: f32[1,32], index: 11, kind: input, shape index: {}]
  %s12 = inlined_call_operand.vmem [shape: f32[4,80,16], index: 12, kind: input, shape index: {}, may-alias: {3,12}]
  %s13 = inlined_call_operand.vmem [shape: f32[16,32], index: 13, kind: input, shape index: {}, may-alias: {4,13}]
  %s14 = inlined_call_operand.vmem [shape: f32[2,2,32,16], index: 14, kind: input, shape index: {}]
  %s15 = inlined_call_operand.vmem [shape: f32[1,16], index: 15, kind: input, shape index: {}]
  %s16 = inlined_call_operand.vmem [shape: f32[3,3,16,16], index: 16, kind: input, shape index: {}]
  %s17 = inlined_call_operand.vmem [shape: f32[3,3,16,16], index: 17, kind: input, shape index: {}]
  %s18 = inlined_call_operand.vmem [shape: f32[1,16], index: 18, kind: input, shape index: {}]
  %s19 = inlined_call_operand.vmem [shape: f32[3,3,16,16], index: 19, kind: input, shape index: {}]
  %s20 = inlined_call_operand.vmem [shape: f32[1,16], index: 20, kind: input, shape index: {}]
  %s21 = inlined_call_operand.hbm [shape: f32[2,16,16], index: 21, kind: output, shape index: {}]
  %s22 = sld [smem:[#allocation0]]
  $region117: #{decoder_forward_nchw.1} parent=0
    _
  %s24 = ssub.s32 1, %s22
  %s25 = scalar_select 0, %s24, %s22
  $region1: #{decoder_forward_nchw.1} parent=0
    #allocation6 [shape = 'u8[16384]{0}', space=vmem, size = 0x4000, scoped, tag = 'output window, operand 0']
    #allocation7 [shape = 's32[2]{0}', space=sflag, size = 0x8, scoped, tag = 'scoped memory for decoder_forward_nchw.1']
    %26 = vsyncpa [#allocation7], 0
    %s27 = scalar_lea.sflag [#allocation7], 1
    %28 = vsyncpa %s27, 0
    loop: start=0, step=1, limit=4
    $region2: #{decoder_forward_nchw.1} parent=1 // loop_pre_header
      _
    $region3: #{decoder_forward_nchw.1} parent=1 // loop_header
      %s30 = sphi 0, %s34
      %p31 = scmp.ge.s32.totalorder %s30, 4
      %s40 = sphi 0, %s42
      %s43 = sphi 0, %s40
      %s44 = sphi 0, %s43
      %s60 = sphi 0, %s44
      %s66 = sphi 0, %s68
      %s69 = sphi 0, %s66
      %s70 = sphi 0, %s69
      %s86 = sphi 0, %s70
      %s92 = sphi 0, %s94
      %s95 = sphi 0, %s92
      %s96 = sphi 0, %s95
      %s112 = sphi 0, %s96
      %s116 = sphi 0, %s116
      %s118 = sphi 0, %s116
      %s119 = sphi 0, %s118
      %s133 = sphi 0, %s119
      %s137 = sphi 0, %s137
      %s139 = sphi 0, %s137
      %s140 = sphi 0, %s139
      %s154 = sphi 0, %s140
      %s158 = sphi 0, %s158
      %s160 = sphi 0, %s158
      %s161 = sphi 0, %s160
      %s175 = sphi 0, %s161
      %s179 = sphi 0, %s179
      %s181 = sphi 0, %s179
      %s182 = sphi 0, %s181
      %s196 = sphi 0, %s182
      %s200 = sphi 0, %s200
      %s202 = sphi 0, %s200
      %s203 = sphi 0, %s202
      %s217 = sphi 0, %s203
      %s221 = sphi 0, %s221
      %s223 = sphi 0, %s221
      %s224 = sphi 0, %s223
      %s238 = sphi 0, %s224
      %s242 = sphi 0, %s242
      %s244 = sphi 0, %s242
      %s245 = sphi 0, %s244
      %s259 = sphi 0, %s245
      %s263 = sphi 0, %s263
      %s265 = sphi 0, %s263
      %s266 = sphi 0, %s265
      %s280 = sphi 0, %s266
      %s284 = sphi 0, %s284
      %s286 = sphi 0, %s284
      %s287 = sphi 0, %s286
      %s301 = sphi 0, %s287
      %s305 = sphi 0, %s305
      %s307 = sphi 0, %s305
      %s308 = sphi 0, %s307
      %s322 = sphi 0, %s308
      %s326 = sphi 0, %s326
      %s328 = sphi 0, %s326
      %s329 = sphi 0, %s328
      %s343 = sphi 0, %s329
      %s347 = sphi 0, %s347
      %s349 = sphi 0, %s347
      %s350 = sphi 0, %s349
      %s364 = sphi 0, %s350
      %s368 = sphi 0, %s368
      %s370 = sphi 0, %s368
      %s371 = sphi 0, %s370
      %s385 = sphi 0, %s371
      %s389 = sphi 0, %s389
      %s391 = sphi 0, %s389
      %s392 = sphi 0, %s391
      %s406 = sphi 0, %s392
      %s410 = sphi 0, %s410
      %s412 = sphi 0, %s410
      %s413 = sphi 0, %s412
      %s427 = sphi 0, %s413
      %s431 = sphi 0, %s431
      %s433 = sphi 0, %s431
      %s434 = sphi 0, %s433
      %s448 = sphi 0, %s434
      %s452 = sphi 0, %s452
      %s454 = sphi 0, %s452
      %s455 = sphi 0, %s454
      %s469 = sphi 0, %s455
      %s473 = sphi 0, %s473
      %s475 = sphi 0, %s473
      %s476 = sphi 0, %s475
      %s490 = sphi 0, %s476
      %s496 = sphi 0, %s498
      %s499 = sphi 0, %s496
      %s500 = sphi 0, %s499
      %s516 = sphi 0, %s500
    $region4: #{decoder_forward_nchw.1} parent=1 // loop_header_branch
      %33 = sbr.rel (%p31) target = $region8
    $region5: #{decoder_forward_nchw.1} parent=1 // loop_body
      %s35 = ssub.s32 %s30, 1
      %s36 = ssub.s32 %s30, 2
      %s37 = sadd.s32 %s30, 1
      %s38 = ssub.s32 %s30, %s37
      %p39 = scmp.eq.s32.totalorder %s38, 0
      %s41 = sadd.s32 %s40, 1
      %s42 = scalar_select %p39, %s40, %s41
      %p45 = pneg %p39
      %p46 = scmp.eq.s32.totalorder %s30, 1
      %p47 = por %p45, %p46
      %p48 = scmp.ne.s32.totalorder %s40, %s43
      %p49 = scmp.eq.s32.totalorder %s30, 0
      %p50 = por %p48, %p49
      %p51 = scmp.ne.s32.totalorder %s40, %s43
      %p52 = scmp.eq.s32.totalorder %s35, 1
      %p53 = por %p51, %p52
      %p54 = scmp.ne.s32.totalorder %s43, %s44
      %p55 = scmp.eq.s32.totalorder %s35, 0
      %p56 = por %p54, %p55
      %p57 = scmp.ne.s32.totalorder %s43, %s44
      %p58 = scmp.eq.s32.totalorder %s36, 1
      %p59 = por %p57, %p58
      %p61 = scmp.ne.s32.totalorder %s44, %s60
      %p62 = scmp.eq.s32.totalorder %s36, 0
      %p63 = por %p61, %p62
      %s64 = ssub.s32 %s30, %s37
      %p65 = scmp.eq.s32.totalorder %s64, 0
      %s67 = sadd.s32 %s66, 1
      %s68 = scalar_select %p65, %s66, %s67
      %p71 = pneg %p65
      %p72 = scmp.eq.s32.totalorder %s30, 1
      %p73 = por %p71, %p72
      %p74 = scmp.ne.s32.totalorder %s66, %s69
      %p75 = scmp.eq.s32.totalorder %s30, 0
      %p76 = por %p74, %p75
      %p77 = scmp.ne.s32.totalorder %s66, %s69
      %p78 = scmp.eq.s32.totalorder %s35, 1
      %p79 = por %p77, %p78
      %p80 = scmp.ne.s32.totalorder %s69, %s70
      %p81 = scmp.eq.s32.totalorder %s35, 0
      %p82 = por %p80, %p81
      %p83 = scmp.ne.s32.totalorder %s69, %s70
      %p84 = scmp.eq.s32.totalorder %s36, 1
      %p85 = por %p83, %p84
      %p87 = scmp.ne.s32.totalorder %s70, %s86
      %p88 = scmp.eq.s32.totalorder %s36, 0
      %p89 = por %p87, %p88
      %s90 = ssub.s32 %s30, %s37
      %p91 = scmp.eq.s32.totalorder %s90, 0
      %s93 = sadd.s32 %s92, 1
      %s94 = scalar_select %p91, %s92, %s93
      %p97 = pneg %p91
      %p98 = scmp.eq.s32.totalorder %s30, 1
      %p99 = por %p97, %p98
      %p100 = scmp.ne.s32.totalorder %s92, %s95
      %p101 = scmp.eq.s32.totalorder %s30, 0
      %p102 = por %p100, %p101
      %p103 = scmp.ne.s32.totalorder %s92, %s95
      %p104 = scmp.eq.s32.totalorder %s35, 1
      %p105 = por %p103, %p104
      %p106 = scmp.ne.s32.totalorder %s95, %s96
      %p107 = scmp.eq.s32.totalorder %s35, 0
      %p108 = por %p106, %p107
      %p109 = scmp.ne.s32.totalorder %s95, %s96
      %p110 = scmp.eq.s32.totalorder %s36, 1
      %p111 = por %p109, %p110
      %p113 = scmp.ne.s32.totalorder %s96, %s112
      %p114 = scmp.eq.s32.totalorder %s36, 0
      %p115 = por %p113, %p114
      %s117 = sadd.s32 %s116, 1
      %p120 = scmp.eq.s32.totalorder %s30, 1
      %p121 = scmp.ne.s32.totalorder %s116, %s118
      %p122 = scmp.eq.s32.totalorder %s30, 0
      %p123 = por %p121, %p122
      %p124 = scmp.ne.s32.totalorder %s116, %s118
      %p125 = scmp.eq.s32.totalorder %s35, 1
      %p126 = por %p124, %p125
      %p127 = scmp.ne.s32.totalorder %s118, %s119
      %p128 = scmp.eq.s32.totalorder %s35, 0
      %p129 = por %p127, %p128
      %p130 = scmp.ne.s32.totalorder %s118, %s119
      %p131 = scmp.eq.s32.totalorder %s36, 1
      %p132 = por %p130, %p131
      %p134 = scmp.ne.s32.totalorder %s119, %s133
      %p135 = scmp.eq.s32.totalorder %s36, 0
      %p136 = por %p134, %p135
      %s138 = sadd.s32 %s137, 1
      %p141 = scmp.eq.s32.totalorder %s30, 1
      %p142 = scmp.ne.s32.totalorder %s137, %s139
      %p143 = scmp.eq.s32.totalorder %s30, 0
      %p144 = por %p142, %p143
      %p145 = scmp.ne.s32.totalorder %s137, %s139
      %p146 = scmp.eq.s32.totalorder %s35, 1
      %p147 = por %p145, %p146
      %p148 = scmp.ne.s32.totalorder %s139, %s140
      %p149 = scmp.eq.s32.totalorder %s35, 0
      %p150 = por %p148, %p149
      %p151 = scmp.ne.s32.totalorder %s139, %s140
      %p152 = scmp.eq.s32.totalorder %s36, 1
      %p153 = por %p151, %p152
      %p155 = scmp.ne.s32.totalorder %s140, %s154
      %p156 = scmp.eq.s32.totalorder %s36, 0
      %p157 = por %p155, %p156
      %s159 = sadd.s32 %s158, 1
      %p162 = scmp.eq.s32.totalorder %s30, 1
      %p163 = scmp.ne.s32.totalorder %s158, %s160
      %p164 = scmp.eq.s32.totalorder %s30, 0
      %p165 = por %p163, %p164
      %p166 = scmp.ne.s32.totalorder %s158, %s160
      %p167 = scmp.eq.s32.totalorder %s35, 1
      %p168 = por %p166, %p167
      %p169 = scmp.ne.s32.totalorder %s160, %s161
      %p170 = scmp.eq.s32.totalorder %s35, 0
      %p171 = por %p169, %p170
      %p172 = scmp.ne.s32.totalorder %s160, %s161
      %p173 = scmp.eq.s32.totalorder %s36, 1
      %p174 = por %p172, %p173
      %p176 = scmp.ne.s32.totalorder %s161, %s175
      %p177 = scmp.eq.s32.totalorder %s36, 0
      %p178 = por %p176, %p177
      %s180 = sadd.s32 %s179, 1
      %p183 = scmp.eq.s32.totalorder %s30, 1
      %p184 = scmp.ne.s32.totalorder %s179, %s181
      %p185 = scmp.eq.s32.totalorder %s30, 0
      %p186 = por %p184, %p185
      %p187 = scmp.ne.s32.totalorder %s179, %s181
      %p188 = scmp.eq.s32.totalorder %s35, 1
      %p189 = por %p187, %p188
      %p190 = scmp.ne.s32.totalorder %s181, %s182
      %p191 = scmp.eq.s32.totalorder %s35, 0
      %p192 = por %p190, %p191
      %p193 = scmp.ne.s32.totalorder %s181, %s182
      %p194 = scmp.eq.s32.totalorder %s36, 1
      %p195 = por %p193, %p194
      %p197 = scmp.ne.s32.totalorder %s182, %s196
      %p198 = scmp.eq.s32.totalorder %s36, 0
      %p199 = por %p197, %p198
      %s201 = sadd.s32 %s200, 1
      %p204 = scmp.eq.s32.totalorder %s30, 1
      %p205 = scmp.ne.s32.totalorder %s200, %s202
      %p206 = scmp.eq.s32.totalorder %s30, 0
      %p207 = por %p205, %p206
      %p208 = scmp.ne.s32.totalorder %s200, %s202
      %p209 = scmp.eq.s32.totalorder %s35, 1
      %p210 = por %p208, %p209
      %p211 = scmp.ne.s32.totalorder %s202, %s203
      %p212 = scmp.eq.s32.totalorder %s35, 0
      %p213 = por %p211, %p212
      %p214 = scmp.ne.s32.totalorder %s202, %s203
      %p215 = scmp.eq.s32.totalorder %s36, 1
      %p216 = por %p214, %p215
      %p218 = scmp.ne.s32.totalorder %s203, %s217
      %p219 = scmp.eq.s32.totalorder %s36, 0
      %p220 = por %p218, %p219
      %s222 = sadd.s32 %s221, 1
      %p225 = scmp.eq.s32.totalorder %s30, 1
      %p226 = scmp.ne.s32.totalorder %s221, %s223
      %p227 = scmp.eq.s32.totalorder %s30, 0
      %p228 = por %p226, %p227
      %p229 = scmp.ne.s32.totalorder %s221, %s223
      %p230 = scmp.eq.s32.totalorder %s35, 1
      %p231 = por %p229, %p230
      %p232 = scmp.ne.s32.totalorder %s223, %s224
      %p233 = scmp.eq.s32.totalorder %s35, 0
      %p234 = por %p232, %p233
      %p235 = scmp.ne.s32.totalorder %s223, %s224
      %p236 = scmp.eq.s32.totalorder %s36, 1
      %p237 = por %p235, %p236
      %p239 = scmp.ne.s32.totalorder %s224, %s238
      %p240 = scmp.eq.s32.totalorder %s36, 0
      %p241 = por %p239, %p240
      %s243 = sadd.s32 %s242, 1
      %p246 = scmp.eq.s32.totalorder %s30, 1
      %p247 = scmp.ne.s32.totalorder %s242, %s244
      %p248 = scmp.eq.s32.totalorder %s30, 0
      %p249 = por %p247, %p248
      %p250 = scmp.ne.s32.totalorder %s242, %s244
      %p251 = scmp.eq.s32.totalorder %s35, 1
      %p252 = por %p250, %p251
      %p253 = scmp.ne.s32.totalorder %s244, %s245
      %p254 = scmp.eq.s32.totalorder %s35, 0
      %p255 = por %p253, %p254
      %p256 = scmp.ne.s32.totalorder %s244, %s245
      %p257 = scmp.eq.s32.totalorder %s36, 1
      %p258 = por %p256, %p257
      %p260 = scmp.ne.s32.totalorder %s245, %s259
      %p261 = scmp.eq.s32.totalorder %s36, 0
      %p262 = por %p260, %p261
      %s264 = sadd.s32 %s263, 1
      %p267 = scmp.eq.s32.totalorder %s30, 1
      %p268 = scmp.ne.s32.totalorder %s263, %s265
      %p269 = scmp.eq.s32.totalorder %s30, 0
      %p270 = por %p268, %p269
      %p271 = scmp.ne.s32.totalorder %s263, %s265
      %p272 = scmp.eq.s32.totalorder %s35, 1
      %p273 = por %p271, %p272
      %p274 = scmp.ne.s32.totalorder %s265, %s266
      %p275 = scmp.eq.s32.totalorder %s35, 0
      %p276 = por %p274, %p275
      %p277 = scmp.ne.s32.totalorder %s265, %s266
      %p278 = scmp.eq.s32.totalorder %s36, 1
      %p279 = por %p277, %p278
      %p281 = scmp.ne.s32.totalorder %s266, %s280
      %p282 = scmp.eq.s32.totalorder %s36, 0
      %p283 = por %p281, %p282
      %s285 = sadd.s32 %s284, 1
      %p288 = scmp.eq.s32.totalorder %s30, 1
      %p289 = scmp.ne.s32.totalorder %s284, %s286
      %p290 = scmp.eq.s32.totalorder %s30, 0
      %p291 = por %p289, %p290
      %p292 = scmp.ne.s32.totalorder %s284, %s286
      %p293 = scmp.eq.s32.totalorder %s35, 1
      %p294 = por %p292, %p293
      %p295 = scmp.ne.s32.totalorder %s286, %s287
      %p296 = scmp.eq.s32.totalorder %s35, 0
      %p297 = por %p295, %p296
      %p298 = scmp.ne.s32.totalorder %s286, %s287
      %p299 = scmp.eq.s32.totalorder %s36, 1
      %p300 = por %p298, %p299
      %p302 = scmp.ne.s32.totalorder %s287, %s301
      %p303 = scmp.eq.s32.totalorder %s36, 0
      %p304 = por %p302, %p303
      %s306 = sadd.s32 %s305, 1
      %p309 = scmp.eq.s32.totalorder %s30, 1
      %p310 = scmp.ne.s32.totalorder %s305, %s307
      %p311 = scmp.eq.s32.totalorder %s30, 0
      %p312 = por %p310, %p311
      %p313 = scmp.ne.s32.totalorder %s305, %s307
      %p314 = scmp.eq.s32.totalorder %s35, 1
      %p315 = por %p313, %p314
      %p316 = scmp.ne.s32.totalorder %s307, %s308
      %p317 = scmp.eq.s32.totalorder %s35, 0
      %p318 = por %p316, %p317
      %p319 = scmp.ne.s32.totalorder %s307, %s308
      %p320 = scmp.eq.s32.totalorder %s36, 1
      %p321 = por %p319, %p320
      %p323 = scmp.ne.s32.totalorder %s308, %s322
      %p324 = scmp.eq.s32.totalorder %s36, 0
      %p325 = por %p323, %p324
      %s327 = sadd.s32 %s326, 1
      %p330 = scmp.eq.s32.totalorder %s30, 1
      %p331 = scmp.ne.s32.totalorder %s326, %s328
      %p332 = scmp.eq.s32.totalorder %s30, 0
      %p333 = por %p331, %p332
      %p334 = scmp.ne.s32.totalorder %s326, %s328
      %p335 = scmp.eq.s32.totalorder %s35, 1
      %p336 = por %p334, %p335
      %p337 = scmp.ne.s32.totalorder %s328, %s329
      %p338 = scmp.eq.s32.totalorder %s35, 0
      %p339 = por %p337, %p338
      %p340 = scmp.ne.s32.totalorder %s328, %s329
      %p341 = scmp.eq.s32.totalorder %s36, 1
      %p342 = por %p340, %p341
      %p344 = scmp.ne.s32.totalorder %s329, %s343
      %p345 = scmp.eq.s32.totalorder %s36, 0
      %p346 = por %p344, %p345
      %s348 = sadd.s32 %s347, 1
      %p351 = scmp.eq.s32.totalorder %s30, 1
      %p352 = scmp.ne.s32.totalorder %s347, %s349
      %p353 = scmp.eq.s32.totalorder %s30, 0
      %p354 = por %p352, %p353
      %p355 = scmp.ne.s32.totalorder %s347, %s349
      %p356 = scmp.eq.s32.totalorder %s35, 1
      %p357 = por %p355, %p356
      %p358 = scmp.ne.s32.totalorder %s349, %s350
      %p359 = scmp.eq.s32.totalorder %s35, 0
      %p360 = por %p358, %p359
      %p361 = scmp.ne.s32.totalorder %s349, %s350
      %p362 = scmp.eq.s32.totalorder %s36, 1
      %p363 = por %p361, %p362
      %p365 = scmp.ne.s32.totalorder %s350, %s364
      %p366 = scmp.eq.s32.totalorder %s36, 0
      %p367 = por %p365, %p366
      %s369 = sadd.s32 %s368, 1
      %p372 = scmp.eq.s32.totalorder %s30, 1
      %p373 = scmp.ne.s32.totalorder %s368, %s370
      %p374 = scmp.eq.s32.totalorder %s30, 0
      %p375 = por %p373, %p374
      %p376 = scmp.ne.s32.totalorder %s368, %s370
      %p377 = scmp.eq.s32.totalorder %s35, 1
      %p378 = por %p376, %p377
      %p379 = scmp.ne.s32.totalorder %s370, %s371
      %p380 = scmp.eq.s32.totalorder %s35, 0
      %p381 = por %p379, %p380
      %p382 = scmp.ne.s32.totalorder %s370, %s371
      %p383 = scmp.eq.s32.totalorder %s36, 1
      %p384 = por %p382, %p383
      %p386 = scmp.ne.s32.totalorder %s371, %s385
      %p387 = scmp.eq.s32.totalorder %s36, 0
      %p388 = por %p386, %p387
      %s390 = sadd.s32 %s389, 1
      %p393 = scmp.eq.s32.totalorder %s30, 1
      %p394 = scmp.ne.s32.totalorder %s389, %s391
      %p395 = scmp.eq.s32.totalorder %s30, 0
      %p396 = por %p394, %p395
      %p397 = scmp.ne.s32.totalorder %s389, %s391
      %p398 = scmp.eq.s32.totalorder %s35, 1
      %p399 = por %p397, %p398
      %p400 = scmp.ne.s32.totalorder %s391, %s392
      %p401 = scmp.eq.s32.totalorder %s35, 0
      %p402 = por %p400, %p401
      %p403 = scmp.ne.s32.totalorder %s391, %s392
      %p404 = scmp.eq.s32.totalorder %s36, 1
      %p405 = por %p403, %p404
      %p407 = scmp.ne.s32.totalorder %s392, %s406
      %p408 = scmp.eq.s32.totalorder %s36, 0
      %p409 = por %p407, %p408
      %s411 = sadd.s32 %s410, 1
      %p414 = scmp.eq.s32.totalorder %s30, 1
      %p415 = scmp.ne.s32.totalorder %s410, %s412
      %p416 = scmp.eq.s32.totalorder %s30, 0
      %p417 = por %p415, %p416
      %p418 = scmp.ne.s32.totalorder %s410, %s412
      %p419 = scmp.eq.s32.totalorder %s35, 1
      %p420 = por %p418, %p419
      %p421 = scmp.ne.s32.totalorder %s412, %s413
      %p422 = scmp.eq.s32.totalorder %s35, 0
      %p423 = por %p421, %p422
      %p424 = scmp.ne.s32.totalorder %s412, %s413
      %p425 = scmp.eq.s32.totalorder %s36, 1
      %p426 = por %p424, %p425
      %p428 = scmp.ne.s32.totalorder %s413, %s427
      %p429 = scmp.eq.s32.totalorder %s36, 0
      %p430 = por %p428, %p429
      %s432 = sadd.s32 %s431, 1
      %p435 = scmp.eq.s32.totalorder %s30, 1
      %p436 = scmp.ne.s32.totalorder %s431, %s433
      %p437 = scmp.eq.s32.totalorder %s30, 0
      %p438 = por %p436, %p437
      %p439 = scmp.ne.s32.totalorder %s431, %s433
      %p440 = scmp.eq.s32.totalorder %s35, 1
      %p441 = por %p439, %p440
      %p442 = scmp.ne.s32.totalorder %s433, %s434
      %p443 = scmp.eq.s32.totalorder %s35, 0
      %p444 = por %p442, %p443
      %p445 = scmp.ne.s32.totalorder %s433, %s434
      %p446 = scmp.eq.s32.totalorder %s36, 1
      %p447 = por %p445, %p446
      %p449 = scmp.ne.s32.totalorder %s434, %s448
      %p450 = scmp.eq.s32.totalorder %s36, 0
      %p451 = por %p449, %p450
      %s453 = sadd.s32 %s452, 1
      %p456 = scmp.eq.s32.totalorder %s30, 1
      %p457 = scmp.ne.s32.totalorder %s452, %s454
      %p458 = scmp.eq.s32.totalorder %s30, 0
      %p459 = por %p457, %p458
      %p460 = scmp.ne.s32.totalorder %s452, %s454
      %p461 = scmp.eq.s32.totalorder %s35, 1
      %p462 = por %p460, %p461
      %p463 = scmp.ne.s32.totalorder %s454, %s455
      %p464 = scmp.eq.s32.totalorder %s35, 0
      %p465 = por %p463, %p464
      %p466 = scmp.ne.s32.totalorder %s454, %s455
      %p467 = scmp.eq.s32.totalorder %s36, 1
      %p468 = por %p466, %p467
      %p470 = scmp.ne.s32.totalorder %s455, %s469
      %p471 = scmp.eq.s32.totalorder %s36, 0
      %p472 = por %p470, %p471
      %s474 = sadd.s32 %s473, 1
      %p477 = scmp.eq.s32.totalorder %s30, 1
      %p478 = scmp.ne.s32.totalorder %s473, %s475
      %p479 = scmp.eq.s32.totalorder %s30, 0
      %p480 = por %p478, %p479
      %p481 = scmp.ne.s32.totalorder %s473, %s475
      %p482 = scmp.eq.s32.totalorder %s35, 1
      %p483 = por %p481, %p482
      %p484 = scmp.ne.s32.totalorder %s475, %s476
      %p485 = scmp.eq.s32.totalorder %s35, 0
      %p486 = por %p484, %p485
      %p487 = scmp.ne.s32.totalorder %s475, %s476
      %p488 = scmp.eq.s32.totalorder %s36, 1
      %p489 = por %p487, %p488
      %p491 = scmp.ne.s32.totalorder %s476, %s490
      %p492 = scmp.eq.s32.totalorder %s36, 0
      %p493 = por %p491, %p492
      %s494 = ssub.s32 %s30, %s37
      %p495 = scmp.eq.s32.totalorder %s494, 0
      %s497 = sadd.s32 %s496, 1
      %s498 = scalar_select %p495, %s496, %s497
      %p501 = pneg %p495
      %p502 = scmp.eq.s32.totalorder %s30, 1
      %p503 = por %p501, %p502
      %p504 = scmp.ne.s32.totalorder %s496, %s499
      %p505 = scmp.eq.s32.totalorder %s30, 0
      %p506 = por %p504, %p505
      %p507 = scmp.ne.s32.totalorder %s496, %s499
      %p508 = scmp.eq.s32.totalorder %s35, 1
      %p509 = por %p507, %p508
      %p510 = scmp.ne.s32.totalorder %s499, %s500
      %p511 = scmp.eq.s32.totalorder %s35, 0
      %p512 = por %p510, %p511
      %p513 = scmp.ne.s32.totalorder %s499, %s500
      %p514 = scmp.eq.s32.totalorder %s36, 1
      %p515 = por %p513, %p514
      %p517 = scmp.ne.s32.totalorder %s500, %s516
      %p518 = scmp.eq.s32.totalorder %s36, 0
      %p519 = por %p517, %p518
      %p520 = scmp.le.s32.totalorder 1, %s30
      %p521 = scmp.lt.s32.totalorder %s30, 3
      %p522 = pnand %p520, %p521
      %p523 = pneg %p522
      // Predicated region
      $region9: #{decoder_forward_nchw.1} parent=5 // pred_check
        _
      $region10: #{decoder_forward_nchw.1} parent=5 // pred_check_branch
        %525 = sbr.rel (%p522) target = $region12
      $region11: #{decoder_forward_nchw.1} parent=5 // pred_region
        %s526 = ssub.s32 %s30, 1
        // Predicated region
        $region13: #{decoder_forward_nchw.1} parent=11 // pred_check
          %p527 = pneg %p129
        $region14: #{decoder_forward_nchw.1} parent=11 // pred_check_branch
          %529 = sbr.rel (%p527) target = $region16
        $region15: #{decoder_forward_nchw.1} parent=11 // pred_region
          _
        $region16: #{decoder_forward_nchw.1} parent=11 // pred_fallthru
          _
        // Predicated region
        $region17: #{decoder_forward_nchw.1} parent=11 // pred_check
          %p530 = pneg %p150
        $region18: #{decoder_forward_nchw.1} parent=11 // pred_check_branch
          %532 = sbr.rel (%p530) target = $region20
        $region19: #{decoder_forward_nchw.1} parent=11 // pred_region
          _
        $region20: #{decoder_forward_nchw.1} parent=11 // pred_fallthru
          _
        // Predicated region
        $region21: #{decoder_forward_nchw.1} parent=11 // pred_check
          %p533 = pneg %p171
        $region22: #{decoder_forward_nchw.1} parent=11 // pred_check_branch
          %535 = sbr.rel (%p533) target = $region24
        $region23: #{decoder_forward_nchw.1} parent=11 // pred_region
          _
        $region24: #{decoder_forward_nchw.1} parent=11 // pred_fallthru
          _
        // Predicated region
        $region25: #{decoder_forward_nchw.1} parent=11 // pred_check
          %p536 = pneg %p192
        $region26: #{decoder_forward_nchw.1} parent=11 // pred_check_branch
          %538 = sbr.rel (%p536) target = $region28
        $region27: #{decoder_forward_nchw.1} parent=11 // pred_region
          _
        $region28: #{decoder_forward_nchw.1} parent=11 // pred_fallthru
          _
        // Predicated region
        $region29: #{decoder_forward_nchw.1} parent=11 // pred_check
          %p539 = pneg %p213
        $region30: #{decoder_forward_nchw.1} parent=11 // pred_check_branch
          %541 = sbr.rel (%p539) target = $region32
        $region31: #{decoder_forward_nchw.1} parent=11 // pred_region
          _
        $region32: #{decoder_forward_nchw.1} parent=11 // pred_fallthru
          _
        // Predicated region
        $region33: #{decoder_forward_nchw.1} parent=11 // pred_check
          %p542 = pneg %p234
        $region34: #{decoder_forward_nchw.1} parent=11 // pred_check_branch
          %544 = sbr.rel (%p542) target = $region36
        $region35: #{decoder_forward_nchw.1} parent=11 // pred_region
          _
        $region36: #{decoder_forward_nchw.1} parent=11 // pred_fallthru
          _
        // Predicated region
        $region37: #{decoder_forward_nchw.1} parent=11 // pred_check
          %p545 = pneg %p255
        $region38: #{decoder_forward_nchw.1} parent=11 // pred_check_branch
          %547 = sbr.rel (%p545) target = $region40
        $region39: #{decoder_forward_nchw.1} parent=11 // pred_region
          _
        $region40: #{decoder_forward_nchw.1} parent=11 // pred_fallthru
          _
        // Predicated region
        $region41: #{decoder_forward_nchw.1} parent=11 // pred_check
          %p548 = pneg %p276
        $region42: #{decoder_forward_nchw.1} parent=11 // pred_check_branch
          %550 = sbr.rel (%p548) target = $region44
        $region43: #{decoder_forward_nchw.1} parent=11 // pred_region
          _
        $region44: #{decoder_forward_nchw.1} parent=11 // pred_fallthru
          _
        // Predicated region
        $region45: #{decoder_forward_nchw.1} parent=11 // pred_check
          %p551 = pneg %p297
        $region46: #{decoder_forward_nchw.1} parent=11 // pred_check_branch
          %553 = sbr.rel (%p551) target = $region48
        $region47: #{decoder_forward_nchw.1} parent=11 // pred_region
          _
        $region48: #{decoder_forward_nchw.1} parent=11 // pred_fallthru
          _
        // Predicated region
        $region49: #{decoder_forward_nchw.1} parent=11 // pred_check
          %p554 = pneg %p318
        $region50: #{decoder_forward_nchw.1} parent=11 // pred_check_branch
          %556 = sbr.rel (%p554) target = $region52
        $region51: #{decoder_forward_nchw.1} parent=11 // pred_region
          _
        $region52: #{decoder_forward_nchw.1} parent=11 // pred_fallthru
          _
        // Predicated region
        $region53: #{decoder_forward_nchw.1} parent=11 // pred_check
          %p557 = pneg %p339
        $region54: #{decoder_forward_nchw.1} parent=11 // pred_check_branch
          %559 = sbr.rel (%p557) target = $region56
        $region55: #{decoder_forward_nchw.1} parent=11 // pred_region
          _
        $region56: #{decoder_forward_nchw.1} parent=11 // pred_fallthru
          _
        // Predicated region
        $region57: #{decoder_forward_nchw.1} parent=11 // pred_check
          %p560 = pneg %p360
        $region58: #{decoder_forward_nchw.1} parent=11 // pred_check_branch
          %562 = sbr.rel (%p560) target = $region60
        $region59: #{decoder_forward_nchw.1} parent=11 // pred_region
          _
        $region60: #{decoder_forward_nchw.1} parent=11 // pred_fallthru
          _
        // Predicated region
        $region61: #{decoder_forward_nchw.1} parent=11 // pred_check
          %p563 = pneg %p381
        $region62: #{decoder_forward_nchw.1} parent=11 // pred_check_branch
          %565 = sbr.rel (%p563) target = $region64
        $region63: #{decoder_forward_nchw.1} parent=11 // pred_region
          _
        $region64: #{decoder_forward_nchw.1} parent=11 // pred_fallthru
          _
        // Predicated region
        $region65: #{decoder_forward_nchw.1} parent=11 // pred_check
          %p566 = pneg %p402
        $region66: #{decoder_forward_nchw.1} parent=11 // pred_check_branch
          %568 = sbr.rel (%p566) target = $region68
        $region67: #{decoder_forward_nchw.1} parent=11 // pred_region
          _
        $region68: #{decoder_forward_nchw.1} parent=11 // pred_fallthru
          _
        // Predicated region
        $region69: #{decoder_forward_nchw.1} parent=11 // pred_check
          %p569 = pneg %p423
        $region70: #{decoder_forward_nchw.1} parent=11 // pred_check_branch
          %571 = sbr.rel (%p569) target = $region72
        $region71: #{decoder_forward_nchw.1} parent=11 // pred_region
          _
        $region72: #{decoder_forward_nchw.1} parent=11 // pred_fallthru
          _
        // Predicated region
        $region73: #{decoder_forward_nchw.1} parent=11 // pred_check
          %p572 = pneg %p444
        $region74: #{decoder_forward_nchw.1} parent=11 // pred_check_branch
          %574 = sbr.rel (%p572) target = $region76
        $region75: #{decoder_forward_nchw.1} parent=11 // pred_region
          _
        $region76: #{decoder_forward_nchw.1} parent=11 // pred_fallthru
          _
        // Predicated region
        $region77: #{decoder_forward_nchw.1} parent=11 // pred_check
          %p575 = pneg %p465
        $region78: #{decoder_forward_nchw.1} parent=11 // pred_check_branch
          %577 = sbr.rel (%p575) target = $region80
        $region79: #{decoder_forward_nchw.1} parent=11 // pred_region
          _
        $region80: #{decoder_forward_nchw.1} parent=11 // pred_fallthru
          _
        // Predicated region
        $region81: #{decoder_forward_nchw.1} parent=11 // pred_check
          %p578 = pneg %p486
        $region82: #{decoder_forward_nchw.1} parent=11 // pred_check_branch
          %580 = sbr.rel (%p578) target = $region84
        $region83: #{decoder_forward_nchw.1} parent=11 // pred_region
          _
        $region84: #{decoder_forward_nchw.1} parent=11 // pred_fallthru
          _
      $region12: #{decoder_forward_nchw.1} parent=5 // pred_fallthru
        _
      %p581 = scmp.lt.s32.totalorder %s30, 2
      // Predicated region
      $region85: #{decoder_forward_nchw.1} parent=5 // pred_check
        %p582 = pneg %p581
      $region86: #{decoder_forward_nchw.1} parent=5 // pred_check_branch
        %584 = sbr.rel (%p582) target = $region88
      $region87: #{decoder_forward_nchw.1} parent=5 // pred_region
        // Predicated region
        $region89: #{decoder_forward_nchw.1} parent=87 // pred_check
          %p585 = pneg %p50
        $region90: #{decoder_forward_nchw.1} parent=87 // pred_check_branch
          %587 = sbr.rel (%p585) target = $region92
        $region91: #{decoder_forward_nchw.1} parent=87 // pred_region
          %p588 = scmp.lt.s32.totalorder %s30, 1
          %s589 = scalar_select %p588, %s30, 1
          %s590 = smul.addr %s589, 2
          %s591 = smul.addr %s590, 8
          %s592 = scalar_lea.vmem %s0, %s591
        $region92: #{decoder_forward_nchw.1} parent=87 // pred_fallthru
          _
        // Predicated region
        $region93: #{decoder_forward_nchw.1} parent=87 // pred_check
          %p593 = pneg %p76
        $region94: #{decoder_forward_nchw.1} parent=87 // pred_check_branch
          %595 = sbr.rel (%p593) target = $region96
        $region95: #{decoder_forward_nchw.1} parent=87 // pred_region
          %p596 = scmp.lt.s32.totalorder %s30, 1
          %s597 = scalar_select %p596, %s30, 1
          %s598 = smul.addr %s597, 10
          %s599 = smul.addr %s598, 8
          %s600 = scalar_lea.vmem %s1, %s599
        $region96: #{decoder_forward_nchw.1} parent=87 // pred_fallthru
          _
        // Predicated region
        $region97: #{decoder_forward_nchw.1} parent=87 // pred_check
          %p601 = pneg %p102
        $region98: #{decoder_forward_nchw.1} parent=87 // pred_check_branch
          %603 = sbr.rel (%p601) target = $region100
        $region99: #{decoder_forward_nchw.1} parent=87 // pred_region
          %p604 = scmp.lt.s32.totalorder %s30, 1
          %s605 = scalar_select %p604, %s30, 1
          %s606 = smul.addr %s605, 10
          %s607 = smul.addr %s606, 8
          %s608 = scalar_lea.vmem %s2, %s607
        $region100: #{decoder_forward_nchw.1} parent=87 // pred_fallthru
          _
      $region88: #{decoder_forward_nchw.1} parent=5 // pred_fallthru
        _
      %p609 = scmp.le.s32.totalorder 1, %s30
      %p610 = scmp.lt.s32.totalorder %s30, 3
      %p611 = pnand %p609, %p610
      %p612 = pneg %p611
      // Predicated region
      $region101: #{decoder_forward_nchw.1} parent=5 // pred_check
        _
      $region102: #{decoder_forward_nchw.1} parent=5 // pred_check_branch
        %614 = sbr.rel (%p611) target = $region104
      $region103: #{decoder_forward_nchw.1} parent=5 // pred_region
        %s615 = ssub.s32 %s30, 1
        %p616 = scmp.lt.s32.totalorder %s35, 1
        %s617 = scalar_select %p616, %s35, 1
        %s618 = smul.addr %s617, 2
        %s619 = smul.addr %s618, 8
        %s620 = scalar_lea.vmem %s0, %s619
        %p621 = pneg %p56
        %p622 = pneg %p53
        %p623 = scmp.lt.s32.totalorder %s35, 1
        %s624 = scalar_select %p623, %s35, 1
        %s625 = smul.addr %s624, 10
        %s626 = smul.addr %s625, 8
        %s627 = scalar_lea.vmem %s1, %s626
        %p628 = pneg %p82
        %p629 = pneg %p79
        %p630 = scmp.lt.s32.totalorder %s35, 1
        %s631 = scalar_select %p630, %s35, 1
        %s632 = smul.addr %s631, 10
        %s633 = smul.addr %s632, 8
        %s634 = scalar_lea.vmem %s2, %s633
        %p635 = pneg %p108
        %p636 = pneg %p105
        %p637 = pneg %p129
        %p638 = pneg %p126
        %p639 = pneg %p150
        %p640 = pneg %p147
        %p641 = pneg %p171
        %p642 = pneg %p168
        %p643 = pneg %p192
        %p644 = pneg %p189
        %p645 = pneg %p213
        %p646 = pneg %p210
        %p647 = pneg %p234
        %p648 = pneg %p231
        %p649 = pneg %p255
        %p650 = pneg %p252
        %p651 = pneg %p276
        %p652 = pneg %p273
        %p653 = pneg %p297
        %p654 = pneg %p294
        %p655 = pneg %p318
        %p656 = pneg %p315
        %p657 = pneg %p339
        %p658 = pneg %p336
        %p659 = pneg %p360
        %p660 = pneg %p357
        %p661 = pneg %p381
        %p662 = pneg %p378
        %p663 = pneg %p402
        %p664 = pneg %p399
        %p665 = pneg %p423
        %p666 = pneg %p420
        %p667 = pneg %p444
        %p668 = pneg %p441
        %p669 = pneg %p465
        %p670 = pneg %p462
        %p671 = pneg %p486
        %p672 = pneg %p483
        %p673 = pneg %p512
        %p674 = pneg %p509
        %s675 = sand.u32 %s499, 1
        %s676 = scalar_lea.sflag [#allocation7], %s675
        %s677 = sand.u32 %s499, 1
        %s678 = smul.addr %s677, 16
        %s679 = scalar_lea.vmem [#allocation6], %s678
        %p680 = scmp.lt.s32.totalorder %s35, 1
        %s681 = scalar_select %p680, %s35, 1
        %s682 = smul.addr %s681, 2
        %s683 = smul.addr %s682, 8
        %s684 = scalar_lea.vmem %s0, %s683
        %p685 = scmp.lt.s32.totalorder %s35, 1
        %s686 = scalar_select %p685, %s35, 1
        %s687 = smul.addr %s686, 10
        %s688 = smul.addr %s687, 8
        %s689 = scalar_lea.vmem %s1, %s688
        %p690 = scmp.lt.s32.totalorder %s35, 1
        %s691 = scalar_select %p690, %s35, 1
        %s692 = smul.addr %s691, 10
        %s693 = smul.addr %s692, 8
        %s694 = scalar_lea.vmem %s2, %s693
        %v695 = vld [vmem:[%s684] sm:$0xff]
        %v696 = vld [vmem:[%s684 + $0x8] sm:$0xff]
        %v697 = vld [vmem:[%s6] sm:$0x1]
        %v699 = vlaneseq
        %v700 = vshrl.u32 %v699, 7
        %v701 = vsub.s32 0, %v700
        %v702 = vrot.slane %v697, %v701
        %v704 = vld [vmem:[%s5] sm:$0xff]
        %v705 = vld [vmem:[%s5 + $0x8] sm:$0xff]
        %v706 = vld [vmem:[%s5 + $0x10] sm:$0xff]
        %v707 = vld [vmem:[%s5 + $0x18] sm:$0xff]
        %v708 = vld [vmem:[%s5 + $0x20] sm:$0xff]
        %v709 = vld [vmem:[%s5 + $0x28] sm:$0xff]
        %v710 = vld [vmem:[%s5 + $0x30] sm:$0xff]
        %v711 = vld [vmem:[%s5 + $0x38] sm:$0xff]
        %vm712 = vcmask 523264
        %v714 = vsel %vm712, %v695, 0
        %v717 = vsel %vm712, %v696, 0
        %719 = vmatprep.subr.mxu0 0.0
        %720 = vmatpush1.msra.mxu0 0.0
        %721 = vmatprep.subr.mxu0 0.0
        %722 = vmatpush1.msra.mxu0 0.0
        %723 = vmatprep.subr.mxu0 0.0
        %724 = vmatpush1.msra.mxu0 0.0
        %725 = vmatprep.subr.mxu0 0.0
        %726 = vmatpush1.msra.mxu0 0.0
        %727 = vmatprep.subr.mxu0 0.0
        %728 = vmatpush1.msra.mxu0 0.0
        %729 = vmatprep.subr.mxu0 0.0
        %730 = vmatpush1.msra.mxu0 0.0
        %731 = vmatprep.subr.mxu0 0.0
        %732 = vmatpush1.msra.mxu0 0.0
        %733 = vmatprep.subr.mxu0 0.0
        %734 = vmatpush1.msra.mxu0 0.0
        %735 = vmatprep.subr.mxu0 0.0
        %736 = vmatpush1.msra.mxu0 %v711
        %737 = vmatprep.subr.mxu0 0.0
        %738 = vmatpush1.msra.mxu0 %v710
        %739 = vmatprep.subr.mxu0 0.0
        %740 = vmatpush1.msra.mxu0 %v709
        %741 = vmatprep.subr.mxu0 0.0
        %742 = vmatpush1.msra.mxu0 %v708
        %743 = vmatprep.subr.mxu0 0.0
        %744 = vmatpush1.msra.mxu0 %v707
        %745 = vmatprep.subr.mxu0 0.0
        %746 = vmatpush1.msra.mxu0 %v706
        %747 = vmatprep.subr.mxu0 0.0
        %748 = vmatpush1.msra.mxu0 %v705
        %749 = vmatprep.subr.mxu0 0.0
        %750 = vmatpush1.msra.mxu0 %v704
        %751 = vmatprep.subr.mxu0 0.0
        %752 = vmatpush2.msra.mxu0 0.0
        %753 = vmatprep.subr.mxu0 0.0
        %754 = vmatpush2.msra.mxu0 0.0
        %755 = vmatprep.subr.mxu0 0.0
        %756 = vmatpush2.msra.mxu0 0.0
        %757 = vmatprep.subr.mxu0 0.0
        %758 = vmatpush2.msra.mxu0 0.0
        %759 = vmatprep.subr.mxu0 0.0
        %760 = vmatpush2.msra.mxu0 0.0
        %761 = vmatprep.subr.mxu0 0.0
        %762 = vmatpush2.msra.mxu0 0.0
        %763 = vmatprep.subr.mxu0 0.0
        %764 = vmatpush2.msra.mxu0 0.0
        %765 = vmatprep.subr.mxu0 0.0
        %766 = vmatpush2.msra.mxu0 0.0
        %767 = vmatprep.subr.mxu0 0.0
        %768 = vmatpush2.msra.mxu0 0.0
        %769 = vmatprep.subr.mxu0 0.0
        %770 = vmatpush2.msra.mxu0 0.0
        %771 = vmatprep.subr.mxu0 0.0
        %772 = vmatpush2.msra.mxu0 0.0
        %773 = vmatprep.subr.mxu0 0.0
        %774 = vmatpush2.msra.mxu0 0.0
        %775 = vmatprep.subr.mxu0 0.0
        %776 = vmatpush2.msra.mxu0 0.0
        %777 = vmatprep.subr.mxu0 0.0
        %778 = vmatpush2.msra.mxu0 0.0
        %779 = vmatprep.subr.mxu0 0.0
        %780 = vmatpush2.msra.mxu0 0.0
        %781 = vmatprep.subr.mxu0 0.0
        %782 = vmatpush2.msra.mxu0 0.0
        %783 = vmatprep.mubr.f32.mxu0 0.0
        %784 = vmatmul.mubr.f32.gmra.mxu0 %v714
        %v785 = vpop.f32.mrf.mxu0
        %v786 = vadd.f32 0.0, %v785
        %v787 = vpop.f32.mrf.mxu0
        %788 = vmatprep.mubr.f32.mxu0 0.0
        %789 = vmatmul.mubr.f32.gmra.mxu0 %v717
        %v790 = vpop.f32.mrf.mxu0
        %v791 = vadd.f32 0.0, %v790
        %v792 = vpop.f32.mrf.mxu0
        %793 = vdwg.mxu0
        %v794 = vld [vmem:[%s3] sm:$0xff]
        %v795 = vld [vmem:[%s3 + $0x8] sm:$0xff]
        %v796 = vld [vmem:[%s3 + $0x10] sm:$0xff]
        %v797 = vld [vmem:[%s3 + $0x18] sm:$0xff]
        %v798 = vld [vmem:[%s3 + $0x20] sm:$0xff]
        %v799 = vld [vmem:[%s3 + $0x28] sm:$0xff]
        %v800 = vld [vmem:[%s3 + $0x30] sm:$0xff]
        %v801 = vld [vmem:[%s3 + $0x38] sm:$0xff]
        %v802 = vld [vmem:[%s3 + $0x40] sm:$0xff]
        %v803 = vld [vmem:[%s3 + $0x48] sm:$0xff]
        %vm804 = vcmask 130048
        %v806 = vsel %vm804, %v794, 0
        %v809 = vsel %vm804, %v795, 0
        %v812 = vsel %vm804, %v796, 0
        %v815 = vsel %vm804, %v797, 0
        %v818 = vsel %vm804, %v798, 0
        %v821 = vsel %vm804, %v799, 0
        %v824 = vsel %vm804, %v800, 0
        %v827 = vsel %vm804, %v801, 0
        %v830 = vsel %vm804, %v802, 0
        %v833 = vsel %vm804, %v803, 0
        %835 = vmatprep.subr.mxu0 0.0
        %836 = vmatpush1.msra.mxu0 0.0
        %837 = vmatprep.subr.mxu0 0.0
        %838 = vmatpush1.msra.mxu0 0.0
        %839 = vmatprep.subr.mxu0 0.0
        %840 = vmatpush1.msra.mxu0 0.0
        %841 = vmatprep.subr.mxu0 0.0
        %842 = vmatpush1.msra.mxu0 0.0
        %843 = vmatprep.subr.mxu0 0.0
        %844 = vmatpush1.msra.mxu0 0.0
        %845 = vmatprep.subr.mxu0 0.0
        %846 = vmatpush1.msra.mxu0 0.0
        %847 = vmatprep.subr.mxu0 0.0
        %848 = vmatpush1.msra.mxu0 0.0
        %849 = vmatprep.subr.mxu0 0.0
        %850 = vmatpush1.msra.mxu0 0.0
        %851 = vmatprep.subr.mxu0 0.0
        %852 = vmatpush1.msra.mxu0 0.0
        %853 = vmatprep.subr.mxu0 0.0
        %854 = vmatpush1.msra.mxu0 0.0
        %855 = vmatprep.subr.mxu0 0.0
        %856 = vmatpush1.msra.mxu0 0.0
        %857 = vmatprep.subr.mxu0 0.0
        %858 = vmatpush1.msra.mxu0 0.0
        %859 = vmatprep.subr.mxu0 0.0
        %860 = vmatpush1.msra.mxu0 0.0
        %861 = vmatprep.subr.mxu0 0.0
        %862 = vmatpush1.msra.mxu0 0.0
        %863 = vmatprep.subr.mxu0 0.0
        %864 = vmatpush1.msra.mxu0 %v791
        %865 = vmatprep.subr.mxu0 0.0
        %866 = vmatpush1.msra.mxu0 %v786
        %867 = vmatprep.subr.mxu0 0.0
        %868 = vmatpush2.msra.mxu0 0.0
        %869 = vmatprep.subr.mxu0 0.0
        %870 = vmatpush2.msra.mxu0 0.0
        %871 = vmatprep.subr.mxu0 0.0
        %872 = vmatpush2.msra.mxu0 0.0
        %873 = vmatprep.subr.mxu0 0.0
        %874 = vmatpush2.msra.mxu0 0.0
        %875 = vmatprep.subr.mxu0 0.0
        %876 = vmatpush2.msra.mxu0 0.0
        %877 = vmatprep.subr.mxu0 0.0
        %878 = vmatpush2.msra.mxu0 0.0
        %879 = vmatprep.subr.mxu0 0.0
        %880 = vmatpush2.msra.mxu0 0.0
        %881 = vmatprep.subr.mxu0 0.0
        %882 = vmatpush2.msra.mxu0 0.0
        %883 = vmatprep.subr.mxu0 0.0
        %884 = vmatpush2.msra.mxu0 0.0
        %885 = vmatprep.subr.mxu0 0.0
        %886 = vmatpush2.msra.mxu0 0.0
        %887 = vmatprep.subr.mxu0 0.0
        %888 = vmatpush2.msra.mxu0 0.0
        %889 = vmatprep.subr.mxu0 0.0
        %890 = vmatpush2.msra.mxu0 0.0
        %891 = vmatprep.subr.mxu0 0.0
        %892 = vmatpush2.msra.mxu0 0.0
        %893 = vmatprep.subr.mxu0 0.0
        %894 = vmatpush2.msra.mxu0 0.0
        %895 = vmatprep.subr.mxu0 0.0
        %896 = vmatpush2.msra.mxu0 0.0
        %897 = vmatprep.subr.mxu0 0.0
        %898 = vmatpush2.msra.mxu0 0.0
        %899 = vmatprep.mubr.f32.mxu0 0.0
        %900 = vmatmul.mubr.f32.gmra.mxu0 %v806
        %v901 = vpop.f32.mrf.mxu0
        %v902 = vadd.f32 0.0, %v901
        %v903 = vpop.f32.mrf.mxu0
        %904 = vmatprep.mubr.f32.mxu0 0.0
        %905 = vmatmul.mubr.f32.gmra.mxu0 %v809
        %v906 = vpop.f32.mrf.mxu0
        %v907 = vadd.f32 0.0, %v906
        %v908 = vpop.f32.mrf.mxu0
        %909 = vmatprep.mubr.f32.mxu0 0.0
        %910 = vmatmul.mubr.f32.gmra.mxu0 %v812
        %v911 = vpop.f32.mrf.mxu0
        %v912 = vadd.f32 0.0, %v911
        %v913 = vpop.f32.mrf.mxu0
        %914 = vmatprep.mubr.f32.mxu0 0.0
        %915 = vmatmul.mubr.f32.gmra.mxu0 %v815
        %v916 = vpop.f32.mrf.mxu0
        %v917 = vadd.f32 0.0, %v916
        %v918 = vpop.f32.mrf.mxu0
        %919 = vmatprep.mubr.f32.mxu0 0.0
        %920 = vmatmul.mubr.f32.gmra.mxu0 %v818
        %v921 = vpop.f32.mrf.mxu0
        %v922 = vadd.f32 0.0, %v921
        %v923 = vpop.f32.mrf.mxu0
        %924 = vmatprep.mubr.f32.mxu0 0.0
        %925 = vmatmul.mubr.f32.gmra.mxu0 %v821
        %v926 = vpop.f32.mrf.mxu0
        %v927 = vadd.f32 0.0, %v926
        %v928 = vpop.f32.mrf.mxu0
        %929 = vmatprep.mubr.f32.mxu0 0.0
        %930 = vmatmul.mubr.f32.gmra.mxu0 %v824
        %v931 = vpop.f32.mrf.mxu0
        %v932 = vadd.f32 0.0, %v931
        %v933 = vpop.f32.mrf.mxu0
        %934 = vmatprep.mubr.f32.mxu0 0.0
        %935 = vmatmul.mubr.f32.gmra.mxu0 %v827
        %v936 = vpop.f32.mrf.mxu0
        %v937 = vadd.f32 0.0, %v936
        %v938 = vpop.f32.mrf.mxu0
        %939 = vmatprep.mubr.f32.mxu0 0.0
        %940 = vmatmul.mubr.f32.gmra.mxu0 %v830
        %v941 = vpop.f32.mrf.mxu0
        %v942 = vadd.f32 0.0, %v941
        %v943 = vpop.f32.mrf.mxu0
        %944 = vmatprep.mubr.f32.mxu0 0.0
        %945 = vmatmul.mubr.f32.gmra.mxu0 %v833
        %v946 = vpop.f32.mrf.mxu0
        %v947 = vadd.f32 0.0, %v946
        %v948 = vpop.f32.mrf.mxu0
        %949 = vdwg.mxu0
        %v950 = vadd.f32 %v702, %v902
        %v951 = vadd.f32 %v702, %v907
        %v952 = vadd.f32 %v702, %v912
        %v953 = vadd.f32 %v702, %v917
        %v954 = vadd.f32 %v702, %v922
        %v955 = vadd.f32 %v702, %v927
        %v956 = vadd.f32 %v702, %v932
        %v957 = vadd.f32 %v702, %v937
        %v958 = vadd.f32 %v702, %v942
        %v959 = vadd.f32 %v702, %v947
        %s960 = scalar_lea.vmem %s5, 64
        %v961 = vld [vmem:[%s960] sm:$0xff]
        %v962 = vld [vmem:[%s960 + $0x8] sm:$0xff]
        %v963 = vld [vmem:[%s960 + $0x10] sm:$0xff]
        %v964 = vld [vmem:[%s960 + $0x18] sm:$0xff]
        %v965 = vld [vmem:[%s960 + $0x20] sm:$0xff]
        %v966 = vld [vmem:[%s960 + $0x28] sm:$0xff]
        %v967 = vld [vmem:[%s960 + $0x30] sm:$0xff]
        %v968 = vld [vmem:[%s960 + $0x38] sm:$0xff]
        %969 = vmatprep.subr.mxu0 0.0
        %970 = vmatpush1.msra.mxu0 0.0
        %971 = vmatprep.subr.mxu0 0.0
        %972 = vmatpush1.msra.mxu0 0.0
        %973 = vmatprep.subr.mxu0 0.0
        %974 = vmatpush1.msra.mxu0 0.0
        %975 = vmatprep.subr.mxu0 0.0
        %976 = vmatpush1.msra.mxu0 0.0
        %977 = vmatprep.subr.mxu0 0.0
        %978 = vmatpush1.msra.mxu0 0.0
        %979 = vmatprep.subr.mxu0 0.0
        %980 = vmatpush1.msra.mxu0 0.0
        %981 = vmatprep.subr.mxu0 0.0
        %982 = vmatpush1.msra.mxu0 0.0
        %983 = vmatprep.subr.mxu0 0.0
        %984 = vmatpush1.msra.mxu0 0.0
        %985 = vmatprep.subr.mxu0 0.0
        %986 = vmatpush1.msra.mxu0 %v968
        %987 = vmatprep.subr.mxu0 0.0
        %988 = vmatpush1.msra.mxu0 %v967
        %989 = vmatprep.subr.mxu0 0.0
        %990 = vmatpush1.msra.mxu0 %v966
        %991 = vmatprep.subr.mxu0 0.0
        %992 = vmatpush1.msra.mxu0 %v965
        %993 = vmatprep.subr.mxu0 0.0
        %994 = vmatpush1.msra.mxu0 %v964
        %995 = vmatprep.subr.mxu0 0.0
        %996 = vmatpush1.msra.mxu0 %v963
        %997 = vmatprep.subr.mxu0 0.0
        %998 = vmatpush1.msra.mxu0 %v962
        %999 = vmatprep.subr.mxu0 0.0
        %1000 = vmatpush1.msra.mxu0 %v961
        %1001 = vmatprep.subr.mxu0 0.0
        %1002 = vmatpush2.msra.mxu0 0.0
        %1003 = vmatprep.subr.mxu0 0.0
        %1004 = vmatpush2.msra.mxu0 0.0
        %1005 = vmatprep.subr.mxu0 0.0
        %1006 = vmatpush2.msra.mxu0 0.0
        %1007 = vmatprep.subr.mxu0 0.0
        %1008 = vmatpush2.msra.mxu0 0.0
        %1009 = vmatprep.subr.mxu0 0.0
        %1010 = vmatpush2.msra.mxu0 0.0
        %1011 = vmatprep.subr.mxu0 0.0
        %1012 = vmatpush2.msra.mxu0 0.0
        %1013 = vmatprep.subr.mxu0 0.0
        %1014 = vmatpush2.msra.mxu0 0.0
        %1015 = vmatprep.subr.mxu0 0.0
        %1016 = vmatpush2.msra.mxu0 0.0
        %1017 = vmatprep.subr.mxu0 0.0
        %1018 = vmatpush2.msra.mxu0 0.0
        %1019 = vmatprep.subr.mxu0 0.0
        %1020 = vmatpush2.msra.mxu0 0.0
        %1021 = vmatprep.subr.mxu0 0.0
        %1022 = vmatpush2.msra.mxu0 0.0
        %1023 = vmatprep.subr.mxu0 0.0
        %1024 = vmatpush2.msra.mxu0 0.0
        %1025 = vmatprep.subr.mxu0 0.0
        %1026 = vmatpush2.msra.mxu0 0.0
        %1027 = vmatprep.subr.mxu0 0.0
        %1028 = vmatpush2.msra.mxu0 0.0
        %1029 = vmatprep.subr.mxu0 0.0
        %1030 = vmatpush2.msra.mxu0 0.0
        %1031 = vmatprep.subr.mxu0 0.0
        %1032 = vmatpush2.msra.mxu0 0.0
        %1033 = vmatprep.mubr.f32.mxu0 0.0
        %1034 = vmatmul.mubr.f32.gmra.mxu0 %v714
        %v1035 = vpop.f32.mrf.mxu0
        %v1036 = vadd.f32 0.0, %v1035
        %v1037 = vpop.f32.mrf.mxu0
        %1038 = vmatprep.mubr.f32.mxu0 0.0
        %1039 = vmatmul.mubr.f32.gmra.mxu0 %v717
        %v1040 = vpop.f32.mrf.mxu0
        %v1041 = vadd.f32 0.0, %v1040
        %v1042 = vpop.f32.mrf.mxu0
        %1043 = vdwg.mxu0
        %s1044 = scalar_lea.vmem %s3, 80
        %v1045 = vld [vmem:[%s1044] sm:$0xff]
        %v1046 = vld [vmem:[%s1044 + $0x8] sm:$0xff]
        %v1047 = vld [vmem:[%s1044 + $0x10] sm:$0xff]
        %v1048 = vld [vmem:[%s1044 + $0x18] sm:$0xff]
        %v1049 = vld [vmem:[%s1044 + $0x20] sm:$0xff]
        %v1050 = vld [vmem:[%s1044 + $0x28] sm:$0xff]
        %v1051 = vld [vmem:[%s1044 + $0x30] sm:$0xff]
        %v1052 = vld [vmem:[%s1044 + $0x38] sm:$0xff]
        %v1053 = vld [vmem:[%s1044 + $0x40] sm:$0xff]
        %v1054 = vld [vmem:[%s1044 + $0x48] sm:$0xff]
        %v1056 = vsel %vm804, %v1045, 0
        %v1059 = vsel %vm804, %v1046, 0
        %v1062 = vsel %vm804, %v1047, 0
        %v1065 = vsel %vm804, %v1048, 0
        %v1068 = vsel %vm804, %v1049, 0
        %v1071 = vsel %vm804, %v1050, 0
        %v1074 = vsel %vm804, %v1051, 0
        %v1077 = vsel %vm804, %v1052, 0
        %v1080 = vsel %vm804, %v1053, 0
        %v1083 = vsel %vm804, %v1054, 0
        %1085 = vmatprep.subr.mxu0 0.0
        %1086 = vmatpush1.msra.mxu0 0.0
        %1087 = vmatprep.subr.mxu0 0.0
        %1088 = vmatpush1.msra.mxu0 0.0
        %1089 = vmatprep.subr.mxu0 0.0
        %1090 = vmatpush1.msra.mxu0 0.0
        %1091 = vmatprep.subr.mxu0 0.0
        %1092 = vmatpush1.msra.mxu0 0.0
        %1093 = vmatprep.subr.mxu0 0.0
        %1094 = vmatpush1.msra.mxu0 0.0
        %1095 = vmatprep.subr.mxu0 0.0
        %1096 = vmatpush1.msra.mxu0 0.0
        %1097 = vmatprep.subr.mxu0 0.0
        %1098 = vmatpush1.msra.mxu0 0.0
        %1099 = vmatprep.subr.mxu0 0.0
        %1100 = vmatpush1.msra.mxu0 0.0
        %1101 = vmatprep.subr.mxu0 0.0
        %1102 = vmatpush1.msra.mxu0 0.0
        %1103 = vmatprep.subr.mxu0 0.0
        %1104 = vmatpush1.msra.mxu0 0.0
        %1105 = vmatprep.subr.mxu0 0.0
        %1106 = vmatpush1.msra.mxu0 0.0
        %1107 = vmatprep.subr.mxu0 0.0
        %1108 = vmatpush1.msra.mxu0 0.0
        %1109 = vmatprep.subr.mxu0 0.0
        %1110 = vmatpush1.msra.mxu0 0.0
        %1111 = vmatprep.subr.mxu0 0.0
        %1112 = vmatpush1.msra.mxu0 0.0
        %1113 = vmatprep.subr.mxu0 0.0
        %1114 = vmatpush1.msra.mxu0 %v1041
        %1115 = vmatprep.subr.mxu0 0.0
        %1116 = vmatpush1.msra.mxu0 %v1036
        %1117 = vmatprep.subr.mxu0 0.0
        %1118 = vmatpush2.msra.mxu0 0.0
        %1119 = vmatprep.subr.mxu0 0.0
        %1120 = vmatpush2.msra.mxu0 0.0
        %1121 = vmatprep.subr.mxu0 0.0
        %1122 = vmatpush2.msra.mxu0 0.0
        %1123 = vmatprep.subr.mxu0 0.0
        %1124 = vmatpush2.msra.mxu0 0.0
        %1125 = vmatprep.subr.mxu0 0.0
        %1126 = vmatpush2.msra.mxu0 0.0
        %1127 = vmatprep.subr.mxu0 0.0
        %1128 = vmatpush2.msra.mxu0 0.0
        %1129 = vmatprep.subr.mxu0 0.0
        %1130 = vmatpush2.msra.mxu0 0.0
        %1131 = vmatprep.subr.mxu0 0.0
        %1132 = vmatpush2.msra.mxu0 0.0
        %1133 = vmatprep.subr.mxu0 0.0
        %1134 = vmatpush2.msra.mxu0 0.0
        %1135 = vmatprep.subr.mxu0 0.0
        %1136 = vmatpush2.msra.mxu0 0.0
        %1137 = vmatprep.subr.mxu0 0.0
        %1138 = vmatpush2.msra.mxu0 0.0
        %1139 = vmatprep.subr.mxu0 0.0
        %1140 = vmatpush2.msra.mxu0 0.0
        %1141 = vmatprep.subr.mxu0 0.0
        %1142 = vmatpush2.msra.mxu0 0.0
        %1143 = vmatprep.subr.mxu0 0.0
        %1144 = vmatpush2.msra.mxu0 0.0
        %1145 = vmatprep.subr.mxu0 0.0
        %1146 = vmatpush2.msra.mxu0 0.0
        %1147 = vmatprep.subr.mxu0 0.0
        %1148 = vmatpush2.msra.mxu0 0.0
        %1149 = vmatprep.mubr.f32.mxu0 0.0
        %1150 = vmatmul.mubr.f32.gmra.mxu0 %v1056
        %v1151 = vpop.f32.mrf.mxu0
        %v1152 = vadd.f32 0.0, %v1151
        %v1153 = vpop.f32.mrf.mxu0
        %1154 = vmatprep.mubr.f32.mxu0 0.0
        %1155 = vmatmul.mubr.f32.gmra.mxu0 %v1059
        %v1156 = vpop.f32.mrf.mxu0
        %v1157 = vadd.f32 0.0, %v1156
        %v1158 = vpop.f32.mrf.mxu0
        %1159 = vmatprep.mubr.f32.mxu0 0.0
        %1160 = vmatmul.mubr.f32.gmra.mxu0 %v1062
        %v1161 = vpop.f32.mrf.mxu0
        %v1162 = vadd.f32 0.0, %v1161
        %v1163 = vpop.f32.mrf.mxu0
        %1164 = vmatprep.mubr.f32.mxu0 0.0
        %1165 = vmatmul.mubr.f32.gmra.mxu0 %v1065
        %v1166 = vpop.f32.mrf.mxu0
        %v1167 = vadd.f32 0.0, %v1166
        %v1168 = vpop.f32.mrf.mxu0
        %1169 = vmatprep.mubr.f32.mxu0 0.0
        %1170 = vmatmul.mubr.f32.gmra.mxu0 %v1068
        %v1171 = vpop.f32.mrf.mxu0
        %v1172 = vadd.f32 0.0, %v1171
        %v1173 = vpop.f32.mrf.mxu0
        %1174 = vmatprep.mubr.f32.mxu0 0.0
        %1175 = vmatmul.mubr.f32.gmra.mxu0 %v1071
        %v1176 = vpop.f32.mrf.mxu0
        %v1177 = vadd.f32 0.0, %v1176
        %v1178 = vpop.f32.mrf.mxu0
        %1179 = vmatprep.mubr.f32.mxu0 0.0
        %1180 = vmatmul.mubr.f32.gmra.mxu0 %v1074
        %v1181 = vpop.f32.mrf.mxu0
        %v1182 = vadd.f32 0.0, %v1181
        %v1183 = vpop.f32.mrf.mxu0
        %1184 = vmatprep.mubr.f32.mxu0 0.0
        %1185 = vmatmul.mubr.f32.gmra.mxu0 %v1077
        %v1186 = vpop.f32.mrf.mxu0
        %v1187 = vadd.f32 0.0, %v1186
        %v1188 = vpop.f32.mrf.mxu0
        %1189 = vmatprep.mubr.f32.mxu0 0.0
        %1190 = vmatmul.mubr.f32.gmra.mxu0 %v1080
        %v1191 = vpop.f32.mrf.mxu0
        %v1192 = vadd.f32 0.0, %v1191
        %v1193 = vpop.f32.mrf.mxu0
        %1194 = vmatprep.mubr.f32.mxu0 0.0
        %1195 = vmatmul.mubr.f32.gmra.mxu0 %v1083
        %v1196 = vpop.f32.mrf.mxu0
        %v1197 = vadd.f32 0.0, %v1196
        %v1198 = vpop.f32.mrf.mxu0
        %1199 = vdwg.mxu0
        %v1200 = vadd.f32 %v950, %v1152
        %v1201 = vadd.f32 %v951, %v1157
        %v1202 = vadd.f32 %v952, %v1162
        %v1203 = vadd.f32 %v953, %v1167
        %v1204 = vadd.f32 %v954, %v1172
        %v1205 = vadd.f32 %v955, %v1177
        %v1206 = vadd.f32 %v956, %v1182
        %v1207 = vadd.f32 %v957, %v1187
        %v1208 = vadd.f32 %v958, %v1192
        %v1209 = vadd.f32 %v959, %v1197
        %s1210 = scalar_lea.vmem %s5, 128
        %v1211 = vld [vmem:[%s1210] sm:$0xff]
        %v1212 = vld [vmem:[%s1210 + $0x8] sm:$0xff]
        %v1213 = vld [vmem:[%s1210 + $0x10] sm:$0xff]
        %v1214 = vld [vmem:[%s1210 + $0x18] sm:$0xff]
        %v1215 = vld [vmem:[%s1210 + $0x20] sm:$0xff]
        %v1216 = vld [vmem:[%s1210 + $0x28] sm:$0xff]
        %v1217 = vld [vmem:[%s1210 + $0x30] sm:$0xff]
        %v1218 = vld [vmem:[%s1210 + $0x38] sm:$0xff]
        %1219 = vmatprep.subr.mxu0 0.0
        %1220 = vmatpush1.msra.mxu0 0.0
        %1221 = vmatprep.subr.mxu0 0.0
        %1222 = vmatpush1.msra.mxu0 0.0
        %1223 = vmatprep.subr.mxu0 0.0
        %1224 = vmatpush1.msra.mxu0 0.0
        %1225 = vmatprep.subr.mxu0 0.0
        %1226 = vmatpush1.msra.mxu0 0.0
        %1227 = vmatprep.subr.mxu0 0.0
        %1228 = vmatpush1.msra.mxu0 0.0
        %1229 = vmatprep.subr.mxu0 0.0
        %1230 = vmatpush1.msra.mxu0 0.0
        %1231 = vmatprep.subr.mxu0 0.0
        %1232 = vmatpush1.msra.mxu0 0.0
        %1233 = vmatprep.subr.mxu0 0.0
        %1234 = vmatpush1.msra.mxu0 0.0
        %1235 = vmatprep.subr.mxu0 0.0
        %1236 = vmatpush1.msra.mxu0 %v1218
        %1237 = vmatprep.subr.mxu0 0.0
        %1238 = vmatpush1.msra.mxu0 %v1217
        %1239 = vmatprep.subr.mxu0 0.0
        %1240 = vmatpush1.msra.mxu0 %v1216
        %1241 = vmatprep.subr.mxu0 0.0
        %1242 = vmatpush1.msra.mxu0 %v1215
        %1243 = vmatprep.subr.mxu0 0.0
        %1244 = vmatpush1.msra.mxu0 %v1214
        %1245 = vmatprep.subr.mxu0 0.0
        %1246 = vmatpush1.msra.mxu0 %v1213
        %1247 = vmatprep.subr.mxu0 0.0
        %1248 = vmatpush1.msra.mxu0 %v1212
        %1249 = vmatprep.subr.mxu0 0.0
        %1250 = vmatpush1.msra.mxu0 %v1211
        %1251 = vmatprep.subr.mxu0 0.0
        %1252 = vmatpush2.msra.mxu0 0.0
        %1253 = vmatprep.subr.mxu0 0.0
        %1254 = vmatpush2.msra.mxu0 0.0
        %1255 = vmatprep.subr.mxu0 0.0
        %1256 = vmatpush2.msra.mxu0 0.0
        %1257 = vmatprep.subr.mxu0 0.0
        %1258 = vmatpush2.msra.mxu0 0.0
        %1259 = vmatprep.subr.mxu0 0.0
        %1260 = vmatpush2.msra.mxu0 0.0
        %1261 = vmatprep.subr.mxu0 0.0
        %1262 = vmatpush2.msra.mxu0 0.0
        %1263 = vmatprep.subr.mxu0 0.0
        %1264 = vmatpush2.msra.mxu0 0.0
        %1265 = vmatprep.subr.mxu0 0.0
        %1266 = vmatpush2.msra.mxu0 0.0
        %1267 = vmatprep.subr.mxu0 0.0
        %1268 = vmatpush2.msra.mxu0 0.0
        %1269 = vmatprep.subr.mxu0 0.0
        %1270 = vmatpush2.msra.mxu0 0.0
        %1271 = vmatprep.subr.mxu0 0.0
        %1272 = vmatpush2.msra.mxu0 0.0
        %1273 = vmatprep.subr.mxu0 0.0
        %1274 = vmatpush2.msra.mxu0 0.0
        %1275 = vmatprep.subr.mxu0 0.0
        %1276 = vmatpush2.msra.mxu0 0.0
        %1277 = vmatprep.subr.mxu0 0.0
        %1278 = vmatpush2.msra.mxu0 0.0
        %1279 = vmatprep.subr.mxu0 0.0
        %1280 = vmatpush2.msra.mxu0 0.0
        %1281 = vmatprep.subr.mxu0 0.0
        %1282 = vmatpush2.msra.mxu0 0.0
        %1283 = vmatprep.mubr.f32.mxu0 0.0
        %1284 = vmatmul.mubr.f32.gmra.mxu0 %v714
        %v1285 = vpop.f32.mrf.mxu0
        %v1286 = vadd.f32 0.0, %v1285
        %v1287 = vpop.f32.mrf.mxu0
        %1288 = vmatprep.mubr.f32.mxu0 0.0
        %1289 = vmatmul.mubr.f32.gmra.mxu0 %v717
        %v1290 = vpop.f32.mrf.mxu0
        %v1291 = vadd.f32 0.0, %v1290
        %v1292 = vpop.f32.mrf.mxu0
        %1293 = vdwg.mxu0
        %s1294 = scalar_lea.vmem %s3, 160
        %v1295 = vld [vmem:[%s1294] sm:$0xff]
        %v1296 = vld [vmem:[%s1294 + $0x8] sm:$0xff]
        %v1297 = vld [vmem:[%s1294 + $0x10] sm:$0xff]
        %v1298 = vld [vmem:[%s1294 + $0x18] sm:$0xff]
        %v1299 = vld [vmem:[%s1294 + $0x20] sm:$0xff]
        %v1300 = vld [vmem:[%s1294 + $0x28] sm:$0xff]
        %v1301 = vld [vmem:[%s1294 + $0x30] sm:$0xff]
        %v1302 = vld [vmem:[%s1294 + $0x38] sm:$0xff]
        %v1303 = vld [vmem:[%s1294 + $0x40] sm:$0xff]
        %v1304 = vld [vmem:[%s1294 + $0x48] sm:$0xff]
        %v1306 = vsel %vm804, %v1295, 0
        %v1309 = vsel %vm804, %v1296, 0
        %v1312 = vsel %vm804, %v1297, 0
        %v1315 = vsel %vm804, %v1298, 0
        %v1318 = vsel %vm804, %v1299, 0
        %v1321 = vsel %vm804, %v1300, 0
        %v1324 = vsel %vm804, %v1301, 0
        %v1327 = vsel %vm804, %v1302, 0
        %v1330 = vsel %vm804, %v1303, 0
        %v1333 = vsel %vm804, %v1304, 0
        %1335 = vmatprep.subr.mxu0 0.0
        %1336 = vmatpush1.msra.mxu0 0.0
        %1337 = vmatprep.subr.mxu0 0.0
        %1338 = vmatpush1.msra.mxu0 0.0
        %1339 = vmatprep.subr.mxu0 0.0
        %1340 = vmatpush1.msra.mxu0 0.0
        %1341 = vmatprep.subr.mxu0 0.0
        %1342 = vmatpush1.msra.mxu0 0.0
        %1343 = vmatprep.subr.mxu0 0.0
        %1344 = vmatpush1.msra.mxu0 0.0
        %1345 = vmatprep.subr.mxu0 0.0
        %1346 = vmatpush1.msra.mxu0 0.0
        %1347 = vmatprep.subr.mxu0 0.0
        %1348 = vmatpush1.msra.mxu0 0.0
        %1349 = vmatprep.subr.mxu0 0.0
        %1350 = vmatpush1.msra.mxu0 0.0
        %1351 = vmatprep.subr.mxu0 0.0
        %1352 = vmatpush1.msra.mxu0 0.0
        %1353 = vmatprep.subr.mxu0 0.0
        %1354 = vmatpush1.msra.mxu0 0.0
        %1355 = vmatprep.subr.mxu0 0.0
        %1356 = vmatpush1.msra.mxu0 0.0
        %1357 = vmatprep.subr.mxu0 0.0
        %1358 = vmatpush1.msra.mxu0 0.0
        %1359 = vmatprep.subr.mxu0 0.0
        %1360 = vmatpush1.msra.mxu0 0.0
        %1361 = vmatprep.subr.mxu0 0.0
        %1362 = vmatpush1.msra.mxu0 0.0
        %1363 = vmatprep.subr.mxu0 0.0
        %1364 = vmatpush1.msra.mxu0 %v1291
        %1365 = vmatprep.subr.mxu0 0.0
        %1366 = vmatpush1.msra.mxu0 %v1286
        %1367 = vmatprep.subr.mxu0 0.0
        %1368 = vmatpush2.msra.mxu0 0.0
        %1369 = vmatprep.subr.mxu0 0.0
        %1370 = vmatpush2.msra.mxu0 0.0
        %1371 = vmatprep.subr.mxu0 0.0
        %1372 = vmatpush2.msra.mxu0 0.0
        %1373 = vmatprep.subr.mxu0 0.0
        %1374 = vmatpush2.msra.mxu0 0.0
        %1375 = vmatprep.subr.mxu0 0.0
        %1376 = vmatpush2.msra.mxu0 0.0
        %1377 = vmatprep.subr.mxu0 0.0
        %1378 = vmatpush2.msra.mxu0 0.0
        %1379 = vmatprep.subr.mxu0 0.0
        %1380 = vmatpush2.msra.mxu0 0.0
        %1381 = vmatprep.subr.mxu0 0.0
        %1382 = vmatpush2.msra.mxu0 0.0
        %1383 = vmatprep.subr.mxu0 0.0
        %1384 = vmatpush2.msra.mxu0 0.0
        %1385 = vmatprep.subr.mxu0 0.0
        %1386 = vmatpush2.msra.mxu0 0.0
        %1387 = vmatprep.subr.mxu0 0.0
        %1388 = vmatpush2.msra.mxu0 0.0
        %1389 = vmatprep.subr.mxu0 0.0
        %1390 = vmatpush2.msra.mxu0 0.0
        %1391 = vmatprep.subr.mxu0 0.0
        %1392 = vmatpush2.msra.mxu0 0.0
        %1393 = vmatprep.subr.mxu0 0.0
        %1394 = vmatpush2.msra.mxu0 0.0
        %1395 = vmatprep.subr.mxu0 0.0
        %1396 = vmatpush2.msra.mxu0 0.0
        %1397 = vmatprep.subr.mxu0 0.0
        %1398 = vmatpush2.msra.mxu0 0.0
        %1399 = vmatprep.mubr.f32.mxu0 0.0
        %1400 = vmatmul.mubr.f32.gmra.mxu0 %v1306
        %v1401 = vpop.f32.mrf.mxu0
        %v1402 = vadd.f32 0.0, %v1401
        %v1403 = vpop.f32.mrf.mxu0
        %1404 = vmatprep.mubr.f32.mxu0 0.0
        %1405 = vmatmul.mubr.f32.gmra.mxu0 %v1309
        %v1406 = vpop.f32.mrf.mxu0
        %v1407 = vadd.f32 0.0, %v1406
        %v1408 = vpop.f32.mrf.mxu0
        %1409 = vmatprep.mubr.f32.mxu0 0.0
        %1410 = vmatmul.mubr.f32.gmra.mxu0 %v1312
        %v1411 = vpop.f32.mrf.mxu0
        %v1412 = vadd.f32 0.0, %v1411
        %v1413 = vpop.f32.mrf.mxu0
        %1414 = vmatprep.mubr.f32.mxu0 0.0
        %1415 = vmatmul.mubr.f32.gmra.mxu0 %v1315
        %v1416 = vpop.f32.mrf.mxu0
        %v1417 = vadd.f32 0.0, %v1416
        %v1418 = vpop.f32.mrf.mxu0
        %1419 = vmatprep.mubr.f32.mxu0 0.0
        %1420 = vmatmul.mubr.f32.gmra.mxu0 %v1318
        %v1421 = vpop.f32.mrf.mxu0
        %v1422 = vadd.f32 0.0, %v1421
        %v1423 = vpop.f32.mrf.mxu0
        %1424 = vmatprep.mubr.f32.mxu0 0.0
        %1425 = vmatmul.mubr.f32.gmra.mxu0 %v1321
        %v1426 = vpop.f32.mrf.mxu0
        %v1427 = vadd.f32 0.0, %v1426
        %v1428 = vpop.f32.mrf.mxu0
        %1429 = vmatprep.mubr.f32.mxu0 0.0
        %1430 = vmatmul.mubr.f32.gmra.mxu0 %v1324
        %v1431 = vpop.f32.mrf.mxu0
        %v1432 = vadd.f32 0.0, %v1431
        %v1433 = vpop.f32.mrf.mxu0
        %1434 = vmatprep.mubr.f32.mxu0 0.0
        %1435 = vmatmul.mubr.f32.gmra.mxu0 %v1327
        %v1436 = vpop.f32.mrf.mxu0
        %v1437 = vadd.f32 0.0, %v1436
        %v1438 = vpop.f32.mrf.mxu0
        %1439 = vmatprep.mubr.f32.mxu0 0.0
        %1440 = vmatmul.mubr.f32.gmra.mxu0 %v1330
        %v1441 = vpop.f32.mrf.mxu0
        %v1442 = vadd.f32 0.0, %v1441
        %v1443 = vpop.f32.mrf.mxu0
        %1444 = vmatprep.mubr.f32.mxu0 0.0
        %1445 = vmatmul.mubr.f32.gmra.mxu0 %v1333
        %v1446 = vpop.f32.mrf.mxu0
        %v1447 = vadd.f32 0.0, %v1446
        %v1448 = vpop.f32.mrf.mxu0
        %1449 = vdwg.mxu0
        %v1450 = vadd.f32 %v1200, %v1402
        %v1451 = vadd.f32 %v1201, %v1407
        %v1452 = vadd.f32 %v1202, %v1412
        %v1453 = vadd.f32 %v1203, %v1417
        %v1454 = vadd.f32 %v1204, %v1422
        %v1455 = vadd.f32 %v1205, %v1427
        %v1456 = vadd.f32 %v1206, %v1432
        %v1457 = vadd.f32 %v1207, %v1437
        %v1458 = vadd.f32 %v1208, %v1442
        %v1459 = vadd.f32 %v1209, %v1447
        %s1460 = scalar_lea.vmem %s5, 192
        %v1461 = vld [vmem:[%s1460] sm:$0xff]
        %v1462 = vld [vmem:[%s1460 + $0x8] sm:$0xff]
        %v1463 = vld [vmem:[%s1460 + $0x10] sm:$0xff]
        %v1464 = vld [vmem:[%s1460 + $0x18] sm:$0xff]
        %v1465 = vld [vmem:[%s1460 + $0x20] sm:$0xff]
        %v1466 = vld [vmem:[%s1460 + $0x28] sm:$0xff]
        %v1467 = vld [vmem:[%s1460 + $0x30] sm:$0xff]
        %v1468 = vld [vmem:[%s1460 + $0x38] sm:$0xff]
        %1469 = vmatprep.subr.mxu0 0.0
        %1470 = vmatpush1.msra.mxu0 0.0
        %1471 = vmatprep.subr.mxu0 0.0
        %1472 = vmatpush1.msra.mxu0 0.0
        %1473 = vmatprep.subr.mxu0 0.0
        %1474 = vmatpush1.msra.mxu0 0.0
        %1475 = vmatprep.subr.mxu0 0.0
        %1476 = vmatpush1.msra.mxu0 0.0
        %1477 = vmatprep.subr.mxu0 0.0
        %1478 = vmatpush1.msra.mxu0 0.0
        %1479 = vmatprep.subr.mxu0 0.0
        %1480 = vmatpush1.msra.mxu0 0.0
        %1481 = vmatprep.subr.mxu0 0.0
        %1482 = vmatpush1.msra.mxu0 0.0
        %1483 = vmatprep.subr.mxu0 0.0
        %1484 = vmatpush1.msra.mxu0 0.0
        %1485 = vmatprep.subr.mxu0 0.0
        %1486 = vmatpush1.msra.mxu0 %v1468
        %1487 = vmatprep.subr.mxu0 0.0
        %1488 = vmatpush1.msra.mxu0 %v1467
        %1489 = vmatprep.subr.mxu0 0.0
        %1490 = vmatpush1.msra.mxu0 %v1466
        %1491 = vmatprep.subr.mxu0 0.0
        %1492 = vmatpush1.msra.mxu0 %v1465
        %1493 = vmatprep.subr.mxu0 0.0
        %1494 = vmatpush1.msra.mxu0 %v1464
        %1495 = vmatprep.subr.mxu0 0.0
        %1496 = vmatpush1.msra.mxu0 %v1463
        %1497 = vmatprep.subr.mxu0 0.0
        %1498 = vmatpush1.msra.mxu0 %v1462
        %1499 = vmatprep.subr.mxu0 0.0
        %1500 = vmatpush1.msra.mxu0 %v1461
        %1501 = vmatprep.subr.mxu0 0.0
        %1502 = vmatpush2.msra.mxu0 0.0
        %1503 = vmatprep.subr.mxu0 0.0
        %1504 = vmatpush2.msra.mxu0 0.0
        %1505 = vmatprep.subr.mxu0 0.0
        %1506 = vmatpush2.msra.mxu0 0.0
        %1507 = vmatprep.subr.mxu0 0.0
        %1508 = vmatpush2.msra.mxu0 0.0
        %1509 = vmatprep.subr.mxu0 0.0
        %1510 = vmatpush2.msra.mxu0 0.0
        %1511 = vmatprep.subr.mxu0 0.0
        %1512 = vmatpush2.msra.mxu0 0.0
        %1513 = vmatprep.subr.mxu0 0.0
        %1514 = vmatpush2.msra.mxu0 0.0
        %1515 = vmatprep.subr.mxu0 0.0
        %1516 = vmatpush2.msra.mxu0 0.0
        %1517 = vmatprep.subr.mxu0 0.0
        %1518 = vmatpush2.msra.mxu0 0.0
        %1519 = vmatprep.subr.mxu0 0.0
        %1520 = vmatpush2.msra.mxu0 0.0
        %1521 = vmatprep.subr.mxu0 0.0
        %1522 = vmatpush2.msra.mxu0 0.0
        %1523 = vmatprep.subr.mxu0 0.0
        %1524 = vmatpush2.msra.mxu0 0.0
        %1525 = vmatprep.subr.mxu0 0.0
        %1526 = vmatpush2.msra.mxu0 0.0
        %1527 = vmatprep.subr.mxu0 0.0
        %1528 = vmatpush2.msra.mxu0 0.0
        %1529 = vmatprep.subr.mxu0 0.0
        %1530 = vmatpush2.msra.mxu0 0.0
        %1531 = vmatprep.subr.mxu0 0.0
        %1532 = vmatpush2.msra.mxu0 0.0
        %1533 = vmatprep.mubr.f32.mxu0 0.0
        %1534 = vmatmul.mubr.f32.gmra.mxu0 %v714
        %v1535 = vpop.f32.mrf.mxu0
        %v1536 = vadd.f32 0.0, %v1535
        %v1537 = vpop.f32.mrf.mxu0
        %1538 = vmatprep.mubr.f32.mxu0 0.0
        %1539 = vmatmul.mubr.f32.gmra.mxu0 %v717
        %v1540 = vpop.f32.mrf.mxu0
        %v1541 = vadd.f32 0.0, %v1540
        %v1542 = vpop.f32.mrf.mxu0
        %1543 = vdwg.mxu0
        %s1544 = scalar_lea.vmem %s3, 240
        %v1545 = vld [vmem:[%s1544] sm:$0xff]
        %v1546 = vld [vmem:[%s1544 + $0x8] sm:$0xff]
        %v1547 = vld [vmem:[%s1544 + $0x10] sm:$0xff]
        %v1548 = vld [vmem:[%s1544 + $0x18] sm:$0xff]
        %v1549 = vld [vmem:[%s1544 + $0x20] sm:$0xff]
        %v1550 = vld [vmem:[%s1544 + $0x28] sm:$0xff]
        %v1551 = vld [vmem:[%s1544 + $0x30] sm:$0xff]
        %v1552 = vld [vmem:[%s1544 + $0x38] sm:$0xff]
        %v1553 = vld [vmem:[%s1544 + $0x40] sm:$0xff]
        %v1554 = vld [vmem:[%s1544 + $0x48] sm:$0xff]
        %v1556 = vsel %vm804, %v1545, 0
        %v1559 = vsel %vm804, %v1546, 0
        %v1562 = vsel %vm804, %v1547, 0
        %v1565 = vsel %vm804, %v1548, 0
        %v1568 = vsel %vm804, %v1549, 0
        %v1571 = vsel %vm804, %v1550, 0
        %v1574 = vsel %vm804, %v1551, 0
        %v1577 = vsel %vm804, %v1552, 0
        %v1580 = vsel %vm804, %v1553, 0
        %v1583 = vsel %vm804, %v1554, 0
        %1585 = vmatprep.subr.mxu0 0.0
        %1586 = vmatpush1.msra.mxu0 0.0
        %1587 = vmatprep.subr.mxu0 0.0
        %1588 = vmatpush1.msra.mxu0 0.0
        %1589 = vmatprep.subr.mxu0 0.0
        %1590 = vmatpush1.msra.mxu0 0.0
        %1591 = vmatprep.subr.mxu0 0.0
        %1592 = vmatpush1.msra.mxu0 0.0
        %1593 = vmatprep.subr.mxu0 0.0
        %1594 = vmatpush1.msra.mxu0 0.0
        %1595 = vmatprep.subr.mxu0 0.0
        %1596 = vmatpush1.msra.mxu0 0.0
        %1597 = vmatprep.subr.mxu0 0.0
        %1598 = vmatpush1.msra.mxu0 0.0
        %1599 = vmatprep.subr.mxu0 0.0
        %1600 = vmatpush1.msra.mxu0 0.0
        %1601 = vmatprep.subr.mxu0 0.0
        %1602 = vmatpush1.msra.mxu0 0.0
        %1603 = vmatprep.subr.mxu0 0.0
        %1604 = vmatpush1.msra.mxu0 0.0
        %1605 = vmatprep.subr.mxu0 0.0
        %1606 = vmatpush1.msra.mxu0 0.0
        %1607 = vmatprep.subr.mxu0 0.0
        %1608 = vmatpush1.msra.mxu0 0.0
        %1609 = vmatprep.subr.mxu0 0.0
        %1610 = vmatpush1.msra.mxu0 0.0
        %1611 = vmatprep.subr.mxu0 0.0
        %1612 = vmatpush1.msra.mxu0 0.0
        %1613 = vmatprep.subr.mxu0 0.0
        %1614 = vmatpush1.msra.mxu0 %v1541
        %1615 = vmatprep.subr.mxu0 0.0
        %1616 = vmatpush1.msra.mxu0 %v1536
        %1617 = vmatprep.subr.mxu0 0.0
        %1618 = vmatpush2.msra.mxu0 0.0
        %1619 = vmatprep.subr.mxu0 0.0
        %1620 = vmatpush2.msra.mxu0 0.0
        %1621 = vmatprep.subr.mxu0 0.0
        %1622 = vmatpush2.msra.mxu0 0.0
        %1623 = vmatprep.subr.mxu0 0.0
        %1624 = vmatpush2.msra.mxu0 0.0
        %1625 = vmatprep.subr.mxu0 0.0
        %1626 = vmatpush2.msra.mxu0 0.0
        %1627 = vmatprep.subr.mxu0 0.0
        %1628 = vmatpush2.msra.mxu0 0.0
        %1629 = vmatprep.subr.mxu0 0.0
        %1630 = vmatpush2.msra.mxu0 0.0
        %1631 = vmatprep.subr.mxu0 0.0
        %1632 = vmatpush2.msra.mxu0 0.0
        %1633 = vmatprep.subr.mxu0 0.0
        %1634 = vmatpush2.msra.mxu0 0.0
        %1635 = vmatprep.subr.mxu0 0.0
        %1636 = vmatpush2.msra.mxu0 0.0
        %1637 = vmatprep.subr.mxu0 0.0
        %1638 = vmatpush2.msra.mxu0 0.0
        %1639 = vmatprep.subr.mxu0 0.0
        %1640 = vmatpush2.msra.mxu0 0.0
        %1641 = vmatprep.subr.mxu0 0.0
        %1642 = vmatpush2.msra.mxu0 0.0
        %1643 = vmatprep.subr.mxu0 0.0
        %1644 = vmatpush2.msra.mxu0 0.0
        %1645 = vmatprep.subr.mxu0 0.0
        %1646 = vmatpush2.msra.mxu0 0.0
        %1647 = vmatprep.subr.mxu0 0.0
        %1648 = vmatpush2.msra.mxu0 0.0
        %1649 = vmatprep.mubr.f32.mxu0 0.0
        %1650 = vmatmul.mubr.f32.gmra.mxu0 %v1556
        %v1651 = vpop.f32.mrf.mxu0
        %v1652 = vadd.f32 0.0, %v1651
        %v1653 = vpop.f32.mrf.mxu0
        %1654 = vmatprep.mubr.f32.mxu0 0.0
        %1655 = vmatmul.mubr.f32.gmra.mxu0 %v1559
        %v1656 = vpop.f32.mrf.mxu0
        %v1657 = vadd.f32 0.0, %v1656
        %v1658 = vpop.f32.mrf.mxu0
        %1659 = vmatprep.mubr.f32.mxu0 0.0
        %1660 = vmatmul.mubr.f32.gmra.mxu0 %v1562
        %v1661 = vpop.f32.mrf.mxu0
        %v1662 = vadd.f32 0.0, %v1661
        %v1663 = vpop.f32.mrf.mxu0
        %1664 = vmatprep.mubr.f32.mxu0 0.0
        %1665 = vmatmul.mubr.f32.gmra.mxu0 %v1565
        %v1666 = vpop.f32.mrf.mxu0
        %v1667 = vadd.f32 0.0, %v1666
        %v1668 = vpop.f32.mrf.mxu0
        %1669 = vmatprep.mubr.f32.mxu0 0.0
        %1670 = vmatmul.mubr.f32.gmra.mxu0 %v1568
        %v1671 = vpop.f32.mrf.mxu0
        %v1672 = vadd.f32 0.0, %v1671
        %v1673 = vpop.f32.mrf.mxu0
        %1674 = vmatprep.mubr.f32.mxu0 0.0
        %1675 = vmatmul.mubr.f32.gmra.mxu0 %v1571
        %v1676 = vpop.f32.mrf.mxu0
        %v1677 = vadd.f32 0.0, %v1676
        %v1678 = vpop.f32.mrf.mxu0
        %1679 = vmatprep.mubr.f32.mxu0 0.0
        %1680 = vmatmul.mubr.f32.gmra.mxu0 %v1574
        %v1681 = vpop.f32.mrf.mxu0
        %v1682 = vadd.f32 0.0, %v1681
        %v1683 = vpop.f32.mrf.mxu0
        %1684 = vmatprep.mubr.f32.mxu0 0.0
        %1685 = vmatmul.mubr.f32.gmra.mxu0 %v1577
        %v1686 = vpop.f32.mrf.mxu0
        %v1687 = vadd.f32 0.0, %v1686
        %v1688 = vpop.f32.mrf.mxu0
        %1689 = vmatprep.mubr.f32.mxu0 0.0
        %1690 = vmatmul.mubr.f32.gmra.mxu0 %v1580
        %v1691 = vpop.f32.mrf.mxu0
        %v1692 = vadd.f32 0.0, %v1691
        %v1693 = vpop.f32.mrf.mxu0
        %1694 = vmatprep.mubr.f32.mxu0 0.0
        %1695 = vmatmul.mubr.f32.gmra.mxu0 %v1583
        %v1696 = vpop.f32.mrf.mxu0
        %v1697 = vadd.f32 0.0, %v1696
        %v1698 = vpop.f32.mrf.mxu0
        %1699 = vdwg.mxu0
        %v1700 = vadd.f32 %v1450, %v1652
        %v1701 = vadd.f32 %v1451, %v1657
        %v1702 = vadd.f32 %v1452, %v1662
        %v1703 = vadd.f32 %v1453, %v1667
        %v1704 = vadd.f32 %v1454, %v1672
        %v1705 = vadd.f32 %v1455, %v1677
        %v1706 = vadd.f32 %v1456, %v1682
        %v1707 = vadd.f32 %v1457, %v1687
        %v1708 = vadd.f32 %v1458, %v1692
        %v1709 = vadd.f32 %v1459, %v1697
        %vm1710 = vcmask 261120
        %1711 = vst.msk [vmem:[#allocation2] sm:$0xff] %vm1710, %v1700
        %1712 = vst.msk [vmem:[#allocation2 + $0x8] sm:$0xff] %vm1710, %v1701
        %1713 = vst.msk [vmem:[#allocation2 + $0x10] sm:$0xff] %vm1710, %v1702
        %1714 = vst.msk [vmem:[#allocation2 + $0x18] sm:$0xff] %vm1710, %v1703
        %1715 = vst.msk [vmem:[#allocation2 + $0x20] sm:$0xff] %vm1710, %v1704
        %1716 = vst.msk [vmem:[#allocation2 + $0x28] sm:$0xff] %vm1710, %v1705
        %1717 = vst.msk [vmem:[#allocation2 + $0x30] sm:$0xff] %vm1710, %v1706
        %1718 = vst.msk [vmem:[#allocation2 + $0x38] sm:$0xff] %vm1710, %v1707
        %1719 = vst.msk [vmem:[#allocation2 + $0x40] sm:$0xff] %vm1710, %v1708
        %1720 = vst.msk [vmem:[#allocation2 + $0x48] sm:$0xff] %vm1710, %v1709
        %v1721 = vld [vmem:[%s9] sm:$0x1]
        %v1723 = vlaneseq
        %v1724 = vshrl.u32 %v1723, 7
        %v1725 = vsub.s32 0, %v1724
        %v1726 = vrot.slane %v1721, %v1725
        %v1728 = vld [vmem:[#allocation2] sm:$0xff]
        %v1729 = vld [vmem:[#allocation2 + $0x8] sm:$0xff]
        %v1730 = vld [vmem:[#allocation2 + $0x10] sm:$0xff]
        %v1731 = vld [vmem:[#allocation2 + $0x18] sm:$0xff]
        %v1732 = vld [vmem:[#allocation2 + $0x20] sm:$0xff]
        %v1733 = vld [vmem:[#allocation2 + $0x28] sm:$0xff]
        %v1734 = vld [vmem:[#allocation2 + $0x30] sm:$0xff]
        %v1735 = vld [vmem:[%s7] sm:$0xff]
        %v1736 = vld [vmem:[%s7 + $0x8] sm:$0xff]
        %v1737 = vld [vmem:[%s7 + $0x10] sm:$0xff]
        %v1738 = vld [vmem:[%s7 + $0x18] sm:$0xff]
        %v1740 = vsel %vm1710, %v1728, 0
        %v1743 = vsel %vm1710, %v1729, 0
        %v1746 = vsel %vm1710, %v1730, 0
        %v1749 = vsel %vm1710, %v1731, 0
        %v1752 = vsel %vm1710, %v1732, 0
        %v1755 = vsel %vm1710, %v1733, 0
        %v1758 = vsel %vm1710, %v1734, 0
        %1760 = vmatprep.subr.mxu0 0.0
        %1761 = vmatpush1.msra.mxu0 0.0
        %1762 = vmatprep.subr.mxu0 0.0
        %1763 = vmatpush1.msra.mxu0 0.0
        %1764 = vmatprep.subr.mxu0 0.0
        %1765 = vmatpush1.msra.mxu0 0.0
        %1766 = vmatprep.subr.mxu0 0.0
        %1767 = vmatpush1.msra.mxu0 0.0
        %1768 = vmatprep.subr.mxu0 0.0
        %1769 = vmatpush1.msra.mxu0 0.0
        %1770 = vmatprep.subr.mxu0 0.0
        %1771 = vmatpush1.msra.mxu0 0.0
        %1772 = vmatprep.subr.mxu0 0.0
        %1773 = vmatpush1.msra.mxu0 0.0
        %1774 = vmatprep.subr.mxu0 0.0
        %1775 = vmatpush1.msra.mxu0 0.0
        %1776 = vmatprep.subr.mxu0 0.0
        %1777 = vmatpush1.msra.mxu0 0.0
        %1778 = vmatprep.subr.mxu0 0.0
        %1779 = vmatpush1.msra.mxu0 0.0
        %1780 = vmatprep.subr.mxu0 0.0
        %1781 = vmatpush1.msra.mxu0 0.0
        %1782 = vmatprep.subr.mxu0 0.0
        %1783 = vmatpush1.msra.mxu0 0.0
        %1784 = vmatprep.subr.mxu0 0.0
        %1785 = vmatpush1.msra.mxu0 %v1738
        %1786 = vmatprep.subr.mxu0 0.0
        %1787 = vmatpush1.msra.mxu0 %v1737
        %1788 = vmatprep.subr.mxu0 0.0
        %1789 = vmatpush1.msra.mxu0 %v1736
        %1790 = vmatprep.subr.mxu0 0.0
        %1791 = vmatpush1.msra.mxu0 %v1735
        %1792 = vmatprep.subr.mxu0 0.0
        %1793 = vmatpush2.msra.mxu0 0.0
        %1794 = vmatprep.subr.mxu0 0.0
        %1795 = vmatpush2.msra.mxu0 0.0
        %1796 = vmatprep.subr.mxu0 0.0
        %1797 = vmatpush2.msra.mxu0 0.0
        %1798 = vmatprep.subr.mxu0 0.0
        %1799 = vmatpush2.msra.mxu0 0.0
        %1800 = vmatprep.subr.mxu0 0.0
        %1801 = vmatpush2.msra.mxu0 0.0
        %1802 = vmatprep.subr.mxu0 0.0
        %1803 = vmatpush2.msra.mxu0 0.0
        %1804 = vmatprep.subr.mxu0 0.0
        %1805 = vmatpush2.msra.mxu0 0.0
        %1806 = vmatprep.subr.mxu0 0.0
        %1807 = vmatpush2.msra.mxu0 0.0
        %1808 = vmatprep.subr.mxu0 0.0
        %1809 = vmatpush2.msra.mxu0 0.0
        %1810 = vmatprep.subr.mxu0 0.0
        %1811 = vmatpush2.msra.mxu0 0.0
        %1812 = vmatprep.subr.mxu0 0.0
        %1813 = vmatpush2.msra.mxu0 0.0
        %1814 = vmatprep.subr.mxu0 0.0
        %1815 = vmatpush2.msra.mxu0 0.0
        %1816 = vmatprep.subr.mxu0 0.0
        %1817 = vmatpush2.msra.mxu0 0.0
        %1818 = vmatprep.subr.mxu0 0.0
        %1819 = vmatpush2.msra.mxu0 0.0
        %1820 = vmatprep.subr.mxu0 0.0
        %1821 = vmatpush2.msra.mxu0 0.0
        %1822 = vmatprep.subr.mxu0 0.0
        %1823 = vmatpush2.msra.mxu0 0.0
        %1824 = vmatprep.mubr.f32.mxu0 0.0
        %1825 = vmatmul.mubr.f32.gmra.mxu0 %v1740
        %v1826 = vpop.f32.mrf.mxu0
        %v1827 = vadd.f32 0.0, %v1826
        %v1828 = vpop.f32.mrf.mxu0
        %1829 = vmatprep.mubr.f32.mxu0 0.0
        %1830 = vmatmul.mubr.f32.gmra.mxu0 %v1743
        %v1831 = vpop.f32.mrf.mxu0
        %v1832 = vadd.f32 0.0, %v1831
        %v1833 = vpop.f32.mrf.mxu0
        %1834 = vmatprep.mubr.f32.mxu0 0.0
        %1835 = vmatmul.mubr.f32.gmra.mxu0 %v1746
        %v1836 = vpop.f32.mrf.mxu0
        %v1837 = vadd.f32 0.0, %v1836
        %v1838 = vpop.f32.mrf.mxu0
        %1839 = vmatprep.mubr.f32.mxu0 0.0
        %1840 = vmatmul.mubr.f32.gmra.mxu0 %v1749
        %v1841 = vpop.f32.mrf.mxu0
        %v1842 = vadd.f32 0.0, %v1841
        %v1843 = vpop.f32.mrf.mxu0
        %1844 = vmatprep.mubr.f32.mxu0 0.0
        %1845 = vmatmul.mubr.f32.gmra.mxu0 %v1752
        %v1846 = vpop.f32.mrf.mxu0
        %v1847 = vadd.f32 0.0, %v1846
        %v1848 = vpop.f32.mrf.mxu0
        %1849 = vmatprep.mubr.f32.mxu0 0.0
        %1850 = vmatmul.mubr.f32.gmra.mxu0 %v1755
        %v1851 = vpop.f32.mrf.mxu0
        %v1852 = vadd.f32 0.0, %v1851
        %v1853 = vpop.f32.mrf.mxu0
        %1854 = vmatprep.mubr.f32.mxu0 0.0
        %1855 = vmatmul.mubr.f32.gmra.mxu0 %v1758
        %v1856 = vpop.f32.mrf.mxu0
        %v1857 = vadd.f32 0.0, %v1856
        %v1858 = vpop.f32.mrf.mxu0
        %1859 = vdwg.mxu0
        %v1860 = vadd.f32 %v1726, %v1827
        %v1861 = vadd.f32 %v1726, %v1832
        %v1862 = vadd.f32 %v1726, %v1837
        %v1863 = vadd.f32 %v1726, %v1842
        %v1864 = vadd.f32 %v1726, %v1847
        %v1865 = vadd.f32 %v1726, %v1852
        %v1866 = vadd.f32 %v1726, %v1857
        %v1867 = vld [vmem:[%s689] sm:$0xff]
        %v1868 = vld [vmem:[%s689 + $0x8] sm:$0xff]
        %v1869 = vld [vmem:[%s689 + $0x10] sm:$0xff]
        %v1870 = vld [vmem:[%s689 + $0x18] sm:$0xff]
        %v1871 = vld [vmem:[%s689 + $0x20] sm:$0xff]
        %v1872 = vld [vmem:[%s689 + $0x28] sm:$0xff]
        %v1873 = vld [vmem:[%s689 + $0x30] sm:$0xff]
        %v1874 = vld [vmem:[%s8] sm:$0xff]
        %v1875 = vld [vmem:[%s8 + $0x8] sm:$0xff]
        %v1876 = vld [vmem:[%s8 + $0x10] sm:$0xff]
        %v1877 = vld [vmem:[%s8 + $0x18] sm:$0xff]
        %v1879 = vsel %vm1710, %v1867, 0
        %v1882 = vsel %vm1710, %v1868, 0
        %v1885 = vsel %vm1710, %v1869, 0
        %v1888 = vsel %vm1710, %v1870, 0
        %v1891 = vsel %vm1710, %v1871, 0
        %v1894 = vsel %vm1710, %v1872, 0
        %v1897 = vsel %vm1710, %v1873, 0
        %1899 = vmatprep.subr.mxu0 0.0
        %1900 = vmatpush1.msra.mxu0 0.0
        %1901 = vmatprep.subr.mxu0 0.0
        %1902 = vmatpush1.msra.mxu0 0.0
        %1903 = vmatprep.subr.mxu0 0.0
        %1904 = vmatpush1.msra.mxu0 0.0
        %1905 = vmatprep.subr.mxu0 0.0
        %1906 = vmatpush1.msra.mxu0 0.0
        %1907 = vmatprep.subr.mxu0 0.0
        %1908 = vmatpush1.msra.mxu0 0.0
        %1909 = vmatprep.subr.mxu0 0.0
        %1910 = vmatpush1.msra.mxu0 0.0
        %1911 = vmatprep.subr.mxu0 0.0
        %1912 = vmatpush1.msra.mxu0 0.0
        %1913 = vmatprep.subr.mxu0 0.0
        %1914 = vmatpush1.msra.mxu0 0.0
        %1915 = vmatprep.subr.mxu0 0.0
        %1916 = vmatpush1.msra.mxu0 0.0
        %1917 = vmatprep.subr.mxu0 0.0
        %1918 = vmatpush1.msra.mxu0 0.0
        %1919 = vmatprep.subr.mxu0 0.0
        %1920 = vmatpush1.msra.mxu0 0.0
        %1921 = vmatprep.subr.mxu0 0.0
        %1922 = vmatpush1.msra.mxu0 0.0
        %1923 = vmatprep.subr.mxu0 0.0
        %1924 = vmatpush1.msra.mxu0 %v1877
        %1925 = vmatprep.subr.mxu0 0.0
        %1926 = vmatpush1.msra.mxu0 %v1876
        %1927 = vmatprep.subr.mxu0 0.0
        %1928 = vmatpush1.msra.mxu0 %v1875
        %1929 = vmatprep.subr.mxu0 0.0
        %1930 = vmatpush1.msra.mxu0 %v1874
        %1931 = vmatprep.subr.mxu0 0.0
        %1932 = vmatpush2.msra.mxu0 0.0
        %1933 = vmatprep.subr.mxu0 0.0
        %1934 = vmatpush2.msra.mxu0 0.0
        %1935 = vmatprep.subr.mxu0 0.0
        %1936 = vmatpush2.msra.mxu0 0.0
        %1937 = vmatprep.subr.mxu0 0.0
        %1938 = vmatpush2.msra.mxu0 0.0
        %1939 = vmatprep.subr.mxu0 0.0
        %1940 = vmatpush2.msra.mxu0 0.0
        %1941 = vmatprep.subr.mxu0 0.0
        %1942 = vmatpush2.msra.mxu0 0.0
        %1943 = vmatprep.subr.mxu0 0.0
        %1944 = vmatpush2.msra.mxu0 0.0
        %1945 = vmatprep.subr.mxu0 0.0
        %1946 = vmatpush2.msra.mxu0 0.0
        %1947 = vmatprep.subr.mxu0 0.0
        %1948 = vmatpush2.msra.mxu0 0.0
        %1949 = vmatprep.subr.mxu0 0.0
        %1950 = vmatpush2.msra.mxu0 0.0
        %1951 = vmatprep.subr.mxu0 0.0
        %1952 = vmatpush2.msra.mxu0 0.0
        %1953 = vmatprep.subr.mxu0 0.0
        %1954 = vmatpush2.msra.mxu0 0.0
        %1955 = vmatprep.subr.mxu0 0.0
        %1956 = vmatpush2.msra.mxu0 0.0
        %1957 = vmatprep.subr.mxu0 0.0
        %1958 = vmatpush2.msra.mxu0 0.0
        %1959 = vmatprep.subr.mxu0 0.0
        %1960 = vmatpush2.msra.mxu0 0.0
        %1961 = vmatprep.subr.mxu0 0.0
        %1962 = vmatpush2.msra.mxu0 0.0
        %1963 = vmatprep.mubr.f32.mxu0 0.0
        %1964 = vmatmul.mubr.f32.gmra.mxu0 %v1879
        %v1965 = vpop.f32.mrf.mxu0
        %v1966 = vadd.f32 0.0, %v1965
        %v1967 = vpop.f32.mrf.mxu0
        %1968 = vmatprep.mubr.f32.mxu0 0.0
        %1969 = vmatmul.mubr.f32.gmra.mxu0 %v1882
        %v1970 = vpop.f32.mrf.mxu0
        %v1971 = vadd.f32 0.0, %v1970
        %v1972 = vpop.f32.mrf.mxu0
        %1973 = vmatprep.mubr.f32.mxu0 0.0
        %1974 = vmatmul.mubr.f32.gmra.mxu0 %v1885
        %v1975 = vpop.f32.mrf.mxu0
        %v1976 = vadd.f32 0.0, %v1975
        %v1977 = vpop.f32.mrf.mxu0
        %1978 = vmatprep.mubr.f32.mxu0 0.0
        %1979 = vmatmul.mubr.f32.gmra.mxu0 %v1888
        %v1980 = vpop.f32.mrf.mxu0
        %v1981 = vadd.f32 0.0, %v1980
        %v1982 = vpop.f32.mrf.mxu0
        %1983 = vmatprep.mubr.f32.mxu0 0.0
        %1984 = vmatmul.mubr.f32.gmra.mxu0 %v1891
        %v1985 = vpop.f32.mrf.mxu0
        %v1986 = vadd.f32 0.0, %v1985
        %v1987 = vpop.f32.mrf.mxu0
        %1988 = vmatprep.mubr.f32.mxu0 0.0
        %1989 = vmatmul.mubr.f32.gmra.mxu0 %v1894
        %v1990 = vpop.f32.mrf.mxu0
        %v1991 = vadd.f32 0.0, %v1990
        %v1992 = vpop.f32.mrf.mxu0
        %1993 = vmatprep.mubr.f32.mxu0 0.0
        %1994 = vmatmul.mubr.f32.gmra.mxu0 %v1897
        %v1995 = vpop.f32.mrf.mxu0
        %v1996 = vadd.f32 0.0, %v1995
        %v1997 = vpop.f32.mrf.mxu0
        %1998 = vdwg.mxu0
        %v1999 = vadd.f32 %v1860, %v1966
        %v2000 = vadd.f32 %v1861, %v1971
        %v2001 = vadd.f32 %v1862, %v1976
        %v2002 = vadd.f32 %v1863, %v1981
        %v2003 = vadd.f32 %v1864, %v1986
        %v2004 = vadd.f32 %v1865, %v1991
        %v2005 = vadd.f32 %v1866, %v1996
        %v2006 = vld [vmem:[#allocation2 + $0x1] sm:$0xff]
        %v2007 = vld [vmem:[#allocation2 + $0x9] sm:$0xff]
        %v2008 = vld [vmem:[#allocation2 + $0x11] sm:$0xff]
        %v2009 = vld [vmem:[#allocation2 + $0x19] sm:$0xff]
        %v2010 = vld [vmem:[#allocation2 + $0x21] sm:$0xff]
        %v2011 = vld [vmem:[#allocation2 + $0x29] sm:$0xff]
        %v2012 = vld [vmem:[#allocation2 + $0x31] sm:$0xff]
        %s2013 = scalar_lea.vmem %s7, 32
        %v2014 = vld [vmem:[%s2013] sm:$0xff]
        %v2015 = vld [vmem:[%s2013 + $0x8] sm:$0xff]
        %v2016 = vld [vmem:[%s2013 + $0x10] sm:$0xff]
        %v2017 = vld [vmem:[%s2013 + $0x18] sm:$0xff]
        %v2019 = vsel %vm1710, %v2006, 0
        %v2022 = vsel %vm1710, %v2007, 0
        %v2025 = vsel %vm1710, %v2008, 0
        %v2028 = vsel %vm1710, %v2009, 0
        %v2031 = vsel %vm1710, %v2010, 0
        %v2034 = vsel %vm1710, %v2011, 0
        %v2037 = vsel %vm1710, %v2012, 0
        %2039 = vmatprep.subr.mxu0 0.0
        %2040 = vmatpush1.msra.mxu0 0.0
        %2041 = vmatprep.subr.mxu0 0.0
        %2042 = vmatpush1.msra.mxu0 0.0
        %2043 = vmatprep.subr.mxu0 0.0
        %2044 = vmatpush1.msra.mxu0 0.0
        %2045 = vmatprep.subr.mxu0 0.0
        %2046 = vmatpush1.msra.mxu0 0.0
        %2047 = vmatprep.subr.mxu0 0.0
        %2048 = vmatpush1.msra.mxu0 0.0
        %2049 = vmatprep.subr.mxu0 0.0
        %2050 = vmatpush1.msra.mxu0 0.0
        %2051 = vmatprep.subr.mxu0 0.0
        %2052 = vmatpush1.msra.mxu0 0.0
        %2053 = vmatprep.subr.mxu0 0.0
        %2054 = vmatpush1.msra.mxu0 0.0
        %2055 = vmatprep.subr.mxu0 0.0
        %2056 = vmatpush1.msra.mxu0 0.0
        %2057 = vmatprep.subr.mxu0 0.0
        %2058 = vmatpush1.msra.mxu0 0.0
        %2059 = vmatprep.subr.mxu0 0.0
        %2060 = vmatpush1.msra.mxu0 0.0
        %2061 = vmatprep.subr.mxu0 0.0
        %2062 = vmatpush1.msra.mxu0 0.0
        %2063 = vmatprep.subr.mxu0 0.0
        %2064 = vmatpush1.msra.mxu0 %v2017
        %2065 = vmatprep.subr.mxu0 0.0
        %2066 = vmatpush1.msra.mxu0 %v2016
        %2067 = vmatprep.subr.mxu0 0.0
        %2068 = vmatpush1.msra.mxu0 %v2015
        %2069 = vmatprep.subr.mxu0 0.0
        %2070 = vmatpush1.msra.mxu0 %v2014
        %2071 = vmatprep.subr.mxu0 0.0
        %2072 = vmatpush2.msra.mxu0 0.0
        %2073 = vmatprep.subr.mxu0 0.0
        %2074 = vmatpush2.msra.mxu0 0.0
        %2075 = vmatprep.subr.mxu0 0.0
        %2076 = vmatpush2.msra.mxu0 0.0
        %2077 = vmatprep.subr.mxu0 0.0
        %2078 = vmatpush2.msra.mxu0 0.0
        %2079 = vmatprep.subr.mxu0 0.0
        %2080 = vmatpush2.msra.mxu0 0.0
        %2081 = vmatprep.subr.mxu0 0.0
        %2082 = vmatpush2.msra.mxu0 0.0
        %2083 = vmatprep.subr.mxu0 0.0
        %2084 = vmatpush2.msra.mxu0 0.0
        %2085 = vmatprep.subr.mxu0 0.0
        %2086 = vmatpush2.msra.mxu0 0.0
        %2087 = vmatprep.subr.mxu0 0.0
        %2088 = vmatpush2.msra.mxu0 0.0
        %2089 = vmatprep.subr.mxu0 0.0
        %2090 = vmatpush2.msra.mxu0 0.0
        %2091 = vmatprep.subr.mxu0 0.0
        %2092 = vmatpush2.msra.mxu0 0.0
        %2093 = vmatprep.subr.mxu0 0.0
        %2094 = vmatpush2.msra.mxu0 0.0
        %2095 = vmatprep.subr.mxu0 0.0
        %2096 = vmatpush2.msra.mxu0 0.0
        %2097 = vmatprep.subr.mxu0 0.0
        %2098 = vmatpush2.msra.mxu0 0.0
        %2099 = vmatprep.subr.mxu0 0.0
        %2100 = vmatpush2.msra.mxu0 0.0
        %2101 = vmatprep.subr.mxu0 0.0
        %2102 = vmatpush2.msra.mxu0 0.0
        %2103 = vmatprep.mubr.f32.mxu0 0.0
        %2104 = vmatmul.mubr.f32.gmra.mxu0 %v2019
        %v2105 = vpop.f32.mrf.mxu0
        %v2106 = vadd.f32 0.0, %v2105
        %v2107 = vpop.f32.mrf.mxu0
        %2108 = vmatprep.mubr.f32.mxu0 0.0
        %2109 = vmatmul.mubr.f32.gmra.mxu0 %v2022
        %v2110 = vpop.f32.mrf.mxu0
        %v2111 = vadd.f32 0.0, %v2110
        %v2112 = vpop.f32.mrf.mxu0
        %2113 = vmatprep.mubr.f32.mxu0 0.0
        %2114 = vmatmul.mubr.f32.gmra.mxu0 %v2025
        %v2115 = vpop.f32.mrf.mxu0
        %v2116 = vadd.f32 0.0, %v2115
        %v2117 = vpop.f32.mrf.mxu0
        %2118 = vmatprep.mubr.f32.mxu0 0.0
        %2119 = vmatmul.mubr.f32.gmra.mxu0 %v2028
        %v2120 = vpop.f32.mrf.mxu0
        %v2121 = vadd.f32 0.0, %v2120
        %v2122 = vpop.f32.mrf.mxu0
        %2123 = vmatprep.mubr.f32.mxu0 0.0
        %2124 = vmatmul.mubr.f32.gmra.mxu0 %v2031
        %v2125 = vpop.f32.mrf.mxu0
        %v2126 = vadd.f32 0.0, %v2125
        %v2127 = vpop.f32.mrf.mxu0
        %2128 = vmatprep.mubr.f32.mxu0 0.0
        %2129 = vmatmul.mubr.f32.gmra.mxu0 %v2034
        %v2130 = vpop.f32.mrf.mxu0
        %v2131 = vadd.f32 0.0, %v2130
        %v2132 = vpop.f32.mrf.mxu0
        %2133 = vmatprep.mubr.f32.mxu0 0.0
        %2134 = vmatmul.mubr.f32.gmra.mxu0 %v2037
        %v2135 = vpop.f32.mrf.mxu0
        %v2136 = vadd.f32 0.0, %v2135
        %v2137 = vpop.f32.mrf.mxu0
        %2138 = vdwg.mxu0
        %v2139 = vadd.f32 %v1999, %v2106
        %v2140 = vadd.f32 %v2000, %v2111
        %v2141 = vadd.f32 %v2001, %v2116
        %v2142 = vadd.f32 %v2002, %v2121
        %v2143 = vadd.f32 %v2003, %v2126
        %v2144 = vadd.f32 %v2004, %v2131
        %v2145 = vadd.f32 %v2005, %v2136
        %v2146 = vld [vmem:[%s689 + $0x1] sm:$0xff]
        %v2147 = vld [vmem:[%s689 + $0x9] sm:$0xff]
        %v2148 = vld [vmem:[%s689 + $0x11] sm:$0xff]
        %v2149 = vld [vmem:[%s689 + $0x19] sm:$0xff]
        %v2150 = vld [vmem:[%s689 + $0x21] sm:$0xff]
        %v2151 = vld [vmem:[%s689 + $0x29] sm:$0xff]
        %v2152 = vld [vmem:[%s689 + $0x31] sm:$0xff]
        %s2153 = scalar_lea.vmem %s8, 32
        %v2154 = vld [vmem:[%s2153] sm:$0xff]
        %v2155 = vld [vmem:[%s2153 + $0x8] sm:$0xff]
        %v2156 = vld [vmem:[%s2153 + $0x10] sm:$0xff]
        %v2157 = vld [vmem:[%s2153 + $0x18] sm:$0xff]
        %v2159 = vsel %vm1710, %v2146, 0
        %v2162 = vsel %vm1710, %v2147, 0
        %v2165 = vsel %vm1710, %v2148, 0
        %v2168 = vsel %vm1710, %v2149, 0
        %v2171 = vsel %vm1710, %v2150, 0
        %v2174 = vsel %vm1710, %v2151, 0
        %v2177 = vsel %vm1710, %v2152, 0
        %2179 = vmatprep.subr.mxu0 0.0
        %2180 = vmatpush1.msra.mxu0 0.0
        %2181 = vmatprep.subr.mxu0 0.0
        %2182 = vmatpush1.msra.mxu0 0.0
        %2183 = vmatprep.subr.mxu0 0.0
        %2184 = vmatpush1.msra.mxu0 0.0
        %2185 = vmatprep.subr.mxu0 0.0
        %2186 = vmatpush1.msra.mxu0 0.0
        %2187 = vmatprep.subr.mxu0 0.0
        %2188 = vmatpush1.msra.mxu0 0.0
        %2189 = vmatprep.subr.mxu0 0.0
        %2190 = vmatpush1.msra.mxu0 0.0
        %2191 = vmatprep.subr.mxu0 0.0
        %2192 = vmatpush1.msra.mxu0 0.0
        %2193 = vmatprep.subr.mxu0 0.0
        %2194 = vmatpush1.msra.mxu0 0.0
        %2195 = vmatprep.subr.mxu0 0.0
        %2196 = vmatpush1.msra.mxu0 0.0
        %2197 = vmatprep.subr.mxu0 0.0
        %2198 = vmatpush1.msra.mxu0 0.0
        %2199 = vmatprep.subr.mxu0 0.0
        %2200 = vmatpush1.msra.mxu0 0.0
        %2201 = vmatprep.subr.mxu0 0.0
        %2202 = vmatpush1.msra.mxu0 0.0
        %2203 = vmatprep.subr.mxu0 0.0
        %2204 = vmatpush1.msra.mxu0 %v2157
        %2205 = vmatprep.subr.mxu0 0.0
        %2206 = vmatpush1.msra.mxu0 %v2156
        %2207 = vmatprep.subr.mxu0 0.0
        %2208 = vmatpush1.msra.mxu0 %v2155
        %2209 = vmatprep.subr.mxu0 0.0
        %2210 = vmatpush1.msra.mxu0 %v2154
        %2211 = vmatprep.subr.mxu0 0.0
        %2212 = vmatpush2.msra.mxu0 0.0
        %2213 = vmatprep.subr.mxu0 0.0
        %2214 = vmatpush2.msra.mxu0 0.0
        %2215 = vmatprep.subr.mxu0 0.0
        %2216 = vmatpush2.msra.mxu0 0.0
        %2217 = vmatprep.subr.mxu0 0.0
        %2218 = vmatpush2.msra.mxu0 0.0
        %2219 = vmatprep.subr.mxu0 0.0
        %2220 = vmatpush2.msra.mxu0 0.0
        %2221 = vmatprep.subr.mxu0 0.0
        %2222 = vmatpush2.msra.mxu0 0.0
        %2223 = vmatprep.subr.mxu0 0.0
        %2224 = vmatpush2.msra.mxu0 0.0
        %2225 = vmatprep.subr.mxu0 0.0
        %2226 = vmatpush2.msra.mxu0 0.0
        %2227 = vmatprep.subr.mxu0 0.0
        %2228 = vmatpush2.msra.mxu0 0.0
        %2229 = vmatprep.subr.mxu0 0.0
        %2230 = vmatpush2.msra.mxu0 0.0
        %2231 = vmatprep.subr.mxu0 0.0
        %2232 = vmatpush2.msra.mxu0 0.0
        %2233 = vmatprep.subr.mxu0 0.0
        %2234 = vmatpush2.msra.mxu0 0.0
        %2235 = vmatprep.subr.mxu0 0.0
        %2236 = vmatpush2.msra.mxu0 0.0
        %2237 = vmatprep.subr.mxu0 0.0
        %2238 = vmatpush2.msra.mxu0 0.0
        %2239 = vmatprep.subr.mxu0 0.0
        %2240 = vmatpush2.msra.mxu0 0.0
        %2241 = vmatprep.subr.mxu0 0.0
        %2242 = vmatpush2.msra.mxu0 0.0
        %2243 = vmatprep.mubr.f32.mxu0 0.0
        %2244 = vmatmul.mubr.f32.gmra.mxu0 %v2159
        %v2245 = vpop.f32.mrf.mxu0
        %v2246 = vadd.f32 0.0, %v2245
        %v2247 = vpop.f32.mrf.mxu0
        %2248 = vmatprep.mubr.f32.mxu0 0.0
        %2249 = vmatmul.mubr.f32.gmra.mxu0 %v2162
        %v2250 = vpop.f32.mrf.mxu0
        %v2251 = vadd.f32 0.0, %v2250
        %v2252 = vpop.f32.mrf.mxu0
        %2253 = vmatprep.mubr.f32.mxu0 0.0
        %2254 = vmatmul.mubr.f32.gmra.mxu0 %v2165
        %v2255 = vpop.f32.mrf.mxu0
        %v2256 = vadd.f32 0.0, %v2255
        %v2257 = vpop.f32.mrf.mxu0
        %2258 = vmatprep.mubr.f32.mxu0 0.0
        %2259 = vmatmul.mubr.f32.gmra.mxu0 %v2168
        %v2260 = vpop.f32.mrf.mxu0
        %v2261 = vadd.f32 0.0, %v2260
        %v2262 = vpop.f32.mrf.mxu0
        %2263 = vmatprep.mubr.f32.mxu0 0.0
        %2264 = vmatmul.mubr.f32.gmra.mxu0 %v2171
        %v2265 = vpop.f32.mrf.mxu0
        %v2266 = vadd.f32 0.0, %v2265
        %v2267 = vpop.f32.mrf.mxu0
        %2268 = vmatprep.mubr.f32.mxu0 0.0
        %2269 = vmatmul.mubr.f32.gmra.mxu0 %v2174
        %v2270 = vpop.f32.mrf.mxu0
        %v2271 = vadd.f32 0.0, %v2270
        %v2272 = vpop.f32.mrf.mxu0
        %2273 = vmatprep.mubr.f32.mxu0 0.0
        %2274 = vmatmul.mubr.f32.gmra.mxu0 %v2177
        %v2275 = vpop.f32.mrf.mxu0
        %v2276 = vadd.f32 0.0, %v2275
        %v2277 = vpop.f32.mrf.mxu0
        %2278 = vdwg.mxu0
        %v2279 = vadd.f32 %v2139, %v2246
        %v2280 = vadd.f32 %v2140, %v2251
        %v2281 = vadd.f32 %v2141, %v2256
        %v2282 = vadd.f32 %v2142, %v2261
        %v2283 = vadd.f32 %v2143, %v2266
        %v2284 = vadd.f32 %v2144, %v2271
        %v2285 = vadd.f32 %v2145, %v2276
        %v2286 = vld [vmem:[#allocation2 + $0x2] sm:$0xff]
        %v2287 = vld [vmem:[#allocation2 + $0xa] sm:$0xff]
        %v2288 = vld [vmem:[#allocation2 + $0x12] sm:$0xff]
        %v2289 = vld [vmem:[#allocation2 + $0x1a] sm:$0xff]
        %v2290 = vld [vmem:[#allocation2 + $0x22] sm:$0xff]
        %v2291 = vld [vmem:[#allocation2 + $0x2a] sm:$0xff]
        %v2292 = vld [vmem:[#allocation2 + $0x32] sm:$0xff]
        %s2293 = scalar_lea.vmem %s7, 64
        %v2294 = vld [vmem:[%s2293] sm:$0xff]
        %v2295 = vld [vmem:[%s2293 + $0x8] sm:$0xff]
        %v2296 = vld [vmem:[%s2293 + $0x10] sm:$0xff]
        %v2297 = vld [vmem:[%s2293 + $0x18] sm:$0xff]
        %v2299 = vsel %vm1710, %v2286, 0
        %v2302 = vsel %vm1710, %v2287, 0
        %v2305 = vsel %vm1710, %v2288, 0
        %v2308 = vsel %vm1710, %v2289, 0
        %v2311 = vsel %vm1710, %v2290, 0
        %v2314 = vsel %vm1710, %v2291, 0
        %v2317 = vsel %vm1710, %v2292, 0
        %2319 = vmatprep.subr.mxu0 0.0
        %2320 = vmatpush1.msra.mxu0 0.0
        %2321 = vmatprep.subr.mxu0 0.0
        %2322 = vmatpush1.msra.mxu0 0.0
        %2323 = vmatprep.subr.mxu0 0.0
        %2324 = vmatpush1.msra.mxu0 0.0
        %2325 = vmatprep.subr.mxu0 0.0
        %2326 = vmatpush1.msra.mxu0 0.0
        %2327 = vmatprep.subr.mxu0 0.0
        %2328 = vmatpush1.msra.mxu0 0.0
        %2329 = vmatprep.subr.mxu0 0.0
        %2330 = vmatpush1.msra.mxu0 0.0
        %2331 = vmatprep.subr.mxu0 0.0
        %2332 = vmatpush1.msra.mxu0 0.0
        %2333 = vmatprep.subr.mxu0 0.0
        %2334 = vmatpush1.msra.mxu0 0.0
        %2335 = vmatprep.subr.mxu0 0.0
        %2336 = vmatpush1.msra.mxu0 0.0
        %2337 = vmatprep.subr.mxu0 0.0
        %2338 = vmatpush1.msra.mxu0 0.0
        %2339 = vmatprep.subr.mxu0 0.0
        %2340 = vmatpush1.msra.mxu0 0.0
        %2341 = vmatprep.subr.mxu0 0.0
        %2342 = vmatpush1.msra.mxu0 0.0
        %2343 = vmatprep.subr.mxu0 0.0
        %2344 = vmatpush1.msra.mxu0 %v2297
        %2345 = vmatprep.subr.mxu0 0.0
        %2346 = vmatpush1.msra.mxu0 %v2296
        %2347 = vmatprep.subr.mxu0 0.0
        %2348 = vmatpush1.msra.mxu0 %v2295
        %2349 = vmatprep.subr.mxu0 0.0
        %2350 = vmatpush1.msra.mxu0 %v2294
        %2351 = vmatprep.subr.mxu0 0.0
        %2352 = vmatpush2.msra.mxu0 0.0
        %2353 = vmatprep.subr.mxu0 0.0
        %2354 = vmatpush2.msra.mxu0 0.0
        %2355 = vmatprep.subr.mxu0 0.0
        %2356 = vmatpush2.msra.mxu0 0.0
        %2357 = vmatprep.subr.mxu0 0.0
        %2358 = vmatpush2.msra.mxu0 0.0
        %2359 = vmatprep.subr.mxu0 0.0
        %2360 = vmatpush2.msra.mxu0 0.0
        %2361 = vmatprep.subr.mxu0 0.0
        %2362 = vmatpush2.msra.mxu0 0.0
        %2363 = vmatprep.subr.mxu0 0.0
        %2364 = vmatpush2.msra.mxu0 0.0
        %2365 = vmatprep.subr.mxu0 0.0
        %2366 = vmatpush2.msra.mxu0 0.0
        %2367 = vmatprep.subr.mxu0 0.0
        %2368 = vmatpush2.msra.mxu0 0.0
        %2369 = vmatprep.subr.mxu0 0.0
        %2370 = vmatpush2.msra.mxu0 0.0
        %2371 = vmatprep.subr.mxu0 0.0
        %2372 = vmatpush2.msra.mxu0 0.0
        %2373 = vmatprep.subr.mxu0 0.0
        %2374 = vmatpush2.msra.mxu0 0.0
        %2375 = vmatprep.subr.mxu0 0.0
        %2376 = vmatpush2.msra.mxu0 0.0
        %2377 = vmatprep.subr.mxu0 0.0
        %2378 = vmatpush2.msra.mxu0 0.0
        %2379 = vmatprep.subr.mxu0 0.0
        %2380 = vmatpush2.msra.mxu0 0.0
        %2381 = vmatprep.subr.mxu0 0.0
        %2382 = vmatpush2.msra.mxu0 0.0
        %2383 = vmatprep.mubr.f32.mxu0 0.0
        %2384 = vmatmul.mubr.f32.gmra.mxu0 %v2299
        %v2385 = vpop.f32.mrf.mxu0
        %v2386 = vadd.f32 0.0, %v2385
        %v2387 = vpop.f32.mrf.mxu0
        %2388 = vmatprep.mubr.f32.mxu0 0.0
        %2389 = vmatmul.mubr.f32.gmra.mxu0 %v2302
        %v2390 = vpop.f32.mrf.mxu0
        %v2391 = vadd.f32 0.0, %v2390
        %v2392 = vpop.f32.mrf.mxu0
        %2393 = vmatprep.mubr.f32.mxu0 0.0
        %2394 = vmatmul.mubr.f32.gmra.mxu0 %v2305
        %v2395 = vpop.f32.mrf.mxu0
        %v2396 = vadd.f32 0.0, %v2395
        %v2397 = vpop.f32.mrf.mxu0
        %2398 = vmatprep.mubr.f32.mxu0 0.0
        %2399 = vmatmul.mubr.f32.gmra.mxu0 %v2308
        %v2400 = vpop.f32.mrf.mxu0
        %v2401 = vadd.f32 0.0, %v2400
        %v2402 = vpop.f32.mrf.mxu0
        %2403 = vmatprep.mubr.f32.mxu0 0.0
        %2404 = vmatmul.mubr.f32.gmra.mxu0 %v2311
        %v2405 = vpop.f32.mrf.mxu0
        %v2406 = vadd.f32 0.0, %v2405
        %v2407 = vpop.f32.mrf.mxu0
        %2408 = vmatprep.mubr.f32.mxu0 0.0
        %2409 = vmatmul.mubr.f32.gmra.mxu0 %v2314
        %v2410 = vpop.f32.mrf.mxu0
        %v2411 = vadd.f32 0.0, %v2410
        %v2412 = vpop.f32.mrf.mxu0
        %2413 = vmatprep.mubr.f32.mxu0 0.0
        %2414 = vmatmul.mubr.f32.gmra.mxu0 %v2317
        %v2415 = vpop.f32.mrf.mxu0
        %v2416 = vadd.f32 0.0, %v2415
        %v2417 = vpop.f32.mrf.mxu0
        %2418 = vdwg.mxu0
        %v2419 = vadd.f32 %v2279, %v2386
        %v2420 = vadd.f32 %v2280, %v2391
        %v2421 = vadd.f32 %v2281, %v2396
        %v2422 = vadd.f32 %v2282, %v2401
        %v2423 = vadd.f32 %v2283, %v2406
        %v2424 = vadd.f32 %v2284, %v2411
        %v2425 = vadd.f32 %v2285, %v2416
        %v2426 = vld [vmem:[%s689 + $0x2] sm:$0xff]
        %v2427 = vld [vmem:[%s689 + $0xa] sm:$0xff]
        %v2428 = vld [vmem:[%s689 + $0x12] sm:$0xff]
        %v2429 = vld [vmem:[%s689 + $0x1a] sm:$0xff]
        %v2430 = vld [vmem:[%s689 + $0x22] sm:$0xff]
        %v2431 = vld [vmem:[%s689 + $0x2a] sm:$0xff]
        %v2432 = vld [vmem:[%s689 + $0x32] sm:$0xff]
        %s2433 = scalar_lea.vmem %s8, 64
        %v2434 = vld [vmem:[%s2433] sm:$0xff]
        %v2435 = vld [vmem:[%s2433 + $0x8] sm:$0xff]
        %v2436 = vld [vmem:[%s2433 + $0x10] sm:$0xff]
        %v2437 = vld [vmem:[%s2433 + $0x18] sm:$0xff]
        %v2439 = vsel %vm1710, %v2426, 0
        %v2442 = vsel %vm1710, %v2427, 0
        %v2445 = vsel %vm1710, %v2428, 0
        %v2448 = vsel %vm1710, %v2429, 0
        %v2451 = vsel %vm1710, %v2430, 0
        %v2454 = vsel %vm1710, %v2431, 0
        %v2457 = vsel %vm1710, %v2432, 0
        %2459 = vmatprep.subr.mxu0 0.0
        %2460 = vmatpush1.msra.mxu0 0.0
        %2461 = vmatprep.subr.mxu0 0.0
        %2462 = vmatpush1.msra.mxu0 0.0
        %2463 = vmatprep.subr.mxu0 0.0
        %2464 = vmatpush1.msra.mxu0 0.0
        %2465 = vmatprep.subr.mxu0 0.0
        %2466 = vmatpush1.msra.mxu0 0.0
        %2467 = vmatprep.subr.mxu0 0.0
        %2468 = vmatpush1.msra.mxu0 0.0
        %2469 = vmatprep.subr.mxu0 0.0
        %2470 = vmatpush1.msra.mxu0 0.0
        %2471 = vmatprep.subr.mxu0 0.0
        %2472 = vmatpush1.msra.mxu0 0.0
        %2473 = vmatprep.subr.mxu0 0.0
        %2474 = vmatpush1.msra.mxu0 0.0
        %2475 = vmatprep.subr.mxu0 0.0
        %2476 = vmatpush1.msra.mxu0 0.0
        %2477 = vmatprep.subr.mxu0 0.0
        %2478 = vmatpush1.msra.mxu0 0.0
        %2479 = vmatprep.subr.mxu0 0.0
        %2480 = vmatpush1.msra.mxu0 0.0
        %2481 = vmatprep.subr.mxu0 0.0
        %2482 = vmatpush1.msra.mxu0 0.0
        %2483 = vmatprep.subr.mxu0 0.0
        %2484 = vmatpush1.msra.mxu0 %v2437
        %2485 = vmatprep.subr.mxu0 0.0
        %2486 = vmatpush1.msra.mxu0 %v2436
        %2487 = vmatprep.subr.mxu0 0.0
        %2488 = vmatpush1.msra.mxu0 %v2435
        %2489 = vmatprep.subr.mxu0 0.0
        %2490 = vmatpush1.msra.mxu0 %v2434
        %2491 = vmatprep.subr.mxu0 0.0
        %2492 = vmatpush2.msra.mxu0 0.0
        %2493 = vmatprep.subr.mxu0 0.0
        %2494 = vmatpush2.msra.mxu0 0.0
        %2495 = vmatprep.subr.mxu0 0.0
        %2496 = vmatpush2.msra.mxu0 0.0
        %2497 = vmatprep.subr.mxu0 0.0
        %2498 = vmatpush2.msra.mxu0 0.0
        %2499 = vmatprep.subr.mxu0 0.0
        %2500 = vmatpush2.msra.mxu0 0.0
        %2501 = vmatprep.subr.mxu0 0.0
        %2502 = vmatpush2.msra.mxu0 0.0
        %2503 = vmatprep.subr.mxu0 0.0
        %2504 = vmatpush2.msra.mxu0 0.0
        %2505 = vmatprep.subr.mxu0 0.0
        %2506 = vmatpush2.msra.mxu0 0.0
        %2507 = vmatprep.subr.mxu0 0.0
        %2508 = vmatpush2.msra.mxu0 0.0
        %2509 = vmatprep.subr.mxu0 0.0
        %2510 = vmatpush2.msra.mxu0 0.0
        %2511 = vmatprep.subr.mxu0 0.0
        %2512 = vmatpush2.msra.mxu0 0.0
        %2513 = vmatprep.subr.mxu0 0.0
        %2514 = vmatpush2.msra.mxu0 0.0
        %2515 = vmatprep.subr.mxu0 0.0
        %2516 = vmatpush2.msra.mxu0 0.0
        %2517 = vmatprep.subr.mxu0 0.0
        %2518 = vmatpush2.msra.mxu0 0.0
        %2519 = vmatprep.subr.mxu0 0.0
        %2520 = vmatpush2.msra.mxu0 0.0
        %2521 = vmatprep.subr.mxu0 0.0
        %2522 = vmatpush2.msra.mxu0 0.0
        %2523 = vmatprep.mubr.f32.mxu0 0.0
        %2524 = vmatmul.mubr.f32.gmra.mxu0 %v2439
        %v2525 = vpop.f32.mrf.mxu0
        %v2526 = vadd.f32 0.0, %v2525
        %v2527 = vpop.f32.mrf.mxu0
        %2528 = vmatprep.mubr.f32.mxu0 0.0
        %2529 = vmatmul.mubr.f32.gmra.mxu0 %v2442
        %v2530 = vpop.f32.mrf.mxu0
        %v2531 = vadd.f32 0.0, %v2530
        %v2532 = vpop.f32.mrf.mxu0
        %2533 = vmatprep.mubr.f32.mxu0 0.0
        %2534 = vmatmul.mubr.f32.gmra.mxu0 %v2445
        %v2535 = vpop.f32.mrf.mxu0
        %v2536 = vadd.f32 0.0, %v2535
        %v2537 = vpop.f32.mrf.mxu0
        %2538 = vmatprep.mubr.f32.mxu0 0.0
        %2539 = vmatmul.mubr.f32.gmra.mxu0 %v2448
        %v2540 = vpop.f32.mrf.mxu0
        %v2541 = vadd.f32 0.0, %v2540
        %v2542 = vpop.f32.mrf.mxu0
        %2543 = vmatprep.mubr.f32.mxu0 0.0
        %2544 = vmatmul.mubr.f32.gmra.mxu0 %v2451
        %v2545 = vpop.f32.mrf.mxu0
        %v2546 = vadd.f32 0.0, %v2545
        %v2547 = vpop.f32.mrf.mxu0
        %2548 = vmatprep.mubr.f32.mxu0 0.0
        %2549 = vmatmul.mubr.f32.gmra.mxu0 %v2454
        %v2550 = vpop.f32.mrf.mxu0
        %v2551 = vadd.f32 0.0, %v2550
        %v2552 = vpop.f32.mrf.mxu0
        %2553 = vmatprep.mubr.f32.mxu0 0.0
        %2554 = vmatmul.mubr.f32.gmra.mxu0 %v2457
        %v2555 = vpop.f32.mrf.mxu0
        %v2556 = vadd.f32 0.0, %v2555
        %v2557 = vpop.f32.mrf.mxu0
        %2558 = vdwg.mxu0
        %v2559 = vadd.f32 %v2419, %v2526
        %v2560 = vadd.f32 %v2420, %v2531
        %v2561 = vadd.f32 %v2421, %v2536
        %v2562 = vadd.f32 %v2422, %v2541
        %v2563 = vadd.f32 %v2423, %v2546
        %v2564 = vadd.f32 %v2424, %v2551
        %v2565 = vadd.f32 %v2425, %v2556
        %v2566 = vld [vmem:[#allocation2 + $0x8] sm:$0xff]
        %v2567 = vld [vmem:[#allocation2 + $0x10] sm:$0xff]
        %v2568 = vld [vmem:[#allocation2 + $0x18] sm:$0xff]
        %v2569 = vld [vmem:[#allocation2 + $0x20] sm:$0xff]
        %v2570 = vld [vmem:[#allocation2 + $0x28] sm:$0xff]
        %v2571 = vld [vmem:[#allocation2 + $0x30] sm:$0xff]
        %v2572 = vld [vmem:[#allocation2 + $0x38] sm:$0xff]
        %s2573 = scalar_lea.vmem %s7, 96
        %v2574 = vld [vmem:[%s2573] sm:$0xff]
        %v2575 = vld [vmem:[%s2573 + $0x8] sm:$0xff]
        %v2576 = vld [vmem:[%s2573 + $0x10] sm:$0xff]
        %v2577 = vld [vmem:[%s2573 + $0x18] sm:$0xff]
        %v2579 = vsel %vm1710, %v2566, 0
        %v2582 = vsel %vm1710, %v2567, 0
        %v2585 = vsel %vm1710, %v2568, 0
        %v2588 = vsel %vm1710, %v2569, 0
        %v2591 = vsel %vm1710, %v2570, 0
        %v2594 = vsel %vm1710, %v2571, 0
        %v2597 = vsel %vm1710, %v2572, 0
        %2599 = vmatprep.subr.mxu0 0.0
        %2600 = vmatpush1.msra.mxu0 0.0
        %2601 = vmatprep.subr.mxu0 0.0
        %2602 = vmatpush1.msra.mxu0 0.0
        %2603 = vmatprep.subr.mxu0 0.0
        %2604 = vmatpush1.msra.mxu0 0.0
        %2605 = vmatprep.subr.mxu0 0.0
        %2606 = vmatpush1.msra.mxu0 0.0
        %2607 = vmatprep.subr.mxu0 0.0
        %2608 = vmatpush1.msra.mxu0 0.0
        %2609 = vmatprep.subr.mxu0 0.0
        %2610 = vmatpush1.msra.mxu0 0.0
        %2611 = vmatprep.subr.mxu0 0.0
        %2612 = vmatpush1.msra.mxu0 0.0
        %2613 = vmatprep.subr.mxu0 0.0
        %2614 = vmatpush1.msra.mxu0 0.0
        %2615 = vmatprep.subr.mxu0 0.0
        %2616 = vmatpush1.msra.mxu0 0.0
        %2617 = vmatprep.subr.mxu0 0.0
        %2618 = vmatpush1.msra.mxu0 0.0
        %2619 = vmatprep.subr.mxu0 0.0
        %2620 = vmatpush1.msra.mxu0 0.0
        %2621 = vmatprep.subr.mxu0 0.0
        %2622 = vmatpush1.msra.mxu0 0.0
        %2623 = vmatprep.subr.mxu0 0.0
        %2624 = vmatpush1.msra.mxu0 %v2577
        %2625 = vmatprep.subr.mxu0 0.0
        %2626 = vmatpush1.msra.mxu0 %v2576
        %2627 = vmatprep.subr.mxu0 0.0
        %2628 = vmatpush1.msra.mxu0 %v2575
        %2629 = vmatprep.subr.mxu0 0.0
        %2630 = vmatpush1.msra.mxu0 %v2574
        %2631 = vmatprep.subr.mxu0 0.0
        %2632 = vmatpush2.msra.mxu0 0.0
        %2633 = vmatprep.subr.mxu0 0.0
        %2634 = vmatpush2.msra.mxu0 0.0
        %2635 = vmatprep.subr.mxu0 0.0
        %2636 = vmatpush2.msra.mxu0 0.0
        %2637 = vmatprep.subr.mxu0 0.0
        %2638 = vmatpush2.msra.mxu0 0.0
        %2639 = vmatprep.subr.mxu0 0.0
        %2640 = vmatpush2.msra.mxu0 0.0
        %2641 = vmatprep.subr.mxu0 0.0
        %2642 = vmatpush2.msra.mxu0 0.0
        %2643 = vmatprep.subr.mxu0 0.0
        %2644 = vmatpush2.msra.mxu0 0.0
        %2645 = vmatprep.subr.mxu0 0.0
        %2646 = vmatpush2.msra.mxu0 0.0
        %2647 = vmatprep.subr.mxu0 0.0
        %2648 = vmatpush2.msra.mxu0 0.0
        %2649 = vmatprep.subr.mxu0 0.0
        %2650 = vmatpush2.msra.mxu0 0.0
        %2651 = vmatprep.subr.mxu0 0.0
        %2652 = vmatpush2.msra.mxu0 0.0
        %2653 = vmatprep.subr.mxu0 0.0
        %2654 = vmatpush2.msra.mxu0 0.0
        %2655 = vmatprep.subr.mxu0 0.0
        %2656 = vmatpush2.msra.mxu0 0.0
        %2657 = vmatprep.subr.mxu0 0.0
        %2658 = vmatpush2.msra.mxu0 0.0
        %2659 = vmatprep.subr.mxu0 0.0
        %2660 = vmatpush2.msra.mxu0 0.0
        %2661 = vmatprep.subr.mxu0 0.0
        %2662 = vmatpush2.msra.mxu0 0.0
        %2663 = vmatprep.mubr.f32.mxu0 0.0
        %2664 = vmatmul.mubr.f32.gmra.mxu0 %v2579
        %v2665 = vpop.f32.mrf.mxu0
        %v2666 = vadd.f32 0.0, %v2665
        %v2667 = vpop.f32.mrf.mxu0
        %2668 = vmatprep.mubr.f32.mxu0 0.0
        %2669 = vmatmul.mubr.f32.gmra.mxu0 %v2582
        %v2670 = vpop.f32.mrf.mxu0
        %v2671 = vadd.f32 0.0, %v2670
        %v2672 = vpop.f32.mrf.mxu0
        %2673 = vmatprep.mubr.f32.mxu0 0.0
        %2674 = vmatmul.mubr.f32.gmra.mxu0 %v2585
        %v2675 = vpop.f32.mrf.mxu0
        %v2676 = vadd.f32 0.0, %v2675
        %v2677 = vpop.f32.mrf.mxu0
        %2678 = vmatprep.mubr.f32.mxu0 0.0
        %2679 = vmatmul.mubr.f32.gmra.mxu0 %v2588
        %v2680 = vpop.f32.mrf.mxu0
        %v2681 = vadd.f32 0.0, %v2680
        %v2682 = vpop.f32.mrf.mxu0
        %2683 = vmatprep.mubr.f32.mxu0 0.0
        %2684 = vmatmul.mubr.f32.gmra.mxu0 %v2591
        %v2685 = vpop.f32.mrf.mxu0
        %v2686 = vadd.f32 0.0, %v2685
        %v2687 = vpop.f32.mrf.mxu0
        %2688 = vmatprep.mubr.f32.mxu0 0.0
        %2689 = vmatmul.mubr.f32.gmra.mxu0 %v2594
        %v2690 = vpop.f32.mrf.mxu0
        %v2691 = vadd.f32 0.0, %v2690
        %v2692 = vpop.f32.mrf.mxu0
        %2693 = vmatprep.mubr.f32.mxu0 0.0
        %2694 = vmatmul.mubr.f32.gmra.mxu0 %v2597
        %v2695 = vpop.f32.mrf.mxu0
        %v2696 = vadd.f32 0.0, %v2695
        %v2697 = vpop.f32.mrf.mxu0
        %2698 = vdwg.mxu0
        %v2699 = vadd.f32 %v2559, %v2666
        %v2700 = vadd.f32 %v2560, %v2671
        %v2701 = vadd.f32 %v2561, %v2676
        %v2702 = vadd.f32 %v2562, %v2681
        %v2703 = vadd.f32 %v2563, %v2686
        %v2704 = vadd.f32 %v2564, %v2691
        %v2705 = vadd.f32 %v2565, %v2696
        %v2706 = vld [vmem:[%s689 + $0x8] sm:$0xff]
        %v2707 = vld [vmem:[%s689 + $0x10] sm:$0xff]
        %v2708 = vld [vmem:[%s689 + $0x18] sm:$0xff]
        %v2709 = vld [vmem:[%s689 + $0x20] sm:$0xff]
        %v2710 = vld [vmem:[%s689 + $0x28] sm:$0xff]
        %v2711 = vld [vmem:[%s689 + $0x30] sm:$0xff]
        %v2712 = vld [vmem:[%s689 + $0x38] sm:$0xff]
        %s2713 = scalar_lea.vmem %s8, 96
        %v2714 = vld [vmem:[%s2713] sm:$0xff]
        %v2715 = vld [vmem:[%s2713 + $0x8] sm:$0xff]
        %v2716 = vld [vmem:[%s2713 + $0x10] sm:$0xff]
        %v2717 = vld [vmem:[%s2713 + $0x18] sm:$0xff]
        %v2719 = vsel %vm1710, %v2706, 0
        %v2722 = vsel %vm1710, %v2707, 0
        %v2725 = vsel %vm1710, %v2708, 0
        %v2728 = vsel %vm1710, %v2709, 0
        %v2731 = vsel %vm1710, %v2710, 0
        %v2734 = vsel %vm1710, %v2711, 0
        %v2737 = vsel %vm1710, %v2712, 0
        %2739 = vmatprep.subr.mxu0 0.0
        %2740 = vmatpush1.msra.mxu0 0.0
        %2741 = vmatprep.subr.mxu0 0.0
        %2742 = vmatpush1.msra.mxu0 0.0
        %2743 = vmatprep.subr.mxu0 0.0
        %2744 = vmatpush1.msra.mxu0 0.0
        %2745 = vmatprep.subr.mxu0 0.0
        %2746 = vmatpush1.msra.mxu0 0.0
        %2747 = vmatprep.subr.mxu0 0.0
        %2748 = vmatpush1.msra.mxu0 0.0
        %2749 = vmatprep.subr.mxu0 0.0
        %2750 = vmatpush1.msra.mxu0 0.0
        %2751 = vmatprep.subr.mxu0 0.0
        %2752 = vmatpush1.msra.mxu0 0.0
        %2753 = vmatprep.subr.mxu0 0.0
        %2754 = vmatpush1.msra.mxu0 0.0
        %2755 = vmatprep.subr.mxu0 0.0
        %2756 = vmatpush1.msra.mxu0 0.0
        %2757 = vmatprep.subr.mxu0 0.0
        %2758 = vmatpush1.msra.mxu0 0.0
        %2759 = vmatprep.subr.mxu0 0.0
        %2760 = vmatpush1.msra.mxu0 0.0
        %2761 = vmatprep.subr.mxu0 0.0
        %2762 = vmatpush1.msra.mxu0 0.0
        %2763 = vmatprep.subr.mxu0 0.0
        %2764 = vmatpush1.msra.mxu0 %v2717
        %2765 = vmatprep.subr.mxu0 0.0
        %2766 = vmatpush1.msra.mxu0 %v2716
        %2767 = vmatprep.subr.mxu0 0.0
        %2768 = vmatpush1.msra.mxu0 %v2715
        %2769 = vmatprep.subr.mxu0 0.0
        %2770 = vmatpush1.msra.mxu0 %v2714
        %2771 = vmatprep.subr.mxu0 0.0
        %2772 = vmatpush2.msra.mxu0 0.0
        %2773 = vmatprep.subr.mxu0 0.0
        %2774 = vmatpush2.msra.mxu0 0.0
        %2775 = vmatprep.subr.mxu0 0.0
        %2776 = vmatpush2.msra.mxu0 0.0
        %2777 = vmatprep.subr.mxu0 0.0
        %2778 = vmatpush2.msra.mxu0 0.0
        %2779 = vmatprep.subr.mxu0 0.0
        %2780 = vmatpush2.msra.mxu0 0.0
        %2781 = vmatprep.subr.mxu0 0.0
        %2782 = vmatpush2.msra.mxu0 0.0
        %2783 = vmatprep.subr.mxu0 0.0
        %2784 = vmatpush2.msra.mxu0 0.0
        %2785 = vmatprep.subr.mxu0 0.0
        %2786 = vmatpush2.msra.mxu0 0.0
        %2787 = vmatprep.subr.mxu0 0.0
        %2788 = vmatpush2.msra.mxu0 0.0
        %2789 = vmatprep.subr.mxu0 0.0
        %2790 = vmatpush2.msra.mxu0 0.0
        %2791 = vmatprep.subr.mxu0 0.0
        %2792 = vmatpush2.msra.mxu0 0.0
        %2793 = vmatprep.subr.mxu0 0.0
        %2794 = vmatpush2.msra.mxu0 0.0
        %2795 = vmatprep.subr.mxu0 0.0
        %2796 = vmatpush2.msra.mxu0 0.0
        %2797 = vmatprep.subr.mxu0 0.0
        %2798 = vmatpush2.msra.mxu0 0.0
        %2799 = vmatprep.subr.mxu0 0.0
        %2800 = vmatpush2.msra.mxu0 0.0
        %2801 = vmatprep.subr.mxu0 0.0
        %2802 = vmatpush2.msra.mxu0 0.0
        %2803 = vmatprep.mubr.f32.mxu0 0.0
        %2804 = vmatmul.mubr.f32.gmra.mxu0 %v2719
        %v2805 = vpop.f32.mrf.mxu0
        %v2806 = vadd.f32 0.0, %v2805
        %v2807 = vpop.f32.mrf.mxu0
        %2808 = vmatprep.mubr.f32.mxu0 0.0
        %2809 = vmatmul.mubr.f32.gmra.mxu0 %v2722
        %v2810 = vpop.f32.mrf.mxu0
        %v2811 = vadd.f32 0.0, %v2810
        %v2812 = vpop.f32.mrf.mxu0
        %2813 = vmatprep.mubr.f32.mxu0 0.0
        %2814 = vmatmul.mubr.f32.gmra.mxu0 %v2725
        %v2815 = vpop.f32.mrf.mxu0
        %v2816 = vadd.f32 0.0, %v2815
        %v2817 = vpop.f32.mrf.mxu0
        %2818 = vmatprep.mubr.f32.mxu0 0.0
        %2819 = vmatmul.mubr.f32.gmra.mxu0 %v2728
        %v2820 = vpop.f32.mrf.mxu0
        %v2821 = vadd.f32 0.0, %v2820
        %v2822 = vpop.f32.mrf.mxu0
        %2823 = vmatprep.mubr.f32.mxu0 0.0
        %2824 = vmatmul.mubr.f32.gmra.mxu0 %v2731
        %v2825 = vpop.f32.mrf.mxu0
        %v2826 = vadd.f32 0.0, %v2825
        %v2827 = vpop.f32.mrf.mxu0
        %2828 = vmatprep.mubr.f32.mxu0 0.0
        %2829 = vmatmul.mubr.f32.gmra.mxu0 %v2734
        %v2830 = vpop.f32.mrf.mxu0
        %v2831 = vadd.f32 0.0, %v2830
        %v2832 = vpop.f32.mrf.mxu0
        %2833 = vmatprep.mubr.f32.mxu0 0.0
        %2834 = vmatmul.mubr.f32.gmra.mxu0 %v2737
        %v2835 = vpop.f32.mrf.mxu0
        %v2836 = vadd.f32 0.0, %v2835
        %v2837 = vpop.f32.mrf.mxu0
        %2838 = vdwg.mxu0
        %v2839 = vadd.f32 %v2699, %v2806
        %v2840 = vadd.f32 %v2700, %v2811
        %v2841 = vadd.f32 %v2701, %v2816
        %v2842 = vadd.f32 %v2702, %v2821
        %v2843 = vadd.f32 %v2703, %v2826
        %v2844 = vadd.f32 %v2704, %v2831
        %v2845 = vadd.f32 %v2705, %v2836
        %v2846 = vld [vmem:[#allocation2 + $0x9] sm:$0xff]
        %v2847 = vld [vmem:[#allocation2 + $0x11] sm:$0xff]
        %v2848 = vld [vmem:[#allocation2 + $0x19] sm:$0xff]
        %v2849 = vld [vmem:[#allocation2 + $0x21] sm:$0xff]
        %v2850 = vld [vmem:[#allocation2 + $0x29] sm:$0xff]
        %v2851 = vld [vmem:[#allocation2 + $0x31] sm:$0xff]
        %v2852 = vld [vmem:[#allocation2 + $0x39] sm:$0xff]
        %s2853 = scalar_lea.vmem %s7, 128
        %v2854 = vld [vmem:[%s2853] sm:$0xff]
        %v2855 = vld [vmem:[%s2853 + $0x8] sm:$0xff]
        %v2856 = vld [vmem:[%s2853 + $0x10] sm:$0xff]
        %v2857 = vld [vmem:[%s2853 + $0x18] sm:$0xff]
        %v2859 = vsel %vm1710, %v2846, 0
        %v2862 = vsel %vm1710, %v2847, 0
        %v2865 = vsel %vm1710, %v2848, 0
        %v2868 = vsel %vm1710, %v2849, 0
        %v2871 = vsel %vm1710, %v2850, 0
        %v2874 = vsel %vm1710, %v2851, 0
        %v2877 = vsel %vm1710, %v2852, 0
        %2879 = vmatprep.subr.mxu0 0.0
        %2880 = vmatpush1.msra.mxu0 0.0
        %2881 = vmatprep.subr.mxu0 0.0
        %2882 = vmatpush1.msra.mxu0 0.0
        %2883 = vmatprep.subr.mxu0 0.0
        %2884 = vmatpush1.msra.mxu0 0.0
        %2885 = vmatprep.subr.mxu0 0.0
        %2886 = vmatpush1.msra.mxu0 0.0
        %2887 = vmatprep.subr.mxu0 0.0
        %2888 = vmatpush1.msra.mxu0 0.0
        %2889 = vmatprep.subr.mxu0 0.0
        %2890 = vmatpush1.msra.mxu0 0.0
        %2891 = vmatprep.subr.mxu0 0.0
        %2892 = vmatpush1.msra.mxu0 0.0
        %2893 = vmatprep.subr.mxu0 0.0
        %2894 = vmatpush1.msra.mxu0 0.0
        %2895 = vmatprep.subr.mxu0 0.0
        %2896 = vmatpush1.msra.mxu0 0.0
        %2897 = vmatprep.subr.mxu0 0.0
        %2898 = vmatpush1.msra.mxu0 0.0
        %2899 = vmatprep.subr.mxu0 0.0
        %2900 = vmatpush1.msra.mxu0 0.0
        %2901 = vmatprep.subr.mxu0 0.0
        %2902 = vmatpush1.msra.mxu0 0.0
        %2903 = vmatprep.subr.mxu0 0.0
        %2904 = vmatpush1.msra.mxu0 %v2857
        %2905 = vmatprep.subr.mxu0 0.0
        %2906 = vmatpush1.msra.mxu0 %v2856
        %2907 = vmatprep.subr.mxu0 0.0
        %2908 = vmatpush1.msra.mxu0 %v2855
        %2909 = vmatprep.subr.mxu0 0.0
        %2910 = vmatpush1.msra.mxu0 %v2854
        %2911 = vmatprep.subr.mxu0 0.0
        %2912 = vmatpush2.msra.mxu0 0.0
        %2913 = vmatprep.subr.mxu0 0.0
        %2914 = vmatpush2.msra.mxu0 0.0
        %2915 = vmatprep.subr.mxu0 0.0
        %2916 = vmatpush2.msra.mxu0 0.0
        %2917 = vmatprep.subr.mxu0 0.0
        %2918 = vmatpush2.msra.mxu0 0.0
        %2919 = vmatprep.subr.mxu0 0.0
        %2920 = vmatpush2.msra.mxu0 0.0
        %2921 = vmatprep.subr.mxu0 0.0
        %2922 = vmatpush2.msra.mxu0 0.0
        %2923 = vmatprep.subr.mxu0 0.0
        %2924 = vmatpush2.msra.mxu0 0.0
        %2925 = vmatprep.subr.mxu0 0.0
        %2926 = vmatpush2.msra.mxu0 0.0
        %2927 = vmatprep.subr.mxu0 0.0
        %2928 = vmatpush2.msra.mxu0 0.0
        %2929 = vmatprep.subr.mxu0 0.0
        %2930 = vmatpush2.msra.mxu0 0.0
        %2931 = vmatprep.subr.mxu0 0.0
        %2932 = vmatpush2.msra.mxu0 0.0
        %2933 = vmatprep.subr.mxu0 0.0
        %2934 = vmatpush2.msra.mxu0 0.0
        %2935 = vmatprep.subr.mxu0 0.0
        %2936 = vmatpush2.msra.mxu0 0.0
        %2937 = vmatprep.subr.mxu0 0.0
        %2938 = vmatpush2.msra.mxu0 0.0
        %2939 = vmatprep.subr.mxu0 0.0
        %2940 = vmatpush2.msra.mxu0 0.0
        %2941 = vmatprep.subr.mxu0 0.0
        %2942 = vmatpush2.msra.mxu0 0.0
        %2943 = vmatprep.mubr.f32.mxu0 0.0
        %2944 = vmatmul.mubr.f32.gmra.mxu0 %v2859
        %v2945 = vpop.f32.mrf.mxu0
        %v2946 = vadd.f32 0.0, %v2945
        %v2947 = vpop.f32.mrf.mxu0
        %2948 = vmatprep.mubr.f32.mxu0 0.0
        %2949 = vmatmul.mubr.f32.gmra.mxu0 %v2862
        %v2950 = vpop.f32.mrf.mxu0
        %v2951 = vadd.f32 0.0, %v2950
        %v2952 = vpop.f32.mrf.mxu0
        %2953 = vmatprep.mubr.f32.mxu0 0.0
        %2954 = vmatmul.mubr.f32.gmra.mxu0 %v2865
        %v2955 = vpop.f32.mrf.mxu0
        %v2956 = vadd.f32 0.0, %v2955
        %v2957 = vpop.f32.mrf.mxu0
        %2958 = vmatprep.mubr.f32.mxu0 0.0
        %2959 = vmatmul.mubr.f32.gmra.mxu0 %v2868
        %v2960 = vpop.f32.mrf.mxu0
        %v2961 = vadd.f32 0.0, %v2960
        %v2962 = vpop.f32.mrf.mxu0
        %2963 = vmatprep.mubr.f32.mxu0 0.0
        %2964 = vmatmul.mubr.f32.gmra.mxu0 %v2871
        %v2965 = vpop.f32.mrf.mxu0
        %v2966 = vadd.f32 0.0, %v2965
        %v2967 = vpop.f32.mrf.mxu0
        %2968 = vmatprep.mubr.f32.mxu0 0.0
        %2969 = vmatmul.mubr.f32.gmra.mxu0 %v2874
        %v2970 = vpop.f32.mrf.mxu0
        %v2971 = vadd.f32 0.0, %v2970
        %v2972 = vpop.f32.mrf.mxu0
        %2973 = vmatprep.mubr.f32.mxu0 0.0
        %2974 = vmatmul.mubr.f32.gmra.mxu0 %v2877
        %v2975 = vpop.f32.mrf.mxu0
        %v2976 = vadd.f32 0.0, %v2975
        %v2977 = vpop.f32.mrf.mxu0
        %2978 = vdwg.mxu0
        %v2979 = vadd.f32 %v2839, %v2946
        %v2980 = vadd.f32 %v2840, %v2951
        %v2981 = vadd.f32 %v2841, %v2956
        %v2982 = vadd.f32 %v2842, %v2961
        %v2983 = vadd.f32 %v2843, %v2966
        %v2984 = vadd.f32 %v2844, %v2971
        %v2985 = vadd.f32 %v2845, %v2976
        %v2986 = vld [vmem:[%s689 + $0x9] sm:$0xff]
        %v2987 = vld [vmem:[%s689 + $0x11] sm:$0xff]
        %v2988 = vld [vmem:[%s689 + $0x19] sm:$0xff]
        %v2989 = vld [vmem:[%s689 + $0x21] sm:$0xff]
        %v2990 = vld [vmem:[%s689 + $0x29] sm:$0xff]
        %v2991 = vld [vmem:[%s689 + $0x31] sm:$0xff]
        %v2992 = vld [vmem:[%s689 + $0x39] sm:$0xff]
        %s2993 = scalar_lea.vmem %s8, 128
        %v2994 = vld [vmem:[%s2993] sm:$0xff]
        %v2995 = vld [vmem:[%s2993 + $0x8] sm:$0xff]
        %v2996 = vld [vmem:[%s2993 + $0x10] sm:$0xff]
        %v2997 = vld [vmem:[%s2993 + $0x18] sm:$0xff]
        %v2999 = vsel %vm1710, %v2986, 0
        %v3002 = vsel %vm1710, %v2987, 0
        %v3005 = vsel %vm1710, %v2988, 0
        %v3008 = vsel %vm1710, %v2989, 0
        %v3011 = vsel %vm1710, %v2990, 0
        %v3014 = vsel %vm1710, %v2991, 0
        %v3017 = vsel %vm1710, %v2992, 0
        %3019 = vmatprep.subr.mxu0 0.0
        %3020 = vmatpush1.msra.mxu0 0.0
        %3021 = vmatprep.subr.mxu0 0.0
        %3022 = vmatpush1.msra.mxu0 0.0
        %3023 = vmatprep.subr.mxu0 0.0
        %3024 = vmatpush1.msra.mxu0 0.0
        %3025 = vmatprep.subr.mxu0 0.0
        %3026 = vmatpush1.msra.mxu0 0.0
        %3027 = vmatprep.subr.mxu0 0.0
        %3028 = vmatpush1.msra.mxu0 0.0
        %3029 = vmatprep.subr.mxu0 0.0
        %3030 = vmatpush1.msra.mxu0 0.0
        %3031 = vmatprep.subr.mxu0 0.0
        %3032 = vmatpush1.msra.mxu0 0.0
        %3033 = vmatprep.subr.mxu0 0.0
        %3034 = vmatpush1.msra.mxu0 0.0
        %3035 = vmatprep.subr.mxu0 0.0
        %3036 = vmatpush1.msra.mxu0 0.0
        %3037 = vmatprep.subr.mxu0 0.0
        %3038 = vmatpush1.msra.mxu0 0.0
        %3039 = vmatprep.subr.mxu0 0.0
        %3040 = vmatpush1.msra.mxu0 0.0
        %3041 = vmatprep.subr.mxu0 0.0
        %3042 = vmatpush1.msra.mxu0 0.0
        %3043 = vmatprep.subr.mxu0 0.0
        %3044 = vmatpush1.msra.mxu0 %v2997
        %3045 = vmatprep.subr.mxu0 0.0
        %3046 = vmatpush1.msra.mxu0 %v2996
        %3047 = vmatprep.subr.mxu0 0.0
        %3048 = vmatpush1.msra.mxu0 %v2995
        %3049 = vmatprep.subr.mxu0 0.0
        %3050 = vmatpush1.msra.mxu0 %v2994
        %3051 = vmatprep.subr.mxu0 0.0
        %3052 = vmatpush2.msra.mxu0 0.0
        %3053 = vmatprep.subr.mxu0 0.0
        %3054 = vmatpush2.msra.mxu0 0.0
        %3055 = vmatprep.subr.mxu0 0.0
        %3056 = vmatpush2.msra.mxu0 0.0
        %3057 = vmatprep.subr.mxu0 0.0
        %3058 = vmatpush2.msra.mxu0 0.0
        %3059 = vmatprep.subr.mxu0 0.0
        %3060 = vmatpush2.msra.mxu0 0.0
        %3061 = vmatprep.subr.mxu0 0.0
        %3062 = vmatpush2.msra.mxu0 0.0
        %3063 = vmatprep.subr.mxu0 0.0
        %3064 = vmatpush2.msra.mxu0 0.0
        %3065 = vmatprep.subr.mxu0 0.0
        %3066 = vmatpush2.msra.mxu0 0.0
        %3067 = vmatprep.subr.mxu0 0.0
        %3068 = vmatpush2.msra.mxu0 0.0
        %3069 = vmatprep.subr.mxu0 0.0
        %3070 = vmatpush2.msra.mxu0 0.0
        %3071 = vmatprep.subr.mxu0 0.0
        %3072 = vmatpush2.msra.mxu0 0.0
        %3073 = vmatprep.subr.mxu0 0.0
        %3074 = vmatpush2.msra.mxu0 0.0
        %3075 = vmatprep.subr.mxu0 0.0
        %3076 = vmatpush2.msra.mxu0 0.0
        %3077 = vmatprep.subr.mxu0 0.0
        %3078 = vmatpush2.msra.mxu0 0.0
        %3079 = vmatprep.subr.mxu0 0.0
        %3080 = vmatpush2.msra.mxu0 0.0
        %3081 = vmatprep.subr.mxu0 0.0
        %3082 = vmatpush2.msra.mxu0 0.0
        %3083 = vmatprep.mubr.f32.mxu0 0.0
        %3084 = vmatmul.mubr.f32.gmra.mxu0 %v2999
        %v3085 = vpop.f32.mrf.mxu0
        %v3086 = vadd.f32 0.0, %v3085
        %v3087 = vpop.f32.mrf.mxu0
        %3088 = vmatprep.mubr.f32.mxu0 0.0
        %3089 = vmatmul.mubr.f32.gmra.mxu0 %v3002
        %v3090 = vpop.f32.mrf.mxu0
        %v3091 = vadd.f32 0.0, %v3090
        %v3092 = vpop.f32.mrf.mxu0
        %3093 = vmatprep.mubr.f32.mxu0 0.0
        %3094 = vmatmul.mubr.f32.gmra.mxu0 %v3005
        %v3095 = vpop.f32.mrf.mxu0
        %v3096 = vadd.f32 0.0, %v3095
        %v3097 = vpop.f32.mrf.mxu0
        %3098 = vmatprep.mubr.f32.mxu0 0.0
        %3099 = vmatmul.mubr.f32.gmra.mxu0 %v3008
        %v3100 = vpop.f32.mrf.mxu0
        %v3101 = vadd.f32 0.0, %v3100
        %v3102 = vpop.f32.mrf.mxu0
        %3103 = vmatprep.mubr.f32.mxu0 0.0
        %3104 = vmatmul.mubr.f32.gmra.mxu0 %v3011
        %v3105 = vpop.f32.mrf.mxu0
        %v3106 = vadd.f32 0.0, %v3105
        %v3107 = vpop.f32.mrf.mxu0
        %3108 = vmatprep.mubr.f32.mxu0 0.0
        %3109 = vmatmul.mubr.f32.gmra.mxu0 %v3014
        %v3110 = vpop.f32.mrf.mxu0
        %v3111 = vadd.f32 0.0, %v3110
        %v3112 = vpop.f32.mrf.mxu0
        %3113 = vmatprep.mubr.f32.mxu0 0.0
        %3114 = vmatmul.mubr.f32.gmra.mxu0 %v3017
        %v3115 = vpop.f32.mrf.mxu0
        %v3116 = vadd.f32 0.0, %v3115
        %v3117 = vpop.f32.mrf.mxu0
        %3118 = vdwg.mxu0
        %v3119 = vadd.f32 %v2979, %v3086
        %v3120 = vadd.f32 %v2980, %v3091
        %v3121 = vadd.f32 %v2981, %v3096
        %v3122 = vadd.f32 %v2982, %v3101
        %v3123 = vadd.f32 %v2983, %v3106
        %v3124 = vadd.f32 %v2984, %v3111
        %v3125 = vadd.f32 %v2985, %v3116
        %v3126 = vld [vmem:[#allocation2 + $0xa] sm:$0xff]
        %v3127 = vld [vmem:[#allocation2 + $0x12] sm:$0xff]
        %v3128 = vld [vmem:[#allocation2 + $0x1a] sm:$0xff]
        %v3129 = vld [vmem:[#allocation2 + $0x22] sm:$0xff]
        %v3130 = vld [vmem:[#allocation2 + $0x2a] sm:$0xff]
        %v3131 = vld [vmem:[#allocation2 + $0x32] sm:$0xff]
        %v3132 = vld [vmem:[#allocation2 + $0x3a] sm:$0xff]
        %s3133 = scalar_lea.vmem %s7, 160
        %v3134 = vld [vmem:[%s3133] sm:$0xff]
        %v3135 = vld [vmem:[%s3133 + $0x8] sm:$0xff]
        %v3136 = vld [vmem:[%s3133 + $0x10] sm:$0xff]
        %v3137 = vld [vmem:[%s3133 + $0x18] sm:$0xff]
        %v3139 = vsel %vm1710, %v3126, 0
        %v3142 = vsel %vm1710, %v3127, 0
        %v3145 = vsel %vm1710, %v3128, 0
        %v3148 = vsel %vm1710, %v3129, 0
        %v3151 = vsel %vm1710, %v3130, 0
        %v3154 = vsel %vm1710, %v3131, 0
        %v3157 = vsel %vm1710, %v3132, 0
        %3159 = vmatprep.subr.mxu0 0.0
        %3160 = vmatpush1.msra.mxu0 0.0
        %3161 = vmatprep.subr.mxu0 0.0
        %3162 = vmatpush1.msra.mxu0 0.0
        %3163 = vmatprep.subr.mxu0 0.0
        %3164 = vmatpush1.msra.mxu0 0.0
        %3165 = vmatprep.subr.mxu0 0.0
        %3166 = vmatpush1.msra.mxu0 0.0
        %3167 = vmatprep.subr.mxu0 0.0
        %3168 = vmatpush1.msra.mxu0 0.0
        %3169 = vmatprep.subr.mxu0 0.0
        %3170 = vmatpush1.msra.mxu0 0.0
        %3171 = vmatprep.subr.mxu0 0.0
        %3172 = vmatpush1.msra.mxu0 0.0
        %3173 = vmatprep.subr.mxu0 0.0
        %3174 = vmatpush1.msra.mxu0 0.0
        %3175 = vmatprep.subr.mxu0 0.0
        %3176 = vmatpush1.msra.mxu0 0.0
        %3177 = vmatprep.subr.mxu0 0.0
        %3178 = vmatpush1.msra.mxu0 0.0
        %3179 = vmatprep.subr.mxu0 0.0
        %3180 = vmatpush1.msra.mxu0 0.0
        %3181 = vmatprep.subr.mxu0 0.0
        %3182 = vmatpush1.msra.mxu0 0.0
        %3183 = vmatprep.subr.mxu0 0.0
        %3184 = vmatpush1.msra.mxu0 %v3137
        %3185 = vmatprep.subr.mxu0 0.0
        %3186 = vmatpush1.msra.mxu0 %v3136
        %3187 = vmatprep.subr.mxu0 0.0
        %3188 = vmatpush1.msra.mxu0 %v3135
        %3189 = vmatprep.subr.mxu0 0.0
        %3190 = vmatpush1.msra.mxu0 %v3134
        %3191 = vmatprep.subr.mxu0 0.0
        %3192 = vmatpush2.msra.mxu0 0.0
        %3193 = vmatprep.subr.mxu0 0.0
        %3194 = vmatpush2.msra.mxu0 0.0
        %3195 = vmatprep.subr.mxu0 0.0
        %3196 = vmatpush2.msra.mxu0 0.0
        %3197 = vmatprep.subr.mxu0 0.0
        %3198 = vmatpush2.msra.mxu0 0.0
        %3199 = vmatprep.subr.mxu0 0.0
        %3200 = vmatpush2.msra.mxu0 0.0
        %3201 = vmatprep.subr.mxu0 0.0
        %3202 = vmatpush2.msra.mxu0 0.0
        %3203 = vmatprep.subr.mxu0 0.0
        %3204 = vmatpush2.msra.mxu0 0.0
        %3205 = vmatprep.subr.mxu0 0.0
        %3206 = vmatpush2.msra.mxu0 0.0
        %3207 = vmatprep.subr.mxu0 0.0
        %3208 = vmatpush2.msra.mxu0 0.0
        %3209 = vmatprep.subr.mxu0 0.0
        %3210 = vmatpush2.msra.mxu0 0.0
        %3211 = vmatprep.subr.mxu0 0.0
        %3212 = vmatpush2.msra.mxu0 0.0
        %3213 = vmatprep.subr.mxu0 0.0
        %3214 = vmatpush2.msra.mxu0 0.0
        %3215 = vmatprep.subr.mxu0 0.0
        %3216 = vmatpush2.msra.mxu0 0.0
        %3217 = vmatprep.subr.mxu0 0.0
        %3218 = vmatpush2.msra.mxu0 0.0
        %3219 = vmatprep.subr.mxu0 0.0
        %3220 = vmatpush2.msra.mxu0 0.0
        %3221 = vmatprep.subr.mxu0 0.0
        %3222 = vmatpush2.msra.mxu0 0.0
        %3223 = vmatprep.mubr.f32.mxu0 0.0
        %3224 = vmatmul.mubr.f32.gmra.mxu0 %v3139
        %v3225 = vpop.f32.mrf.mxu0
        %v3226 = vadd.f32 0.0, %v3225
        %v3227 = vpop.f32.mrf.mxu0
        %3228 = vmatprep.mubr.f32.mxu0 0.0
        %3229 = vmatmul.mubr.f32.gmra.mxu0 %v3142
        %v3230 = vpop.f32.mrf.mxu0
        %v3231 = vadd.f32 0.0, %v3230
        %v3232 = vpop.f32.mrf.mxu0
        %3233 = vmatprep.mubr.f32.mxu0 0.0
        %3234 = vmatmul.mubr.f32.gmra.mxu0 %v3145
        %v3235 = vpop.f32.mrf.mxu0
        %v3236 = vadd.f32 0.0, %v3235
        %v3237 = vpop.f32.mrf.mxu0
        %3238 = vmatprep.mubr.f32.mxu0 0.0
        %3239 = vmatmul.mubr.f32.gmra.mxu0 %v3148
        %v3240 = vpop.f32.mrf.mxu0
        %v3241 = vadd.f32 0.0, %v3240
        %v3242 = vpop.f32.mrf.mxu0
        %3243 = vmatprep.mubr.f32.mxu0 0.0
        %3244 = vmatmul.mubr.f32.gmra.mxu0 %v3151
        %v3245 = vpop.f32.mrf.mxu0
        %v3246 = vadd.f32 0.0, %v3245
        %v3247 = vpop.f32.mrf.mxu0
        %3248 = vmatprep.mubr.f32.mxu0 0.0
        %3249 = vmatmul.mubr.f32.gmra.mxu0 %v3154
        %v3250 = vpop.f32.mrf.mxu0
        %v3251 = vadd.f32 0.0, %v3250
        %v3252 = vpop.f32.mrf.mxu0
        %3253 = vmatprep.mubr.f32.mxu0 0.0
        %3254 = vmatmul.mubr.f32.gmra.mxu0 %v3157
        %v3255 = vpop.f32.mrf.mxu0
        %v3256 = vadd.f32 0.0, %v3255
        %v3257 = vpop.f32.mrf.mxu0
        %3258 = vdwg.mxu0
        %v3259 = vadd.f32 %v3119, %v3226
        %v3260 = vadd.f32 %v3120, %v3231
        %v3261 = vadd.f32 %v3121, %v3236
        %v3262 = vadd.f32 %v3122, %v3241
        %v3263 = vadd.f32 %v3123, %v3246
        %v3264 = vadd.f32 %v3124, %v3251
        %v3265 = vadd.f32 %v3125, %v3256
        %v3266 = vld [vmem:[%s689 + $0xa] sm:$0xff]
        %v3267 = vld [vmem:[%s689 + $0x12] sm:$0xff]
        %v3268 = vld [vmem:[%s689 + $0x1a] sm:$0xff]
        %v3269 = vld [vmem:[%s689 + $0x22] sm:$0xff]
        %v3270 = vld [vmem:[%s689 + $0x2a] sm:$0xff]
        %v3271 = vld [vmem:[%s689 + $0x32] sm:$0xff]
        %v3272 = vld [vmem:[%s689 + $0x3a] sm:$0xff]
        %s3273 = scalar_lea.vmem %s8, 160
        %v3274 = vld [vmem:[%s3273] sm:$0xff]
        %v3275 = vld [vmem:[%s3273 + $0x8] sm:$0xff]
        %v3276 = vld [vmem:[%s3273 + $0x10] sm:$0xff]
        %v3277 = vld [vmem:[%s3273 + $0x18] sm:$0xff]
        %v3279 = vsel %vm1710, %v3266, 0
        %v3282 = vsel %vm1710, %v3267, 0
        %v3285 = vsel %vm1710, %v3268, 0
        %v3288 = vsel %vm1710, %v3269, 0
        %v3291 = vsel %vm1710, %v3270, 0
        %v3294 = vsel %vm1710, %v3271, 0
        %v3297 = vsel %vm1710, %v3272, 0
        %3299 = vmatprep.subr.mxu0 0.0
        %3300 = vmatpush1.msra.mxu0 0.0
        %3301 = vmatprep.subr.mxu0 0.0
        %3302 = vmatpush1.msra.mxu0 0.0
        %3303 = vmatprep.subr.mxu0 0.0
        %3304 = vmatpush1.msra.mxu0 0.0
        %3305 = vmatprep.subr.mxu0 0.0
        %3306 = vmatpush1.msra.mxu0 0.0
        %3307 = vmatprep.subr.mxu0 0.0
        %3308 = vmatpush1.msra.mxu0 0.0
        %3309 = vmatprep.subr.mxu0 0.0
        %3310 = vmatpush1.msra.mxu0 0.0
        %3311 = vmatprep.subr.mxu0 0.0
        %3312 = vmatpush1.msra.mxu0 0.0
        %3313 = vmatprep.subr.mxu0 0.0
        %3314 = vmatpush1.msra.mxu0 0.0
        %3315 = vmatprep.subr.mxu0 0.0
        %3316 = vmatpush1.msra.mxu0 0.0
        %3317 = vmatprep.subr.mxu0 0.0
        %3318 = vmatpush1.msra.mxu0 0.0
        %3319 = vmatprep.subr.mxu0 0.0
        %3320 = vmatpush1.msra.mxu0 0.0
        %3321 = vmatprep.subr.mxu0 0.0
        %3322 = vmatpush1.msra.mxu0 0.0
        %3323 = vmatprep.subr.mxu0 0.0
        %3324 = vmatpush1.msra.mxu0 %v3277
        %3325 = vmatprep.subr.mxu0 0.0
        %3326 = vmatpush1.msra.mxu0 %v3276
        %3327 = vmatprep.subr.mxu0 0.0
        %3328 = vmatpush1.msra.mxu0 %v3275
        %3329 = vmatprep.subr.mxu0 0.0
        %3330 = vmatpush1.msra.mxu0 %v3274
        %3331 = vmatprep.subr.mxu0 0.0
        %3332 = vmatpush2.msra.mxu0 0.0
        %3333 = vmatprep.subr.mxu0 0.0
        %3334 = vmatpush2.msra.mxu0 0.0
        %3335 = vmatprep.subr.mxu0 0.0
        %3336 = vmatpush2.msra.mxu0 0.0
        %3337 = vmatprep.subr.mxu0 0.0
        %3338 = vmatpush2.msra.mxu0 0.0
        %3339 = vmatprep.subr.mxu0 0.0
        %3340 = vmatpush2.msra.mxu0 0.0
        %3341 = vmatprep.subr.mxu0 0.0
        %3342 = vmatpush2.msra.mxu0 0.0
        %3343 = vmatprep.subr.mxu0 0.0
        %3344 = vmatpush2.msra.mxu0 0.0
        %3345 = vmatprep.subr.mxu0 0.0
        %3346 = vmatpush2.msra.mxu0 0.0
        %3347 = vmatprep.subr.mxu0 0.0
        %3348 = vmatpush2.msra.mxu0 0.0
        %3349 = vmatprep.subr.mxu0 0.0
        %3350 = vmatpush2.msra.mxu0 0.0
        %3351 = vmatprep.subr.mxu0 0.0
        %3352 = vmatpush2.msra.mxu0 0.0
        %3353 = vmatprep.subr.mxu0 0.0
        %3354 = vmatpush2.msra.mxu0 0.0
        %3355 = vmatprep.subr.mxu0 0.0
        %3356 = vmatpush2.msra.mxu0 0.0
        %3357 = vmatprep.subr.mxu0 0.0
        %3358 = vmatpush2.msra.mxu0 0.0
        %3359 = vmatprep.subr.mxu0 0.0
        %3360 = vmatpush2.msra.mxu0 0.0
        %3361 = vmatprep.subr.mxu0 0.0
        %3362 = vmatpush2.msra.mxu0 0.0
        %3363 = vmatprep.mubr.f32.mxu0 0.0
        %3364 = vmatmul.mubr.f32.gmra.mxu0 %v3279
        %v3365 = vpop.f32.mrf.mxu0
        %v3366 = vadd.f32 0.0, %v3365
        %v3367 = vpop.f32.mrf.mxu0
        %3368 = vmatprep.mubr.f32.mxu0 0.0
        %3369 = vmatmul.mubr.f32.gmra.mxu0 %v3282
        %v3370 = vpop.f32.mrf.mxu0
        %v3371 = vadd.f32 0.0, %v3370
        %v3372 = vpop.f32.mrf.mxu0
        %3373 = vmatprep.mubr.f32.mxu0 0.0
        %3374 = vmatmul.mubr.f32.gmra.mxu0 %v3285
        %v3375 = vpop.f32.mrf.mxu0
        %v3376 = vadd.f32 0.0, %v3375
        %v3377 = vpop.f32.mrf.mxu0
        %3378 = vmatprep.mubr.f32.mxu0 0.0
        %3379 = vmatmul.mubr.f32.gmra.mxu0 %v3288
        %v3380 = vpop.f32.mrf.mxu0
        %v3381 = vadd.f32 0.0, %v3380
        %v3382 = vpop.f32.mrf.mxu0
        %3383 = vmatprep.mubr.f32.mxu0 0.0
        %3384 = vmatmul.mubr.f32.gmra.mxu0 %v3291
        %v3385 = vpop.f32.mrf.mxu0
        %v3386 = vadd.f32 0.0, %v3385
        %v3387 = vpop.f32.mrf.mxu0
        %3388 = vmatprep.mubr.f32.mxu0 0.0
        %3389 = vmatmul.mubr.f32.gmra.mxu0 %v3294
        %v3390 = vpop.f32.mrf.mxu0
        %v3391 = vadd.f32 0.0, %v3390
        %v3392 = vpop.f32.mrf.mxu0
        %3393 = vmatprep.mubr.f32.mxu0 0.0
        %3394 = vmatmul.mubr.f32.gmra.mxu0 %v3297
        %v3395 = vpop.f32.mrf.mxu0
        %v3396 = vadd.f32 0.0, %v3395
        %v3397 = vpop.f32.mrf.mxu0
        %3398 = vdwg.mxu0
        %v3399 = vadd.f32 %v3259, %v3366
        %v3400 = vadd.f32 %v3260, %v3371
        %v3401 = vadd.f32 %v3261, %v3376
        %v3402 = vadd.f32 %v3262, %v3381
        %v3403 = vadd.f32 %v3263, %v3386
        %v3404 = vadd.f32 %v3264, %v3391
        %v3405 = vadd.f32 %v3265, %v3396
        %v3406 = vld [vmem:[#allocation2 + $0x10] sm:$0xff]
        %v3407 = vld [vmem:[#allocation2 + $0x18] sm:$0xff]
        %v3408 = vld [vmem:[#allocation2 + $0x20] sm:$0xff]
        %v3409 = vld [vmem:[#allocation2 + $0x28] sm:$0xff]
        %v3410 = vld [vmem:[#allocation2 + $0x30] sm:$0xff]
        %v3411 = vld [vmem:[#allocation2 + $0x38] sm:$0xff]
        %v3412 = vld [vmem:[#allocation2 + $0x40] sm:$0xff]
        %s3413 = scalar_lea.vmem %s7, 192
        %v3414 = vld [vmem:[%s3413] sm:$0xff]
        %v3415 = vld [vmem:[%s3413 + $0x8] sm:$0xff]
        %v3416 = vld [vmem:[%s3413 + $0x10] sm:$0xff]
        %v3417 = vld [vmem:[%s3413 + $0x18] sm:$0xff]
        %v3419 = vsel %vm1710, %v3406, 0
        %v3422 = vsel %vm1710, %v3407, 0
        %v3425 = vsel %vm1710, %v3408, 0
        %v3428 = vsel %vm1710, %v3409, 0
        %v3431 = vsel %vm1710, %v3410, 0
        %v3434 = vsel %vm1710, %v3411, 0
        %v3437 = vsel %vm1710, %v3412, 0
        %3439 = vmatprep.subr.mxu0 0.0
        %3440 = vmatpush1.msra.mxu0 0.0
        %3441 = vmatprep.subr.mxu0 0.0
        %3442 = vmatpush1.msra.mxu0 0.0
        %3443 = vmatprep.subr.mxu0 0.0
        %3444 = vmatpush1.msra.mxu0 0.0
        %3445 = vmatprep.subr.mxu0 0.0
        %3446 = vmatpush1.msra.mxu0 0.0
        %3447 = vmatprep.subr.mxu0 0.0
        %3448 = vmatpush1.msra.mxu0 0.0
        %3449 = vmatprep.subr.mxu0 0.0
        %3450 = vmatpush1.msra.mxu0 0.0
        %3451 = vmatprep.subr.mxu0 0.0
        %3452 = vmatpush1.msra.mxu0 0.0
        %3453 = vmatprep.subr.mxu0 0.0
        %3454 = vmatpush1.msra.mxu0 0.0
        %3455 = vmatprep.subr.mxu0 0.0
        %3456 = vmatpush1.msra.mxu0 0.0
        %3457 = vmatprep.subr.mxu0 0.0
        %3458 = vmatpush1.msra.mxu0 0.0
        %3459 = vmatprep.subr.mxu0 0.0
        %3460 = vmatpush1.msra.mxu0 0.0
        %3461 = vmatprep.subr.mxu0 0.0
        %3462 = vmatpush1.msra.mxu0 0.0
        %3463 = vmatprep.subr.mxu0 0.0
        %3464 = vmatpush1.msra.mxu0 %v3417
        %3465 = vmatprep.subr.mxu0 0.0
        %3466 = vmatpush1.msra.mxu0 %v3416
        %3467 = vmatprep.subr.mxu0 0.0
        %3468 = vmatpush1.msra.mxu0 %v3415
        %3469 = vmatprep.subr.mxu0 0.0
        %3470 = vmatpush1.msra.mxu0 %v3414
        %3471 = vmatprep.subr.mxu0 0.0
        %3472 = vmatpush2.msra.mxu0 0.0
        %3473 = vmatprep.subr.mxu0 0.0
        %3474 = vmatpush2.msra.mxu0 0.0
        %3475 = vmatprep.subr.mxu0 0.0
        %3476 = vmatpush2.msra.mxu0 0.0
        %3477 = vmatprep.subr.mxu0 0.0
        %3478 = vmatpush2.msra.mxu0 0.0
        %3479 = vmatprep.subr.mxu0 0.0
        %3480 = vmatpush2.msra.mxu0 0.0
        %3481 = vmatprep.subr.mxu0 0.0
        %3482 = vmatpush2.msra.mxu0 0.0
        %3483 = vmatprep.subr.mxu0 0.0
        %3484 = vmatpush2.msra.mxu0 0.0
        %3485 = vmatprep.subr.mxu0 0.0
        %3486 = vmatpush2.msra.mxu0 0.0
        %3487 = vmatprep.subr.mxu0 0.0
        %3488 = vmatpush2.msra.mxu0 0.0
        %3489 = vmatprep.subr.mxu0 0.0
        %3490 = vmatpush2.msra.mxu0 0.0
        %3491 = vmatprep.subr.mxu0 0.0
        %3492 = vmatpush2.msra.mxu0 0.0
        %3493 = vmatprep.subr.mxu0 0.0
        %3494 = vmatpush2.msra.mxu0 0.0
        %3495 = vmatprep.subr.mxu0 0.0
        %3496 = vmatpush2.msra.mxu0 0.0
        %3497 = vmatprep.subr.mxu0 0.0
        %3498 = vmatpush2.msra.mxu0 0.0
        %3499 = vmatprep.subr.mxu0 0.0
        %3500 = vmatpush2.msra.mxu0 0.0
        %3501 = vmatprep.subr.mxu0 0.0
        %3502 = vmatpush2.msra.mxu0 0.0
        %3503 = vmatprep.mubr.f32.mxu0 0.0
        %3504 = vmatmul.mubr.f32.gmra.mxu0 %v3419
        %v3505 = vpop.f32.mrf.mxu0
        %v3506 = vadd.f32 0.0, %v3505
        %v3507 = vpop.f32.mrf.mxu0
        %3508 = vmatprep.mubr.f32.mxu0 0.0
        %3509 = vmatmul.mubr.f32.gmra.mxu0 %v3422
        %v3510 = vpop.f32.mrf.mxu0
        %v3511 = vadd.f32 0.0, %v3510
        %v3512 = vpop.f32.mrf.mxu0
        %3513 = vmatprep.mubr.f32.mxu0 0.0
        %3514 = vmatmul.mubr.f32.gmra.mxu0 %v3425
        %v3515 = vpop.f32.mrf.mxu0
        %v3516 = vadd.f32 0.0, %v3515
        %v3517 = vpop.f32.mrf.mxu0
        %3518 = vmatprep.mubr.f32.mxu0 0.0
        %3519 = vmatmul.mubr.f32.gmra.mxu0 %v3428
        %v3520 = vpop.f32.mrf.mxu0
        %v3521 = vadd.f32 0.0, %v3520
        %v3522 = vpop.f32.mrf.mxu0
        %3523 = vmatprep.mubr.f32.mxu0 0.0
        %3524 = vmatmul.mubr.f32.gmra.mxu0 %v3431
        %v3525 = vpop.f32.mrf.mxu0
        %v3526 = vadd.f32 0.0, %v3525
        %v3527 = vpop.f32.mrf.mxu0
        %3528 = vmatprep.mubr.f32.mxu0 0.0
        %3529 = vmatmul.mubr.f32.gmra.mxu0 %v3434
        %v3530 = vpop.f32.mrf.mxu0
        %v3531 = vadd.f32 0.0, %v3530
        %v3532 = vpop.f32.mrf.mxu0
        %3533 = vmatprep.mubr.f32.mxu0 0.0
        %3534 = vmatmul.mubr.f32.gmra.mxu0 %v3437
        %v3535 = vpop.f32.mrf.mxu0
        %v3536 = vadd.f32 0.0, %v3535
        %v3537 = vpop.f32.mrf.mxu0
        %3538 = vdwg.mxu0
        %v3539 = vadd.f32 %v3399, %v3506
        %v3540 = vadd.f32 %v3400, %v3511
        %v3541 = vadd.f32 %v3401, %v3516
        %v3542 = vadd.f32 %v3402, %v3521
        %v3543 = vadd.f32 %v3403, %v3526
        %v3544 = vadd.f32 %v3404, %v3531
        %v3545 = vadd.f32 %v3405, %v3536
        %v3546 = vld [vmem:[%s689 + $0x10] sm:$0xff]
        %v3547 = vld [vmem:[%s689 + $0x18] sm:$0xff]
        %v3548 = vld [vmem:[%s689 + $0x20] sm:$0xff]
        %v3549 = vld [vmem:[%s689 + $0x28] sm:$0xff]
        %v3550 = vld [vmem:[%s689 + $0x30] sm:$0xff]
        %v3551 = vld [vmem:[%s689 + $0x38] sm:$0xff]
        %v3552 = vld [vmem:[%s689 + $0x40] sm:$0xff]
        %s3553 = scalar_lea.vmem %s8, 192
        %v3554 = vld [vmem:[%s3553] sm:$0xff]
        %v3555 = vld [vmem:[%s3553 + $0x8] sm:$0xff]
        %v3556 = vld [vmem:[%s3553 + $0x10] sm:$0xff]
        %v3557 = vld [vmem:[%s3553 + $0x18] sm:$0xff]
        %v3559 = vsel %vm1710, %v3546, 0
        %v3562 = vsel %vm1710, %v3547, 0
        %v3565 = vsel %vm1710, %v3548, 0
        %v3568 = vsel %vm1710, %v3549, 0
        %v3571 = vsel %vm1710, %v3550, 0
        %v3574 = vsel %vm1710, %v3551, 0
        %v3577 = vsel %vm1710, %v3552, 0
        %3579 = vmatprep.subr.mxu0 0.0
        %3580 = vmatpush1.msra.mxu0 0.0
        %3581 = vmatprep.subr.mxu0 0.0
        %3582 = vmatpush1.msra.mxu0 0.0
        %3583 = vmatprep.subr.mxu0 0.0
        %3584 = vmatpush1.msra.mxu0 0.0
        %3585 = vmatprep.subr.mxu0 0.0
        %3586 = vmatpush1.msra.mxu0 0.0
        %3587 = vmatprep.subr.mxu0 0.0
        %3588 = vmatpush1.msra.mxu0 0.0
        %3589 = vmatprep.subr.mxu0 0.0
        %3590 = vmatpush1.msra.mxu0 0.0
        %3591 = vmatprep.subr.mxu0 0.0
        %3592 = vmatpush1.msra.mxu0 0.0
        %3593 = vmatprep.subr.mxu0 0.0
        %3594 = vmatpush1.msra.mxu0 0.0
        %3595 = vmatprep.subr.mxu0 0.0
        %3596 = vmatpush1.msra.mxu0 0.0
        %3597 = vmatprep.subr.mxu0 0.0
        %3598 = vmatpush1.msra.mxu0 0.0
        %3599 = vmatprep.subr.mxu0 0.0
        %3600 = vmatpush1.msra.mxu0 0.0
        %3601 = vmatprep.subr.mxu0 0.0
        %3602 = vmatpush1.msra.mxu0 0.0
        %3603 = vmatprep.subr.mxu0 0.0
        %3604 = vmatpush1.msra.mxu0 %v3557
        %3605 = vmatprep.subr.mxu0 0.0
        %3606 = vmatpush1.msra.mxu0 %v3556
        %3607 = vmatprep.subr.mxu0 0.0
        %3608 = vmatpush1.msra.mxu0 %v3555
        %3609 = vmatprep.subr.mxu0 0.0
        %3610 = vmatpush1.msra.mxu0 %v3554
        %3611 = vmatprep.subr.mxu0 0.0
        %3612 = vmatpush2.msra.mxu0 0.0
        %3613 = vmatprep.subr.mxu0 0.0
        %3614 = vmatpush2.msra.mxu0 0.0
        %3615 = vmatprep.subr.mxu0 0.0
        %3616 = vmatpush2.msra.mxu0 0.0
        %3617 = vmatprep.subr.mxu0 0.0
        %3618 = vmatpush2.msra.mxu0 0.0
        %3619 = vmatprep.subr.mxu0 0.0
        %3620 = vmatpush2.msra.mxu0 0.0
        %3621 = vmatprep.subr.mxu0 0.0
        %3622 = vmatpush2.msra.mxu0 0.0
        %3623 = vmatprep.subr.mxu0 0.0
        %3624 = vmatpush2.msra.mxu0 0.0
        %3625 = vmatprep.subr.mxu0 0.0
        %3626 = vmatpush2.msra.mxu0 0.0
        %3627 = vmatprep.subr.mxu0 0.0
        %3628 = vmatpush2.msra.mxu0 0.0
        %3629 = vmatprep.subr.mxu0 0.0
        %3630 = vmatpush2.msra.mxu0 0.0
        %3631 = vmatprep.subr.mxu0 0.0
        %3632 = vmatpush2.msra.mxu0 0.0
        %3633 = vmatprep.subr.mxu0 0.0
        %3634 = vmatpush2.msra.mxu0 0.0
        %3635 = vmatprep.subr.mxu0 0.0
        %3636 = vmatpush2.msra.mxu0 0.0
        %3637 = vmatprep.subr.mxu0 0.0
        %3638 = vmatpush2.msra.mxu0 0.0
        %3639 = vmatprep.subr.mxu0 0.0
        %3640 = vmatpush2.msra.mxu0 0.0
        %3641 = vmatprep.subr.mxu0 0.0
        %3642 = vmatpush2.msra.mxu0 0.0
        %3643 = vmatprep.mubr.f32.mxu0 0.0
        %3644 = vmatmul.mubr.f32.gmra.mxu0 %v3559
        %v3645 = vpop.f32.mrf.mxu0
        %v3646 = vadd.f32 0.0, %v3645
        %v3647 = vpop.f32.mrf.mxu0
        %3648 = vmatprep.mubr.f32.mxu0 0.0
        %3649 = vmatmul.mubr.f32.gmra.mxu0 %v3562
        %v3650 = vpop.f32.mrf.mxu0
        %v3651 = vadd.f32 0.0, %v3650
        %v3652 = vpop.f32.mrf.mxu0
        %3653 = vmatprep.mubr.f32.mxu0 0.0
        %3654 = vmatmul.mubr.f32.gmra.mxu0 %v3565
        %v3655 = vpop.f32.mrf.mxu0
        %v3656 = vadd.f32 0.0, %v3655
        %v3657 = vpop.f32.mrf.mxu0
        %3658 = vmatprep.mubr.f32.mxu0 0.0
        %3659 = vmatmul.mubr.f32.gmra.mxu0 %v3568
        %v3660 = vpop.f32.mrf.mxu0
        %v3661 = vadd.f32 0.0, %v3660
        %v3662 = vpop.f32.mrf.mxu0
        %3663 = vmatprep.mubr.f32.mxu0 0.0
        %3664 = vmatmul.mubr.f32.gmra.mxu0 %v3571
        %v3665 = vpop.f32.mrf.mxu0
        %v3666 = vadd.f32 0.0, %v3665
        %v3667 = vpop.f32.mrf.mxu0
        %3668 = vmatprep.mubr.f32.mxu0 0.0
        %3669 = vmatmul.mubr.f32.gmra.mxu0 %v3574
        %v3670 = vpop.f32.mrf.mxu0
        %v3671 = vadd.f32 0.0, %v3670
        %v3672 = vpop.f32.mrf.mxu0
        %3673 = vmatprep.mubr.f32.mxu0 0.0
        %3674 = vmatmul.mubr.f32.gmra.mxu0 %v3577
        %v3675 = vpop.f32.mrf.mxu0
        %v3676 = vadd.f32 0.0, %v3675
        %v3677 = vpop.f32.mrf.mxu0
        %3678 = vdwg.mxu0
        %v3679 = vadd.f32 %v3539, %v3646
        %v3680 = vadd.f32 %v3540, %v3651
        %v3681 = vadd.f32 %v3541, %v3656
        %v3682 = vadd.f32 %v3542, %v3661
        %v3683 = vadd.f32 %v3543, %v3666
        %v3684 = vadd.f32 %v3544, %v3671
        %v3685 = vadd.f32 %v3545, %v3676
        %v3686 = vld [vmem:[#allocation2 + $0x11] sm:$0xff]
        %v3687 = vld [vmem:[#allocation2 + $0x19] sm:$0xff]
        %v3688 = vld [vmem:[#allocation2 + $0x21] sm:$0xff]
        %v3689 = vld [vmem:[#allocation2 + $0x29] sm:$0xff]
        %v3690 = vld [vmem:[#allocation2 + $0x31] sm:$0xff]
        %v3691 = vld [vmem:[#allocation2 + $0x39] sm:$0xff]
        %v3692 = vld [vmem:[#allocation2 + $0x41] sm:$0xff]
        %s3693 = scalar_lea.vmem %s7, 224
        %v3694 = vld [vmem:[%s3693] sm:$0xff]
        %v3695 = vld [vmem:[%s3693 + $0x8] sm:$0xff]
        %v3696 = vld [vmem:[%s3693 + $0x10] sm:$0xff]
        %v3697 = vld [vmem:[%s3693 + $0x18] sm:$0xff]
        %v3699 = vsel %vm1710, %v3686, 0
        %v3702 = vsel %vm1710, %v3687, 0
        %v3705 = vsel %vm1710, %v3688, 0
        %v3708 = vsel %vm1710, %v3689, 0
        %v3711 = vsel %vm1710, %v3690, 0
        %v3714 = vsel %vm1710, %v3691, 0
        %v3717 = vsel %vm1710, %v3692, 0
        %3719 = vmatprep.subr.mxu0 0.0
        %3720 = vmatpush1.msra.mxu0 0.0
        %3721 = vmatprep.subr.mxu0 0.0
        %3722 = vmatpush1.msra.mxu0 0.0
        %3723 = vmatprep.subr.mxu0 0.0
        %3724 = vmatpush1.msra.mxu0 0.0
        %3725 = vmatprep.subr.mxu0 0.0
        %3726 = vmatpush1.msra.mxu0 0.0
        %3727 = vmatprep.subr.mxu0 0.0
        %3728 = vmatpush1.msra.mxu0 0.0
        %3729 = vmatprep.subr.mxu0 0.0
        %3730 = vmatpush1.msra.mxu0 0.0
        %3731 = vmatprep.subr.mxu0 0.0
        %3732 = vmatpush1.msra.mxu0 0.0
        %3733 = vmatprep.subr.mxu0 0.0
        %3734 = vmatpush1.msra.mxu0 0.0
        %3735 = vmatprep.subr.mxu0 0.0
        %3736 = vmatpush1.msra.mxu0 0.0
        %3737 = vmatprep.subr.mxu0 0.0
        %3738 = vmatpush1.msra.mxu0 0.0
        %3739 = vmatprep.subr.mxu0 0.0
        %3740 = vmatpush1.msra.mxu0 0.0
        %3741 = vmatprep.subr.mxu0 0.0
        %3742 = vmatpush1.msra.mxu0 0.0
        %3743 = vmatprep.subr.mxu0 0.0
        %3744 = vmatpush1.msra.mxu0 %v3697
        %3745 = vmatprep.subr.mxu0 0.0
        %3746 = vmatpush1.msra.mxu0 %v3696
        %3747 = vmatprep.subr.mxu0 0.0
        %3748 = vmatpush1.msra.mxu0 %v3695
        %3749 = vmatprep.subr.mxu0 0.0
        %3750 = vmatpush1.msra.mxu0 %v3694
        %3751 = vmatprep.subr.mxu0 0.0
        %3752 = vmatpush2.msra.mxu0 0.0
        %3753 = vmatprep.subr.mxu0 0.0
        %3754 = vmatpush2.msra.mxu0 0.0
        %3755 = vmatprep.subr.mxu0 0.0
        %3756 = vmatpush2.msra.mxu0 0.0
        %3757 = vmatprep.subr.mxu0 0.0
        %3758 = vmatpush2.msra.mxu0 0.0
        %3759 = vmatprep.subr.mxu0 0.0
        %3760 = vmatpush2.msra.mxu0 0.0
        %3761 = vmatprep.subr.mxu0 0.0
        %3762 = vmatpush2.msra.mxu0 0.0
        %3763 = vmatprep.subr.mxu0 0.0
        %3764 = vmatpush2.msra.mxu0 0.0
        %3765 = vmatprep.subr.mxu0 0.0
        %3766 = vmatpush2.msra.mxu0 0.0
        %3767 = vmatprep.subr.mxu0 0.0
        %3768 = vmatpush2.msra.mxu0 0.0
        %3769 = vmatprep.subr.mxu0 0.0
        %3770 = vmatpush2.msra.mxu0 0.0
        %3771 = vmatprep.subr.mxu0 0.0
        %3772 = vmatpush2.msra.mxu0 0.0
        %3773 = vmatprep.subr.mxu0 0.0
        %3774 = vmatpush2.msra.mxu0 0.0
        %3775 = vmatprep.subr.mxu0 0.0
        %3776 = vmatpush2.msra.mxu0 0.0
        %3777 = vmatprep.subr.mxu0 0.0
        %3778 = vmatpush2.msra.mxu0 0.0
        %3779 = vmatprep.subr.mxu0 0.0
        %3780 = vmatpush2.msra.mxu0 0.0
        %3781 = vmatprep.subr.mxu0 0.0
        %3782 = vmatpush2.msra.mxu0 0.0
        %3783 = vmatprep.mubr.f32.mxu0 0.0
        %3784 = vmatmul.mubr.f32.gmra.mxu0 %v3699
        %v3785 = vpop.f32.mrf.mxu0
        %v3786 = vadd.f32 0.0, %v3785
        %v3787 = vpop.f32.mrf.mxu0
        %3788 = vmatprep.mubr.f32.mxu0 0.0
        %3789 = vmatmul.mubr.f32.gmra.mxu0 %v3702
        %v3790 = vpop.f32.mrf.mxu0
        %v3791 = vadd.f32 0.0, %v3790
        %v3792 = vpop.f32.mrf.mxu0
        %3793 = vmatprep.mubr.f32.mxu0 0.0
        %3794 = vmatmul.mubr.f32.gmra.mxu0 %v3705
        %v3795 = vpop.f32.mrf.mxu0
        %v3796 = vadd.f32 0.0, %v3795
        %v3797 = vpop.f32.mrf.mxu0
        %3798 = vmatprep.mubr.f32.mxu0 0.0
        %3799 = vmatmul.mubr.f32.gmra.mxu0 %v3708
        %v3800 = vpop.f32.mrf.mxu0
        %v3801 = vadd.f32 0.0, %v3800
        %v3802 = vpop.f32.mrf.mxu0
        %3803 = vmatprep.mubr.f32.mxu0 0.0
        %3804 = vmatmul.mubr.f32.gmra.mxu0 %v3711
        %v3805 = vpop.f32.mrf.mxu0
        %v3806 = vadd.f32 0.0, %v3805
        %v3807 = vpop.f32.mrf.mxu0
        %3808 = vmatprep.mubr.f32.mxu0 0.0
        %3809 = vmatmul.mubr.f32.gmra.mxu0 %v3714
        %v3810 = vpop.f32.mrf.mxu0
        %v3811 = vadd.f32 0.0, %v3810
        %v3812 = vpop.f32.mrf.mxu0
        %3813 = vmatprep.mubr.f32.mxu0 0.0
        %3814 = vmatmul.mubr.f32.gmra.mxu0 %v3717
        %v3815 = vpop.f32.mrf.mxu0
        %v3816 = vadd.f32 0.0, %v3815
        %v3817 = vpop.f32.mrf.mxu0
        %3818 = vdwg.mxu0
        %v3819 = vadd.f32 %v3679, %v3786
        %v3820 = vadd.f32 %v3680, %v3791
        %v3821 = vadd.f32 %v3681, %v3796
        %v3822 = vadd.f32 %v3682, %v3801
        %v3823 = vadd.f32 %v3683, %v3806
        %v3824 = vadd.f32 %v3684, %v3811
        %v3825 = vadd.f32 %v3685, %v3816
        %v3826 = vld [vmem:[%s689 + $0x11] sm:$0xff]
        %v3827 = vld [vmem:[%s689 + $0x19] sm:$0xff]
        %v3828 = vld [vmem:[%s689 + $0x21] sm:$0xff]
        %v3829 = vld [vmem:[%s689 + $0x29] sm:$0xff]
        %v3830 = vld [vmem:[%s689 + $0x31] sm:$0xff]
        %v3831 = vld [vmem:[%s689 + $0x39] sm:$0xff]
        %v3832 = vld [vmem:[%s689 + $0x41] sm:$0xff]
        %s3833 = scalar_lea.vmem %s8, 224
        %v3834 = vld [vmem:[%s3833] sm:$0xff]
        %v3835 = vld [vmem:[%s3833 + $0x8] sm:$0xff]
        %v3836 = vld [vmem:[%s3833 + $0x10] sm:$0xff]
        %v3837 = vld [vmem:[%s3833 + $0x18] sm:$0xff]
        %v3839 = vsel %vm1710, %v3826, 0
        %v3842 = vsel %vm1710, %v3827, 0
        %v3845 = vsel %vm1710, %v3828, 0
        %v3848 = vsel %vm1710, %v3829, 0
        %v3851 = vsel %vm1710, %v3830, 0
        %v3854 = vsel %vm1710, %v3831, 0
        %v3857 = vsel %vm1710, %v3832, 0
        %3859 = vmatprep.subr.mxu0 0.0
        %3860 = vmatpush1.msra.mxu0 0.0
        %3861 = vmatprep.subr.mxu0 0.0
        %3862 = vmatpush1.msra.mxu0 0.0
        %3863 = vmatprep.subr.mxu0 0.0
        %3864 = vmatpush1.msra.mxu0 0.0
        %3865 = vmatprep.subr.mxu0 0.0
        %3866 = vmatpush1.msra.mxu0 0.0
        %3867 = vmatprep.subr.mxu0 0.0
        %3868 = vmatpush1.msra.mxu0 0.0
        %3869 = vmatprep.subr.mxu0 0.0
        %3870 = vmatpush1.msra.mxu0 0.0
        %3871 = vmatprep.subr.mxu0 0.0
        %3872 = vmatpush1.msra.mxu0 0.0
        %3873 = vmatprep.subr.mxu0 0.0
        %3874 = vmatpush1.msra.mxu0 0.0
        %3875 = vmatprep.subr.mxu0 0.0
        %3876 = vmatpush1.msra.mxu0 0.0
        %3877 = vmatprep.subr.mxu0 0.0
        %3878 = vmatpush1.msra.mxu0 0.0
        %3879 = vmatprep.subr.mxu0 0.0
        %3880 = vmatpush1.msra.mxu0 0.0
        %3881 = vmatprep.subr.mxu0 0.0
        %3882 = vmatpush1.msra.mxu0 0.0
        %3883 = vmatprep.subr.mxu0 0.0
        %3884 = vmatpush1.msra.mxu0 %v3837
        %3885 = vmatprep.subr.mxu0 0.0
        %3886 = vmatpush1.msra.mxu0 %v3836
        %3887 = vmatprep.subr.mxu0 0.0
        %3888 = vmatpush1.msra.mxu0 %v3835
        %3889 = vmatprep.subr.mxu0 0.0
        %3890 = vmatpush1.msra.mxu0 %v3834
        %3891 = vmatprep.subr.mxu0 0.0
        %3892 = vmatpush2.msra.mxu0 0.0
        %3893 = vmatprep.subr.mxu0 0.0
        %3894 = vmatpush2.msra.mxu0 0.0
        %3895 = vmatprep.subr.mxu0 0.0
        %3896 = vmatpush2.msra.mxu0 0.0
        %3897 = vmatprep.subr.mxu0 0.0
        %3898 = vmatpush2.msra.mxu0 0.0
        %3899 = vmatprep.subr.mxu0 0.0
        %3900 = vmatpush2.msra.mxu0 0.0
        %3901 = vmatprep.subr.mxu0 0.0
        %3902 = vmatpush2.msra.mxu0 0.0
        %3903 = vmatprep.subr.mxu0 0.0
        %3904 = vmatpush2.msra.mxu0 0.0
        %3905 = vmatprep.subr.mxu0 0.0
        %3906 = vmatpush2.msra.mxu0 0.0
        %3907 = vmatprep.subr.mxu0 0.0
        %3908 = vmatpush2.msra.mxu0 0.0
        %3909 = vmatprep.subr.mxu0 0.0
        %3910 = vmatpush2.msra.mxu0 0.0
        %3911 = vmatprep.subr.mxu0 0.0
        %3912 = vmatpush2.msra.mxu0 0.0
        %3913 = vmatprep.subr.mxu0 0.0
        %3914 = vmatpush2.msra.mxu0 0.0
        %3915 = vmatprep.subr.mxu0 0.0
        %3916 = vmatpush2.msra.mxu0 0.0
        %3917 = vmatprep.subr.mxu0 0.0
        %3918 = vmatpush2.msra.mxu0 0.0
        %3919 = vmatprep.subr.mxu0 0.0
        %3920 = vmatpush2.msra.mxu0 0.0
        %3921 = vmatprep.subr.mxu0 0.0
        %3922 = vmatpush2.msra.mxu0 0.0
        %3923 = vmatprep.mubr.f32.mxu0 0.0
        %3924 = vmatmul.mubr.f32.gmra.mxu0 %v3839
        %v3925 = vpop.f32.mrf.mxu0
        %v3926 = vadd.f32 0.0, %v3925
        %v3927 = vpop.f32.mrf.mxu0
        %3928 = vmatprep.mubr.f32.mxu0 0.0
        %3929 = vmatmul.mubr.f32.gmra.mxu0 %v3842
        %v3930 = vpop.f32.mrf.mxu0
        %v3931 = vadd.f32 0.0, %v3930
        %v3932 = vpop.f32.mrf.mxu0
        %3933 = vmatprep.mubr.f32.mxu0 0.0
        %3934 = vmatmul.mubr.f32.gmra.mxu0 %v3845
        %v3935 = vpop.f32.mrf.mxu0
        %v3936 = vadd.f32 0.0, %v3935
        %v3937 = vpop.f32.mrf.mxu0
        %3938 = vmatprep.mubr.f32.mxu0 0.0
        %3939 = vmatmul.mubr.f32.gmra.mxu0 %v3848
        %v3940 = vpop.f32.mrf.mxu0
        %v3941 = vadd.f32 0.0, %v3940
        %v3942 = vpop.f32.mrf.mxu0
        %3943 = vmatprep.mubr.f32.mxu0 0.0
        %3944 = vmatmul.mubr.f32.gmra.mxu0 %v3851
        %v3945 = vpop.f32.mrf.mxu0
        %v3946 = vadd.f32 0.0, %v3945
        %v3947 = vpop.f32.mrf.mxu0
        %3948 = vmatprep.mubr.f32.mxu0 0.0
        %3949 = vmatmul.mubr.f32.gmra.mxu0 %v3854
        %v3950 = vpop.f32.mrf.mxu0
        %v3951 = vadd.f32 0.0, %v3950
        %v3952 = vpop.f32.mrf.mxu0
        %3953 = vmatprep.mubr.f32.mxu0 0.0
        %3954 = vmatmul.mubr.f32.gmra.mxu0 %v3857
        %v3955 = vpop.f32.mrf.mxu0
        %v3956 = vadd.f32 0.0, %v3955
        %v3957 = vpop.f32.mrf.mxu0
        %3958 = vdwg.mxu0
        %v3959 = vadd.f32 %v3819, %v3926
        %v3960 = vadd.f32 %v3820, %v3931
        %v3961 = vadd.f32 %v3821, %v3936
        %v3962 = vadd.f32 %v3822, %v3941
        %v3963 = vadd.f32 %v3823, %v3946
        %v3964 = vadd.f32 %v3824, %v3951
        %v3965 = vadd.f32 %v3825, %v3956
        %v3966 = vld [vmem:[#allocation2 + $0x12] sm:$0xff]
        %v3967 = vld [vmem:[#allocation2 + $0x1a] sm:$0xff]
        %v3968 = vld [vmem:[#allocation2 + $0x22] sm:$0xff]
        %v3969 = vld [vmem:[#allocation2 + $0x2a] sm:$0xff]
        %v3970 = vld [vmem:[#allocation2 + $0x32] sm:$0xff]
        %v3971 = vld [vmem:[#allocation2 + $0x3a] sm:$0xff]
        %v3972 = vld [vmem:[#allocation2 + $0x42] sm:$0xff]
        %s3973 = scalar_lea.vmem %s7, 256
        %v3974 = vld [vmem:[%s3973] sm:$0xff]
        %v3975 = vld [vmem:[%s3973 + $0x8] sm:$0xff]
        %v3976 = vld [vmem:[%s3973 + $0x10] sm:$0xff]
        %v3977 = vld [vmem:[%s3973 + $0x18] sm:$0xff]
        %v3979 = vsel %vm1710, %v3966, 0
        %v3982 = vsel %vm1710, %v3967, 0
        %v3985 = vsel %vm1710, %v3968, 0
        %v3988 = vsel %vm1710, %v3969, 0
        %v3991 = vsel %vm1710, %v3970, 0
        %v3994 = vsel %vm1710, %v3971, 0
        %v3997 = vsel %vm1710, %v3972, 0
        %3999 = vmatprep.subr.mxu0 0.0
        %4000 = vmatpush1.msra.mxu0 0.0
        %4001 = vmatprep.subr.mxu0 0.0
        %4002 = vmatpush1.msra.mxu0 0.0
        %4003 = vmatprep.subr.mxu0 0.0
        %4004 = vmatpush1.msra.mxu0 0.0
        %4005 = vmatprep.subr.mxu0 0.0
        %4006 = vmatpush1.msra.mxu0 0.0
        %4007 = vmatprep.subr.mxu0 0.0
        %4008 = vmatpush1.msra.mxu0 0.0
        %4009 = vmatprep.subr.mxu0 0.0
        %4010 = vmatpush1.msra.mxu0 0.0
        %4011 = vmatprep.subr.mxu0 0.0
        %4012 = vmatpush1.msra.mxu0 0.0
        %4013 = vmatprep.subr.mxu0 0.0
        %4014 = vmatpush1.msra.mxu0 0.0
        %4015 = vmatprep.subr.mxu0 0.0
        %4016 = vmatpush1.msra.mxu0 0.0
        %4017 = vmatprep.subr.mxu0 0.0
        %4018 = vmatpush1.msra.mxu0 0.0
        %4019 = vmatprep.subr.mxu0 0.0
        %4020 = vmatpush1.msra.mxu0 0.0
        %4021 = vmatprep.subr.mxu0 0.0
        %4022 = vmatpush1.msra.mxu0 0.0
        %4023 = vmatprep.subr.mxu0 0.0
        %4024 = vmatpush1.msra.mxu0 %v3977
        %4025 = vmatprep.subr.mxu0 0.0
        %4026 = vmatpush1.msra.mxu0 %v3976
        %4027 = vmatprep.subr.mxu0 0.0
        %4028 = vmatpush1.msra.mxu0 %v3975
        %4029 = vmatprep.subr.mxu0 0.0
        %4030 = vmatpush1.msra.mxu0 %v3974
        %4031 = vmatprep.subr.mxu0 0.0
        %4032 = vmatpush2.msra.mxu0 0.0
        %4033 = vmatprep.subr.mxu0 0.0
        %4034 = vmatpush2.msra.mxu0 0.0
        %4035 = vmatprep.subr.mxu0 0.0
        %4036 = vmatpush2.msra.mxu0 0.0
        %4037 = vmatprep.subr.mxu0 0.0
        %4038 = vmatpush2.msra.mxu0 0.0
        %4039 = vmatprep.subr.mxu0 0.0
        %4040 = vmatpush2.msra.mxu0 0.0
        %4041 = vmatprep.subr.mxu0 0.0
        %4042 = vmatpush2.msra.mxu0 0.0
        %4043 = vmatprep.subr.mxu0 0.0
        %4044 = vmatpush2.msra.mxu0 0.0
        %4045 = vmatprep.subr.mxu0 0.0
        %4046 = vmatpush2.msra.mxu0 0.0
        %4047 = vmatprep.subr.mxu0 0.0
        %4048 = vmatpush2.msra.mxu0 0.0
        %4049 = vmatprep.subr.mxu0 0.0
        %4050 = vmatpush2.msra.mxu0 0.0
        %4051 = vmatprep.subr.mxu0 0.0
        %4052 = vmatpush2.msra.mxu0 0.0
        %4053 = vmatprep.subr.mxu0 0.0
        %4054 = vmatpush2.msra.mxu0 0.0
        %4055 = vmatprep.subr.mxu0 0.0
        %4056 = vmatpush2.msra.mxu0 0.0
        %4057 = vmatprep.subr.mxu0 0.0
        %4058 = vmatpush2.msra.mxu0 0.0
        %4059 = vmatprep.subr.mxu0 0.0
        %4060 = vmatpush2.msra.mxu0 0.0
        %4061 = vmatprep.subr.mxu0 0.0
        %4062 = vmatpush2.msra.mxu0 0.0
        %4063 = vmatprep.mubr.f32.mxu0 0.0
        %4064 = vmatmul.mubr.f32.gmra.mxu0 %v3979
        %v4065 = vpop.f32.mrf.mxu0
        %v4066 = vadd.f32 0.0, %v4065
        %v4067 = vpop.f32.mrf.mxu0
        %4068 = vmatprep.mubr.f32.mxu0 0.0
        %4069 = vmatmul.mubr.f32.gmra.mxu0 %v3982
        %v4070 = vpop.f32.mrf.mxu0
        %v4071 = vadd.f32 0.0, %v4070
        %v4072 = vpop.f32.mrf.mxu0
        %4073 = vmatprep.mubr.f32.mxu0 0.0
        %4074 = vmatmul.mubr.f32.gmra.mxu0 %v3985
        %v4075 = vpop.f32.mrf.mxu0
        %v4076 = vadd.f32 0.0, %v4075
        %v4077 = vpop.f32.mrf.mxu0
        %4078 = vmatprep.mubr.f32.mxu0 0.0
        %4079 = vmatmul.mubr.f32.gmra.mxu0 %v3988
        %v4080 = vpop.f32.mrf.mxu0
        %v4081 = vadd.f32 0.0, %v4080
        %v4082 = vpop.f32.mrf.mxu0
        %4083 = vmatprep.mubr.f32.mxu0 0.0
        %4084 = vmatmul.mubr.f32.gmra.mxu0 %v3991
        %v4085 = vpop.f32.mrf.mxu0
        %v4086 = vadd.f32 0.0, %v4085
        %v4087 = vpop.f32.mrf.mxu0
        %4088 = vmatprep.mubr.f32.mxu0 0.0
        %4089 = vmatmul.mubr.f32.gmra.mxu0 %v3994
        %v4090 = vpop.f32.mrf.mxu0
        %v4091 = vadd.f32 0.0, %v4090
        %v4092 = vpop.f32.mrf.mxu0
        %4093 = vmatprep.mubr.f32.mxu0 0.0
        %4094 = vmatmul.mubr.f32.gmra.mxu0 %v3997
        %v4095 = vpop.f32.mrf.mxu0
        %v4096 = vadd.f32 0.0, %v4095
        %v4097 = vpop.f32.mrf.mxu0
        %4098 = vdwg.mxu0
        %v4099 = vadd.f32 %v3959, %v4066
        %v4100 = vadd.f32 %v3960, %v4071
        %v4101 = vadd.f32 %v3961, %v4076
        %v4102 = vadd.f32 %v3962, %v4081
        %v4103 = vadd.f32 %v3963, %v4086
        %v4104 = vadd.f32 %v3964, %v4091
        %v4105 = vadd.f32 %v3965, %v4096
        %v4106 = vld [vmem:[%s689 + $0x12] sm:$0xff]
        %v4107 = vld [vmem:[%s689 + $0x1a] sm:$0xff]
        %v4108 = vld [vmem:[%s689 + $0x22] sm:$0xff]
        %v4109 = vld [vmem:[%s689 + $0x2a] sm:$0xff]
        %v4110 = vld [vmem:[%s689 + $0x32] sm:$0xff]
        %v4111 = vld [vmem:[%s689 + $0x3a] sm:$0xff]
        %v4112 = vld [vmem:[%s689 + $0x42] sm:$0xff]
        %s4113 = scalar_lea.vmem %s8, 256
        %v4114 = vld [vmem:[%s4113] sm:$0xff]
        %v4115 = vld [vmem:[%s4113 + $0x8] sm:$0xff]
        %v4116 = vld [vmem:[%s4113 + $0x10] sm:$0xff]
        %v4117 = vld [vmem:[%s4113 + $0x18] sm:$0xff]
        %v4119 = vsel %vm1710, %v4106, 0
        %v4122 = vsel %vm1710, %v4107, 0
        %v4125 = vsel %vm1710, %v4108, 0
        %v4128 = vsel %vm1710, %v4109, 0
        %v4131 = vsel %vm1710, %v4110, 0
        %v4134 = vsel %vm1710, %v4111, 0
        %v4137 = vsel %vm1710, %v4112, 0
        %4139 = vmatprep.subr.mxu0 0.0
        %4140 = vmatpush1.msra.mxu0 0.0
        %4141 = vmatprep.subr.mxu0 0.0
        %4142 = vmatpush1.msra.mxu0 0.0
        %4143 = vmatprep.subr.mxu0 0.0
        %4144 = vmatpush1.msra.mxu0 0.0
        %4145 = vmatprep.subr.mxu0 0.0
        %4146 = vmatpush1.msra.mxu0 0.0
        %4147 = vmatprep.subr.mxu0 0.0
        %4148 = vmatpush1.msra.mxu0 0.0
        %4149 = vmatprep.subr.mxu0 0.0
        %4150 = vmatpush1.msra.mxu0 0.0
        %4151 = vmatprep.subr.mxu0 0.0
        %4152 = vmatpush1.msra.mxu0 0.0
        %4153 = vmatprep.subr.mxu0 0.0
        %4154 = vmatpush1.msra.mxu0 0.0
        %4155 = vmatprep.subr.mxu0 0.0
        %4156 = vmatpush1.msra.mxu0 0.0
        %4157 = vmatprep.subr.mxu0 0.0
        %4158 = vmatpush1.msra.mxu0 0.0
        %4159 = vmatprep.subr.mxu0 0.0
        %4160 = vmatpush1.msra.mxu0 0.0
        %4161 = vmatprep.subr.mxu0 0.0
        %4162 = vmatpush1.msra.mxu0 0.0
        %4163 = vmatprep.subr.mxu0 0.0
        %4164 = vmatpush1.msra.mxu0 %v4117
        %4165 = vmatprep.subr.mxu0 0.0
        %4166 = vmatpush1.msra.mxu0 %v4116
        %4167 = vmatprep.subr.mxu0 0.0
        %4168 = vmatpush1.msra.mxu0 %v4115
        %4169 = vmatprep.subr.mxu0 0.0
        %4170 = vmatpush1.msra.mxu0 %v4114
        %4171 = vmatprep.subr.mxu0 0.0
        %4172 = vmatpush2.msra.mxu0 0.0
        %4173 = vmatprep.subr.mxu0 0.0
        %4174 = vmatpush2.msra.mxu0 0.0
        %4175 = vmatprep.subr.mxu0 0.0
        %4176 = vmatpush2.msra.mxu0 0.0
        %4177 = vmatprep.subr.mxu0 0.0
        %4178 = vmatpush2.msra.mxu0 0.0
        %4179 = vmatprep.subr.mxu0 0.0
        %4180 = vmatpush2.msra.mxu0 0.0
        %4181 = vmatprep.subr.mxu0 0.0
        %4182 = vmatpush2.msra.mxu0 0.0
        %4183 = vmatprep.subr.mxu0 0.0
        %4184 = vmatpush2.msra.mxu0 0.0
        %4185 = vmatprep.subr.mxu0 0.0
        %4186 = vmatpush2.msra.mxu0 0.0
        %4187 = vmatprep.subr.mxu0 0.0
        %4188 = vmatpush2.msra.mxu0 0.0
        %4189 = vmatprep.subr.mxu0 0.0
        %4190 = vmatpush2.msra.mxu0 0.0
        %4191 = vmatprep.subr.mxu0 0.0
        %4192 = vmatpush2.msra.mxu0 0.0
        %4193 = vmatprep.subr.mxu0 0.0
        %4194 = vmatpush2.msra.mxu0 0.0
        %4195 = vmatprep.subr.mxu0 0.0
        %4196 = vmatpush2.msra.mxu0 0.0
        %4197 = vmatprep.subr.mxu0 0.0
        %4198 = vmatpush2.msra.mxu0 0.0
        %4199 = vmatprep.subr.mxu0 0.0
        %4200 = vmatpush2.msra.mxu0 0.0
        %4201 = vmatprep.subr.mxu0 0.0
        %4202 = vmatpush2.msra.mxu0 0.0
        %4203 = vmatprep.mubr.f32.mxu0 0.0
        %4204 = vmatmul.mubr.f32.gmra.mxu0 %v4119
        %v4205 = vpop.f32.mrf.mxu0
        %v4206 = vadd.f32 0.0, %v4205
        %v4207 = vpop.f32.mrf.mxu0
        %4208 = vmatprep.mubr.f32.mxu0 0.0
        %4209 = vmatmul.mubr.f32.gmra.mxu0 %v4122
        %v4210 = vpop.f32.mrf.mxu0
        %v4211 = vadd.f32 0.0, %v4210
        %v4212 = vpop.f32.mrf.mxu0
        %4213 = vmatprep.mubr.f32.mxu0 0.0
        %4214 = vmatmul.mubr.f32.gmra.mxu0 %v4125
        %v4215 = vpop.f32.mrf.mxu0
        %v4216 = vadd.f32 0.0, %v4215
        %v4217 = vpop.f32.mrf.mxu0
        %4218 = vmatprep.mubr.f32.mxu0 0.0
        %4219 = vmatmul.mubr.f32.gmra.mxu0 %v4128
        %v4220 = vpop.f32.mrf.mxu0
        %v4221 = vadd.f32 0.0, %v4220
        %v4222 = vpop.f32.mrf.mxu0
        %4223 = vmatprep.mubr.f32.mxu0 0.0
        %4224 = vmatmul.mubr.f32.gmra.mxu0 %v4131
        %v4225 = vpop.f32.mrf.mxu0
        %v4226 = vadd.f32 0.0, %v4225
        %v4227 = vpop.f32.mrf.mxu0
        %4228 = vmatprep.mubr.f32.mxu0 0.0
        %4229 = vmatmul.mubr.f32.gmra.mxu0 %v4134
        %v4230 = vpop.f32.mrf.mxu0
        %v4231 = vadd.f32 0.0, %v4230
        %v4232 = vpop.f32.mrf.mxu0
        %4233 = vmatprep.mubr.f32.mxu0 0.0
        %4234 = vmatmul.mubr.f32.gmra.mxu0 %v4137
        %v4235 = vpop.f32.mrf.mxu0
        %v4236 = vadd.f32 0.0, %v4235
        %v4237 = vpop.f32.mrf.mxu0
        %4238 = vdwg.mxu0
        %v4239 = vadd.f32 %v4099, %v4206
        %v4240 = vadd.f32 %v4100, %v4211
        %v4241 = vadd.f32 %v4101, %v4216
        %v4242 = vadd.f32 %v4102, %v4221
        %v4243 = vadd.f32 %v4103, %v4226
        %v4244 = vadd.f32 %v4104, %v4231
        %v4245 = vadd.f32 %v4105, %v4236
        %v4246 = vmax.f32 %v4239, 0.0
        %v4247 = vmax.f32 %v4240, 0.0
        %v4248 = vmax.f32 %v4241, 0.0
        %v4249 = vmax.f32 %v4242, 0.0
        %v4250 = vmax.f32 %v4243, 0.0
        %v4251 = vmax.f32 %v4244, 0.0
        %v4252 = vmax.f32 %v4245, 0.0
        %4253 = vst.msk [vmem:[#allocation3] sm:$0xff] %vm1710, %v4246
        %4254 = vst.msk [vmem:[#allocation3 + $0x8] sm:$0xff] %vm1710, %v4247
        %4255 = vst.msk [vmem:[#allocation3 + $0x10] sm:$0xff] %vm1710, %v4248
        %4256 = vst.msk [vmem:[#allocation3 + $0x18] sm:$0xff] %vm1710, %v4249
        %4257 = vst.msk [vmem:[#allocation3 + $0x20] sm:$0xff] %vm1710, %v4250
        %4258 = vst.msk [vmem:[#allocation3 + $0x28] sm:$0xff] %vm1710, %v4251
        %4259 = vst.msk [vmem:[#allocation3 + $0x30] sm:$0xff] %vm1710, %v4252
        %v4260 = vld [vmem:[%s11] sm:$0x1]
        %v4262 = vlaneseq
        %v4263 = vshrl.u32 %v4262, 7
        %v4264 = vsub.s32 0, %v4263
        %v4265 = vrot.slane %v4260, %v4264
        %v4267 = vld [vmem:[#allocation3] sm:$0xff]
        %v4268 = vld [vmem:[#allocation3 + $0x8] sm:$0xff]
        %v4269 = vld [vmem:[#allocation3 + $0x10] sm:$0xff]
        %v4270 = vld [vmem:[#allocation3 + $0x18] sm:$0xff]
        %v4271 = vld [vmem:[%s10] sm:$0xff]
        %v4272 = vld [vmem:[%s10 + $0x8] sm:$0xff]
        %v4273 = vld [vmem:[%s10 + $0x10] sm:$0xff]
        %v4274 = vld [vmem:[%s10 + $0x18] sm:$0xff]
        %v4276 = vsel %vm1710, %v4267, 0
        %v4279 = vsel %vm1710, %v4268, 0
        %v4282 = vsel %vm1710, %v4269, 0
        %v4285 = vsel %vm1710, %v4270, 0
        %4287 = vmatprep.subr.mxu0 0.0
        %4288 = vmatpush1.msra.mxu0 0.0
        %4289 = vmatprep.subr.mxu0 0.0
        %4290 = vmatpush1.msra.mxu0 0.0
        %4291 = vmatprep.subr.mxu0 0.0
        %4292 = vmatpush1.msra.mxu0 0.0
        %4293 = vmatprep.subr.mxu0 0.0
        %4294 = vmatpush1.msra.mxu0 0.0
        %4295 = vmatprep.subr.mxu0 0.0
        %4296 = vmatpush1.msra.mxu0 0.0
        %4297 = vmatprep.subr.mxu0 0.0
        %4298 = vmatpush1.msra.mxu0 0.0
        %4299 = vmatprep.subr.mxu0 0.0
        %4300 = vmatpush1.msra.mxu0 0.0
        %4301 = vmatprep.subr.mxu0 0.0
        %4302 = vmatpush1.msra.mxu0 0.0
        %4303 = vmatprep.subr.mxu0 0.0
        %4304 = vmatpush1.msra.mxu0 0.0
        %4305 = vmatprep.subr.mxu0 0.0
        %4306 = vmatpush1.msra.mxu0 0.0
        %4307 = vmatprep.subr.mxu0 0.0
        %4308 = vmatpush1.msra.mxu0 0.0
        %4309 = vmatprep.subr.mxu0 0.0
        %4310 = vmatpush1.msra.mxu0 0.0
        %4311 = vmatprep.subr.mxu0 0.0
        %4312 = vmatpush1.msra.mxu0 %v4274
        %4313 = vmatprep.subr.mxu0 0.0
        %4314 = vmatpush1.msra.mxu0 %v4273
        %4315 = vmatprep.subr.mxu0 0.0
        %4316 = vmatpush1.msra.mxu0 %v4272
        %4317 = vmatprep.subr.mxu0 0.0
        %4318 = vmatpush1.msra.mxu0 %v4271
        %4319 = vmatprep.subr.mxu0 0.0
        %4320 = vmatpush2.msra.mxu0 0.0
        %4321 = vmatprep.subr.mxu0 0.0
        %4322 = vmatpush2.msra.mxu0 0.0
        %4323 = vmatprep.subr.mxu0 0.0
        %4324 = vmatpush2.msra.mxu0 0.0
        %4325 = vmatprep.subr.mxu0 0.0
        %4326 = vmatpush2.msra.mxu0 0.0
        %4327 = vmatprep.subr.mxu0 0.0
        %4328 = vmatpush2.msra.mxu0 0.0
        %4329 = vmatprep.subr.mxu0 0.0
        %4330 = vmatpush2.msra.mxu0 0.0
        %4331 = vmatprep.subr.mxu0 0.0
        %4332 = vmatpush2.msra.mxu0 0.0
        %4333 = vmatprep.subr.mxu0 0.0
        %4334 = vmatpush2.msra.mxu0 0.0
        %4335 = vmatprep.subr.mxu0 0.0
        %4336 = vmatpush2.msra.mxu0 0.0
        %4337 = vmatprep.subr.mxu0 0.0
        %4338 = vmatpush2.msra.mxu0 0.0
        %4339 = vmatprep.subr.mxu0 0.0
        %4340 = vmatpush2.msra.mxu0 0.0
        %4341 = vmatprep.subr.mxu0 0.0
        %4342 = vmatpush2.msra.mxu0 0.0
        %4343 = vmatprep.subr.mxu0 0.0
        %4344 = vmatpush2.msra.mxu0 0.0
        %4345 = vmatprep.subr.mxu0 0.0
        %4346 = vmatpush2.msra.mxu0 0.0
        %4347 = vmatprep.subr.mxu0 0.0
        %4348 = vmatpush2.msra.mxu0 0.0
        %4349 = vmatprep.subr.mxu0 0.0
        %4350 = vmatpush2.msra.mxu0 0.0
        %4351 = vmatprep.mubr.f32.mxu0 0.0
        %4352 = vmatmul.mubr.f32.gmra.mxu0 %v4276
        %v4353 = vpop.f32.mrf.mxu0
        %v4354 = vadd.f32 0.0, %v4353
        %v4355 = vpop.f32.mrf.mxu0
        %4356 = vmatprep.mubr.f32.mxu0 0.0
        %4357 = vmatmul.mubr.f32.gmra.mxu0 %v4279
        %v4358 = vpop.f32.mrf.mxu0
        %v4359 = vadd.f32 0.0, %v4358
        %v4360 = vpop.f32.mrf.mxu0
        %4361 = vmatprep.mubr.f32.mxu0 0.0
        %4362 = vmatmul.mubr.f32.gmra.mxu0 %v4282
        %v4363 = vpop.f32.mrf.mxu0
        %v4364 = vadd.f32 0.0, %v4363
        %v4365 = vpop.f32.mrf.mxu0
        %4366 = vmatprep.mubr.f32.mxu0 0.0
        %4367 = vmatmul.mubr.f32.gmra.mxu0 %v4285
        %v4368 = vpop.f32.mrf.mxu0
        %v4369 = vadd.f32 0.0, %v4368
        %v4370 = vpop.f32.mrf.mxu0
        %4371 = vdwg.mxu0
        %v4372 = vadd.f32 %v4265, %v4354
        %v4373 = vadd.f32 %v4265, %v4359
        %v4374 = vadd.f32 %v4265, %v4364
        %v4375 = vadd.f32 %v4265, %v4369
        %v4376 = vld [vmem:[#allocation3 + $0x1] sm:$0xff]
        %v4377 = vld [vmem:[#allocation3 + $0x9] sm:$0xff]
        %v4378 = vld [vmem:[#allocation3 + $0x11] sm:$0xff]
        %v4379 = vld [vmem:[#allocation3 + $0x19] sm:$0xff]
        %s4380 = scalar_lea.vmem %s10, 32
        %v4381 = vld [vmem:[%s4380] sm:$0xff]
        %v4382 = vld [vmem:[%s4380 + $0x8] sm:$0xff]
        %v4383 = vld [vmem:[%s4380 + $0x10] sm:$0xff]
        %v4384 = vld [vmem:[%s4380 + $0x18] sm:$0xff]
        %v4386 = vsel %vm1710, %v4376, 0
        %v4389 = vsel %vm1710, %v4377, 0
        %v4392 = vsel %vm1710, %v4378, 0
        %v4395 = vsel %vm1710, %v4379, 0
        %4397 = vmatprep.subr.mxu0 0.0
        %4398 = vmatpush1.msra.mxu0 0.0
        %4399 = vmatprep.subr.mxu0 0.0
        %4400 = vmatpush1.msra.mxu0 0.0
        %4401 = vmatprep.subr.mxu0 0.0
        %4402 = vmatpush1.msra.mxu0 0.0
        %4403 = vmatprep.subr.mxu0 0.0
        %4404 = vmatpush1.msra.mxu0 0.0
        %4405 = vmatprep.subr.mxu0 0.0
        %4406 = vmatpush1.msra.mxu0 0.0
        %4407 = vmatprep.subr.mxu0 0.0
        %4408 = vmatpush1.msra.mxu0 0.0
        %4409 = vmatprep.subr.mxu0 0.0
        %4410 = vmatpush1.msra.mxu0 0.0
        %4411 = vmatprep.subr.mxu0 0.0
        %4412 = vmatpush1.msra.mxu0 0.0
        %4413 = vmatprep.subr.mxu0 0.0
        %4414 = vmatpush1.msra.mxu0 0.0
        %4415 = vmatprep.subr.mxu0 0.0
        %4416 = vmatpush1.msra.mxu0 0.0
        %4417 = vmatprep.subr.mxu0 0.0
        %4418 = vmatpush1.msra.mxu0 0.0
        %4419 = vmatprep.subr.mxu0 0.0
        %4420 = vmatpush1.msra.mxu0 0.0
        %4421 = vmatprep.subr.mxu0 0.0
        %4422 = vmatpush1.msra.mxu0 %v4384
        %4423 = vmatprep.subr.mxu0 0.0
        %4424 = vmatpush1.msra.mxu0 %v4383
        %4425 = vmatprep.subr.mxu0 0.0
        %4426 = vmatpush1.msra.mxu0 %v4382
        %4427 = vmatprep.subr.mxu0 0.0
        %4428 = vmatpush1.msra.mxu0 %v4381
        %4429 = vmatprep.subr.mxu0 0.0
        %4430 = vmatpush2.msra.mxu0 0.0
        %4431 = vmatprep.subr.mxu0 0.0
        %4432 = vmatpush2.msra.mxu0 0.0
        %4433 = vmatprep.subr.mxu0 0.0
        %4434 = vmatpush2.msra.mxu0 0.0
        %4435 = vmatprep.subr.mxu0 0.0
        %4436 = vmatpush2.msra.mxu0 0.0
        %4437 = vmatprep.subr.mxu0 0.0
        %4438 = vmatpush2.msra.mxu0 0.0
        %4439 = vmatprep.subr.mxu0 0.0
        %4440 = vmatpush2.msra.mxu0 0.0
        %4441 = vmatprep.subr.mxu0 0.0
        %4442 = vmatpush2.msra.mxu0 0.0
        %4443 = vmatprep.subr.mxu0 0.0
        %4444 = vmatpush2.msra.mxu0 0.0
        %4445 = vmatprep.subr.mxu0 0.0
        %4446 = vmatpush2.msra.mxu0 0.0
        %4447 = vmatprep.subr.mxu0 0.0
        %4448 = vmatpush2.msra.mxu0 0.0
        %4449 = vmatprep.subr.mxu0 0.0
        %4450 = vmatpush2.msra.mxu0 0.0
        %4451 = vmatprep.subr.mxu0 0.0
        %4452 = vmatpush2.msra.mxu0 0.0
        %4453 = vmatprep.subr.mxu0 0.0
        %4454 = vmatpush2.msra.mxu0 0.0
        %4455 = vmatprep.subr.mxu0 0.0
        %4456 = vmatpush2.msra.mxu0 0.0
        %4457 = vmatprep.subr.mxu0 0.0
        %4458 = vmatpush2.msra.mxu0 0.0
        %4459 = vmatprep.subr.mxu0 0.0
        %4460 = vmatpush2.msra.mxu0 0.0
        %4461 = vmatprep.mubr.f32.mxu0 0.0
        %4462 = vmatmul.mubr.f32.gmra.mxu0 %v4386
        %v4463 = vpop.f32.mrf.mxu0
        %v4464 = vadd.f32 0.0, %v4463
        %v4465 = vpop.f32.mrf.mxu0
        %4466 = vmatprep.mubr.f32.mxu0 0.0
        %4467 = vmatmul.mubr.f32.gmra.mxu0 %v4389
        %v4468 = vpop.f32.mrf.mxu0
        %v4469 = vadd.f32 0.0, %v4468
        %v4470 = vpop.f32.mrf.mxu0
        %4471 = vmatprep.mubr.f32.mxu0 0.0
        %4472 = vmatmul.mubr.f32.gmra.mxu0 %v4392
        %v4473 = vpop.f32.mrf.mxu0
        %v4474 = vadd.f32 0.0, %v4473
        %v4475 = vpop.f32.mrf.mxu0
        %4476 = vmatprep.mubr.f32.mxu0 0.0
        %4477 = vmatmul.mubr.f32.gmra.mxu0 %v4395
        %v4478 = vpop.f32.mrf.mxu0
        %v4479 = vadd.f32 0.0, %v4478
        %v4480 = vpop.f32.mrf.mxu0
        %4481 = vdwg.mxu0
        %v4482 = vadd.f32 %v4372, %v4464
        %v4483 = vadd.f32 %v4373, %v4469
        %v4484 = vadd.f32 %v4374, %v4474
        %v4485 = vadd.f32 %v4375, %v4479
        %v4486 = vld [vmem:[#allocation3 + $0x2] sm:$0xff]
        %v4487 = vld [vmem:[#allocation3 + $0xa] sm:$0xff]
        %v4488 = vld [vmem:[#allocation3 + $0x12] sm:$0xff]
        %v4489 = vld [vmem:[#allocation3 + $0x1a] sm:$0xff]
        %s4490 = scalar_lea.vmem %s10, 64
        %v4491 = vld [vmem:[%s4490] sm:$0xff]
        %v4492 = vld [vmem:[%s4490 + $0x8] sm:$0xff]
        %v4493 = vld [vmem:[%s4490 + $0x10] sm:$0xff]
        %v4494 = vld [vmem:[%s4490 + $0x18] sm:$0xff]
        %v4496 = vsel %vm1710, %v4486, 0
        %v4499 = vsel %vm1710, %v4487, 0
        %v4502 = vsel %vm1710, %v4488, 0
        %v4505 = vsel %vm1710, %v4489, 0
        %4507 = vmatprep.subr.mxu0 0.0
        %4508 = vmatpush1.msra.mxu0 0.0
        %4509 = vmatprep.subr.mxu0 0.0
        %4510 = vmatpush1.msra.mxu0 0.0
        %4511 = vmatprep.subr.mxu0 0.0
        %4512 = vmatpush1.msra.mxu0 0.0
        %4513 = vmatprep.subr.mxu0 0.0
        %4514 = vmatpush1.msra.mxu0 0.0
        %4515 = vmatprep.subr.mxu0 0.0
        %4516 = vmatpush1.msra.mxu0 0.0
        %4517 = vmatprep.subr.mxu0 0.0
        %4518 = vmatpush1.msra.mxu0 0.0
        %4519 = vmatprep.subr.mxu0 0.0
        %4520 = vmatpush1.msra.mxu0 0.0
        %4521 = vmatprep.subr.mxu0 0.0
        %4522 = vmatpush1.msra.mxu0 0.0
        %4523 = vmatprep.subr.mxu0 0.0
        %4524 = vmatpush1.msra.mxu0 0.0
        %4525 = vmatprep.subr.mxu0 0.0
        %4526 = vmatpush1.msra.mxu0 0.0
        %4527 = vmatprep.subr.mxu0 0.0
        %4528 = vmatpush1.msra.mxu0 0.0
        %4529 = vmatprep.subr.mxu0 0.0
        %4530 = vmatpush1.msra.mxu0 0.0
        %4531 = vmatprep.subr.mxu0 0.0
        %4532 = vmatpush1.msra.mxu0 %v4494
        %4533 = vmatprep.subr.mxu0 0.0
        %4534 = vmatpush1.msra.mxu0 %v4493
        %4535 = vmatprep.subr.mxu0 0.0
        %4536 = vmatpush1.msra.mxu0 %v4492
        %4537 = vmatprep.subr.mxu0 0.0
        %4538 = vmatpush1.msra.mxu0 %v4491
        %4539 = vmatprep.subr.mxu0 0.0
        %4540 = vmatpush2.msra.mxu0 0.0
        %4541 = vmatprep.subr.mxu0 0.0
        %4542 = vmatpush2.msra.mxu0 0.0
        %4543 = vmatprep.subr.mxu0 0.0
        %4544 = vmatpush2.msra.mxu0 0.0
        %4545 = vmatprep.subr.mxu0 0.0
        %4546 = vmatpush2.msra.mxu0 0.0
        %4547 = vmatprep.subr.mxu0 0.0
        %4548 = vmatpush2.msra.mxu0 0.0
        %4549 = vmatprep.subr.mxu0 0.0
        %4550 = vmatpush2.msra.mxu0 0.0
        %4551 = vmatprep.subr.mxu0 0.0
        %4552 = vmatpush2.msra.mxu0 0.0
        %4553 = vmatprep.subr.mxu0 0.0
        %4554 = vmatpush2.msra.mxu0 0.0
        %4555 = vmatprep.subr.mxu0 0.0
        %4556 = vmatpush2.msra.mxu0 0.0
        %4557 = vmatprep.subr.mxu0 0.0
        %4558 = vmatpush2.msra.mxu0 0.0
        %4559 = vmatprep.subr.mxu0 0.0
        %4560 = vmatpush2.msra.mxu0 0.0
        %4561 = vmatprep.subr.mxu0 0.0
        %4562 = vmatpush2.msra.mxu0 0.0
        %4563 = vmatprep.subr.mxu0 0.0
        %4564 = vmatpush2.msra.mxu0 0.0
        %4565 = vmatprep.subr.mxu0 0.0
        %4566 = vmatpush2.msra.mxu0 0.0
        %4567 = vmatprep.subr.mxu0 0.0
        %4568 = vmatpush2.msra.mxu0 0.0
        %4569 = vmatprep.subr.mxu0 0.0
        %4570 = vmatpush2.msra.mxu0 0.0
        %4571 = vmatprep.mubr.f32.mxu0 0.0
        %4572 = vmatmul.mubr.f32.gmra.mxu0 %v4496
        %v4573 = vpop.f32.mrf.mxu0
        %v4574 = vadd.f32 0.0, %v4573
        %v4575 = vpop.f32.mrf.mxu0
        %4576 = vmatprep.mubr.f32.mxu0 0.0
        %4577 = vmatmul.mubr.f32.gmra.mxu0 %v4499
        %v4578 = vpop.f32.mrf.mxu0
        %v4579 = vadd.f32 0.0, %v4578
        %v4580 = vpop.f32.mrf.mxu0
        %4581 = vmatprep.mubr.f32.mxu0 0.0
        %4582 = vmatmul.mubr.f32.gmra.mxu0 %v4502
        %v4583 = vpop.f32.mrf.mxu0
        %v4584 = vadd.f32 0.0, %v4583
        %v4585 = vpop.f32.mrf.mxu0
        %4586 = vmatprep.mubr.f32.mxu0 0.0
        %4587 = vmatmul.mubr.f32.gmra.mxu0 %v4505
        %v4588 = vpop.f32.mrf.mxu0
        %v4589 = vadd.f32 0.0, %v4588
        %v4590 = vpop.f32.mrf.mxu0
        %4591 = vdwg.mxu0
        %v4592 = vadd.f32 %v4482, %v4574
        %v4593 = vadd.f32 %v4483, %v4579
        %v4594 = vadd.f32 %v4484, %v4584
        %v4595 = vadd.f32 %v4485, %v4589
        %v4596 = vld [vmem:[#allocation3 + $0x8] sm:$0xff]
        %v4597 = vld [vmem:[#allocation3 + $0x10] sm:$0xff]
        %v4598 = vld [vmem:[#allocation3 + $0x18] sm:$0xff]
        %v4599 = vld [vmem:[#allocation3 + $0x20] sm:$0xff]
        %s4600 = scalar_lea.vmem %s10, 96
        %v4601 = vld [vmem:[%s4600] sm:$0xff]
        %v4602 = vld [vmem:[%s4600 + $0x8] sm:$0xff]
        %v4603 = vld [vmem:[%s4600 + $0x10] sm:$0xff]
        %v4604 = vld [vmem:[%s4600 + $0x18] sm:$0xff]
        %v4606 = vsel %vm1710, %v4596, 0
        %v4609 = vsel %vm1710, %v4597, 0
        %v4612 = vsel %vm1710, %v4598, 0
        %v4615 = vsel %vm1710, %v4599, 0
        %4617 = vmatprep.subr.mxu0 0.0
        %4618 = vmatpush1.msra.mxu0 0.0
        %4619 = vmatprep.subr.mxu0 0.0
        %4620 = vmatpush1.msra.mxu0 0.0
        %4621 = vmatprep.subr.mxu0 0.0
        %4622 = vmatpush1.msra.mxu0 0.0
        %4623 = vmatprep.subr.mxu0 0.0
        %4624 = vmatpush1.msra.mxu0 0.0
        %4625 = vmatprep.subr.mxu0 0.0
        %4626 = vmatpush1.msra.mxu0 0.0
        %4627 = vmatprep.subr.mxu0 0.0
        %4628 = vmatpush1.msra.mxu0 0.0
        %4629 = vmatprep.subr.mxu0 0.0
        %4630 = vmatpush1.msra.mxu0 0.0
        %4631 = vmatprep.subr.mxu0 0.0
        %4632 = vmatpush1.msra.mxu0 0.0
        %4633 = vmatprep.subr.mxu0 0.0
        %4634 = vmatpush1.msra.mxu0 0.0
        %4635 = vmatprep.subr.mxu0 0.0
        %4636 = vmatpush1.msra.mxu0 0.0
        %4637 = vmatprep.subr.mxu0 0.0
        %4638 = vmatpush1.msra.mxu0 0.0
        %4639 = vmatprep.subr.mxu0 0.0
        %4640 = vmatpush1.msra.mxu0 0.0
        %4641 = vmatprep.subr.mxu0 0.0
        %4642 = vmatpush1.msra.mxu0 %v4604
        %4643 = vmatprep.subr.mxu0 0.0
        %4644 = vmatpush1.msra.mxu0 %v4603
        %4645 = vmatprep.subr.mxu0 0.0
        %4646 = vmatpush1.msra.mxu0 %v4602
        %4647 = vmatprep.subr.mxu0 0.0
        %4648 = vmatpush1.msra.mxu0 %v4601
        %4649 = vmatprep.subr.mxu0 0.0
        %4650 = vmatpush2.msra.mxu0 0.0
        %4651 = vmatprep.subr.mxu0 0.0
        %4652 = vmatpush2.msra.mxu0 0.0
        %4653 = vmatprep.subr.mxu0 0.0
        %4654 = vmatpush2.msra.mxu0 0.0
        %4655 = vmatprep.subr.mxu0 0.0
        %4656 = vmatpush2.msra.mxu0 0.0
        %4657 = vmatprep.subr.mxu0 0.0
        %4658 = vmatpush2.msra.mxu0 0.0
        %4659 = vmatprep.subr.mxu0 0.0
        %4660 = vmatpush2.msra.mxu0 0.0
        %4661 = vmatprep.subr.mxu0 0.0
        %4662 = vmatpush2.msra.mxu0 0.0
        %4663 = vmatprep.subr.mxu0 0.0
        %4664 = vmatpush2.msra.mxu0 0.0
        %4665 = vmatprep.subr.mxu0 0.0
        %4666 = vmatpush2.msra.mxu0 0.0
        %4667 = vmatprep.subr.mxu0 0.0
        %4668 = vmatpush2.msra.mxu0 0.0
        %4669 = vmatprep.subr.mxu0 0.0
        %4670 = vmatpush2.msra.mxu0 0.0
        %4671 = vmatprep.subr.mxu0 0.0
        %4672 = vmatpush2.msra.mxu0 0.0
        %4673 = vmatprep.subr.mxu0 0.0
        %4674 = vmatpush2.msra.mxu0 0.0
        %4675 = vmatprep.subr.mxu0 0.0
        %4676 = vmatpush2.msra.mxu0 0.0
        %4677 = vmatprep.subr.mxu0 0.0
        %4678 = vmatpush2.msra.mxu0 0.0
        %4679 = vmatprep.subr.mxu0 0.0
        %4680 = vmatpush2.msra.mxu0 0.0
        %4681 = vmatprep.mubr.f32.mxu0 0.0
        %4682 = vmatmul.mubr.f32.gmra.mxu0 %v4606
        %v4683 = vpop.f32.mrf.mxu0
        %v4684 = vadd.f32 0.0, %v4683
        %v4685 = vpop.f32.mrf.mxu0
        %4686 = vmatprep.mubr.f32.mxu0 0.0
        %4687 = vmatmul.mubr.f32.gmra.mxu0 %v4609
        %v4688 = vpop.f32.mrf.mxu0
        %v4689 = vadd.f32 0.0, %v4688
        %v4690 = vpop.f32.mrf.mxu0
        %4691 = vmatprep.mubr.f32.mxu0 0.0
        %4692 = vmatmul.mubr.f32.gmra.mxu0 %v4612
        %v4693 = vpop.f32.mrf.mxu0
        %v4694 = vadd.f32 0.0, %v4693
        %v4695 = vpop.f32.mrf.mxu0
        %4696 = vmatprep.mubr.f32.mxu0 0.0
        %4697 = vmatmul.mubr.f32.gmra.mxu0 %v4615
        %v4698 = vpop.f32.mrf.mxu0
        %v4699 = vadd.f32 0.0, %v4698
        %v4700 = vpop.f32.mrf.mxu0
        %4701 = vdwg.mxu0
        %v4702 = vadd.f32 %v4592, %v4684
        %v4703 = vadd.f32 %v4593, %v4689
        %v4704 = vadd.f32 %v4594, %v4694
        %v4705 = vadd.f32 %v4595, %v4699
        %v4706 = vld [vmem:[#allocation3 + $0x9] sm:$0xff]
        %v4707 = vld [vmem:[#allocation3 + $0x11] sm:$0xff]
        %v4708 = vld [vmem:[#allocation3 + $0x19] sm:$0xff]
        %v4709 = vld [vmem:[#allocation3 + $0x21] sm:$0xff]
        %s4710 = scalar_lea.vmem %s10, 128
        %v4711 = vld [vmem:[%s4710] sm:$0xff]
        %v4712 = vld [vmem:[%s4710 + $0x8] sm:$0xff]
        %v4713 = vld [vmem:[%s4710 + $0x10] sm:$0xff]
        %v4714 = vld [vmem:[%s4710 + $0x18] sm:$0xff]
        %v4716 = vsel %vm1710, %v4706, 0
        %v4719 = vsel %vm1710, %v4707, 0
        %v4722 = vsel %vm1710, %v4708, 0
        %v4725 = vsel %vm1710, %v4709, 0
        %4727 = vmatprep.subr.mxu0 0.0
        %4728 = vmatpush1.msra.mxu0 0.0
        %4729 = vmatprep.subr.mxu0 0.0
        %4730 = vmatpush1.msra.mxu0 0.0
        %4731 = vmatprep.subr.mxu0 0.0
        %4732 = vmatpush1.msra.mxu0 0.0
        %4733 = vmatprep.subr.mxu0 0.0
        %4734 = vmatpush1.msra.mxu0 0.0
        %4735 = vmatprep.subr.mxu0 0.0
        %4736 = vmatpush1.msra.mxu0 0.0
        %4737 = vmatprep.subr.mxu0 0.0
        %4738 = vmatpush1.msra.mxu0 0.0
        %4739 = vmatprep.subr.mxu0 0.0
        %4740 = vmatpush1.msra.mxu0 0.0
        %4741 = vmatprep.subr.mxu0 0.0
        %4742 = vmatpush1.msra.mxu0 0.0
        %4743 = vmatprep.subr.mxu0 0.0
        %4744 = vmatpush1.msra.mxu0 0.0
        %4745 = vmatprep.subr.mxu0 0.0
        %4746 = vmatpush1.msra.mxu0 0.0
        %4747 = vmatprep.subr.mxu0 0.0
        %4748 = vmatpush1.msra.mxu0 0.0
        %4749 = vmatprep.subr.mxu0 0.0
        %4750 = vmatpush1.msra.mxu0 0.0
        %4751 = vmatprep.subr.mxu0 0.0
        %4752 = vmatpush1.msra.mxu0 %v4714
        %4753 = vmatprep.subr.mxu0 0.0
        %4754 = vmatpush1.msra.mxu0 %v4713
        %4755 = vmatprep.subr.mxu0 0.0
        %4756 = vmatpush1.msra.mxu0 %v4712
        %4757 = vmatprep.subr.mxu0 0.0
        %4758 = vmatpush1.msra.mxu0 %v4711
        %4759 = vmatprep.subr.mxu0 0.0
        %4760 = vmatpush2.msra.mxu0 0.0
        %4761 = vmatprep.subr.mxu0 0.0
        %4762 = vmatpush2.msra.mxu0 0.0
        %4763 = vmatprep.subr.mxu0 0.0
        %4764 = vmatpush2.msra.mxu0 0.0
        %4765 = vmatprep.subr.mxu0 0.0
        %4766 = vmatpush2.msra.mxu0 0.0
        %4767 = vmatprep.subr.mxu0 0.0
        %4768 = vmatpush2.msra.mxu0 0.0
        %4769 = vmatprep.subr.mxu0 0.0
        %4770 = vmatpush2.msra.mxu0 0.0
        %4771 = vmatprep.subr.mxu0 0.0
        %4772 = vmatpush2.msra.mxu0 0.0
        %4773 = vmatprep.subr.mxu0 0.0
        %4774 = vmatpush2.msra.mxu0 0.0
        %4775 = vmatprep.subr.mxu0 0.0
        %4776 = vmatpush2.msra.mxu0 0.0
        %4777 = vmatprep.subr.mxu0 0.0
        %4778 = vmatpush2.msra.mxu0 0.0
        %4779 = vmatprep.subr.mxu0 0.0
        %4780 = vmatpush2.msra.mxu0 0.0
        %4781 = vmatprep.subr.mxu0 0.0
        %4782 = vmatpush2.msra.mxu0 0.0
        %4783 = vmatprep.subr.mxu0 0.0
        %4784 = vmatpush2.msra.mxu0 0.0
        %4785 = vmatprep.subr.mxu0 0.0
        %4786 = vmatpush2.msra.mxu0 0.0
        %4787 = vmatprep.subr.mxu0 0.0
        %4788 = vmatpush2.msra.mxu0 0.0
        %4789 = vmatprep.subr.mxu0 0.0
        %4790 = vmatpush2.msra.mxu0 0.0
        %4791 = vmatprep.mubr.f32.mxu0 0.0
        %4792 = vmatmul.mubr.f32.gmra.mxu0 %v4716
        %v4793 = vpop.f32.mrf.mxu0
        %v4794 = vadd.f32 0.0, %v4793
        %v4795 = vpop.f32.mrf.mxu0
        %4796 = vmatprep.mubr.f32.mxu0 0.0
        %4797 = vmatmul.mubr.f32.gmra.mxu0 %v4719
        %v4798 = vpop.f32.mrf.mxu0
        %v4799 = vadd.f32 0.0, %v4798
        %v4800 = vpop.f32.mrf.mxu0
        %4801 = vmatprep.mubr.f32.mxu0 0.0
        %4802 = vmatmul.mubr.f32.gmra.mxu0 %v4722
        %v4803 = vpop.f32.mrf.mxu0
        %v4804 = vadd.f32 0.0, %v4803
        %v4805 = vpop.f32.mrf.mxu0
        %4806 = vmatprep.mubr.f32.mxu0 0.0
        %4807 = vmatmul.mubr.f32.gmra.mxu0 %v4725
        %v4808 = vpop.f32.mrf.mxu0
        %v4809 = vadd.f32 0.0, %v4808
        %v4810 = vpop.f32.mrf.mxu0
        %4811 = vdwg.mxu0
        %v4812 = vadd.f32 %v4702, %v4794
        %v4813 = vadd.f32 %v4703, %v4799
        %v4814 = vadd.f32 %v4704, %v4804
        %v4815 = vadd.f32 %v4705, %v4809
        %v4816 = vld [vmem:[#allocation3 + $0xa] sm:$0xff]
        %v4817 = vld [vmem:[#allocation3 + $0x12] sm:$0xff]
        %v4818 = vld [vmem:[#allocation3 + $0x1a] sm:$0xff]
        %v4819 = vld [vmem:[#allocation3 + $0x22] sm:$0xff]
        %s4820 = scalar_lea.vmem %s10, 160
        %v4821 = vld [vmem:[%s4820] sm:$0xff]
        %v4822 = vld [vmem:[%s4820 + $0x8] sm:$0xff]
        %v4823 = vld [vmem:[%s4820 + $0x10] sm:$0xff]
        %v4824 = vld [vmem:[%s4820 + $0x18] sm:$0xff]
        %v4826 = vsel %vm1710, %v4816, 0
        %v4829 = vsel %vm1710, %v4817, 0
        %v4832 = vsel %vm1710, %v4818, 0
        %v4835 = vsel %vm1710, %v4819, 0
        %4837 = vmatprep.subr.mxu0 0.0
        %4838 = vmatpush1.msra.mxu0 0.0
        %4839 = vmatprep.subr.mxu0 0.0
        %4840 = vmatpush1.msra.mxu0 0.0
        %4841 = vmatprep.subr.mxu0 0.0
        %4842 = vmatpush1.msra.mxu0 0.0
        %4843 = vmatprep.subr.mxu0 0.0
        %4844 = vmatpush1.msra.mxu0 0.0
        %4845 = vmatprep.subr.mxu0 0.0
        %4846 = vmatpush1.msra.mxu0 0.0
        %4847 = vmatprep.subr.mxu0 0.0
        %4848 = vmatpush1.msra.mxu0 0.0
        %4849 = vmatprep.subr.mxu0 0.0
        %4850 = vmatpush1.msra.mxu0 0.0
        %4851 = vmatprep.subr.mxu0 0.0
        %4852 = vmatpush1.msra.mxu0 0.0
        %4853 = vmatprep.subr.mxu0 0.0
        %4854 = vmatpush1.msra.mxu0 0.0
        %4855 = vmatprep.subr.mxu0 0.0
        %4856 = vmatpush1.msra.mxu0 0.0
        %4857 = vmatprep.subr.mxu0 0.0
        %4858 = vmatpush1.msra.mxu0 0.0
        %4859 = vmatprep.subr.mxu0 0.0
        %4860 = vmatpush1.msra.mxu0 0.0
        %4861 = vmatprep.subr.mxu0 0.0
        %4862 = vmatpush1.msra.mxu0 %v4824
        %4863 = vmatprep.subr.mxu0 0.0
        %4864 = vmatpush1.msra.mxu0 %v4823
        %4865 = vmatprep.subr.mxu0 0.0
        %4866 = vmatpush1.msra.mxu0 %v4822
        %4867 = vmatprep.subr.mxu0 0.0
        %4868 = vmatpush1.msra.mxu0 %v4821
        %4869 = vmatprep.subr.mxu0 0.0
        %4870 = vmatpush2.msra.mxu0 0.0
        %4871 = vmatprep.subr.mxu0 0.0
        %4872 = vmatpush2.msra.mxu0 0.0
        %4873 = vmatprep.subr.mxu0 0.0
        %4874 = vmatpush2.msra.mxu0 0.0
        %4875 = vmatprep.subr.mxu0 0.0
        %4876 = vmatpush2.msra.mxu0 0.0
        %4877 = vmatprep.subr.mxu0 0.0
        %4878 = vmatpush2.msra.mxu0 0.0
        %4879 = vmatprep.subr.mxu0 0.0
        %4880 = vmatpush2.msra.mxu0 0.0
        %4881 = vmatprep.subr.mxu0 0.0
        %4882 = vmatpush2.msra.mxu0 0.0
        %4883 = vmatprep.subr.mxu0 0.0
        %4884 = vmatpush2.msra.mxu0 0.0
        %4885 = vmatprep.subr.mxu0 0.0
        %4886 = vmatpush2.msra.mxu0 0.0
        %4887 = vmatprep.subr.mxu0 0.0
        %4888 = vmatpush2.msra.mxu0 0.0
        %4889 = vmatprep.subr.mxu0 0.0
        %4890 = vmatpush2.msra.mxu0 0.0
        %4891 = vmatprep.subr.mxu0 0.0
        %4892 = vmatpush2.msra.mxu0 0.0
        %4893 = vmatprep.subr.mxu0 0.0
        %4894 = vmatpush2.msra.mxu0 0.0
        %4895 = vmatprep.subr.mxu0 0.0
        %4896 = vmatpush2.msra.mxu0 0.0
        %4897 = vmatprep.subr.mxu0 0.0
        %4898 = vmatpush2.msra.mxu0 0.0
        %4899 = vmatprep.subr.mxu0 0.0
        %4900 = vmatpush2.msra.mxu0 0.0
        %4901 = vmatprep.mubr.f32.mxu0 0.0
        %4902 = vmatmul.mubr.f32.gmra.mxu0 %v4826
        %v4903 = vpop.f32.mrf.mxu0
        %v4904 = vadd.f32 0.0, %v4903
        %v4905 = vpop.f32.mrf.mxu0
        %4906 = vmatprep.mubr.f32.mxu0 0.0
        %4907 = vmatmul.mubr.f32.gmra.mxu0 %v4829
        %v4908 = vpop.f32.mrf.mxu0
        %v4909 = vadd.f32 0.0, %v4908
        %v4910 = vpop.f32.mrf.mxu0
        %4911 = vmatprep.mubr.f32.mxu0 0.0
        %4912 = vmatmul.mubr.f32.gmra.mxu0 %v4832
        %v4913 = vpop.f32.mrf.mxu0
        %v4914 = vadd.f32 0.0, %v4913
        %v4915 = vpop.f32.mrf.mxu0
        %4916 = vmatprep.mubr.f32.mxu0 0.0
        %4917 = vmatmul.mubr.f32.gmra.mxu0 %v4835
        %v4918 = vpop.f32.mrf.mxu0
        %v4919 = vadd.f32 0.0, %v4918
        %v4920 = vpop.f32.mrf.mxu0
        %4921 = vdwg.mxu0
        %v4922 = vadd.f32 %v4812, %v4904
        %v4923 = vadd.f32 %v4813, %v4909
        %v4924 = vadd.f32 %v4814, %v4914
        %v4925 = vadd.f32 %v4815, %v4919
        %v4926 = vld [vmem:[#allocation3 + $0x10] sm:$0xff]
        %v4927 = vld [vmem:[#allocation3 + $0x18] sm:$0xff]
        %v4928 = vld [vmem:[#allocation3 + $0x20] sm:$0xff]
        %v4929 = vld [vmem:[#allocation3 + $0x28] sm:$0xff]
        %s4930 = scalar_lea.vmem %s10, 192
        %v4931 = vld [vmem:[%s4930] sm:$0xff]
        %v4932 = vld [vmem:[%s4930 + $0x8] sm:$0xff]
        %v4933 = vld [vmem:[%s4930 + $0x10] sm:$0xff]
        %v4934 = vld [vmem:[%s4930 + $0x18] sm:$0xff]
        %v4936 = vsel %vm1710, %v4926, 0
        %v4939 = vsel %vm1710, %v4927, 0
        %v4942 = vsel %vm1710, %v4928, 0
        %v4945 = vsel %vm1710, %v4929, 0
        %4947 = vmatprep.subr.mxu0 0.0
        %4948 = vmatpush1.msra.mxu0 0.0
        %4949 = vmatprep.subr.mxu0 0.0
        %4950 = vmatpush1.msra.mxu0 0.0
        %4951 = vmatprep.subr.mxu0 0.0
        %4952 = vmatpush1.msra.mxu0 0.0
        %4953 = vmatprep.subr.mxu0 0.0
        %4954 = vmatpush1.msra.mxu0 0.0
        %4955 = vmatprep.subr.mxu0 0.0
        %4956 = vmatpush1.msra.mxu0 0.0
        %4957 = vmatprep.subr.mxu0 0.0
        %4958 = vmatpush1.msra.mxu0 0.0
        %4959 = vmatprep.subr.mxu0 0.0
        %4960 = vmatpush1.msra.mxu0 0.0
        %4961 = vmatprep.subr.mxu0 0.0
        %4962 = vmatpush1.msra.mxu0 0.0
        %4963 = vmatprep.subr.mxu0 0.0
        %4964 = vmatpush1.msra.mxu0 0.0
        %4965 = vmatprep.subr.mxu0 0.0
        %4966 = vmatpush1.msra.mxu0 0.0
        %4967 = vmatprep.subr.mxu0 0.0
        %4968 = vmatpush1.msra.mxu0 0.0
        %4969 = vmatprep.subr.mxu0 0.0
        %4970 = vmatpush1.msra.mxu0 0.0
        %4971 = vmatprep.subr.mxu0 0.0
        %4972 = vmatpush1.msra.mxu0 %v4934
        %4973 = vmatprep.subr.mxu0 0.0
        %4974 = vmatpush1.msra.mxu0 %v4933
        %4975 = vmatprep.subr.mxu0 0.0
        %4976 = vmatpush1.msra.mxu0 %v4932
        %4977 = vmatprep.subr.mxu0 0.0
        %4978 = vmatpush1.msra.mxu0 %v4931
        %4979 = vmatprep.subr.mxu0 0.0
        %4980 = vmatpush2.msra.mxu0 0.0
        %4981 = vmatprep.subr.mxu0 0.0
        %4982 = vmatpush2.msra.mxu0 0.0
        %4983 = vmatprep.subr.mxu0 0.0
        %4984 = vmatpush2.msra.mxu0 0.0
        %4985 = vmatprep.subr.mxu0 0.0
        %4986 = vmatpush2.msra.mxu0 0.0
        %4987 = vmatprep.subr.mxu0 0.0
        %4988 = vmatpush2.msra.mxu0 0.0
        %4989 = vmatprep.subr.mxu0 0.0
        %4990 = vmatpush2.msra.mxu0 0.0
        %4991 = vmatprep.subr.mxu0 0.0
        %4992 = vmatpush2.msra.mxu0 0.0
        %4993 = vmatprep.subr.mxu0 0.0
        %4994 = vmatpush2.msra.mxu0 0.0
        %4995 = vmatprep.subr.mxu0 0.0
        %4996 = vmatpush2.msra.mxu0 0.0
        %4997 = vmatprep.subr.mxu0 0.0
        %4998 = vmatpush2.msra.mxu0 0.0
        %4999 = vmatprep.subr.mxu0 0.0
        %5000 = vmatpush2.msra.mxu0 0.0
        %5001 = vmatprep.subr.mxu0 0.0
        %5002 = vmatpush2.msra.mxu0 0.0
        %5003 = vmatprep.subr.mxu0 0.0
        %5004 = vmatpush2.msra.mxu0 0.0
        %5005 = vmatprep.subr.mxu0 0.0
        %5006 = vmatpush2.msra.mxu0 0.0
        %5007 = vmatprep.subr.mxu0 0.0
        %5008 = vmatpush2.msra.mxu0 0.0
        %5009 = vmatprep.subr.mxu0 0.0
        %5010 = vmatpush2.msra.mxu0 0.0
        %5011 = vmatprep.mubr.f32.mxu0 0.0
        %5012 = vmatmul.mubr.f32.gmra.mxu0 %v4936
        %v5013 = vpop.f32.mrf.mxu0
        %v5014 = vadd.f32 0.0, %v5013
        %v5015 = vpop.f32.mrf.mxu0
        %5016 = vmatprep.mubr.f32.mxu0 0.0
        %5017 = vmatmul.mubr.f32.gmra.mxu0 %v4939
        %v5018 = vpop.f32.mrf.mxu0
        %v5019 = vadd.f32 0.0, %v5018
        %v5020 = vpop.f32.mrf.mxu0
        %5021 = vmatprep.mubr.f32.mxu0 0.0
        %5022 = vmatmul.mubr.f32.gmra.mxu0 %v4942
        %v5023 = vpop.f32.mrf.mxu0
        %v5024 = vadd.f32 0.0, %v5023
        %v5025 = vpop.f32.mrf.mxu0
        %5026 = vmatprep.mubr.f32.mxu0 0.0
        %5027 = vmatmul.mubr.f32.gmra.mxu0 %v4945
        %v5028 = vpop.f32.mrf.mxu0
        %v5029 = vadd.f32 0.0, %v5028
        %v5030 = vpop.f32.mrf.mxu0
        %5031 = vdwg.mxu0
        %v5032 = vadd.f32 %v4922, %v5014
        %v5033 = vadd.f32 %v4923, %v5019
        %v5034 = vadd.f32 %v4924, %v5024
        %v5035 = vadd.f32 %v4925, %v5029
        %v5036 = vld [vmem:[#allocation3 + $0x11] sm:$0xff]
        %v5037 = vld [vmem:[#allocation3 + $0x19] sm:$0xff]
        %v5038 = vld [vmem:[#allocation3 + $0x21] sm:$0xff]
        %v5039 = vld [vmem:[#allocation3 + $0x29] sm:$0xff]
        %s5040 = scalar_lea.vmem %s10, 224
        %v5041 = vld [vmem:[%s5040] sm:$0xff]
        %v5042 = vld [vmem:[%s5040 + $0x8] sm:$0xff]
        %v5043 = vld [vmem:[%s5040 + $0x10] sm:$0xff]
        %v5044 = vld [vmem:[%s5040 + $0x18] sm:$0xff]
        %v5046 = vsel %vm1710, %v5036, 0
        %v5049 = vsel %vm1710, %v5037, 0
        %v5052 = vsel %vm1710, %v5038, 0
        %v5055 = vsel %vm1710, %v5039, 0
        %5057 = vmatprep.subr.mxu0 0.0
        %5058 = vmatpush1.msra.mxu0 0.0
        %5059 = vmatprep.subr.mxu0 0.0
        %5060 = vmatpush1.msra.mxu0 0.0
        %5061 = vmatprep.subr.mxu0 0.0
        %5062 = vmatpush1.msra.mxu0 0.0
        %5063 = vmatprep.subr.mxu0 0.0
        %5064 = vmatpush1.msra.mxu0 0.0
        %5065 = vmatprep.subr.mxu0 0.0
        %5066 = vmatpush1.msra.mxu0 0.0
        %5067 = vmatprep.subr.mxu0 0.0
        %5068 = vmatpush1.msra.mxu0 0.0
        %5069 = vmatprep.subr.mxu0 0.0
        %5070 = vmatpush1.msra.mxu0 0.0
        %5071 = vmatprep.subr.mxu0 0.0
        %5072 = vmatpush1.msra.mxu0 0.0
        %5073 = vmatprep.subr.mxu0 0.0
        %5074 = vmatpush1.msra.mxu0 0.0
        %5075 = vmatprep.subr.mxu0 0.0
        %5076 = vmatpush1.msra.mxu0 0.0
        %5077 = vmatprep.subr.mxu0 0.0
        %5078 = vmatpush1.msra.mxu0 0.0
        %5079 = vmatprep.subr.mxu0 0.0
        %5080 = vmatpush1.msra.mxu0 0.0
        %5081 = vmatprep.subr.mxu0 0.0
        %5082 = vmatpush1.msra.mxu0 %v5044
        %5083 = vmatprep.subr.mxu0 0.0
        %5084 = vmatpush1.msra.mxu0 %v5043
        %5085 = vmatprep.subr.mxu0 0.0
        %5086 = vmatpush1.msra.mxu0 %v5042
        %5087 = vmatprep.subr.mxu0 0.0
        %5088 = vmatpush1.msra.mxu0 %v5041
        %5089 = vmatprep.subr.mxu0 0.0
        %5090 = vmatpush2.msra.mxu0 0.0
        %5091 = vmatprep.subr.mxu0 0.0
        %5092 = vmatpush2.msra.mxu0 0.0
        %5093 = vmatprep.subr.mxu0 0.0
        %5094 = vmatpush2.msra.mxu0 0.0
        %5095 = vmatprep.subr.mxu0 0.0
        %5096 = vmatpush2.msra.mxu0 0.0
        %5097 = vmatprep.subr.mxu0 0.0
        %5098 = vmatpush2.msra.mxu0 0.0
        %5099 = vmatprep.subr.mxu0 0.0
        %5100 = vmatpush2.msra.mxu0 0.0
        %5101 = vmatprep.subr.mxu0 0.0
        %5102 = vmatpush2.msra.mxu0 0.0
        %5103 = vmatprep.subr.mxu0 0.0
        %5104 = vmatpush2.msra.mxu0 0.0
        %5105 = vmatprep.subr.mxu0 0.0
        %5106 = vmatpush2.msra.mxu0 0.0
        %5107 = vmatprep.subr.mxu0 0.0
        %5108 = vmatpush2.msra.mxu0 0.0
        %5109 = vmatprep.subr.mxu0 0.0
        %5110 = vmatpush2.msra.mxu0 0.0
        %5111 = vmatprep.subr.mxu0 0.0
        %5112 = vmatpush2.msra.mxu0 0.0
        %5113 = vmatprep.subr.mxu0 0.0
        %5114 = vmatpush2.msra.mxu0 0.0
        %5115 = vmatprep.subr.mxu0 0.0
        %5116 = vmatpush2.msra.mxu0 0.0
        %5117 = vmatprep.subr.mxu0 0.0
        %5118 = vmatpush2.msra.mxu0 0.0
        %5119 = vmatprep.subr.mxu0 0.0
        %5120 = vmatpush2.msra.mxu0 0.0
        %5121 = vmatprep.mubr.f32.mxu0 0.0
        %5122 = vmatmul.mubr.f32.gmra.mxu0 %v5046
        %v5123 = vpop.f32.mrf.mxu0
        %v5124 = vadd.f32 0.0, %v5123
        %v5125 = vpop.f32.mrf.mxu0
        %5126 = vmatprep.mubr.f32.mxu0 0.0
        %5127 = vmatmul.mubr.f32.gmra.mxu0 %v5049
        %v5128 = vpop.f32.mrf.mxu0
        %v5129 = vadd.f32 0.0, %v5128
        %v5130 = vpop.f32.mrf.mxu0
        %5131 = vmatprep.mubr.f32.mxu0 0.0
        %5132 = vmatmul.mubr.f32.gmra.mxu0 %v5052
        %v5133 = vpop.f32.mrf.mxu0
        %v5134 = vadd.f32 0.0, %v5133
        %v5135 = vpop.f32.mrf.mxu0
        %5136 = vmatprep.mubr.f32.mxu0 0.0
        %5137 = vmatmul.mubr.f32.gmra.mxu0 %v5055
        %v5138 = vpop.f32.mrf.mxu0
        %v5139 = vadd.f32 0.0, %v5138
        %v5140 = vpop.f32.mrf.mxu0
        %5141 = vdwg.mxu0
        %v5142 = vadd.f32 %v5032, %v5124
        %v5143 = vadd.f32 %v5033, %v5129
        %v5144 = vadd.f32 %v5034, %v5134
        %v5145 = vadd.f32 %v5035, %v5139
        %v5146 = vld [vmem:[#allocation3 + $0x12] sm:$0xff]
        %v5147 = vld [vmem:[#allocation3 + $0x1a] sm:$0xff]
        %v5148 = vld [vmem:[#allocation3 + $0x22] sm:$0xff]
        %v5149 = vld [vmem:[#allocation3 + $0x2a] sm:$0xff]
        %s5150 = scalar_lea.vmem %s10, 256
        %v5151 = vld [vmem:[%s5150] sm:$0xff]
        %v5152 = vld [vmem:[%s5150 + $0x8] sm:$0xff]
        %v5153 = vld [vmem:[%s5150 + $0x10] sm:$0xff]
        %v5154 = vld [vmem:[%s5150 + $0x18] sm:$0xff]
        %v5156 = vsel %vm1710, %v5146, 0
        %v5159 = vsel %vm1710, %v5147, 0
        %v5162 = vsel %vm1710, %v5148, 0
        %v5165 = vsel %vm1710, %v5149, 0
        %5167 = vmatprep.subr.mxu0 0.0
        %5168 = vmatpush1.msra.mxu0 0.0
        %5169 = vmatprep.subr.mxu0 0.0
        %5170 = vmatpush1.msra.mxu0 0.0
        %5171 = vmatprep.subr.mxu0 0.0
        %5172 = vmatpush1.msra.mxu0 0.0
        %5173 = vmatprep.subr.mxu0 0.0
        %5174 = vmatpush1.msra.mxu0 0.0
        %5175 = vmatprep.subr.mxu0 0.0
        %5176 = vmatpush1.msra.mxu0 0.0
        %5177 = vmatprep.subr.mxu0 0.0
        %5178 = vmatpush1.msra.mxu0 0.0
        %5179 = vmatprep.subr.mxu0 0.0
        %5180 = vmatpush1.msra.mxu0 0.0
        %5181 = vmatprep.subr.mxu0 0.0
        %5182 = vmatpush1.msra.mxu0 0.0
        %5183 = vmatprep.subr.mxu0 0.0
        %5184 = vmatpush1.msra.mxu0 0.0
        %5185 = vmatprep.subr.mxu0 0.0
        %5186 = vmatpush1.msra.mxu0 0.0
        %5187 = vmatprep.subr.mxu0 0.0
        %5188 = vmatpush1.msra.mxu0 0.0
        %5189 = vmatprep.subr.mxu0 0.0
        %5190 = vmatpush1.msra.mxu0 0.0
        %5191 = vmatprep.subr.mxu0 0.0
        %5192 = vmatpush1.msra.mxu0 %v5154
        %5193 = vmatprep.subr.mxu0 0.0
        %5194 = vmatpush1.msra.mxu0 %v5153
        %5195 = vmatprep.subr.mxu0 0.0
        %5196 = vmatpush1.msra.mxu0 %v5152
        %5197 = vmatprep.subr.mxu0 0.0
        %5198 = vmatpush1.msra.mxu0 %v5151
        %5199 = vmatprep.subr.mxu0 0.0
        %5200 = vmatpush2.msra.mxu0 0.0
        %5201 = vmatprep.subr.mxu0 0.0
        %5202 = vmatpush2.msra.mxu0 0.0
        %5203 = vmatprep.subr.mxu0 0.0
        %5204 = vmatpush2.msra.mxu0 0.0
        %5205 = vmatprep.subr.mxu0 0.0
        %5206 = vmatpush2.msra.mxu0 0.0
        %5207 = vmatprep.subr.mxu0 0.0
        %5208 = vmatpush2.msra.mxu0 0.0
        %5209 = vmatprep.subr.mxu0 0.0
        %5210 = vmatpush2.msra.mxu0 0.0
        %5211 = vmatprep.subr.mxu0 0.0
        %5212 = vmatpush2.msra.mxu0 0.0
        %5213 = vmatprep.subr.mxu0 0.0
        %5214 = vmatpush2.msra.mxu0 0.0
        %5215 = vmatprep.subr.mxu0 0.0
        %5216 = vmatpush2.msra.mxu0 0.0
        %5217 = vmatprep.subr.mxu0 0.0
        %5218 = vmatpush2.msra.mxu0 0.0
        %5219 = vmatprep.subr.mxu0 0.0
        %5220 = vmatpush2.msra.mxu0 0.0
        %5221 = vmatprep.subr.mxu0 0.0
        %5222 = vmatpush2.msra.mxu0 0.0
        %5223 = vmatprep.subr.mxu0 0.0
        %5224 = vmatpush2.msra.mxu0 0.0
        %5225 = vmatprep.subr.mxu0 0.0
        %5226 = vmatpush2.msra.mxu0 0.0
        %5227 = vmatprep.subr.mxu0 0.0
        %5228 = vmatpush2.msra.mxu0 0.0
        %5229 = vmatprep.subr.mxu0 0.0
        %5230 = vmatpush2.msra.mxu0 0.0
        %5231 = vmatprep.mubr.f32.mxu0 0.0
        %5232 = vmatmul.mubr.f32.gmra.mxu0 %v5156
        %v5233 = vpop.f32.mrf.mxu0
        %v5234 = vadd.f32 0.0, %v5233
        %v5235 = vpop.f32.mrf.mxu0
        %5236 = vmatprep.mubr.f32.mxu0 0.0
        %5237 = vmatmul.mubr.f32.gmra.mxu0 %v5159
        %v5238 = vpop.f32.mrf.mxu0
        %v5239 = vadd.f32 0.0, %v5238
        %v5240 = vpop.f32.mrf.mxu0
        %5241 = vmatprep.mubr.f32.mxu0 0.0
        %5242 = vmatmul.mubr.f32.gmra.mxu0 %v5162
        %v5243 = vpop.f32.mrf.mxu0
        %v5244 = vadd.f32 0.0, %v5243
        %v5245 = vpop.f32.mrf.mxu0
        %5246 = vmatprep.mubr.f32.mxu0 0.0
        %5247 = vmatmul.mubr.f32.gmra.mxu0 %v5165
        %v5248 = vpop.f32.mrf.mxu0
        %v5249 = vadd.f32 0.0, %v5248
        %v5250 = vpop.f32.mrf.mxu0
        %5251 = vdwg.mxu0
        %v5252 = vadd.f32 %v5142, %v5234
        %v5253 = vadd.f32 %v5143, %v5239
        %v5254 = vadd.f32 %v5144, %v5244
        %v5255 = vadd.f32 %v5145, %v5249
        %v5256 = vld [vmem:[%s4] sm:$0xff]
        %v5257 = vld [vmem:[%s4 + $0x8] sm:$0xff]
        %v5259 = vsel %vm1710, %v5256, 0
        %v5262 = vsel %vm1710, %v5257, 0
        %5264 = vmatprep.subr.mxu0 0.0
        %5265 = vmatpush1.msra.mxu0 0.0
        %5266 = vmatprep.subr.mxu0 0.0
        %5267 = vmatpush1.msra.mxu0 0.0
        %5268 = vmatprep.subr.mxu0 0.0
        %5269 = vmatpush1.msra.mxu0 0.0
        %5270 = vmatprep.subr.mxu0 0.0
        %5271 = vmatpush1.msra.mxu0 0.0
        %5272 = vmatprep.subr.mxu0 0.0
        %5273 = vmatpush1.msra.mxu0 0.0
        %5274 = vmatprep.subr.mxu0 0.0
        %5275 = vmatpush1.msra.mxu0 0.0
        %5276 = vmatprep.subr.mxu0 0.0
        %5277 = vmatpush1.msra.mxu0 0.0
        %5278 = vmatprep.subr.mxu0 0.0
        %5279 = vmatpush1.msra.mxu0 0.0
        %5280 = vmatprep.subr.mxu0 0.0
        %5281 = vmatpush1.msra.mxu0 0.0
        %5282 = vmatprep.subr.mxu0 0.0
        %5283 = vmatpush1.msra.mxu0 0.0
        %5284 = vmatprep.subr.mxu0 0.0
        %5285 = vmatpush1.msra.mxu0 0.0
        %5286 = vmatprep.subr.mxu0 0.0
        %5287 = vmatpush1.msra.mxu0 0.0
        %5288 = vmatprep.subr.mxu0 0.0
        %5289 = vmatpush1.msra.mxu0 %v5255
        %5290 = vmatprep.subr.mxu0 0.0
        %5291 = vmatpush1.msra.mxu0 %v5254
        %5292 = vmatprep.subr.mxu0 0.0
        %5293 = vmatpush1.msra.mxu0 %v5253
        %5294 = vmatprep.subr.mxu0 0.0
        %5295 = vmatpush1.msra.mxu0 %v5252
        %5296 = vmatprep.subr.mxu0 0.0
        %5297 = vmatpush2.msra.mxu0 0.0
        %5298 = vmatprep.subr.mxu0 0.0
        %5299 = vmatpush2.msra.mxu0 0.0
        %5300 = vmatprep.subr.mxu0 0.0
        %5301 = vmatpush2.msra.mxu0 0.0
        %5302 = vmatprep.subr.mxu0 0.0
        %5303 = vmatpush2.msra.mxu0 0.0
        %5304 = vmatprep.subr.mxu0 0.0
        %5305 = vmatpush2.msra.mxu0 0.0
        %5306 = vmatprep.subr.mxu0 0.0
        %5307 = vmatpush2.msra.mxu0 0.0
        %5308 = vmatprep.subr.mxu0 0.0
        %5309 = vmatpush2.msra.mxu0 0.0
        %5310 = vmatprep.subr.mxu0 0.0
        %5311 = vmatpush2.msra.mxu0 0.0
        %5312 = vmatprep.subr.mxu0 0.0
        %5313 = vmatpush2.msra.mxu0 0.0
        %5314 = vmatprep.subr.mxu0 0.0
        %5315 = vmatpush2.msra.mxu0 0.0
        %5316 = vmatprep.subr.mxu0 0.0
        %5317 = vmatpush2.msra.mxu0 0.0
        %5318 = vmatprep.subr.mxu0 0.0
        %5319 = vmatpush2.msra.mxu0 0.0
        %5320 = vmatprep.subr.mxu0 0.0
        %5321 = vmatpush2.msra.mxu0 0.0
        %5322 = vmatprep.subr.mxu0 0.0
        %5323 = vmatpush2.msra.mxu0 0.0
        %5324 = vmatprep.subr.mxu0 0.0
        %5325 = vmatpush2.msra.mxu0 0.0
        %5326 = vmatprep.subr.mxu0 0.0
        %5327 = vmatpush2.msra.mxu0 0.0
        %5328 = vmatprep.mubr.f32.mxu0 0.0
        %5329 = vmatmul.mubr.f32.gmra.mxu0 %v5259
        %v5330 = vpop.f32.mrf.mxu0
        %v5331 = vadd.f32 0.0, %v5330
        %v5332 = vpop.f32.mrf.mxu0
        %5333 = vmatprep.mubr.f32.mxu0 0.0
        %5334 = vmatmul.mubr.f32.gmra.mxu0 %v5262
        %v5335 = vpop.f32.mrf.mxu0
        %v5336 = vadd.f32 0.0, %v5335
        %v5337 = vpop.f32.mrf.mxu0
        %5338 = vdwg.mxu0
        %v5339 = vld [vmem:[%s15] sm:$0x1]
        %v5341 = vlaneseq
        %v5342 = vshrl.u32 %v5341, 7
        %v5343 = vsub.s32 0, %v5342
        %v5344 = vrot.slane %v5339, %v5343
        %v5346 = vld [vmem:[%s14] sm:$0xff]
        %v5347 = vld [vmem:[%s14 + $0x8] sm:$0xff]
        %v5348 = vld [vmem:[%s14 + $0x10] sm:$0xff]
        %v5349 = vld [vmem:[%s14 + $0x18] sm:$0xff]
        %v5351 = vsel %vm1710, %v5331, 0
        %v5354 = vsel %vm1710, %v5336, 0
        %5356 = vmatprep.subr.mxu0 0.0
        %5357 = vmatpush1.msra.mxu0 0.0
        %5358 = vmatprep.subr.mxu0 0.0
        %5359 = vmatpush1.msra.mxu0 0.0
        %5360 = vmatprep.subr.mxu0 0.0
        %5361 = vmatpush1.msra.mxu0 0.0
        %5362 = vmatprep.subr.mxu0 0.0
        %5363 = vmatpush1.msra.mxu0 0.0
        %5364 = vmatprep.subr.mxu0 0.0
        %5365 = vmatpush1.msra.mxu0 0.0
        %5366 = vmatprep.subr.mxu0 0.0
        %5367 = vmatpush1.msra.mxu0 0.0
        %5368 = vmatprep.subr.mxu0 0.0
        %5369 = vmatpush1.msra.mxu0 0.0
        %5370 = vmatprep.subr.mxu0 0.0
        %5371 = vmatpush1.msra.mxu0 0.0
        %5372 = vmatprep.subr.mxu0 0.0
        %5373 = vmatpush1.msra.mxu0 0.0
        %5374 = vmatprep.subr.mxu0 0.0
        %5375 = vmatpush1.msra.mxu0 0.0
        %5376 = vmatprep.subr.mxu0 0.0
        %5377 = vmatpush1.msra.mxu0 0.0
        %5378 = vmatprep.subr.mxu0 0.0
        %5379 = vmatpush1.msra.mxu0 0.0
        %5380 = vmatprep.subr.mxu0 0.0
        %5381 = vmatpush1.msra.mxu0 %v5349
        %5382 = vmatprep.subr.mxu0 0.0
        %5383 = vmatpush1.msra.mxu0 %v5348
        %5384 = vmatprep.subr.mxu0 0.0
        %5385 = vmatpush1.msra.mxu0 %v5347
        %5386 = vmatprep.subr.mxu0 0.0
        %5387 = vmatpush1.msra.mxu0 %v5346
        %5388 = vmatprep.subr.mxu0 0.0
        %5389 = vmatpush2.msra.mxu0 0.0
        %5390 = vmatprep.subr.mxu0 0.0
        %5391 = vmatpush2.msra.mxu0 0.0
        %5392 = vmatprep.subr.mxu0 0.0
        %5393 = vmatpush2.msra.mxu0 0.0
        %5394 = vmatprep.subr.mxu0 0.0
        %5395 = vmatpush2.msra.mxu0 0.0
        %5396 = vmatprep.subr.mxu0 0.0
        %5397 = vmatpush2.msra.mxu0 0.0
        %5398 = vmatprep.subr.mxu0 0.0
        %5399 = vmatpush2.msra.mxu0 0.0
        %5400 = vmatprep.subr.mxu0 0.0
        %5401 = vmatpush2.msra.mxu0 0.0
        %5402 = vmatprep.subr.mxu0 0.0
        %5403 = vmatpush2.msra.mxu0 0.0
        %5404 = vmatprep.subr.mxu0 0.0
        %5405 = vmatpush2.msra.mxu0 0.0
        %5406 = vmatprep.subr.mxu0 0.0
        %5407 = vmatpush2.msra.mxu0 0.0
        %5408 = vmatprep.subr.mxu0 0.0
        %5409 = vmatpush2.msra.mxu0 0.0
        %5410 = vmatprep.subr.mxu0 0.0
        %5411 = vmatpush2.msra.mxu0 0.0
        %5412 = vmatprep.subr.mxu0 0.0
        %5413 = vmatpush2.msra.mxu0 0.0
        %5414 = vmatprep.subr.mxu0 0.0
        %5415 = vmatpush2.msra.mxu0 0.0
        %5416 = vmatprep.subr.mxu0 0.0
        %5417 = vmatpush2.msra.mxu0 0.0
        %5418 = vmatprep.subr.mxu0 0.0
        %5419 = vmatpush2.msra.mxu0 0.0
        %5420 = vmatprep.mubr.f32.mxu0 0.0
        %5421 = vmatmul.mubr.f32.gmra.mxu0 %v5351
        %v5422 = vpop.f32.mrf.mxu0
        %v5423 = vadd.f32 0.0, %v5422
        %v5424 = vpop.f32.mrf.mxu0
        %5425 = vmatprep.mubr.f32.mxu0 0.0
        %5426 = vmatmul.mubr.f32.gmra.mxu0 %v5354
        %v5427 = vpop.f32.mrf.mxu0
        %v5428 = vadd.f32 0.0, %v5427
        %v5429 = vpop.f32.mrf.mxu0
        %5430 = vdwg.mxu0
        %v5431 = vld [vmem:[%s12] sm:$0xff]
        %v5432 = vld [vmem:[%s12 + $0x8] sm:$0xff]
        %v5433 = vld [vmem:[%s12 + $0x10] sm:$0xff]
        %v5434 = vld [vmem:[%s12 + $0x18] sm:$0xff]
        %v5435 = vld [vmem:[%s12 + $0x20] sm:$0xff]
        %v5436 = vld [vmem:[%s12 + $0x28] sm:$0xff]
        %v5437 = vld [vmem:[%s12 + $0x30] sm:$0xff]
        %v5438 = vld [vmem:[%s12 + $0x38] sm:$0xff]
        %v5439 = vld [vmem:[%s12 + $0x40] sm:$0xff]
        %v5440 = vld [vmem:[%s12 + $0x48] sm:$0xff]
        %v5442 = vsel %vm804, %v5431, 0
        %v5445 = vsel %vm804, %v5432, 0
        %v5448 = vsel %vm804, %v5433, 0
        %v5451 = vsel %vm804, %v5434, 0
        %v5454 = vsel %vm804, %v5435, 0
        %v5457 = vsel %vm804, %v5436, 0
        %v5460 = vsel %vm804, %v5437, 0
        %v5463 = vsel %vm804, %v5438, 0
        %v5466 = vsel %vm804, %v5439, 0
        %v5469 = vsel %vm804, %v5440, 0
        %5471 = vmatprep.subr.mxu0 0.0
        %5472 = vmatpush1.msra.mxu0 0.0
        %5473 = vmatprep.subr.mxu0 0.0
        %5474 = vmatpush1.msra.mxu0 0.0
        %5475 = vmatprep.subr.mxu0 0.0
        %5476 = vmatpush1.msra.mxu0 0.0
        %5477 = vmatprep.subr.mxu0 0.0
        %5478 = vmatpush1.msra.mxu0 0.0
        %5479 = vmatprep.subr.mxu0 0.0
        %5480 = vmatpush1.msra.mxu0 0.0
        %5481 = vmatprep.subr.mxu0 0.0
        %5482 = vmatpush1.msra.mxu0 0.0
        %5483 = vmatprep.subr.mxu0 0.0
        %5484 = vmatpush1.msra.mxu0 0.0
        %5485 = vmatprep.subr.mxu0 0.0
        %5486 = vmatpush1.msra.mxu0 0.0
        %5487 = vmatprep.subr.mxu0 0.0
        %5488 = vmatpush1.msra.mxu0 0.0
        %5489 = vmatprep.subr.mxu0 0.0
        %5490 = vmatpush1.msra.mxu0 0.0
        %5491 = vmatprep.subr.mxu0 0.0
        %5492 = vmatpush1.msra.mxu0 0.0
        %5493 = vmatprep.subr.mxu0 0.0
        %5494 = vmatpush1.msra.mxu0 0.0
        %5495 = vmatprep.subr.mxu0 0.0
        %5496 = vmatpush1.msra.mxu0 0.0
        %5497 = vmatprep.subr.mxu0 0.0
        %5498 = vmatpush1.msra.mxu0 0.0
        %5499 = vmatprep.subr.mxu0 0.0
        %5500 = vmatpush1.msra.mxu0 %v5428
        %5501 = vmatprep.subr.mxu0 0.0
        %5502 = vmatpush1.msra.mxu0 %v5423
        %5503 = vmatprep.subr.mxu0 0.0
        %5504 = vmatpush2.msra.mxu0 0.0
        %5505 = vmatprep.subr.mxu0 0.0
        %5506 = vmatpush2.msra.mxu0 0.0
        %5507 = vmatprep.subr.mxu0 0.0
        %5508 = vmatpush2.msra.mxu0 0.0
        %5509 = vmatprep.subr.mxu0 0.0
        %5510 = vmatpush2.msra.mxu0 0.0
        %5511 = vmatprep.subr.mxu0 0.0
        %5512 = vmatpush2.msra.mxu0 0.0
        %5513 = vmatprep.subr.mxu0 0.0
        %5514 = vmatpush2.msra.mxu0 0.0
        %5515 = vmatprep.subr.mxu0 0.0
        %5516 = vmatpush2.msra.mxu0 0.0
        %5517 = vmatprep.subr.mxu0 0.0
        %5518 = vmatpush2.msra.mxu0 0.0
        %5519 = vmatprep.subr.mxu0 0.0
        %5520 = vmatpush2.msra.mxu0 0.0
        %5521 = vmatprep.subr.mxu0 0.0
        %5522 = vmatpush2.msra.mxu0 0.0
        %5523 = vmatprep.subr.mxu0 0.0
        %5524 = vmatpush2.msra.mxu0 0.0
        %5525 = vmatprep.subr.mxu0 0.0
        %5526 = vmatpush2.msra.mxu0 0.0
        %5527 = vmatprep.subr.mxu0 0.0
        %5528 = vmatpush2.msra.mxu0 0.0
        %5529 = vmatprep.subr.mxu0 0.0
        %5530 = vmatpush2.msra.mxu0 0.0
        %5531 = vmatprep.subr.mxu0 0.0
        %5532 = vmatpush2.msra.mxu0 0.0
        %5533 = vmatprep.subr.mxu0 0.0
        %5534 = vmatpush2.msra.mxu0 0.0
        %5535 = vmatprep.mubr.f32.mxu0 0.0
        %5536 = vmatmul.mubr.f32.gmra.mxu0 %v5442
        %v5537 = vpop.f32.mrf.mxu0
        %v5538 = vadd.f32 0.0, %v5537
        %v5539 = vpop.f32.mrf.mxu0
        %5540 = vmatprep.mubr.f32.mxu0 0.0
        %5541 = vmatmul.mubr.f32.gmra.mxu0 %v5445
        %v5542 = vpop.f32.mrf.mxu0
        %v5543 = vadd.f32 0.0, %v5542
        %v5544 = vpop.f32.mrf.mxu0
        %5545 = vmatprep.mubr.f32.mxu0 0.0
        %5546 = vmatmul.mubr.f32.gmra.mxu0 %v5448
        %v5547 = vpop.f32.mrf.mxu0
        %v5548 = vadd.f32 0.0, %v5547
        %v5549 = vpop.f32.mrf.mxu0
        %5550 = vmatprep.mubr.f32.mxu0 0.0
        %5551 = vmatmul.mubr.f32.gmra.mxu0 %v5451
        %v5552 = vpop.f32.mrf.mxu0
        %v5553 = vadd.f32 0.0, %v5552
        %v5554 = vpop.f32.mrf.mxu0
        %5555 = vmatprep.mubr.f32.mxu0 0.0
        %5556 = vmatmul.mubr.f32.gmra.mxu0 %v5454
        %v5557 = vpop.f32.mrf.mxu0
        %v5558 = vadd.f32 0.0, %v5557
        %v5559 = vpop.f32.mrf.mxu0
        %5560 = vmatprep.mubr.f32.mxu0 0.0
        %5561 = vmatmul.mubr.f32.gmra.mxu0 %v5457
        %v5562 = vpop.f32.mrf.mxu0
        %v5563 = vadd.f32 0.0, %v5562
        %v5564 = vpop.f32.mrf.mxu0
        %5565 = vmatprep.mubr.f32.mxu0 0.0
        %5566 = vmatmul.mubr.f32.gmra.mxu0 %v5460
        %v5567 = vpop.f32.mrf.mxu0
        %v5568 = vadd.f32 0.0, %v5567
        %v5569 = vpop.f32.mrf.mxu0
        %5570 = vmatprep.mubr.f32.mxu0 0.0
        %5571 = vmatmul.mubr.f32.gmra.mxu0 %v5463
        %v5572 = vpop.f32.mrf.mxu0
        %v5573 = vadd.f32 0.0, %v5572
        %v5574 = vpop.f32.mrf.mxu0
        %5575 = vmatprep.mubr.f32.mxu0 0.0
        %5576 = vmatmul.mubr.f32.gmra.mxu0 %v5466
        %v5577 = vpop.f32.mrf.mxu0
        %v5578 = vadd.f32 0.0, %v5577
        %v5579 = vpop.f32.mrf.mxu0
        %5580 = vmatprep.mubr.f32.mxu0 0.0
        %5581 = vmatmul.mubr.f32.gmra.mxu0 %v5469
        %v5582 = vpop.f32.mrf.mxu0
        %v5583 = vadd.f32 0.0, %v5582
        %v5584 = vpop.f32.mrf.mxu0
        %5585 = vdwg.mxu0
        %v5586 = vadd.f32 %v5344, %v5538
        %v5587 = vadd.f32 %v5344, %v5543
        %v5588 = vadd.f32 %v5344, %v5548
        %v5589 = vadd.f32 %v5344, %v5553
        %v5590 = vadd.f32 %v5344, %v5558
        %v5591 = vadd.f32 %v5344, %v5563
        %v5592 = vadd.f32 %v5344, %v5568
        %v5593 = vadd.f32 %v5344, %v5573
        %v5594 = vadd.f32 %v5344, %v5578
        %v5595 = vadd.f32 %v5344, %v5583
        %s5596 = scalar_lea.vmem %s14, 32
        %v5597 = vld [vmem:[%s5596] sm:$0xff]
        %v5598 = vld [vmem:[%s5596 + $0x8] sm:$0xff]
        %v5599 = vld [vmem:[%s5596 + $0x10] sm:$0xff]
        %v5600 = vld [vmem:[%s5596 + $0x18] sm:$0xff]
        %5601 = vmatprep.subr.mxu0 0.0
        %5602 = vmatpush1.msra.mxu0 0.0
        %5603 = vmatprep.subr.mxu0 0.0
        %5604 = vmatpush1.msra.mxu0 0.0
        %5605 = vmatprep.subr.mxu0 0.0
        %5606 = vmatpush1.msra.mxu0 0.0
        %5607 = vmatprep.subr.mxu0 0.0
        %5608 = vmatpush1.msra.mxu0 0.0
        %5609 = vmatprep.subr.mxu0 0.0
        %5610 = vmatpush1.msra.mxu0 0.0
        %5611 = vmatprep.subr.mxu0 0.0
        %5612 = vmatpush1.msra.mxu0 0.0
        %5613 = vmatprep.subr.mxu0 0.0
        %5614 = vmatpush1.msra.mxu0 0.0
        %5615 = vmatprep.subr.mxu0 0.0
        %5616 = vmatpush1.msra.mxu0 0.0
        %5617 = vmatprep.subr.mxu0 0.0
        %5618 = vmatpush1.msra.mxu0 0.0
        %5619 = vmatprep.subr.mxu0 0.0
        %5620 = vmatpush1.msra.mxu0 0.0
        %5621 = vmatprep.subr.mxu0 0.0
        %5622 = vmatpush1.msra.mxu0 0.0
        %5623 = vmatprep.subr.mxu0 0.0
        %5624 = vmatpush1.msra.mxu0 0.0
        %5625 = vmatprep.subr.mxu0 0.0
        %5626 = vmatpush1.msra.mxu0 %v5600
        %5627 = vmatprep.subr.mxu0 0.0
        %5628 = vmatpush1.msra.mxu0 %v5599
        %5629 = vmatprep.subr.mxu0 0.0
        %5630 = vmatpush1.msra.mxu0 %v5598
        %5631 = vmatprep.subr.mxu0 0.0
        %5632 = vmatpush1.msra.mxu0 %v5597
        %5633 = vmatprep.subr.mxu0 0.0
        %5634 = vmatpush2.msra.mxu0 0.0
        %5635 = vmatprep.subr.mxu0 0.0
        %5636 = vmatpush2.msra.mxu0 0.0
        %5637 = vmatprep.subr.mxu0 0.0
        %5638 = vmatpush2.msra.mxu0 0.0
        %5639 = vmatprep.subr.mxu0 0.0
        %5640 = vmatpush2.msra.mxu0 0.0
        %5641 = vmatprep.subr.mxu0 0.0
        %5642 = vmatpush2.msra.mxu0 0.0
        %5643 = vmatprep.subr.mxu0 0.0
        %5644 = vmatpush2.msra.mxu0 0.0
        %5645 = vmatprep.subr.mxu0 0.0
        %5646 = vmatpush2.msra.mxu0 0.0
        %5647 = vmatprep.subr.mxu0 0.0
        %5648 = vmatpush2.msra.mxu0 0.0
        %5649 = vmatprep.subr.mxu0 0.0
        %5650 = vmatpush2.msra.mxu0 0.0
        %5651 = vmatprep.subr.mxu0 0.0
        %5652 = vmatpush2.msra.mxu0 0.0
        %5653 = vmatprep.subr.mxu0 0.0
        %5654 = vmatpush2.msra.mxu0 0.0
        %5655 = vmatprep.subr.mxu0 0.0
        %5656 = vmatpush2.msra.mxu0 0.0
        %5657 = vmatprep.subr.mxu0 0.0
        %5658 = vmatpush2.msra.mxu0 0.0
        %5659 = vmatprep.subr.mxu0 0.0
        %5660 = vmatpush2.msra.mxu0 0.0
        %5661 = vmatprep.subr.mxu0 0.0
        %5662 = vmatpush2.msra.mxu0 0.0
        %5663 = vmatprep.subr.mxu0 0.0
        %5664 = vmatpush2.msra.mxu0 0.0
        %5665 = vmatprep.mubr.f32.mxu0 0.0
        %5666 = vmatmul.mubr.f32.gmra.mxu0 %v5351
        %v5667 = vpop.f32.mrf.mxu0
        %v5668 = vadd.f32 0.0, %v5667
        %v5669 = vpop.f32.mrf.mxu0
        %5670 = vmatprep.mubr.f32.mxu0 0.0
        %5671 = vmatmul.mubr.f32.gmra.mxu0 %v5354
        %v5672 = vpop.f32.mrf.mxu0
        %v5673 = vadd.f32 0.0, %v5672
        %v5674 = vpop.f32.mrf.mxu0
        %5675 = vdwg.mxu0
        %s5676 = scalar_lea.vmem %s12, 80
        %v5677 = vld [vmem:[%s5676] sm:$0xff]
        %v5678 = vld [vmem:[%s5676 + $0x8] sm:$0xff]
        %v5679 = vld [vmem:[%s5676 + $0x10] sm:$0xff]
        %v5680 = vld [vmem:[%s5676 + $0x18] sm:$0xff]
        %v5681 = vld [vmem:[%s5676 + $0x20] sm:$0xff]
        %v5682 = vld [vmem:[%s5676 + $0x28] sm:$0xff]
        %v5683 = vld [vmem:[%s5676 + $0x30] sm:$0xff]
        %v5684 = vld [vmem:[%s5676 + $0x38] sm:$0xff]
        %v5685 = vld [vmem:[%s5676 + $0x40] sm:$0xff]
        %v5686 = vld [vmem:[%s5676 + $0x48] sm:$0xff]
        %v5688 = vsel %vm804, %v5677, 0
        %v5691 = vsel %vm804, %v5678, 0
        %v5694 = vsel %vm804, %v5679, 0
        %v5697 = vsel %vm804, %v5680, 0
        %v5700 = vsel %vm804, %v5681, 0
        %v5703 = vsel %vm804, %v5682, 0
        %v5706 = vsel %vm804, %v5683, 0
        %v5709 = vsel %vm804, %v5684, 0
        %v5712 = vsel %vm804, %v5685, 0
        %v5715 = vsel %vm804, %v5686, 0
        %5717 = vmatprep.subr.mxu0 0.0
        %5718 = vmatpush1.msra.mxu0 0.0
        %5719 = vmatprep.subr.mxu0 0.0
        %5720 = vmatpush1.msra.mxu0 0.0
        %5721 = vmatprep.subr.mxu0 0.0
        %5722 = vmatpush1.msra.mxu0 0.0
        %5723 = vmatprep.subr.mxu0 0.0
        %5724 = vmatpush1.msra.mxu0 0.0
        %5725 = vmatprep.subr.mxu0 0.0
        %5726 = vmatpush1.msra.mxu0 0.0
        %5727 = vmatprep.subr.mxu0 0.0
        %5728 = vmatpush1.msra.mxu0 0.0
        %5729 = vmatprep.subr.mxu0 0.0
        %5730 = vmatpush1.msra.mxu0 0.0
        %5731 = vmatprep.subr.mxu0 0.0
        %5732 = vmatpush1.msra.mxu0 0.0
        %5733 = vmatprep.subr.mxu0 0.0
        %5734 = vmatpush1.msra.mxu0 0.0
        %5735 = vmatprep.subr.mxu0 0.0
        %5736 = vmatpush1.msra.mxu0 0.0
        %5737 = vmatprep.subr.mxu0 0.0
        %5738 = vmatpush1.msra.mxu0 0.0
        %5739 = vmatprep.subr.mxu0 0.0
        %5740 = vmatpush1.msra.mxu0 0.0
        %5741 = vmatprep.subr.mxu0 0.0
        %5742 = vmatpush1.msra.mxu0 0.0
        %5743 = vmatprep.subr.mxu0 0.0
        %5744 = vmatpush1.msra.mxu0 0.0
        %5745 = vmatprep.subr.mxu0 0.0
        %5746 = vmatpush1.msra.mxu0 %v5673
        %5747 = vmatprep.subr.mxu0 0.0
        %5748 = vmatpush1.msra.mxu0 %v5668
        %5749 = vmatprep.subr.mxu0 0.0
        %5750 = vmatpush2.msra.mxu0 0.0
        %5751 = vmatprep.subr.mxu0 0.0
        %5752 = vmatpush2.msra.mxu0 0.0
        %5753 = vmatprep.subr.mxu0 0.0
        %5754 = vmatpush2.msra.mxu0 0.0
        %5755 = vmatprep.subr.mxu0 0.0
        %5756 = vmatpush2.msra.mxu0 0.0
        %5757 = vmatprep.subr.mxu0 0.0
        %5758 = vmatpush2.msra.mxu0 0.0
        %5759 = vmatprep.subr.mxu0 0.0
        %5760 = vmatpush2.msra.mxu0 0.0
        %5761 = vmatprep.subr.mxu0 0.0
        %5762 = vmatpush2.msra.mxu0 0.0
        %5763 = vmatprep.subr.mxu0 0.0
        %5764 = vmatpush2.msra.mxu0 0.0
        %5765 = vmatprep.subr.mxu0 0.0
        %5766 = vmatpush2.msra.mxu0 0.0
        %5767 = vmatprep.subr.mxu0 0.0
        %5768 = vmatpush2.msra.mxu0 0.0
        %5769 = vmatprep.subr.mxu0 0.0
        %5770 = vmatpush2.msra.mxu0 0.0
        %5771 = vmatprep.subr.mxu0 0.0
        %5772 = vmatpush2.msra.mxu0 0.0
        %5773 = vmatprep.subr.mxu0 0.0
        %5774 = vmatpush2.msra.mxu0 0.0
        %5775 = vmatprep.subr.mxu0 0.0
        %5776 = vmatpush2.msra.mxu0 0.0
        %5777 = vmatprep.subr.mxu0 0.0
        %5778 = vmatpush2.msra.mxu0 0.0
        %5779 = vmatprep.subr.mxu0 0.0
        %5780 = vmatpush2.msra.mxu0 0.0
        %5781 = vmatprep.mubr.f32.mxu0 0.0
        %5782 = vmatmul.mubr.f32.gmra.mxu0 %v5688
        %v5783 = vpop.f32.mrf.mxu0
        %v5784 = vadd.f32 0.0, %v5783
        %v5785 = vpop.f32.mrf.mxu0
        %5786 = vmatprep.mubr.f32.mxu0 0.0
        %5787 = vmatmul.mubr.f32.gmra.mxu0 %v5691
        %v5788 = vpop.f32.mrf.mxu0
        %v5789 = vadd.f32 0.0, %v5788
        %v5790 = vpop.f32.mrf.mxu0
        %5791 = vmatprep.mubr.f32.mxu0 0.0
        %5792 = vmatmul.mubr.f32.gmra.mxu0 %v5694
        %v5793 = vpop.f32.mrf.mxu0
        %v5794 = vadd.f32 0.0, %v5793
        %v5795 = vpop.f32.mrf.mxu0
        %5796 = vmatprep.mubr.f32.mxu0 0.0
        %5797 = vmatmul.mubr.f32.gmra.mxu0 %v5697
        %v5798 = vpop.f32.mrf.mxu0
        %v5799 = vadd.f32 0.0, %v5798
        %v5800 = vpop.f32.mrf.mxu0
        %5801 = vmatprep.mubr.f32.mxu0 0.0
        %5802 = vmatmul.mubr.f32.gmra.mxu0 %v5700
        %v5803 = vpop.f32.mrf.mxu0
        %v5804 = vadd.f32 0.0, %v5803
        %v5805 = vpop.f32.mrf.mxu0
        %5806 = vmatprep.mubr.f32.mxu0 0.0
        %5807 = vmatmul.mubr.f32.gmra.mxu0 %v5703
        %v5808 = vpop.f32.mrf.mxu0
        %v5809 = vadd.f32 0.0, %v5808
        %v5810 = vpop.f32.mrf.mxu0
        %5811 = vmatprep.mubr.f32.mxu0 0.0
        %5812 = vmatmul.mubr.f32.gmra.mxu0 %v5706
        %v5813 = vpop.f32.mrf.mxu0
        %v5814 = vadd.f32 0.0, %v5813
        %v5815 = vpop.f32.mrf.mxu0
        %5816 = vmatprep.mubr.f32.mxu0 0.0
        %5817 = vmatmul.mubr.f32.gmra.mxu0 %v5709
        %v5818 = vpop.f32.mrf.mxu0
        %v5819 = vadd.f32 0.0, %v5818
        %v5820 = vpop.f32.mrf.mxu0
        %5821 = vmatprep.mubr.f32.mxu0 0.0
        %5822 = vmatmul.mubr.f32.gmra.mxu0 %v5712
        %v5823 = vpop.f32.mrf.mxu0
        %v5824 = vadd.f32 0.0, %v5823
        %v5825 = vpop.f32.mrf.mxu0
        %5826 = vmatprep.mubr.f32.mxu0 0.0
        %5827 = vmatmul.mubr.f32.gmra.mxu0 %v5715
        %v5828 = vpop.f32.mrf.mxu0
        %v5829 = vadd.f32 0.0, %v5828
        %v5830 = vpop.f32.mrf.mxu0
        %5831 = vdwg.mxu0
        %v5832 = vadd.f32 %v5586, %v5784
        %v5833 = vadd.f32 %v5587, %v5789
        %v5834 = vadd.f32 %v5588, %v5794
        %v5835 = vadd.f32 %v5589, %v5799
        %v5836 = vadd.f32 %v5590, %v5804
        %v5837 = vadd.f32 %v5591, %v5809
        %v5838 = vadd.f32 %v5592, %v5814
        %v5839 = vadd.f32 %v5593, %v5819
        %v5840 = vadd.f32 %v5594, %v5824
        %v5841 = vadd.f32 %v5595, %v5829
        %s5842 = scalar_lea.vmem %s14, 64
        %v5843 = vld [vmem:[%s5842] sm:$0xff]
        %v5844 = vld [vmem:[%s5842 + $0x8] sm:$0xff]
        %v5845 = vld [vmem:[%s5842 + $0x10] sm:$0xff]
        %v5846 = vld [vmem:[%s5842 + $0x18] sm:$0xff]
        %5847 = vmatprep.subr.mxu0 0.0
        %5848 = vmatpush1.msra.mxu0 0.0
        %5849 = vmatprep.subr.mxu0 0.0
        %5850 = vmatpush1.msra.mxu0 0.0
        %5851 = vmatprep.subr.mxu0 0.0
        %5852 = vmatpush1.msra.mxu0 0.0
        %5853 = vmatprep.subr.mxu0 0.0
        %5854 = vmatpush1.msra.mxu0 0.0
        %5855 = vmatprep.subr.mxu0 0.0
        %5856 = vmatpush1.msra.mxu0 0.0
        %5857 = vmatprep.subr.mxu0 0.0
        %5858 = vmatpush1.msra.mxu0 0.0
        %5859 = vmatprep.subr.mxu0 0.0
        %5860 = vmatpush1.msra.mxu0 0.0
        %5861 = vmatprep.subr.mxu0 0.0
        %5862 = vmatpush1.msra.mxu0 0.0
        %5863 = vmatprep.subr.mxu0 0.0
        %5864 = vmatpush1.msra.mxu0 0.0
        %5865 = vmatprep.subr.mxu0 0.0
        %5866 = vmatpush1.msra.mxu0 0.0
        %5867 = vmatprep.subr.mxu0 0.0
        %5868 = vmatpush1.msra.mxu0 0.0
        %5869 = vmatprep.subr.mxu0 0.0
        %5870 = vmatpush1.msra.mxu0 0.0
        %5871 = vmatprep.subr.mxu0 0.0
        %5872 = vmatpush1.msra.mxu0 %v5846
        %5873 = vmatprep.subr.mxu0 0.0
        %5874 = vmatpush1.msra.mxu0 %v5845
        %5875 = vmatprep.subr.mxu0 0.0
        %5876 = vmatpush1.msra.mxu0 %v5844
        %5877 = vmatprep.subr.mxu0 0.0
        %5878 = vmatpush1.msra.mxu0 %v5843
        %5879 = vmatprep.subr.mxu0 0.0
        %5880 = vmatpush2.msra.mxu0 0.0
        %5881 = vmatprep.subr.mxu0 0.0
        %5882 = vmatpush2.msra.mxu0 0.0
        %5883 = vmatprep.subr.mxu0 0.0
        %5884 = vmatpush2.msra.mxu0 0.0
        %5885 = vmatprep.subr.mxu0 0.0
        %5886 = vmatpush2.msra.mxu0 0.0
        %5887 = vmatprep.subr.mxu0 0.0
        %5888 = vmatpush2.msra.mxu0 0.0
        %5889 = vmatprep.subr.mxu0 0.0
        %5890 = vmatpush2.msra.mxu0 0.0
        %5891 = vmatprep.subr.mxu0 0.0
        %5892 = vmatpush2.msra.mxu0 0.0
        %5893 = vmatprep.subr.mxu0 0.0
        %5894 = vmatpush2.msra.mxu0 0.0
        %5895 = vmatprep.subr.mxu0 0.0
        %5896 = vmatpush2.msra.mxu0 0.0
        %5897 = vmatprep.subr.mxu0 0.0
        %5898 = vmatpush2.msra.mxu0 0.0
        %5899 = vmatprep.subr.mxu0 0.0
        %5900 = vmatpush2.msra.mxu0 0.0
        %5901 = vmatprep.subr.mxu0 0.0
        %5902 = vmatpush2.msra.mxu0 0.0
        %5903 = vmatprep.subr.mxu0 0.0
        %5904 = vmatpush2.msra.mxu0 0.0
        %5905 = vmatprep.subr.mxu0 0.0
        %5906 = vmatpush2.msra.mxu0 0.0
        %5907 = vmatprep.subr.mxu0 0.0
        %5908 = vmatpush2.msra.mxu0 0.0
        %5909 = vmatprep.subr.mxu0 0.0
        %5910 = vmatpush2.msra.mxu0 0.0
        %5911 = vmatprep.mubr.f32.mxu0 0.0
        %5912 = vmatmul.mubr.f32.gmra.mxu0 %v5351
        %v5913 = vpop.f32.mrf.mxu0
        %v5914 = vadd.f32 0.0, %v5913
        %v5915 = vpop.f32.mrf.mxu0
        %5916 = vmatprep.mubr.f32.mxu0 0.0
        %5917 = vmatmul.mubr.f32.gmra.mxu0 %v5354
        %v5918 = vpop.f32.mrf.mxu0
        %v5919 = vadd.f32 0.0, %v5918
        %v5920 = vpop.f32.mrf.mxu0
        %5921 = vdwg.mxu0
        %s5922 = scalar_lea.vmem %s12, 160
        %v5923 = vld [vmem:[%s5922] sm:$0xff]
        %v5924 = vld [vmem:[%s5922 + $0x8] sm:$0xff]
        %v5925 = vld [vmem:[%s5922 + $0x10] sm:$0xff]
        %v5926 = vld [vmem:[%s5922 + $0x18] sm:$0xff]
        %v5927 = vld [vmem:[%s5922 + $0x20] sm:$0xff]
        %v5928 = vld [vmem:[%s5922 + $0x28] sm:$0xff]
        %v5929 = vld [vmem:[%s5922 + $0x30] sm:$0xff]
        %v5930 = vld [vmem:[%s5922 + $0x38] sm:$0xff]
        %v5931 = vld [vmem:[%s5922 + $0x40] sm:$0xff]
        %v5932 = vld [vmem:[%s5922 + $0x48] sm:$0xff]
        %v5934 = vsel %vm804, %v5923, 0
        %v5937 = vsel %vm804, %v5924, 0
        %v5940 = vsel %vm804, %v5925, 0
        %v5943 = vsel %vm804, %v5926, 0
        %v5946 = vsel %vm804, %v5927, 0
        %v5949 = vsel %vm804, %v5928, 0
        %v5952 = vsel %vm804, %v5929, 0
        %v5955 = vsel %vm804, %v5930, 0
        %v5958 = vsel %vm804, %v5931, 0
        %v5961 = vsel %vm804, %v5932, 0
        %5963 = vmatprep.subr.mxu0 0.0
        %5964 = vmatpush1.msra.mxu0 0.0
        %5965 = vmatprep.subr.mxu0 0.0
        %5966 = vmatpush1.msra.mxu0 0.0
        %5967 = vmatprep.subr.mxu0 0.0
        %5968 = vmatpush1.msra.mxu0 0.0
        %5969 = vmatprep.subr.mxu0 0.0
        %5970 = vmatpush1.msra.mxu0 0.0
        %5971 = vmatprep.subr.mxu0 0.0
        %5972 = vmatpush1.msra.mxu0 0.0
        %5973 = vmatprep.subr.mxu0 0.0
        %5974 = vmatpush1.msra.mxu0 0.0
        %5975 = vmatprep.subr.mxu0 0.0
        %5976 = vmatpush1.msra.mxu0 0.0
        %5977 = vmatprep.subr.mxu0 0.0
        %5978 = vmatpush1.msra.mxu0 0.0
        %5979 = vmatprep.subr.mxu0 0.0
        %5980 = vmatpush1.msra.mxu0 0.0
        %5981 = vmatprep.subr.mxu0 0.0
        %5982 = vmatpush1.msra.mxu0 0.0
        %5983 = vmatprep.subr.mxu0 0.0
        %5984 = vmatpush1.msra.mxu0 0.0
        %5985 = vmatprep.subr.mxu0 0.0
        %5986 = vmatpush1.msra.mxu0 0.0
        %5987 = vmatprep.subr.mxu0 0.0
        %5988 = vmatpush1.msra.mxu0 0.0
        %5989 = vmatprep.subr.mxu0 0.0
        %5990 = vmatpush1.msra.mxu0 0.0
        %5991 = vmatprep.subr.mxu0 0.0
        %5992 = vmatpush1.msra.mxu0 %v5919
        %5993 = vmatprep.subr.mxu0 0.0
        %5994 = vmatpush1.msra.mxu0 %v5914
        %5995 = vmatprep.subr.mxu0 0.0
        %5996 = vmatpush2.msra.mxu0 0.0
        %5997 = vmatprep.subr.mxu0 0.0
        %5998 = vmatpush2.msra.mxu0 0.0
        %5999 = vmatprep.subr.mxu0 0.0
        %6000 = vmatpush2.msra.mxu0 0.0
        %6001 = vmatprep.subr.mxu0 0.0
        %6002 = vmatpush2.msra.mxu0 0.0
        %6003 = vmatprep.subr.mxu0 0.0
        %6004 = vmatpush2.msra.mxu0 0.0
        %6005 = vmatprep.subr.mxu0 0.0
        %6006 = vmatpush2.msra.mxu0 0.0
        %6007 = vmatprep.subr.mxu0 0.0
        %6008 = vmatpush2.msra.mxu0 0.0
        %6009 = vmatprep.subr.mxu0 0.0
        %6010 = vmatpush2.msra.mxu0 0.0
        %6011 = vmatprep.subr.mxu0 0.0
        %6012 = vmatpush2.msra.mxu0 0.0
        %6013 = vmatprep.subr.mxu0 0.0
        %6014 = vmatpush2.msra.mxu0 0.0
        %6015 = vmatprep.subr.mxu0 0.0
        %6016 = vmatpush2.msra.mxu0 0.0
        %6017 = vmatprep.subr.mxu0 0.0
        %6018 = vmatpush2.msra.mxu0 0.0
        %6019 = vmatprep.subr.mxu0 0.0
        %6020 = vmatpush2.msra.mxu0 0.0
        %6021 = vmatprep.subr.mxu0 0.0
        %6022 = vmatpush2.msra.mxu0 0.0
        %6023 = vmatprep.subr.mxu0 0.0
        %6024 = vmatpush2.msra.mxu0 0.0
        %6025 = vmatprep.subr.mxu0 0.0
        %6026 = vmatpush2.msra.mxu0 0.0
        %6027 = vmatprep.mubr.f32.mxu0 0.0
        %6028 = vmatmul.mubr.f32.gmra.mxu0 %v5934
        %v6029 = vpop.f32.mrf.mxu0
        %v6030 = vadd.f32 0.0, %v6029
        %v6031 = vpop.f32.mrf.mxu0
        %6032 = vmatprep.mubr.f32.mxu0 0.0
        %6033 = vmatmul.mubr.f32.gmra.mxu0 %v5937
        %v6034 = vpop.f32.mrf.mxu0
        %v6035 = vadd.f32 0.0, %v6034
        %v6036 = vpop.f32.mrf.mxu0
        %6037 = vmatprep.mubr.f32.mxu0 0.0
        %6038 = vmatmul.mubr.f32.gmra.mxu0 %v5940
        %v6039 = vpop.f32.mrf.mxu0
        %v6040 = vadd.f32 0.0, %v6039
        %v6041 = vpop.f32.mrf.mxu0
        %6042 = vmatprep.mubr.f32.mxu0 0.0
        %6043 = vmatmul.mubr.f32.gmra.mxu0 %v5943
        %v6044 = vpop.f32.mrf.mxu0
        %v6045 = vadd.f32 0.0, %v6044
        %v6046 = vpop.f32.mrf.mxu0
        %6047 = vmatprep.mubr.f32.mxu0 0.0
        %6048 = vmatmul.mubr.f32.gmra.mxu0 %v5946
        %v6049 = vpop.f32.mrf.mxu0
        %v6050 = vadd.f32 0.0, %v6049
        %v6051 = vpop.f32.mrf.mxu0
        %6052 = vmatprep.mubr.f32.mxu0 0.0
        %6053 = vmatmul.mubr.f32.gmra.mxu0 %v5949
        %v6054 = vpop.f32.mrf.mxu0
        %v6055 = vadd.f32 0.0, %v6054
        %v6056 = vpop.f32.mrf.mxu0
        %6057 = vmatprep.mubr.f32.mxu0 0.0
        %6058 = vmatmul.mubr.f32.gmra.mxu0 %v5952
        %v6059 = vpop.f32.mrf.mxu0
        %v6060 = vadd.f32 0.0, %v6059
        %v6061 = vpop.f32.mrf.mxu0
        %6062 = vmatprep.mubr.f32.mxu0 0.0
        %6063 = vmatmul.mubr.f32.gmra.mxu0 %v5955
        %v6064 = vpop.f32.mrf.mxu0
        %v6065 = vadd.f32 0.0, %v6064
        %v6066 = vpop.f32.mrf.mxu0
        %6067 = vmatprep.mubr.f32.mxu0 0.0
        %6068 = vmatmul.mubr.f32.gmra.mxu0 %v5958
        %v6069 = vpop.f32.mrf.mxu0
        %v6070 = vadd.f32 0.0, %v6069
        %v6071 = vpop.f32.mrf.mxu0
        %6072 = vmatprep.mubr.f32.mxu0 0.0
        %6073 = vmatmul.mubr.f32.gmra.mxu0 %v5961
        %v6074 = vpop.f32.mrf.mxu0
        %v6075 = vadd.f32 0.0, %v6074
        %v6076 = vpop.f32.mrf.mxu0
        %6077 = vdwg.mxu0
        %v6078 = vadd.f32 %v5832, %v6030
        %v6079 = vadd.f32 %v5833, %v6035
        %v6080 = vadd.f32 %v5834, %v6040
        %v6081 = vadd.f32 %v5835, %v6045
        %v6082 = vadd.f32 %v5836, %v6050
        %v6083 = vadd.f32 %v5837, %v6055
        %v6084 = vadd.f32 %v5838, %v6060
        %v6085 = vadd.f32 %v5839, %v6065
        %v6086 = vadd.f32 %v5840, %v6070
        %v6087 = vadd.f32 %v5841, %v6075
        %s6088 = scalar_lea.vmem %s14, 96
        %v6089 = vld [vmem:[%s6088] sm:$0xff]
        %v6090 = vld [vmem:[%s6088 + $0x8] sm:$0xff]
        %v6091 = vld [vmem:[%s6088 + $0x10] sm:$0xff]
        %v6092 = vld [vmem:[%s6088 + $0x18] sm:$0xff]
        %6093 = vmatprep.subr.mxu0 0.0
        %6094 = vmatpush1.msra.mxu0 0.0
        %6095 = vmatprep.subr.mxu0 0.0
        %6096 = vmatpush1.msra.mxu0 0.0
        %6097 = vmatprep.subr.mxu0 0.0
        %6098 = vmatpush1.msra.mxu0 0.0
        %6099 = vmatprep.subr.mxu0 0.0
        %6100 = vmatpush1.msra.mxu0 0.0
        %6101 = vmatprep.subr.mxu0 0.0
        %6102 = vmatpush1.msra.mxu0 0.0
        %6103 = vmatprep.subr.mxu0 0.0
        %6104 = vmatpush1.msra.mxu0 0.0
        %6105 = vmatprep.subr.mxu0 0.0
        %6106 = vmatpush1.msra.mxu0 0.0
        %6107 = vmatprep.subr.mxu0 0.0
        %6108 = vmatpush1.msra.mxu0 0.0
        %6109 = vmatprep.subr.mxu0 0.0
        %6110 = vmatpush1.msra.mxu0 0.0
        %6111 = vmatprep.subr.mxu0 0.0
        %6112 = vmatpush1.msra.mxu0 0.0
        %6113 = vmatprep.subr.mxu0 0.0
        %6114 = vmatpush1.msra.mxu0 0.0
        %6115 = vmatprep.subr.mxu0 0.0
        %6116 = vmatpush1.msra.mxu0 0.0
        %6117 = vmatprep.subr.mxu0 0.0
        %6118 = vmatpush1.msra.mxu0 %v6092
        %6119 = vmatprep.subr.mxu0 0.0
        %6120 = vmatpush1.msra.mxu0 %v6091
        %6121 = vmatprep.subr.mxu0 0.0
        %6122 = vmatpush1.msra.mxu0 %v6090
        %6123 = vmatprep.subr.mxu0 0.0
        %6124 = vmatpush1.msra.mxu0 %v6089
        %6125 = vmatprep.subr.mxu0 0.0
        %6126 = vmatpush2.msra.mxu0 0.0
        %6127 = vmatprep.subr.mxu0 0.0
        %6128 = vmatpush2.msra.mxu0 0.0
        %6129 = vmatprep.subr.mxu0 0.0
        %6130 = vmatpush2.msra.mxu0 0.0
        %6131 = vmatprep.subr.mxu0 0.0
        %6132 = vmatpush2.msra.mxu0 0.0
        %6133 = vmatprep.subr.mxu0 0.0
        %6134 = vmatpush2.msra.mxu0 0.0
        %6135 = vmatprep.subr.mxu0 0.0
        %6136 = vmatpush2.msra.mxu0 0.0
        %6137 = vmatprep.subr.mxu0 0.0
        %6138 = vmatpush2.msra.mxu0 0.0
        %6139 = vmatprep.subr.mxu0 0.0
        %6140 = vmatpush2.msra.mxu0 0.0
        %6141 = vmatprep.subr.mxu0 0.0
        %6142 = vmatpush2.msra.mxu0 0.0
        %6143 = vmatprep.subr.mxu0 0.0
        %6144 = vmatpush2.msra.mxu0 0.0
        %6145 = vmatprep.subr.mxu0 0.0
        %6146 = vmatpush2.msra.mxu0 0.0
        %6147 = vmatprep.subr.mxu0 0.0
        %6148 = vmatpush2.msra.mxu0 0.0
        %6149 = vmatprep.subr.mxu0 0.0
        %6150 = vmatpush2.msra.mxu0 0.0
        %6151 = vmatprep.subr.mxu0 0.0
        %6152 = vmatpush2.msra.mxu0 0.0
        %6153 = vmatprep.subr.mxu0 0.0
        %6154 = vmatpush2.msra.mxu0 0.0
        %6155 = vmatprep.subr.mxu0 0.0
        %6156 = vmatpush2.msra.mxu0 0.0
        %6157 = vmatprep.mubr.f32.mxu0 0.0
        %6158 = vmatmul.mubr.f32.gmra.mxu0 %v5351
        %v6159 = vpop.f32.mrf.mxu0
        %v6160 = vadd.f32 0.0, %v6159
        %v6161 = vpop.f32.mrf.mxu0
        %6162 = vmatprep.mubr.f32.mxu0 0.0
        %6163 = vmatmul.mubr.f32.gmra.mxu0 %v5354
        %v6164 = vpop.f32.mrf.mxu0
        %v6165 = vadd.f32 0.0, %v6164
        %v6166 = vpop.f32.mrf.mxu0
        %6167 = vdwg.mxu0
        %s6168 = scalar_lea.vmem %s12, 240
        %v6169 = vld [vmem:[%s6168] sm:$0xff]
        %v6170 = vld [vmem:[%s6168 + $0x8] sm:$0xff]
        %v6171 = vld [vmem:[%s6168 + $0x10] sm:$0xff]
        %v6172 = vld [vmem:[%s6168 + $0x18] sm:$0xff]
        %v6173 = vld [vmem:[%s6168 + $0x20] sm:$0xff]
        %v6174 = vld [vmem:[%s6168 + $0x28] sm:$0xff]
        %v6175 = vld [vmem:[%s6168 + $0x30] sm:$0xff]
        %v6176 = vld [vmem:[%s6168 + $0x38] sm:$0xff]
        %v6177 = vld [vmem:[%s6168 + $0x40] sm:$0xff]
        %v6178 = vld [vmem:[%s6168 + $0x48] sm:$0xff]
        %v6180 = vsel %vm804, %v6169, 0
        %v6183 = vsel %vm804, %v6170, 0
        %v6186 = vsel %vm804, %v6171, 0
        %v6189 = vsel %vm804, %v6172, 0
        %v6192 = vsel %vm804, %v6173, 0
        %v6195 = vsel %vm804, %v6174, 0
        %v6198 = vsel %vm804, %v6175, 0
        %v6201 = vsel %vm804, %v6176, 0
        %v6204 = vsel %vm804, %v6177, 0
        %v6207 = vsel %vm804, %v6178, 0
        %6209 = vmatprep.subr.mxu0 0.0
        %6210 = vmatpush1.msra.mxu0 0.0
        %6211 = vmatprep.subr.mxu0 0.0
        %6212 = vmatpush1.msra.mxu0 0.0
        %6213 = vmatprep.subr.mxu0 0.0
        %6214 = vmatpush1.msra.mxu0 0.0
        %6215 = vmatprep.subr.mxu0 0.0
        %6216 = vmatpush1.msra.mxu0 0.0
        %6217 = vmatprep.subr.mxu0 0.0
        %6218 = vmatpush1.msra.mxu0 0.0
        %6219 = vmatprep.subr.mxu0 0.0
        %6220 = vmatpush1.msra.mxu0 0.0
        %6221 = vmatprep.subr.mxu0 0.0
        %6222 = vmatpush1.msra.mxu0 0.0
        %6223 = vmatprep.subr.mxu0 0.0
        %6224 = vmatpush1.msra.mxu0 0.0
        %6225 = vmatprep.subr.mxu0 0.0
        %6226 = vmatpush1.msra.mxu0 0.0
        %6227 = vmatprep.subr.mxu0 0.0
        %6228 = vmatpush1.msra.mxu0 0.0
        %6229 = vmatprep.subr.mxu0 0.0
        %6230 = vmatpush1.msra.mxu0 0.0
        %6231 = vmatprep.subr.mxu0 0.0
        %6232 = vmatpush1.msra.mxu0 0.0
        %6233 = vmatprep.subr.mxu0 0.0
        %6234 = vmatpush1.msra.mxu0 0.0
        %6235 = vmatprep.subr.mxu0 0.0
        %6236 = vmatpush1.msra.mxu0 0.0
        %6237 = vmatprep.subr.mxu0 0.0
        %6238 = vmatpush1.msra.mxu0 %v6165
        %6239 = vmatprep.subr.mxu0 0.0
        %6240 = vmatpush1.msra.mxu0 %v6160
        %6241 = vmatprep.subr.mxu0 0.0
        %6242 = vmatpush2.msra.mxu0 0.0
        %6243 = vmatprep.subr.mxu0 0.0
        %6244 = vmatpush2.msra.mxu0 0.0
        %6245 = vmatprep.subr.mxu0 0.0
        %6246 = vmatpush2.msra.mxu0 0.0
        %6247 = vmatprep.subr.mxu0 0.0
        %6248 = vmatpush2.msra.mxu0 0.0
        %6249 = vmatprep.subr.mxu0 0.0
        %6250 = vmatpush2.msra.mxu0 0.0
        %6251 = vmatprep.subr.mxu0 0.0
        %6252 = vmatpush2.msra.mxu0 0.0
        %6253 = vmatprep.subr.mxu0 0.0
        %6254 = vmatpush2.msra.mxu0 0.0
        %6255 = vmatprep.subr.mxu0 0.0
        %6256 = vmatpush2.msra.mxu0 0.0
        %6257 = vmatprep.subr.mxu0 0.0
        %6258 = vmatpush2.msra.mxu0 0.0
        %6259 = vmatprep.subr.mxu0 0.0
        %6260 = vmatpush2.msra.mxu0 0.0
        %6261 = vmatprep.subr.mxu0 0.0
        %6262 = vmatpush2.msra.mxu0 0.0
        %6263 = vmatprep.subr.mxu0 0.0
        %6264 = vmatpush2.msra.mxu0 0.0
        %6265 = vmatprep.subr.mxu0 0.0
        %6266 = vmatpush2.msra.mxu0 0.0
        %6267 = vmatprep.subr.mxu0 0.0
        %6268 = vmatpush2.msra.mxu0 0.0
        %6269 = vmatprep.subr.mxu0 0.0
        %6270 = vmatpush2.msra.mxu0 0.0
        %6271 = vmatprep.subr.mxu0 0.0
        %6272 = vmatpush2.msra.mxu0 0.0
        %6273 = vmatprep.mubr.f32.mxu0 0.0
        %6274 = vmatmul.mubr.f32.gmra.mxu0 %v6180
        %v6275 = vpop.f32.mrf.mxu0
        %v6276 = vadd.f32 0.0, %v6275
        %v6277 = vpop.f32.mrf.mxu0
        %6278 = vmatprep.mubr.f32.mxu0 0.0
        %6279 = vmatmul.mubr.f32.gmra.mxu0 %v6183
        %v6280 = vpop.f32.mrf.mxu0
        %v6281 = vadd.f32 0.0, %v6280
        %v6282 = vpop.f32.mrf.mxu0
        %6283 = vmatprep.mubr.f32.mxu0 0.0
        %6284 = vmatmul.mubr.f32.gmra.mxu0 %v6186
        %v6285 = vpop.f32.mrf.mxu0
        %v6286 = vadd.f32 0.0, %v6285
        %v6287 = vpop.f32.mrf.mxu0
        %6288 = vmatprep.mubr.f32.mxu0 0.0
        %6289 = vmatmul.mubr.f32.gmra.mxu0 %v6189
        %v6290 = vpop.f32.mrf.mxu0
        %v6291 = vadd.f32 0.0, %v6290
        %v6292 = vpop.f32.mrf.mxu0
        %6293 = vmatprep.mubr.f32.mxu0 0.0
        %6294 = vmatmul.mubr.f32.gmra.mxu0 %v6192
        %v6295 = vpop.f32.mrf.mxu0
        %v6296 = vadd.f32 0.0, %v6295
        %v6297 = vpop.f32.mrf.mxu0
        %6298 = vmatprep.mubr.f32.mxu0 0.0
        %6299 = vmatmul.mubr.f32.gmra.mxu0 %v6195
        %v6300 = vpop.f32.mrf.mxu0
        %v6301 = vadd.f32 0.0, %v6300
        %v6302 = vpop.f32.mrf.mxu0
        %6303 = vmatprep.mubr.f32.mxu0 0.0
        %6304 = vmatmul.mubr.f32.gmra.mxu0 %v6198
        %v6305 = vpop.f32.mrf.mxu0
        %v6306 = vadd.f32 0.0, %v6305
        %v6307 = vpop.f32.mrf.mxu0
        %6308 = vmatprep.mubr.f32.mxu0 0.0
        %6309 = vmatmul.mubr.f32.gmra.mxu0 %v6201
        %v6310 = vpop.f32.mrf.mxu0
        %v6311 = vadd.f32 0.0, %v6310
        %v6312 = vpop.f32.mrf.mxu0
        %6313 = vmatprep.mubr.f32.mxu0 0.0
        %6314 = vmatmul.mubr.f32.gmra.mxu0 %v6204
        %v6315 = vpop.f32.mrf.mxu0
        %v6316 = vadd.f32 0.0, %v6315
        %v6317 = vpop.f32.mrf.mxu0
        %6318 = vmatprep.mubr.f32.mxu0 0.0
        %6319 = vmatmul.mubr.f32.gmra.mxu0 %v6207
        %v6320 = vpop.f32.mrf.mxu0
        %v6321 = vadd.f32 0.0, %v6320
        %v6322 = vpop.f32.mrf.mxu0
        %6323 = vdwg.mxu0
        %v6324 = vadd.f32 %v6078, %v6276
        %v6325 = vadd.f32 %v6079, %v6281
        %v6326 = vadd.f32 %v6080, %v6286
        %v6327 = vadd.f32 %v6081, %v6291
        %v6328 = vadd.f32 %v6082, %v6296
        %v6329 = vadd.f32 %v6083, %v6301
        %v6330 = vadd.f32 %v6084, %v6306
        %v6331 = vadd.f32 %v6085, %v6311
        %v6332 = vadd.f32 %v6086, %v6316
        %v6333 = vadd.f32 %v6087, %v6321
        %6334 = vst.msk [vmem:[#allocation4] sm:$0xff] %vm804, %v6324
        %6335 = vst.msk [vmem:[#allocation4 + $0x8] sm:$0xff] %vm804, %v6325
        %6336 = vst.msk [vmem:[#allocation4 + $0x10] sm:$0xff] %vm804, %v6326
        %6337 = vst.msk [vmem:[#allocation4 + $0x18] sm:$0xff] %vm804, %v6327
        %6338 = vst.msk [vmem:[#allocation4 + $0x20] sm:$0xff] %vm804, %v6328
        %6339 = vst.msk [vmem:[#allocation4 + $0x28] sm:$0xff] %vm804, %v6329
        %6340 = vst.msk [vmem:[#allocation4 + $0x30] sm:$0xff] %vm804, %v6330
        %6341 = vst.msk [vmem:[#allocation4 + $0x38] sm:$0xff] %vm804, %v6331
        %6342 = vst.msk [vmem:[#allocation4 + $0x40] sm:$0xff] %vm804, %v6332
        %6343 = vst.msk [vmem:[#allocation4 + $0x48] sm:$0xff] %vm804, %v6333
        %v6344 = vld [vmem:[%s18] sm:$0x1]
        %v6346 = vlaneseq
        %v6347 = vshrl.u32 %v6346, 7
        %v6348 = vsub.s32 0, %v6347
        %v6349 = vrot.slane %v6344, %v6348
        %v6351 = vld [vmem:[#allocation4] sm:$0xff]
        %v6352 = vld [vmem:[#allocation4 + $0x8] sm:$0xff]
        %v6353 = vld [vmem:[#allocation4 + $0x10] sm:$0xff]
        %v6354 = vld [vmem:[#allocation4 + $0x18] sm:$0xff]
        %v6355 = vld [vmem:[#allocation4 + $0x20] sm:$0xff]
        %v6356 = vld [vmem:[#allocation4 + $0x28] sm:$0xff]
        %v6357 = vld [vmem:[#allocation4 + $0x30] sm:$0xff]
        %v6358 = vld [vmem:[%s16] sm:$0xff]
        %v6359 = vld [vmem:[%s16 + $0x8] sm:$0xff]
        %v6361 = vsel %vm804, %v6351, 0
        %v6364 = vsel %vm804, %v6352, 0
        %v6367 = vsel %vm804, %v6353, 0
        %v6370 = vsel %vm804, %v6354, 0
        %v6373 = vsel %vm804, %v6355, 0
        %v6376 = vsel %vm804, %v6356, 0
        %v6379 = vsel %vm804, %v6357, 0
        %6381 = vmatprep.subr.mxu0 0.0
        %6382 = vmatpush1.msra.mxu0 0.0
        %6383 = vmatprep.subr.mxu0 0.0
        %6384 = vmatpush1.msra.mxu0 0.0
        %6385 = vmatprep.subr.mxu0 0.0
        %6386 = vmatpush1.msra.mxu0 0.0
        %6387 = vmatprep.subr.mxu0 0.0
        %6388 = vmatpush1.msra.mxu0 0.0
        %6389 = vmatprep.subr.mxu0 0.0
        %6390 = vmatpush1.msra.mxu0 0.0
        %6391 = vmatprep.subr.mxu0 0.0
        %6392 = vmatpush1.msra.mxu0 0.0
        %6393 = vmatprep.subr.mxu0 0.0
        %6394 = vmatpush1.msra.mxu0 0.0
        %6395 = vmatprep.subr.mxu0 0.0
        %6396 = vmatpush1.msra.mxu0 0.0
        %6397 = vmatprep.subr.mxu0 0.0
        %6398 = vmatpush1.msra.mxu0 0.0
        %6399 = vmatprep.subr.mxu0 0.0
        %6400 = vmatpush1.msra.mxu0 0.0
        %6401 = vmatprep.subr.mxu0 0.0
        %6402 = vmatpush1.msra.mxu0 0.0
        %6403 = vmatprep.subr.mxu0 0.0
        %6404 = vmatpush1.msra.mxu0 0.0
        %6405 = vmatprep.subr.mxu0 0.0
        %6406 = vmatpush1.msra.mxu0 0.0
        %6407 = vmatprep.subr.mxu0 0.0
        %6408 = vmatpush1.msra.mxu0 0.0
        %6409 = vmatprep.subr.mxu0 0.0
        %6410 = vmatpush1.msra.mxu0 %v6359
        %6411 = vmatprep.subr.mxu0 0.0
        %6412 = vmatpush1.msra.mxu0 %v6358
        %6413 = vmatprep.subr.mxu0 0.0
        %6414 = vmatpush2.msra.mxu0 0.0
        %6415 = vmatprep.subr.mxu0 0.0
        %6416 = vmatpush2.msra.mxu0 0.0
        %6417 = vmatprep.subr.mxu0 0.0
        %6418 = vmatpush2.msra.mxu0 0.0
        %6419 = vmatprep.subr.mxu0 0.0
        %6420 = vmatpush2.msra.mxu0 0.0
        %6421 = vmatprep.subr.mxu0 0.0
        %6422 = vmatpush2.msra.mxu0 0.0
        %6423 = vmatprep.subr.mxu0 0.0
        %6424 = vmatpush2.msra.mxu0 0.0
        %6425 = vmatprep.subr.mxu0 0.0
        %6426 = vmatpush2.msra.mxu0 0.0
        %6427 = vmatprep.subr.mxu0 0.0
        %6428 = vmatpush2.msra.mxu0 0.0
        %6429 = vmatprep.subr.mxu0 0.0
        %6430 = vmatpush2.msra.mxu0 0.0
        %6431 = vmatprep.subr.mxu0 0.0
        %6432 = vmatpush2.msra.mxu0 0.0
        %6433 = vmatprep.subr.mxu0 0.0
        %6434 = vmatpush2.msra.mxu0 0.0
        %6435 = vmatprep.subr.mxu0 0.0
        %6436 = vmatpush2.msra.mxu0 0.0
        %6437 = vmatprep.subr.mxu0 0.0
        %6438 = vmatpush2.msra.mxu0 0.0
        %6439 = vmatprep.subr.mxu0 0.0
        %6440 = vmatpush2.msra.mxu0 0.0
        %6441 = vmatprep.subr.mxu0 0.0
        %6442 = vmatpush2.msra.mxu0 0.0
        %6443 = vmatprep.subr.mxu0 0.0
        %6444 = vmatpush2.msra.mxu0 0.0
        %6445 = vmatprep.mubr.f32.mxu0 0.0
        %6446 = vmatmul.mubr.f32.gmra.mxu0 %v6361
        %v6447 = vpop.f32.mrf.mxu0
        %v6448 = vadd.f32 0.0, %v6447
        %v6449 = vpop.f32.mrf.mxu0
        %6450 = vmatprep.mubr.f32.mxu0 0.0
        %6451 = vmatmul.mubr.f32.gmra.mxu0 %v6364
        %v6452 = vpop.f32.mrf.mxu0
        %v6453 = vadd.f32 0.0, %v6452
        %v6454 = vpop.f32.mrf.mxu0
        %6455 = vmatprep.mubr.f32.mxu0 0.0
        %6456 = vmatmul.mubr.f32.gmra.mxu0 %v6367
        %v6457 = vpop.f32.mrf.mxu0
        %v6458 = vadd.f32 0.0, %v6457
        %v6459 = vpop.f32.mrf.mxu0
        %6460 = vmatprep.mubr.f32.mxu0 0.0
        %6461 = vmatmul.mubr.f32.gmra.mxu0 %v6370
        %v6462 = vpop.f32.mrf.mxu0
        %v6463 = vadd.f32 0.0, %v6462
        %v6464 = vpop.f32.mrf.mxu0
        %6465 = vmatprep.mubr.f32.mxu0 0.0
        %6466 = vmatmul.mubr.f32.gmra.mxu0 %v6373
        %v6467 = vpop.f32.mrf.mxu0
        %v6468 = vadd.f32 0.0, %v6467
        %v6469 = vpop.f32.mrf.mxu0
        %6470 = vmatprep.mubr.f32.mxu0 0.0
        %6471 = vmatmul.mubr.f32.gmra.mxu0 %v6376
        %v6472 = vpop.f32.mrf.mxu0
        %v6473 = vadd.f32 0.0, %v6472
        %v6474 = vpop.f32.mrf.mxu0
        %6475 = vmatprep.mubr.f32.mxu0 0.0
        %6476 = vmatmul.mubr.f32.gmra.mxu0 %v6379
        %v6477 = vpop.f32.mrf.mxu0
        %v6478 = vadd.f32 0.0, %v6477
        %v6479 = vpop.f32.mrf.mxu0
        %6480 = vdwg.mxu0
        %v6481 = vadd.f32 %v6349, %v6448
        %v6482 = vadd.f32 %v6349, %v6453
        %v6483 = vadd.f32 %v6349, %v6458
        %v6484 = vadd.f32 %v6349, %v6463
        %v6485 = vadd.f32 %v6349, %v6468
        %v6486 = vadd.f32 %v6349, %v6473
        %v6487 = vadd.f32 %v6349, %v6478
        %v6488 = vld [vmem:[%s694] sm:$0xff]
        %v6489 = vld [vmem:[%s694 + $0x8] sm:$0xff]
        %v6490 = vld [vmem:[%s694 + $0x10] sm:$0xff]
        %v6491 = vld [vmem:[%s694 + $0x18] sm:$0xff]
        %v6492 = vld [vmem:[%s694 + $0x20] sm:$0xff]
        %v6493 = vld [vmem:[%s694 + $0x28] sm:$0xff]
        %v6494 = vld [vmem:[%s694 + $0x30] sm:$0xff]
        %v6495 = vld [vmem:[%s17] sm:$0xff]
        %v6496 = vld [vmem:[%s17 + $0x8] sm:$0xff]
        %v6498 = vsel %vm804, %v6488, 0
        %v6501 = vsel %vm804, %v6489, 0
        %v6504 = vsel %vm804, %v6490, 0
        %v6507 = vsel %vm804, %v6491, 0
        %v6510 = vsel %vm804, %v6492, 0
        %v6513 = vsel %vm804, %v6493, 0
        %v6516 = vsel %vm804, %v6494, 0
        %6518 = vmatprep.subr.mxu0 0.0
        %6519 = vmatpush1.msra.mxu0 0.0
        %6520 = vmatprep.subr.mxu0 0.0
        %6521 = vmatpush1.msra.mxu0 0.0
        %6522 = vmatprep.subr.mxu0 0.0
        %6523 = vmatpush1.msra.mxu0 0.0
        %6524 = vmatprep.subr.mxu0 0.0
        %6525 = vmatpush1.msra.mxu0 0.0
        %6526 = vmatprep.subr.mxu0 0.0
        %6527 = vmatpush1.msra.mxu0 0.0
        %6528 = vmatprep.subr.mxu0 0.0
        %6529 = vmatpush1.msra.mxu0 0.0
        %6530 = vmatprep.subr.mxu0 0.0
        %6531 = vmatpush1.msra.mxu0 0.0
        %6532 = vmatprep.subr.mxu0 0.0
        %6533 = vmatpush1.msra.mxu0 0.0
        %6534 = vmatprep.subr.mxu0 0.0
        %6535 = vmatpush1.msra.mxu0 0.0
        %6536 = vmatprep.subr.mxu0 0.0
        %6537 = vmatpush1.msra.mxu0 0.0
        %6538 = vmatprep.subr.mxu0 0.0
        %6539 = vmatpush1.msra.mxu0 0.0
        %6540 = vmatprep.subr.mxu0 0.0
        %6541 = vmatpush1.msra.mxu0 0.0
        %6542 = vmatprep.subr.mxu0 0.0
        %6543 = vmatpush1.msra.mxu0 0.0
        %6544 = vmatprep.subr.mxu0 0.0
        %6545 = vmatpush1.msra.mxu0 0.0
        %6546 = vmatprep.subr.mxu0 0.0
        %6547 = vmatpush1.msra.mxu0 %v6496
        %6548 = vmatprep.subr.mxu0 0.0
        %6549 = vmatpush1.msra.mxu0 %v6495
        %6550 = vmatprep.subr.mxu0 0.0
        %6551 = vmatpush2.msra.mxu0 0.0
        %6552 = vmatprep.subr.mxu0 0.0
        %6553 = vmatpush2.msra.mxu0 0.0
        %6554 = vmatprep.subr.mxu0 0.0
        %6555 = vmatpush2.msra.mxu0 0.0
        %6556 = vmatprep.subr.mxu0 0.0
        %6557 = vmatpush2.msra.mxu0 0.0
        %6558 = vmatprep.subr.mxu0 0.0
        %6559 = vmatpush2.msra.mxu0 0.0
        %6560 = vmatprep.subr.mxu0 0.0
        %6561 = vmatpush2.msra.mxu0 0.0
        %6562 = vmatprep.subr.mxu0 0.0
        %6563 = vmatpush2.msra.mxu0 0.0
        %6564 = vmatprep.subr.mxu0 0.0
        %6565 = vmatpush2.msra.mxu0 0.0
        %6566 = vmatprep.subr.mxu0 0.0
        %6567 = vmatpush2.msra.mxu0 0.0
        %6568 = vmatprep.subr.mxu0 0.0
        %6569 = vmatpush2.msra.mxu0 0.0
        %6570 = vmatprep.subr.mxu0 0.0
        %6571 = vmatpush2.msra.mxu0 0.0
        %6572 = vmatprep.subr.mxu0 0.0
        %6573 = vmatpush2.msra.mxu0 0.0
        %6574 = vmatprep.subr.mxu0 0.0
        %6575 = vmatpush2.msra.mxu0 0.0
        %6576 = vmatprep.subr.mxu0 0.0
        %6577 = vmatpush2.msra.mxu0 0.0
        %6578 = vmatprep.subr.mxu0 0.0
        %6579 = vmatpush2.msra.mxu0 0.0
        %6580 = vmatprep.subr.mxu0 0.0
        %6581 = vmatpush2.msra.mxu0 0.0
        %6582 = vmatprep.mubr.f32.mxu0 0.0
        %6583 = vmatmul.mubr.f32.gmra.mxu0 %v6498
        %v6584 = vpop.f32.mrf.mxu0
        %v6585 = vadd.f32 0.0, %v6584
        %v6586 = vpop.f32.mrf.mxu0
        %6587 = vmatprep.mubr.f32.mxu0 0.0
        %6588 = vmatmul.mubr.f32.gmra.mxu0 %v6501
        %v6589 = vpop.f32.mrf.mxu0
        %v6590 = vadd.f32 0.0, %v6589
        %v6591 = vpop.f32.mrf.mxu0
        %6592 = vmatprep.mubr.f32.mxu0 0.0
        %6593 = vmatmul.mubr.f32.gmra.mxu0 %v6504
        %v6594 = vpop.f32.mrf.mxu0
        %v6595 = vadd.f32 0.0, %v6594
        %v6596 = vpop.f32.mrf.mxu0
        %6597 = vmatprep.mubr.f32.mxu0 0.0
        %6598 = vmatmul.mubr.f32.gmra.mxu0 %v6507
        %v6599 = vpop.f32.mrf.mxu0
        %v6600 = vadd.f32 0.0, %v6599
        %v6601 = vpop.f32.mrf.mxu0
        %6602 = vmatprep.mubr.f32.mxu0 0.0
        %6603 = vmatmul.mubr.f32.gmra.mxu0 %v6510
        %v6604 = vpop.f32.mrf.mxu0
        %v6605 = vadd.f32 0.0, %v6604
        %v6606 = vpop.f32.mrf.mxu0
        %6607 = vmatprep.mubr.f32.mxu0 0.0
        %6608 = vmatmul.mubr.f32.gmra.mxu0 %v6513
        %v6609 = vpop.f32.mrf.mxu0
        %v6610 = vadd.f32 0.0, %v6609
        %v6611 = vpop.f32.mrf.mxu0
        %6612 = vmatprep.mubr.f32.mxu0 0.0
        %6613 = vmatmul.mubr.f32.gmra.mxu0 %v6516
        %v6614 = vpop.f32.mrf.mxu0
        %v6615 = vadd.f32 0.0, %v6614
        %v6616 = vpop.f32.mrf.mxu0
        %6617 = vdwg.mxu0
        %v6618 = vadd.f32 %v6481, %v6585
        %v6619 = vadd.f32 %v6482, %v6590
        %v6620 = vadd.f32 %v6483, %v6595
        %v6621 = vadd.f32 %v6484, %v6600
        %v6622 = vadd.f32 %v6485, %v6605
        %v6623 = vadd.f32 %v6486, %v6610
        %v6624 = vadd.f32 %v6487, %v6615
        %v6625 = vld [vmem:[#allocation4 + $0x1] sm:$0xff]
        %v6626 = vld [vmem:[#allocation4 + $0x9] sm:$0xff]
        %v6627 = vld [vmem:[#allocation4 + $0x11] sm:$0xff]
        %v6628 = vld [vmem:[#allocation4 + $0x19] sm:$0xff]
        %v6629 = vld [vmem:[#allocation4 + $0x21] sm:$0xff]
        %v6630 = vld [vmem:[#allocation4 + $0x29] sm:$0xff]
        %v6631 = vld [vmem:[#allocation4 + $0x31] sm:$0xff]
        %s6632 = scalar_lea.vmem %s16, 16
        %v6633 = vld [vmem:[%s6632] sm:$0xff]
        %v6634 = vld [vmem:[%s6632 + $0x8] sm:$0xff]
        %v6636 = vsel %vm804, %v6625, 0
        %v6639 = vsel %vm804, %v6626, 0
        %v6642 = vsel %vm804, %v6627, 0
        %v6645 = vsel %vm804, %v6628, 0
        %v6648 = vsel %vm804, %v6629, 0
        %v6651 = vsel %vm804, %v6630, 0
        %v6654 = vsel %vm804, %v6631, 0
        %6656 = vmatprep.subr.mxu0 0.0
        %6657 = vmatpush1.msra.mxu0 0.0
        %6658 = vmatprep.subr.mxu0 0.0
        %6659 = vmatpush1.msra.mxu0 0.0
        %6660 = vmatprep.subr.mxu0 0.0
        %6661 = vmatpush1.msra.mxu0 0.0
        %6662 = vmatprep.subr.mxu0 0.0
        %6663 = vmatpush1.msra.mxu0 0.0
        %6664 = vmatprep.subr.mxu0 0.0
        %6665 = vmatpush1.msra.mxu0 0.0
        %6666 = vmatprep.subr.mxu0 0.0
        %6667 = vmatpush1.msra.mxu0 0.0
        %6668 = vmatprep.subr.mxu0 0.0
        %6669 = vmatpush1.msra.mxu0 0.0
        %6670 = vmatprep.subr.mxu0 0.0
        %6671 = vmatpush1.msra.mxu0 0.0
        %6672 = vmatprep.subr.mxu0 0.0
        %6673 = vmatpush1.msra.mxu0 0.0
        %6674 = vmatprep.subr.mxu0 0.0
        %6675 = vmatpush1.msra.mxu0 0.0
        %6676 = vmatprep.subr.mxu0 0.0
        %6677 = vmatpush1.msra.mxu0 0.0
        %6678 = vmatprep.subr.mxu0 0.0
        %6679 = vmatpush1.msra.mxu0 0.0
        %6680 = vmatprep.subr.mxu0 0.0
        %6681 = vmatpush1.msra.mxu0 0.0
        %6682 = vmatprep.subr.mxu0 0.0
        %6683 = vmatpush1.msra.mxu0 0.0
        %6684 = vmatprep.subr.mxu0 0.0
        %6685 = vmatpush1.msra.mxu0 %v6634
        %6686 = vmatprep.subr.mxu0 0.0
        %6687 = vmatpush1.msra.mxu0 %v6633
        %6688 = vmatprep.subr.mxu0 0.0
        %6689 = vmatpush2.msra.mxu0 0.0
        %6690 = vmatprep.subr.mxu0 0.0
        %6691 = vmatpush2.msra.mxu0 0.0
        %6692 = vmatprep.subr.mxu0 0.0
        %6693 = vmatpush2.msra.mxu0 0.0
        %6694 = vmatprep.subr.mxu0 0.0
        %6695 = vmatpush2.msra.mxu0 0.0
        %6696 = vmatprep.subr.mxu0 0.0
        %6697 = vmatpush2.msra.mxu0 0.0
        %6698 = vmatprep.subr.mxu0 0.0
        %6699 = vmatpush2.msra.mxu0 0.0
        %6700 = vmatprep.subr.mxu0 0.0
        %6701 = vmatpush2.msra.mxu0 0.0
        %6702 = vmatprep.subr.mxu0 0.0
        %6703 = vmatpush2.msra.mxu0 0.0
        %6704 = vmatprep.subr.mxu0 0.0
        %6705 = vmatpush2.msra.mxu0 0.0
        %6706 = vmatprep.subr.mxu0 0.0
        %6707 = vmatpush2.msra.mxu0 0.0
        %6708 = vmatprep.subr.mxu0 0.0
        %6709 = vmatpush2.msra.mxu0 0.0
        %6710 = vmatprep.subr.mxu0 0.0
        %6711 = vmatpush2.msra.mxu0 0.0
        %6712 = vmatprep.subr.mxu0 0.0
        %6713 = vmatpush2.msra.mxu0 0.0
        %6714 = vmatprep.subr.mxu0 0.0
        %6715 = vmatpush2.msra.mxu0 0.0
        %6716 = vmatprep.subr.mxu0 0.0
        %6717 = vmatpush2.msra.mxu0 0.0
        %6718 = vmatprep.subr.mxu0 0.0
        %6719 = vmatpush2.msra.mxu0 0.0
        %6720 = vmatprep.mubr.f32.mxu0 0.0
        %6721 = vmatmul.mubr.f32.gmra.mxu0 %v6636
        %v6722 = vpop.f32.mrf.mxu0
        %v6723 = vadd.f32 0.0, %v6722
        %v6724 = vpop.f32.mrf.mxu0
        %6725 = vmatprep.mubr.f32.mxu0 0.0
        %6726 = vmatmul.mubr.f32.gmra.mxu0 %v6639
        %v6727 = vpop.f32.mrf.mxu0
        %v6728 = vadd.f32 0.0, %v6727
        %v6729 = vpop.f32.mrf.mxu0
        %6730 = vmatprep.mubr.f32.mxu0 0.0
        %6731 = vmatmul.mubr.f32.gmra.mxu0 %v6642
        %v6732 = vpop.f32.mrf.mxu0
        %v6733 = vadd.f32 0.0, %v6732
        %v6734 = vpop.f32.mrf.mxu0
        %6735 = vmatprep.mubr.f32.mxu0 0.0
        %6736 = vmatmul.mubr.f32.gmra.mxu0 %v6645
        %v6737 = vpop.f32.mrf.mxu0
        %v6738 = vadd.f32 0.0, %v6737
        %v6739 = vpop.f32.mrf.mxu0
        %6740 = vmatprep.mubr.f32.mxu0 0.0
        %6741 = vmatmul.mubr.f32.gmra.mxu0 %v6648
        %v6742 = vpop.f32.mrf.mxu0
        %v6743 = vadd.f32 0.0, %v6742
        %v6744 = vpop.f32.mrf.mxu0
        %6745 = vmatprep.mubr.f32.mxu0 0.0
        %6746 = vmatmul.mubr.f32.gmra.mxu0 %v6651
        %v6747 = vpop.f32.mrf.mxu0
        %v6748 = vadd.f32 0.0, %v6747
        %v6749 = vpop.f32.mrf.mxu0
        %6750 = vmatprep.mubr.f32.mxu0 0.0
        %6751 = vmatmul.mubr.f32.gmra.mxu0 %v6654
        %v6752 = vpop.f32.mrf.mxu0
        %v6753 = vadd.f32 0.0, %v6752
        %v6754 = vpop.f32.mrf.mxu0
        %6755 = vdwg.mxu0
        %v6756 = vadd.f32 %v6618, %v6723
        %v6757 = vadd.f32 %v6619, %v6728
        %v6758 = vadd.f32 %v6620, %v6733
        %v6759 = vadd.f32 %v6621, %v6738
        %v6760 = vadd.f32 %v6622, %v6743
        %v6761 = vadd.f32 %v6623, %v6748
        %v6762 = vadd.f32 %v6624, %v6753
        %v6763 = vld [vmem:[%s694 + $0x1] sm:$0xff]
        %v6764 = vld [vmem:[%s694 + $0x9] sm:$0xff]
        %v6765 = vld [vmem:[%s694 + $0x11] sm:$0xff]
        %v6766 = vld [vmem:[%s694 + $0x19] sm:$0xff]
        %v6767 = vld [vmem:[%s694 + $0x21] sm:$0xff]
        %v6768 = vld [vmem:[%s694 + $0x29] sm:$0xff]
        %v6769 = vld [vmem:[%s694 + $0x31] sm:$0xff]
        %s6770 = scalar_lea.vmem %s17, 16
        %v6771 = vld [vmem:[%s6770] sm:$0xff]
        %v6772 = vld [vmem:[%s6770 + $0x8] sm:$0xff]
        %v6774 = vsel %vm804, %v6763, 0
        %v6777 = vsel %vm804, %v6764, 0
        %v6780 = vsel %vm804, %v6765, 0
        %v6783 = vsel %vm804, %v6766, 0
        %v6786 = vsel %vm804, %v6767, 0
        %v6789 = vsel %vm804, %v6768, 0
        %v6792 = vsel %vm804, %v6769, 0
        %6794 = vmatprep.subr.mxu0 0.0
        %6795 = vmatpush1.msra.mxu0 0.0
        %6796 = vmatprep.subr.mxu0 0.0
        %6797 = vmatpush1.msra.mxu0 0.0
        %6798 = vmatprep.subr.mxu0 0.0
        %6799 = vmatpush1.msra.mxu0 0.0
        %6800 = vmatprep.subr.mxu0 0.0
        %6801 = vmatpush1.msra.mxu0 0.0
        %6802 = vmatprep.subr.mxu0 0.0
        %6803 = vmatpush1.msra.mxu0 0.0
        %6804 = vmatprep.subr.mxu0 0.0
        %6805 = vmatpush1.msra.mxu0 0.0
        %6806 = vmatprep.subr.mxu0 0.0
        %6807 = vmatpush1.msra.mxu0 0.0
        %6808 = vmatprep.subr.mxu0 0.0
        %6809 = vmatpush1.msra.mxu0 0.0
        %6810 = vmatprep.subr.mxu0 0.0
        %6811 = vmatpush1.msra.mxu0 0.0
        %6812 = vmatprep.subr.mxu0 0.0
        %6813 = vmatpush1.msra.mxu0 0.0
        %6814 = vmatprep.subr.mxu0 0.0
        %6815 = vmatpush1.msra.mxu0 0.0
        %6816 = vmatprep.subr.mxu0 0.0
        %6817 = vmatpush1.msra.mxu0 0.0
        %6818 = vmatprep.subr.mxu0 0.0
        %6819 = vmatpush1.msra.mxu0 0.0
        %6820 = vmatprep.subr.mxu0 0.0
        %6821 = vmatpush1.msra.mxu0 0.0
        %6822 = vmatprep.subr.mxu0 0.0
        %6823 = vmatpush1.msra.mxu0 %v6772
        %6824 = vmatprep.subr.mxu0 0.0
        %6825 = vmatpush1.msra.mxu0 %v6771
        %6826 = vmatprep.subr.mxu0 0.0
        %6827 = vmatpush2.msra.mxu0 0.0
        %6828 = vmatprep.subr.mxu0 0.0
        %6829 = vmatpush2.msra.mxu0 0.0
        %6830 = vmatprep.subr.mxu0 0.0
        %6831 = vmatpush2.msra.mxu0 0.0
        %6832 = vmatprep.subr.mxu0 0.0
        %6833 = vmatpush2.msra.mxu0 0.0
        %6834 = vmatprep.subr.mxu0 0.0
        %6835 = vmatpush2.msra.mxu0 0.0
        %6836 = vmatprep.subr.mxu0 0.0
        %6837 = vmatpush2.msra.mxu0 0.0
        %6838 = vmatprep.subr.mxu0 0.0
        %6839 = vmatpush2.msra.mxu0 0.0
        %6840 = vmatprep.subr.mxu0 0.0
        %6841 = vmatpush2.msra.mxu0 0.0
        %6842 = vmatprep.subr.mxu0 0.0
        %6843 = vmatpush2.msra.mxu0 0.0
        %6844 = vmatprep.subr.mxu0 0.0
        %6845 = vmatpush2.msra.mxu0 0.0
        %6846 = vmatprep.subr.mxu0 0.0
        %6847 = vmatpush2.msra.mxu0 0.0
        %6848 = vmatprep.subr.mxu0 0.0
        %6849 = vmatpush2.msra.mxu0 0.0
        %6850 = vmatprep.subr.mxu0 0.0
        %6851 = vmatpush2.msra.mxu0 0.0
        %6852 = vmatprep.subr.mxu0 0.0
        %6853 = vmatpush2.msra.mxu0 0.0
        %6854 = vmatprep.subr.mxu0 0.0
        %6855 = vmatpush2.msra.mxu0 0.0
        %6856 = vmatprep.subr.mxu0 0.0
        %6857 = vmatpush2.msra.mxu0 0.0
        %6858 = vmatprep.mubr.f32.mxu0 0.0
        %6859 = vmatmul.mubr.f32.gmra.mxu0 %v6774
        %v6860 = vpop.f32.mrf.mxu0
        %v6861 = vadd.f32 0.0, %v6860
        %v6862 = vpop.f32.mrf.mxu0
        %6863 = vmatprep.mubr.f32.mxu0 0.0
        %6864 = vmatmul.mubr.f32.gmra.mxu0 %v6777
        %v6865 = vpop.f32.mrf.mxu0
        %v6866 = vadd.f32 0.0, %v6865
        %v6867 = vpop.f32.mrf.mxu0
        %6868 = vmatprep.mubr.f32.mxu0 0.0
        %6869 = vmatmul.mubr.f32.gmra.mxu0 %v6780
        %v6870 = vpop.f32.mrf.mxu0
        %v6871 = vadd.f32 0.0, %v6870
        %v6872 = vpop.f32.mrf.mxu0
        %6873 = vmatprep.mubr.f32.mxu0 0.0
        %6874 = vmatmul.mubr.f32.gmra.mxu0 %v6783
        %v6875 = vpop.f32.mrf.mxu0
        %v6876 = vadd.f32 0.0, %v6875
        %v6877 = vpop.f32.mrf.mxu0
        %6878 = vmatprep.mubr.f32.mxu0 0.0
        %6879 = vmatmul.mubr.f32.gmra.mxu0 %v6786
        %v6880 = vpop.f32.mrf.mxu0
        %v6881 = vadd.f32 0.0, %v6880
        %v6882 = vpop.f32.mrf.mxu0
        %6883 = vmatprep.mubr.f32.mxu0 0.0
        %6884 = vmatmul.mubr.f32.gmra.mxu0 %v6789
        %v6885 = vpop.f32.mrf.mxu0
        %v6886 = vadd.f32 0.0, %v6885
        %v6887 = vpop.f32.mrf.mxu0
        %6888 = vmatprep.mubr.f32.mxu0 0.0
        %6889 = vmatmul.mubr.f32.gmra.mxu0 %v6792
        %v6890 = vpop.f32.mrf.mxu0
        %v6891 = vadd.f32 0.0, %v6890
        %v6892 = vpop.f32.mrf.mxu0
        %6893 = vdwg.mxu0
        %v6894 = vadd.f32 %v6756, %v6861
        %v6895 = vadd.f32 %v6757, %v6866
        %v6896 = vadd.f32 %v6758, %v6871
        %v6897 = vadd.f32 %v6759, %v6876
        %v6898 = vadd.f32 %v6760, %v6881
        %v6899 = vadd.f32 %v6761, %v6886
        %v6900 = vadd.f32 %v6762, %v6891
        %v6901 = vld [vmem:[#allocation4 + $0x2] sm:$0xff]
        %v6902 = vld [vmem:[#allocation4 + $0xa] sm:$0xff]
        %v6903 = vld [vmem:[#allocation4 + $0x12] sm:$0xff]
        %v6904 = vld [vmem:[#allocation4 + $0x1a] sm:$0xff]
        %v6905 = vld [vmem:[#allocation4 + $0x22] sm:$0xff]
        %v6906 = vld [vmem:[#allocation4 + $0x2a] sm:$0xff]
        %v6907 = vld [vmem:[#allocation4 + $0x32] sm:$0xff]
        %s6908 = scalar_lea.vmem %s16, 32
        %v6909 = vld [vmem:[%s6908] sm:$0xff]
        %v6910 = vld [vmem:[%s6908 + $0x8] sm:$0xff]
        %v6912 = vsel %vm804, %v6901, 0
        %v6915 = vsel %vm804, %v6902, 0
        %v6918 = vsel %vm804, %v6903, 0
        %v6921 = vsel %vm804, %v6904, 0
        %v6924 = vsel %vm804, %v6905, 0
        %v6927 = vsel %vm804, %v6906, 0
        %v6930 = vsel %vm804, %v6907, 0
        %6932 = vmatprep.subr.mxu0 0.0
        %6933 = vmatpush1.msra.mxu0 0.0
        %6934 = vmatprep.subr.mxu0 0.0
        %6935 = vmatpush1.msra.mxu0 0.0
        %6936 = vmatprep.subr.mxu0 0.0
        %6937 = vmatpush1.msra.mxu0 0.0
        %6938 = vmatprep.subr.mxu0 0.0
        %6939 = vmatpush1.msra.mxu0 0.0
        %6940 = vmatprep.subr.mxu0 0.0
        %6941 = vmatpush1.msra.mxu0 0.0
        %6942 = vmatprep.subr.mxu0 0.0
        %6943 = vmatpush1.msra.mxu0 0.0
        %6944 = vmatprep.subr.mxu0 0.0
        %6945 = vmatpush1.msra.mxu0 0.0
        %6946 = vmatprep.subr.mxu0 0.0
        %6947 = vmatpush1.msra.mxu0 0.0
        %6948 = vmatprep.subr.mxu0 0.0
        %6949 = vmatpush1.msra.mxu0 0.0
        %6950 = vmatprep.subr.mxu0 0.0
        %6951 = vmatpush1.msra.mxu0 0.0
        %6952 = vmatprep.subr.mxu0 0.0
        %6953 = vmatpush1.msra.mxu0 0.0
        %6954 = vmatprep.subr.mxu0 0.0
        %6955 = vmatpush1.msra.mxu0 0.0
        %6956 = vmatprep.subr.mxu0 0.0
        %6957 = vmatpush1.msra.mxu0 0.0
        %6958 = vmatprep.subr.mxu0 0.0
        %6959 = vmatpush1.msra.mxu0 0.0
        %6960 = vmatprep.subr.mxu0 0.0
        %6961 = vmatpush1.msra.mxu0 %v6910
        %6962 = vmatprep.subr.mxu0 0.0
        %6963 = vmatpush1.msra.mxu0 %v6909
        %6964 = vmatprep.subr.mxu0 0.0
        %6965 = vmatpush2.msra.mxu0 0.0
        %6966 = vmatprep.subr.mxu0 0.0
        %6967 = vmatpush2.msra.mxu0 0.0
        %6968 = vmatprep.subr.mxu0 0.0
        %6969 = vmatpush2.msra.mxu0 0.0
        %6970 = vmatprep.subr.mxu0 0.0
        %6971 = vmatpush2.msra.mxu0 0.0
        %6972 = vmatprep.subr.mxu0 0.0
        %6973 = vmatpush2.msra.mxu0 0.0
        %6974 = vmatprep.subr.mxu0 0.0
        %6975 = vmatpush2.msra.mxu0 0.0
        %6976 = vmatprep.subr.mxu0 0.0
        %6977 = vmatpush2.msra.mxu0 0.0
        %6978 = vmatprep.subr.mxu0 0.0
        %6979 = vmatpush2.msra.mxu0 0.0
        %6980 = vmatprep.subr.mxu0 0.0
        %6981 = vmatpush2.msra.mxu0 0.0
        %6982 = vmatprep.subr.mxu0 0.0
        %6983 = vmatpush2.msra.mxu0 0.0
        %6984 = vmatprep.subr.mxu0 0.0
        %6985 = vmatpush2.msra.mxu0 0.0
        %6986 = vmatprep.subr.mxu0 0.0
        %6987 = vmatpush2.msra.mxu0 0.0
        %6988 = vmatprep.subr.mxu0 0.0
        %6989 = vmatpush2.msra.mxu0 0.0
        %6990 = vmatprep.subr.mxu0 0.0
        %6991 = vmatpush2.msra.mxu0 0.0
        %6992 = vmatprep.subr.mxu0 0.0
        %6993 = vmatpush2.msra.mxu0 0.0
        %6994 = vmatprep.subr.mxu0 0.0
        %6995 = vmatpush2.msra.mxu0 0.0
        %6996 = vmatprep.mubr.f32.mxu0 0.0
        %6997 = vmatmul.mubr.f32.gmra.mxu0 %v6912
        %v6998 = vpop.f32.mrf.mxu0
        %v6999 = vadd.f32 0.0, %v6998
        %v7000 = vpop.f32.mrf.mxu0
        %7001 = vmatprep.mubr.f32.mxu0 0.0
        %7002 = vmatmul.mubr.f32.gmra.mxu0 %v6915
        %v7003 = vpop.f32.mrf.mxu0
        %v7004 = vadd.f32 0.0, %v7003
        %v7005 = vpop.f32.mrf.mxu0
        %7006 = vmatprep.mubr.f32.mxu0 0.0
        %7007 = vmatmul.mubr.f32.gmra.mxu0 %v6918
        %v7008 = vpop.f32.mrf.mxu0
        %v7009 = vadd.f32 0.0, %v7008
        %v7010 = vpop.f32.mrf.mxu0
        %7011 = vmatprep.mubr.f32.mxu0 0.0
        %7012 = vmatmul.mubr.f32.gmra.mxu0 %v6921
        %v7013 = vpop.f32.mrf.mxu0
        %v7014 = vadd.f32 0.0, %v7013
        %v7015 = vpop.f32.mrf.mxu0
        %7016 = vmatprep.mubr.f32.mxu0 0.0
        %7017 = vmatmul.mubr.f32.gmra.mxu0 %v6924
        %v7018 = vpop.f32.mrf.mxu0
        %v7019 = vadd.f32 0.0, %v7018
        %v7020 = vpop.f32.mrf.mxu0
        %7021 = vmatprep.mubr.f32.mxu0 0.0
        %7022 = vmatmul.mubr.f32.gmra.mxu0 %v6927
        %v7023 = vpop.f32.mrf.mxu0
        %v7024 = vadd.f32 0.0, %v7023
        %v7025 = vpop.f32.mrf.mxu0
        %7026 = vmatprep.mubr.f32.mxu0 0.0
        %7027 = vmatmul.mubr.f32.gmra.mxu0 %v6930
        %v7028 = vpop.f32.mrf.mxu0
        %v7029 = vadd.f32 0.0, %v7028
        %v7030 = vpop.f32.mrf.mxu0
        %7031 = vdwg.mxu0
        %v7032 = vadd.f32 %v6894, %v6999
        %v7033 = vadd.f32 %v6895, %v7004
        %v7034 = vadd.f32 %v6896, %v7009
        %v7035 = vadd.f32 %v6897, %v7014
        %v7036 = vadd.f32 %v6898, %v7019
        %v7037 = vadd.f32 %v6899, %v7024
        %v7038 = vadd.f32 %v6900, %v7029
        %v7039 = vld [vmem:[%s694 + $0x2] sm:$0xff]
        %v7040 = vld [vmem:[%s694 + $0xa] sm:$0xff]
        %v7041 = vld [vmem:[%s694 + $0x12] sm:$0xff]
        %v7042 = vld [vmem:[%s694 + $0x1a] sm:$0xff]
        %v7043 = vld [vmem:[%s694 + $0x22] sm:$0xff]
        %v7044 = vld [vmem:[%s694 + $0x2a] sm:$0xff]
        %v7045 = vld [vmem:[%s694 + $0x32] sm:$0xff]
        %s7046 = scalar_lea.vmem %s17, 32
        %v7047 = vld [vmem:[%s7046] sm:$0xff]
        %v7048 = vld [vmem:[%s7046 + $0x8] sm:$0xff]
        %v7050 = vsel %vm804, %v7039, 0
        %v7053 = vsel %vm804, %v7040, 0
        %v7056 = vsel %vm804, %v7041, 0
        %v7059 = vsel %vm804, %v7042, 0
        %v7062 = vsel %vm804, %v7043, 0
        %v7065 = vsel %vm804, %v7044, 0
        %v7068 = vsel %vm804, %v7045, 0
        %7070 = vmatprep.subr.mxu0 0.0
        %7071 = vmatpush1.msra.mxu0 0.0
        %7072 = vmatprep.subr.mxu0 0.0
        %7073 = vmatpush1.msra.mxu0 0.0
        %7074 = vmatprep.subr.mxu0 0.0
        %7075 = vmatpush1.msra.mxu0 0.0
        %7076 = vmatprep.subr.mxu0 0.0
        %7077 = vmatpush1.msra.mxu0 0.0
        %7078 = vmatprep.subr.mxu0 0.0
        %7079 = vmatpush1.msra.mxu0 0.0
        %7080 = vmatprep.subr.mxu0 0.0
        %7081 = vmatpush1.msra.mxu0 0.0
        %7082 = vmatprep.subr.mxu0 0.0
        %7083 = vmatpush1.msra.mxu0 0.0
        %7084 = vmatprep.subr.mxu0 0.0
        %7085 = vmatpush1.msra.mxu0 0.0
        %7086 = vmatprep.subr.mxu0 0.0
        %7087 = vmatpush1.msra.mxu0 0.0
        %7088 = vmatprep.subr.mxu0 0.0
        %7089 = vmatpush1.msra.mxu0 0.0
        %7090 = vmatprep.subr.mxu0 0.0
        %7091 = vmatpush1.msra.mxu0 0.0
        %7092 = vmatprep.subr.mxu0 0.0
        %7093 = vmatpush1.msra.mxu0 0.0
        %7094 = vmatprep.subr.mxu0 0.0
        %7095 = vmatpush1.msra.mxu0 0.0
        %7096 = vmatprep.subr.mxu0 0.0
        %7097 = vmatpush1.msra.mxu0 0.0
        %7098 = vmatprep.subr.mxu0 0.0
        %7099 = vmatpush1.msra.mxu0 %v7048
        %7100 = vmatprep.subr.mxu0 0.0
        %7101 = vmatpush1.msra.mxu0 %v7047
        %7102 = vmatprep.subr.mxu0 0.0
        %7103 = vmatpush2.msra.mxu0 0.0
        %7104 = vmatprep.subr.mxu0 0.0
        %7105 = vmatpush2.msra.mxu0 0.0
        %7106 = vmatprep.subr.mxu0 0.0
        %7107 = vmatpush2.msra.mxu0 0.0
        %7108 = vmatprep.subr.mxu0 0.0
        %7109 = vmatpush2.msra.mxu0 0.0
        %7110 = vmatprep.subr.mxu0 0.0
        %7111 = vmatpush2.msra.mxu0 0.0
        %7112 = vmatprep.subr.mxu0 0.0
        %7113 = vmatpush2.msra.mxu0 0.0
        %7114 = vmatprep.subr.mxu0 0.0
        %7115 = vmatpush2.msra.mxu0 0.0
        %7116 = vmatprep.subr.mxu0 0.0
        %7117 = vmatpush2.msra.mxu0 0.0
        %7118 = vmatprep.subr.mxu0 0.0
        %7119 = vmatpush2.msra.mxu0 0.0
        %7120 = vmatprep.subr.mxu0 0.0
        %7121 = vmatpush2.msra.mxu0 0.0
        %7122 = vmatprep.subr.mxu0 0.0
        %7123 = vmatpush2.msra.mxu0 0.0
        %7124 = vmatprep.subr.mxu0 0.0
        %7125 = vmatpush2.msra.mxu0 0.0
        %7126 = vmatprep.subr.mxu0 0.0
        %7127 = vmatpush2.msra.mxu0 0.0
        %7128 = vmatprep.subr.mxu0 0.0
        %7129 = vmatpush2.msra.mxu0 0.0
        %7130 = vmatprep.subr.mxu0 0.0
        %7131 = vmatpush2.msra.mxu0 0.0
        %7132 = vmatprep.subr.mxu0 0.0
        %7133 = vmatpush2.msra.mxu0 0.0
        %7134 = vmatprep.mubr.f32.mxu0 0.0
        %7135 = vmatmul.mubr.f32.gmra.mxu0 %v7050
        %v7136 = vpop.f32.mrf.mxu0
        %v7137 = vadd.f32 0.0, %v7136
        %v7138 = vpop.f32.mrf.mxu0
        %7139 = vmatprep.mubr.f32.mxu0 0.0
        %7140 = vmatmul.mubr.f32.gmra.mxu0 %v7053
        %v7141 = vpop.f32.mrf.mxu0
        %v7142 = vadd.f32 0.0, %v7141
        %v7143 = vpop.f32.mrf.mxu0
        %7144 = vmatprep.mubr.f32.mxu0 0.0
        %7145 = vmatmul.mubr.f32.gmra.mxu0 %v7056
        %v7146 = vpop.f32.mrf.mxu0
        %v7147 = vadd.f32 0.0, %v7146
        %v7148 = vpop.f32.mrf.mxu0
        %7149 = vmatprep.mubr.f32.mxu0 0.0
        %7150 = vmatmul.mubr.f32.gmra.mxu0 %v7059
        %v7151 = vpop.f32.mrf.mxu0
        %v7152 = vadd.f32 0.0, %v7151
        %v7153 = vpop.f32.mrf.mxu0
        %7154 = vmatprep.mubr.f32.mxu0 0.0
        %7155 = vmatmul.mubr.f32.gmra.mxu0 %v7062
        %v7156 = vpop.f32.mrf.mxu0
        %v7157 = vadd.f32 0.0, %v7156
        %v7158 = vpop.f32.mrf.mxu0
        %7159 = vmatprep.mubr.f32.mxu0 0.0
        %7160 = vmatmul.mubr.f32.gmra.mxu0 %v7065
        %v7161 = vpop.f32.mrf.mxu0
        %v7162 = vadd.f32 0.0, %v7161
        %v7163 = vpop.f32.mrf.mxu0
        %7164 = vmatprep.mubr.f32.mxu0 0.0
        %7165 = vmatmul.mubr.f32.gmra.mxu0 %v7068
        %v7166 = vpop.f32.mrf.mxu0
        %v7167 = vadd.f32 0.0, %v7166
        %v7168 = vpop.f32.mrf.mxu0
        %7169 = vdwg.mxu0
        %v7170 = vadd.f32 %v7032, %v7137
        %v7171 = vadd.f32 %v7033, %v7142
        %v7172 = vadd.f32 %v7034, %v7147
        %v7173 = vadd.f32 %v7035, %v7152
        %v7174 = vadd.f32 %v7036, %v7157
        %v7175 = vadd.f32 %v7037, %v7162
        %v7176 = vadd.f32 %v7038, %v7167
        %v7177 = vld [vmem:[#allocation4 + $0x8] sm:$0xff]
        %v7178 = vld [vmem:[#allocation4 + $0x10] sm:$0xff]
        %v7179 = vld [vmem:[#allocation4 + $0x18] sm:$0xff]
        %v7180 = vld [vmem:[#allocation4 + $0x20] sm:$0xff]
        %v7181 = vld [vmem:[#allocation4 + $0x28] sm:$0xff]
        %v7182 = vld [vmem:[#allocation4 + $0x30] sm:$0xff]
        %v7183 = vld [vmem:[#allocation4 + $0x38] sm:$0xff]
        %s7184 = scalar_lea.vmem %s16, 48
        %v7185 = vld [vmem:[%s7184] sm:$0xff]
        %v7186 = vld [vmem:[%s7184 + $0x8] sm:$0xff]
        %v7188 = vsel %vm804, %v7177, 0
        %v7191 = vsel %vm804, %v7178, 0
        %v7194 = vsel %vm804, %v7179, 0
        %v7197 = vsel %vm804, %v7180, 0
        %v7200 = vsel %vm804, %v7181, 0
        %v7203 = vsel %vm804, %v7182, 0
        %v7206 = vsel %vm804, %v7183, 0
        %7208 = vmatprep.subr.mxu0 0.0
        %7209 = vmatpush1.msra.mxu0 0.0
        %7210 = vmatprep.subr.mxu0 0.0
        %7211 = vmatpush1.msra.mxu0 0.0
        %7212 = vmatprep.subr.mxu0 0.0
        %7213 = vmatpush1.msra.mxu0 0.0
        %7214 = vmatprep.subr.mxu0 0.0
        %7215 = vmatpush1.msra.mxu0 0.0
        %7216 = vmatprep.subr.mxu0 0.0
        %7217 = vmatpush1.msra.mxu0 0.0
        %7218 = vmatprep.subr.mxu0 0.0
        %7219 = vmatpush1.msra.mxu0 0.0
        %7220 = vmatprep.subr.mxu0 0.0
        %7221 = vmatpush1.msra.mxu0 0.0
        %7222 = vmatprep.subr.mxu0 0.0
        %7223 = vmatpush1.msra.mxu0 0.0
        %7224 = vmatprep.subr.mxu0 0.0
        %7225 = vmatpush1.msra.mxu0 0.0
        %7226 = vmatprep.subr.mxu0 0.0
        %7227 = vmatpush1.msra.mxu0 0.0
        %7228 = vmatprep.subr.mxu0 0.0
        %7229 = vmatpush1.msra.mxu0 0.0
        %7230 = vmatprep.subr.mxu0 0.0
        %7231 = vmatpush1.msra.mxu0 0.0
        %7232 = vmatprep.subr.mxu0 0.0
        %7233 = vmatpush1.msra.mxu0 0.0
        %7234 = vmatprep.subr.mxu0 0.0
        %7235 = vmatpush1.msra.mxu0 0.0
        %7236 = vmatprep.subr.mxu0 0.0
        %7237 = vmatpush1.msra.mxu0 %v7186
        %7238 = vmatprep.subr.mxu0 0.0
        %7239 = vmatpush1.msra.mxu0 %v7185
        %7240 = vmatprep.subr.mxu0 0.0
        %7241 = vmatpush2.msra.mxu0 0.0
        %7242 = vmatprep.subr.mxu0 0.0
        %7243 = vmatpush2.msra.mxu0 0.0
        %7244 = vmatprep.subr.mxu0 0.0
        %7245 = vmatpush2.msra.mxu0 0.0
        %7246 = vmatprep.subr.mxu0 0.0
        %7247 = vmatpush2.msra.mxu0 0.0
        %7248 = vmatprep.subr.mxu0 0.0
        %7249 = vmatpush2.msra.mxu0 0.0
        %7250 = vmatprep.subr.mxu0 0.0
        %7251 = vmatpush2.msra.mxu0 0.0
        %7252 = vmatprep.subr.mxu0 0.0
        %7253 = vmatpush2.msra.mxu0 0.0
        %7254 = vmatprep.subr.mxu0 0.0
        %7255 = vmatpush2.msra.mxu0 0.0
        %7256 = vmatprep.subr.mxu0 0.0
        %7257 = vmatpush2.msra.mxu0 0.0
        %7258 = vmatprep.subr.mxu0 0.0
        %7259 = vmatpush2.msra.mxu0 0.0
        %7260 = vmatprep.subr.mxu0 0.0
        %7261 = vmatpush2.msra.mxu0 0.0
        %7262 = vmatprep.subr.mxu0 0.0
        %7263 = vmatpush2.msra.mxu0 0.0
        %7264 = vmatprep.subr.mxu0 0.0
        %7265 = vmatpush2.msra.mxu0 0.0
        %7266 = vmatprep.subr.mxu0 0.0
        %7267 = vmatpush2.msra.mxu0 0.0
        %7268 = vmatprep.subr.mxu0 0.0
        %7269 = vmatpush2.msra.mxu0 0.0
        %7270 = vmatprep.subr.mxu0 0.0
        %7271 = vmatpush2.msra.mxu0 0.0
        %7272 = vmatprep.mubr.f32.mxu0 0.0
        %7273 = vmatmul.mubr.f32.gmra.mxu0 %v7188
        %v7274 = vpop.f32.mrf.mxu0
        %v7275 = vadd.f32 0.0, %v7274
        %v7276 = vpop.f32.mrf.mxu0
        %7277 = vmatprep.mubr.f32.mxu0 0.0
        %7278 = vmatmul.mubr.f32.gmra.mxu0 %v7191
        %v7279 = vpop.f32.mrf.mxu0
        %v7280 = vadd.f32 0.0, %v7279
        %v7281 = vpop.f32.mrf.mxu0
        %7282 = vmatprep.mubr.f32.mxu0 0.0
        %7283 = vmatmul.mubr.f32.gmra.mxu0 %v7194
        %v7284 = vpop.f32.mrf.mxu0
        %v7285 = vadd.f32 0.0, %v7284
        %v7286 = vpop.f32.mrf.mxu0
        %7287 = vmatprep.mubr.f32.mxu0 0.0
        %7288 = vmatmul.mubr.f32.gmra.mxu0 %v7197
        %v7289 = vpop.f32.mrf.mxu0
        %v7290 = vadd.f32 0.0, %v7289
        %v7291 = vpop.f32.mrf.mxu0
        %7292 = vmatprep.mubr.f32.mxu0 0.0
        %7293 = vmatmul.mubr.f32.gmra.mxu0 %v7200
        %v7294 = vpop.f32.mrf.mxu0
        %v7295 = vadd.f32 0.0, %v7294
        %v7296 = vpop.f32.mrf.mxu0
        %7297 = vmatprep.mubr.f32.mxu0 0.0
        %7298 = vmatmul.mubr.f32.gmra.mxu0 %v7203
        %v7299 = vpop.f32.mrf.mxu0
        %v7300 = vadd.f32 0.0, %v7299
        %v7301 = vpop.f32.mrf.mxu0
        %7302 = vmatprep.mubr.f32.mxu0 0.0
        %7303 = vmatmul.mubr.f32.gmra.mxu0 %v7206
        %v7304 = vpop.f32.mrf.mxu0
        %v7305 = vadd.f32 0.0, %v7304
        %v7306 = vpop.f32.mrf.mxu0
        %7307 = vdwg.mxu0
        %v7308 = vadd.f32 %v7170, %v7275
        %v7309 = vadd.f32 %v7171, %v7280
        %v7310 = vadd.f32 %v7172, %v7285
        %v7311 = vadd.f32 %v7173, %v7290
        %v7312 = vadd.f32 %v7174, %v7295
        %v7313 = vadd.f32 %v7175, %v7300
        %v7314 = vadd.f32 %v7176, %v7305
        %v7315 = vld [vmem:[%s694 + $0x8] sm:$0xff]
        %v7316 = vld [vmem:[%s694 + $0x10] sm:$0xff]
        %v7317 = vld [vmem:[%s694 + $0x18] sm:$0xff]
        %v7318 = vld [vmem:[%s694 + $0x20] sm:$0xff]
        %v7319 = vld [vmem:[%s694 + $0x28] sm:$0xff]
        %v7320 = vld [vmem:[%s694 + $0x30] sm:$0xff]
        %v7321 = vld [vmem:[%s694 + $0x38] sm:$0xff]
        %s7322 = scalar_lea.vmem %s17, 48
        %v7323 = vld [vmem:[%s7322] sm:$0xff]
        %v7324 = vld [vmem:[%s7322 + $0x8] sm:$0xff]
        %v7326 = vsel %vm804, %v7315, 0
        %v7329 = vsel %vm804, %v7316, 0
        %v7332 = vsel %vm804, %v7317, 0
        %v7335 = vsel %vm804, %v7318, 0
        %v7338 = vsel %vm804, %v7319, 0
        %v7341 = vsel %vm804, %v7320, 0
        %v7344 = vsel %vm804, %v7321, 0
        %7346 = vmatprep.subr.mxu0 0.0
        %7347 = vmatpush1.msra.mxu0 0.0
        %7348 = vmatprep.subr.mxu0 0.0
        %7349 = vmatpush1.msra.mxu0 0.0
        %7350 = vmatprep.subr.mxu0 0.0
        %7351 = vmatpush1.msra.mxu0 0.0
        %7352 = vmatprep.subr.mxu0 0.0
        %7353 = vmatpush1.msra.mxu0 0.0
        %7354 = vmatprep.subr.mxu0 0.0
        %7355 = vmatpush1.msra.mxu0 0.0
        %7356 = vmatprep.subr.mxu0 0.0
        %7357 = vmatpush1.msra.mxu0 0.0
        %7358 = vmatprep.subr.mxu0 0.0
        %7359 = vmatpush1.msra.mxu0 0.0
        %7360 = vmatprep.subr.mxu0 0.0
        %7361 = vmatpush1.msra.mxu0 0.0
        %7362 = vmatprep.subr.mxu0 0.0
        %7363 = vmatpush1.msra.mxu0 0.0
        %7364 = vmatprep.subr.mxu0 0.0
        %7365 = vmatpush1.msra.mxu0 0.0
        %7366 = vmatprep.subr.mxu0 0.0
        %7367 = vmatpush1.msra.mxu0 0.0
        %7368 = vmatprep.subr.mxu0 0.0
        %7369 = vmatpush1.msra.mxu0 0.0
        %7370 = vmatprep.subr.mxu0 0.0
        %7371 = vmatpush1.msra.mxu0 0.0
        %7372 = vmatprep.subr.mxu0 0.0
        %7373 = vmatpush1.msra.mxu0 0.0
        %7374 = vmatprep.subr.mxu0 0.0
        %7375 = vmatpush1.msra.mxu0 %v7324
        %7376 = vmatprep.subr.mxu0 0.0
        %7377 = vmatpush1.msra.mxu0 %v7323
        %7378 = vmatprep.subr.mxu0 0.0
        %7379 = vmatpush2.msra.mxu0 0.0
        %7380 = vmatprep.subr.mxu0 0.0
        %7381 = vmatpush2.msra.mxu0 0.0
        %7382 = vmatprep.subr.mxu0 0.0
        %7383 = vmatpush2.msra.mxu0 0.0
        %7384 = vmatprep.subr.mxu0 0.0
        %7385 = vmatpush2.msra.mxu0 0.0
        %7386 = vmatprep.subr.mxu0 0.0
        %7387 = vmatpush2.msra.mxu0 0.0
        %7388 = vmatprep.subr.mxu0 0.0
        %7389 = vmatpush2.msra.mxu0 0.0
        %7390 = vmatprep.subr.mxu0 0.0
        %7391 = vmatpush2.msra.mxu0 0.0
        %7392 = vmatprep.subr.mxu0 0.0
        %7393 = vmatpush2.msra.mxu0 0.0
        %7394 = vmatprep.subr.mxu0 0.0
        %7395 = vmatpush2.msra.mxu0 0.0
        %7396 = vmatprep.subr.mxu0 0.0
        %7397 = vmatpush2.msra.mxu0 0.0
        %7398 = vmatprep.subr.mxu0 0.0
        %7399 = vmatpush2.msra.mxu0 0.0
        %7400 = vmatprep.subr.mxu0 0.0
        %7401 = vmatpush2.msra.mxu0 0.0
        %7402 = vmatprep.subr.mxu0 0.0
        %7403 = vmatpush2.msra.mxu0 0.0
        %7404 = vmatprep.subr.mxu0 0.0
        %7405 = vmatpush2.msra.mxu0 0.0
        %7406 = vmatprep.subr.mxu0 0.0
        %7407 = vmatpush2.msra.mxu0 0.0
        %7408 = vmatprep.subr.mxu0 0.0
        %7409 = vmatpush2.msra.mxu0 0.0
        %7410 = vmatprep.mubr.f32.mxu0 0.0
        %7411 = vmatmul.mubr.f32.gmra.mxu0 %v7326
        %v7412 = vpop.f32.mrf.mxu0
        %v7413 = vadd.f32 0.0, %v7412
        %v7414 = vpop.f32.mrf.mxu0
        %7415 = vmatprep.mubr.f32.mxu0 0.0
        %7416 = vmatmul.mubr.f32.gmra.mxu0 %v7329
        %v7417 = vpop.f32.mrf.mxu0
        %v7418 = vadd.f32 0.0, %v7417
        %v7419 = vpop.f32.mrf.mxu0
        %7420 = vmatprep.mubr.f32.mxu0 0.0
        %7421 = vmatmul.mubr.f32.gmra.mxu0 %v7332
        %v7422 = vpop.f32.mrf.mxu0
        %v7423 = vadd.f32 0.0, %v7422
        %v7424 = vpop.f32.mrf.mxu0
        %7425 = vmatprep.mubr.f32.mxu0 0.0
        %7426 = vmatmul.mubr.f32.gmra.mxu0 %v7335
        %v7427 = vpop.f32.mrf.mxu0
        %v7428 = vadd.f32 0.0, %v7427
        %v7429 = vpop.f32.mrf.mxu0
        %7430 = vmatprep.mubr.f32.mxu0 0.0
        %7431 = vmatmul.mubr.f32.gmra.mxu0 %v7338
        %v7432 = vpop.f32.mrf.mxu0
        %v7433 = vadd.f32 0.0, %v7432
        %v7434 = vpop.f32.mrf.mxu0
        %7435 = vmatprep.mubr.f32.mxu0 0.0
        %7436 = vmatmul.mubr.f32.gmra.mxu0 %v7341
        %v7437 = vpop.f32.mrf.mxu0
        %v7438 = vadd.f32 0.0, %v7437
        %v7439 = vpop.f32.mrf.mxu0
        %7440 = vmatprep.mubr.f32.mxu0 0.0
        %7441 = vmatmul.mubr.f32.gmra.mxu0 %v7344
        %v7442 = vpop.f32.mrf.mxu0
        %v7443 = vadd.f32 0.0, %v7442
        %v7444 = vpop.f32.mrf.mxu0
        %7445 = vdwg.mxu0
        %v7446 = vadd.f32 %v7308, %v7413
        %v7447 = vadd.f32 %v7309, %v7418
        %v7448 = vadd.f32 %v7310, %v7423
        %v7449 = vadd.f32 %v7311, %v7428
        %v7450 = vadd.f32 %v7312, %v7433
        %v7451 = vadd.f32 %v7313, %v7438
        %v7452 = vadd.f32 %v7314, %v7443
        %v7453 = vld [vmem:[#allocation4 + $0x9] sm:$0xff]
        %v7454 = vld [vmem:[#allocation4 + $0x11] sm:$0xff]
        %v7455 = vld [vmem:[#allocation4 + $0x19] sm:$0xff]
        %v7456 = vld [vmem:[#allocation4 + $0x21] sm:$0xff]
        %v7457 = vld [vmem:[#allocation4 + $0x29] sm:$0xff]
        %v7458 = vld [vmem:[#allocation4 + $0x31] sm:$0xff]
        %v7459 = vld [vmem:[#allocation4 + $0x39] sm:$0xff]
        %s7460 = scalar_lea.vmem %s16, 64
        %v7461 = vld [vmem:[%s7460] sm:$0xff]
        %v7462 = vld [vmem:[%s7460 + $0x8] sm:$0xff]
        %v7464 = vsel %vm804, %v7453, 0
        %v7467 = vsel %vm804, %v7454, 0
        %v7470 = vsel %vm804, %v7455, 0
        %v7473 = vsel %vm804, %v7456, 0
        %v7476 = vsel %vm804, %v7457, 0
        %v7479 = vsel %vm804, %v7458, 0
        %v7482 = vsel %vm804, %v7459, 0
        %7484 = vmatprep.subr.mxu0 0.0
        %7485 = vmatpush1.msra.mxu0 0.0
        %7486 = vmatprep.subr.mxu0 0.0
        %7487 = vmatpush1.msra.mxu0 0.0
        %7488 = vmatprep.subr.mxu0 0.0
        %7489 = vmatpush1.msra.mxu0 0.0
        %7490 = vmatprep.subr.mxu0 0.0
        %7491 = vmatpush1.msra.mxu0 0.0
        %7492 = vmatprep.subr.mxu0 0.0
        %7493 = vmatpush1.msra.mxu0 0.0
        %7494 = vmatprep.subr.mxu0 0.0
        %7495 = vmatpush1.msra.mxu0 0.0
        %7496 = vmatprep.subr.mxu0 0.0
        %7497 = vmatpush1.msra.mxu0 0.0
        %7498 = vmatprep.subr.mxu0 0.0
        %7499 = vmatpush1.msra.mxu0 0.0
        %7500 = vmatprep.subr.mxu0 0.0
        %7501 = vmatpush1.msra.mxu0 0.0
        %7502 = vmatprep.subr.mxu0 0.0
        %7503 = vmatpush1.msra.mxu0 0.0
        %7504 = vmatprep.subr.mxu0 0.0
        %7505 = vmatpush1.msra.mxu0 0.0
        %7506 = vmatprep.subr.mxu0 0.0
        %7507 = vmatpush1.msra.mxu0 0.0
        %7508 = vmatprep.subr.mxu0 0.0
        %7509 = vmatpush1.msra.mxu0 0.0
        %7510 = vmatprep.subr.mxu0 0.0
        %7511 = vmatpush1.msra.mxu0 0.0
        %7512 = vmatprep.subr.mxu0 0.0
        %7513 = vmatpush1.msra.mxu0 %v7462
        %7514 = vmatprep.subr.mxu0 0.0
        %7515 = vmatpush1.msra.mxu0 %v7461
        %7516 = vmatprep.subr.mxu0 0.0
        %7517 = vmatpush2.msra.mxu0 0.0
        %7518 = vmatprep.subr.mxu0 0.0
        %7519 = vmatpush2.msra.mxu0 0.0
        %7520 = vmatprep.subr.mxu0 0.0
        %7521 = vmatpush2.msra.mxu0 0.0
        %7522 = vmatprep.subr.mxu0 0.0
        %7523 = vmatpush2.msra.mxu0 0.0
        %7524 = vmatprep.subr.mxu0 0.0
        %7525 = vmatpush2.msra.mxu0 0.0
        %7526 = vmatprep.subr.mxu0 0.0
        %7527 = vmatpush2.msra.mxu0 0.0
        %7528 = vmatprep.subr.mxu0 0.0
        %7529 = vmatpush2.msra.mxu0 0.0
        %7530 = vmatprep.subr.mxu0 0.0
        %7531 = vmatpush2.msra.mxu0 0.0
        %7532 = vmatprep.subr.mxu0 0.0
        %7533 = vmatpush2.msra.mxu0 0.0
        %7534 = vmatprep.subr.mxu0 0.0
        %7535 = vmatpush2.msra.mxu0 0.0
        %7536 = vmatprep.subr.mxu0 0.0
        %7537 = vmatpush2.msra.mxu0 0.0
        %7538 = vmatprep.subr.mxu0 0.0
        %7539 = vmatpush2.msra.mxu0 0.0
        %7540 = vmatprep.subr.mxu0 0.0
        %7541 = vmatpush2.msra.mxu0 0.0
        %7542 = vmatprep.subr.mxu0 0.0
        %7543 = vmatpush2.msra.mxu0 0.0
        %7544 = vmatprep.subr.mxu0 0.0
        %7545 = vmatpush2.msra.mxu0 0.0
        %7546 = vmatprep.subr.mxu0 0.0
        %7547 = vmatpush2.msra.mxu0 0.0
        %7548 = vmatprep.mubr.f32.mxu0 0.0
        %7549 = vmatmul.mubr.f32.gmra.mxu0 %v7464
        %v7550 = vpop.f32.mrf.mxu0
        %v7551 = vadd.f32 0.0, %v7550
        %v7552 = vpop.f32.mrf.mxu0
        %7553 = vmatprep.mubr.f32.mxu0 0.0
        %7554 = vmatmul.mubr.f32.gmra.mxu0 %v7467
        %v7555 = vpop.f32.mrf.mxu0
        %v7556 = vadd.f32 0.0, %v7555
        %v7557 = vpop.f32.mrf.mxu0
        %7558 = vmatprep.mubr.f32.mxu0 0.0
        %7559 = vmatmul.mubr.f32.gmra.mxu0 %v7470
        %v7560 = vpop.f32.mrf.mxu0
        %v7561 = vadd.f32 0.0, %v7560
        %v7562 = vpop.f32.mrf.mxu0
        %7563 = vmatprep.mubr.f32.mxu0 0.0
        %7564 = vmatmul.mubr.f32.gmra.mxu0 %v7473
        %v7565 = vpop.f32.mrf.mxu0
        %v7566 = vadd.f32 0.0, %v7565
        %v7567 = vpop.f32.mrf.mxu0
        %7568 = vmatprep.mubr.f32.mxu0 0.0
        %7569 = vmatmul.mubr.f32.gmra.mxu0 %v7476
        %v7570 = vpop.f32.mrf.mxu0
        %v7571 = vadd.f32 0.0, %v7570
        %v7572 = vpop.f32.mrf.mxu0
        %7573 = vmatprep.mubr.f32.mxu0 0.0
        %7574 = vmatmul.mubr.f32.gmra.mxu0 %v7479
        %v7575 = vpop.f32.mrf.mxu0
        %v7576 = vadd.f32 0.0, %v7575
        %v7577 = vpop.f32.mrf.mxu0
        %7578 = vmatprep.mubr.f32.mxu0 0.0
        %7579 = vmatmul.mubr.f32.gmra.mxu0 %v7482
        %v7580 = vpop.f32.mrf.mxu0
        %v7581 = vadd.f32 0.0, %v7580
        %v7582 = vpop.f32.mrf.mxu0
        %7583 = vdwg.mxu0
        %v7584 = vadd.f32 %v7446, %v7551
        %v7585 = vadd.f32 %v7447, %v7556
        %v7586 = vadd.f32 %v7448, %v7561
        %v7587 = vadd.f32 %v7449, %v7566
        %v7588 = vadd.f32 %v7450, %v7571
        %v7589 = vadd.f32 %v7451, %v7576
        %v7590 = vadd.f32 %v7452, %v7581
        %v7591 = vld [vmem:[%s694 + $0x9] sm:$0xff]
        %v7592 = vld [vmem:[%s694 + $0x11] sm:$0xff]
        %v7593 = vld [vmem:[%s694 + $0x19] sm:$0xff]
        %v7594 = vld [vmem:[%s694 + $0x21] sm:$0xff]
        %v7595 = vld [vmem:[%s694 + $0x29] sm:$0xff]
        %v7596 = vld [vmem:[%s694 + $0x31] sm:$0xff]
        %v7597 = vld [vmem:[%s694 + $0x39] sm:$0xff]
        %s7598 = scalar_lea.vmem %s17, 64
        %v7599 = vld [vmem:[%s7598] sm:$0xff]
        %v7600 = vld [vmem:[%s7598 + $0x8] sm:$0xff]
        %v7602 = vsel %vm804, %v7591, 0
        %v7605 = vsel %vm804, %v7592, 0
        %v7608 = vsel %vm804, %v7593, 0
        %v7611 = vsel %vm804, %v7594, 0
        %v7614 = vsel %vm804, %v7595, 0
        %v7617 = vsel %vm804, %v7596, 0
        %v7620 = vsel %vm804, %v7597, 0
        %7622 = vmatprep.subr.mxu0 0.0
        %7623 = vmatpush1.msra.mxu0 0.0
        %7624 = vmatprep.subr.mxu0 0.0
        %7625 = vmatpush1.msra.mxu0 0.0
        %7626 = vmatprep.subr.mxu0 0.0
        %7627 = vmatpush1.msra.mxu0 0.0
        %7628 = vmatprep.subr.mxu0 0.0
        %7629 = vmatpush1.msra.mxu0 0.0
        %7630 = vmatprep.subr.mxu0 0.0
        %7631 = vmatpush1.msra.mxu0 0.0
        %7632 = vmatprep.subr.mxu0 0.0
        %7633 = vmatpush1.msra.mxu0 0.0
        %7634 = vmatprep.subr.mxu0 0.0
        %7635 = vmatpush1.msra.mxu0 0.0
        %7636 = vmatprep.subr.mxu0 0.0
        %7637 = vmatpush1.msra.mxu0 0.0
        %7638 = vmatprep.subr.mxu0 0.0
        %7639 = vmatpush1.msra.mxu0 0.0
        %7640 = vmatprep.subr.mxu0 0.0
        %7641 = vmatpush1.msra.mxu0 0.0
        %7642 = vmatprep.subr.mxu0 0.0
        %7643 = vmatpush1.msra.mxu0 0.0
        %7644 = vmatprep.subr.mxu0 0.0
        %7645 = vmatpush1.msra.mxu0 0.0
        %7646 = vmatprep.subr.mxu0 0.0
        %7647 = vmatpush1.msra.mxu0 0.0
        %7648 = vmatprep.subr.mxu0 0.0
        %7649 = vmatpush1.msra.mxu0 0.0
        %7650 = vmatprep.subr.mxu0 0.0
        %7651 = vmatpush1.msra.mxu0 %v7600
        %7652 = vmatprep.subr.mxu0 0.0
        %7653 = vmatpush1.msra.mxu0 %v7599
        %7654 = vmatprep.subr.mxu0 0.0
        %7655 = vmatpush2.msra.mxu0 0.0
        %7656 = vmatprep.subr.mxu0 0.0
        %7657 = vmatpush2.msra.mxu0 0.0
        %7658 = vmatprep.subr.mxu0 0.0
        %7659 = vmatpush2.msra.mxu0 0.0
        %7660 = vmatprep.subr.mxu0 0.0
        %7661 = vmatpush2.msra.mxu0 0.0
        %7662 = vmatprep.subr.mxu0 0.0
        %7663 = vmatpush2.msra.mxu0 0.0
        %7664 = vmatprep.subr.mxu0 0.0
        %7665 = vmatpush2.msra.mxu0 0.0
        %7666 = vmatprep.subr.mxu0 0.0
        %7667 = vmatpush2.msra.mxu0 0.0
        %7668 = vmatprep.subr.mxu0 0.0
        %7669 = vmatpush2.msra.mxu0 0.0
        %7670 = vmatprep.subr.mxu0 0.0
        %7671 = vmatpush2.msra.mxu0 0.0
        %7672 = vmatprep.subr.mxu0 0.0
        %7673 = vmatpush2.msra.mxu0 0.0
        %7674 = vmatprep.subr.mxu0 0.0
        %7675 = vmatpush2.msra.mxu0 0.0
        %7676 = vmatprep.subr.mxu0 0.0
        %7677 = vmatpush2.msra.mxu0 0.0
        %7678 = vmatprep.subr.mxu0 0.0
        %7679 = vmatpush2.msra.mxu0 0.0
        %7680 = vmatprep.subr.mxu0 0.0
        %7681 = vmatpush2.msra.mxu0 0.0
        %7682 = vmatprep.subr.mxu0 0.0
        %7683 = vmatpush2.msra.mxu0 0.0
        %7684 = vmatprep.subr.mxu0 0.0
        %7685 = vmatpush2.msra.mxu0 0.0
        %7686 = vmatprep.mubr.f32.mxu0 0.0
        %7687 = vmatmul.mubr.f32.gmra.mxu0 %v7602
        %v7688 = vpop.f32.mrf.mxu0
        %v7689 = vadd.f32 0.0, %v7688
        %v7690 = vpop.f32.mrf.mxu0
        %7691 = vmatprep.mubr.f32.mxu0 0.0
        %7692 = vmatmul.mubr.f32.gmra.mxu0 %v7605
        %v7693 = vpop.f32.mrf.mxu0
        %v7694 = vadd.f32 0.0, %v7693
        %v7695 = vpop.f32.mrf.mxu0
        %7696 = vmatprep.mubr.f32.mxu0 0.0
        %7697 = vmatmul.mubr.f32.gmra.mxu0 %v7608
        %v7698 = vpop.f32.mrf.mxu0
        %v7699 = vadd.f32 0.0, %v7698
        %v7700 = vpop.f32.mrf.mxu0
        %7701 = vmatprep.mubr.f32.mxu0 0.0
        %7702 = vmatmul.mubr.f32.gmra.mxu0 %v7611
        %v7703 = vpop.f32.mrf.mxu0
        %v7704 = vadd.f32 0.0, %v7703
        %v7705 = vpop.f32.mrf.mxu0
        %7706 = vmatprep.mubr.f32.mxu0 0.0
        %7707 = vmatmul.mubr.f32.gmra.mxu0 %v7614
        %v7708 = vpop.f32.mrf.mxu0
        %v7709 = vadd.f32 0.0, %v7708
        %v7710 = vpop.f32.mrf.mxu0
        %7711 = vmatprep.mubr.f32.mxu0 0.0
        %7712 = vmatmul.mubr.f32.gmra.mxu0 %v7617
        %v7713 = vpop.f32.mrf.mxu0
        %v7714 = vadd.f32 0.0, %v7713
        %v7715 = vpop.f32.mrf.mxu0
        %7716 = vmatprep.mubr.f32.mxu0 0.0
        %7717 = vmatmul.mubr.f32.gmra.mxu0 %v7620
        %v7718 = vpop.f32.mrf.mxu0
        %v7719 = vadd.f32 0.0, %v7718
        %v7720 = vpop.f32.mrf.mxu0
        %7721 = vdwg.mxu0
        %v7722 = vadd.f32 %v7584, %v7689
        %v7723 = vadd.f32 %v7585, %v7694
        %v7724 = vadd.f32 %v7586, %v7699
        %v7725 = vadd.f32 %v7587, %v7704
        %v7726 = vadd.f32 %v7588, %v7709
        %v7727 = vadd.f32 %v7589, %v7714
        %v7728 = vadd.f32 %v7590, %v7719
        %v7729 = vld [vmem:[#allocation4 + $0xa] sm:$0xff]
        %v7730 = vld [vmem:[#allocation4 + $0x12] sm:$0xff]
        %v7731 = vld [vmem:[#allocation4 + $0x1a] sm:$0xff]
        %v7732 = vld [vmem:[#allocation4 + $0x22] sm:$0xff]
        %v7733 = vld [vmem:[#allocation4 + $0x2a] sm:$0xff]
        %v7734 = vld [vmem:[#allocation4 + $0x32] sm:$0xff]
        %v7735 = vld [vmem:[#allocation4 + $0x3a] sm:$0xff]
        %s7736 = scalar_lea.vmem %s16, 80
        %v7737 = vld [vmem:[%s7736] sm:$0xff]
        %v7738 = vld [vmem:[%s7736 + $0x8] sm:$0xff]
        %v7740 = vsel %vm804, %v7729, 0
        %v7743 = vsel %vm804, %v7730, 0
        %v7746 = vsel %vm804, %v7731, 0
        %v7749 = vsel %vm804, %v7732, 0
        %v7752 = vsel %vm804, %v7733, 0
        %v7755 = vsel %vm804, %v7734, 0
        %v7758 = vsel %vm804, %v7735, 0
        %7760 = vmatprep.subr.mxu0 0.0
        %7761 = vmatpush1.msra.mxu0 0.0
        %7762 = vmatprep.subr.mxu0 0.0
        %7763 = vmatpush1.msra.mxu0 0.0
        %7764 = vmatprep.subr.mxu0 0.0
        %7765 = vmatpush1.msra.mxu0 0.0
        %7766 = vmatprep.subr.mxu0 0.0
        %7767 = vmatpush1.msra.mxu0 0.0
        %7768 = vmatprep.subr.mxu0 0.0
        %7769 = vmatpush1.msra.mxu0 0.0
        %7770 = vmatprep.subr.mxu0 0.0
        %7771 = vmatpush1.msra.mxu0 0.0
        %7772 = vmatprep.subr.mxu0 0.0
        %7773 = vmatpush1.msra.mxu0 0.0
        %7774 = vmatprep.subr.mxu0 0.0
        %7775 = vmatpush1.msra.mxu0 0.0
        %7776 = vmatprep.subr.mxu0 0.0
        %7777 = vmatpush1.msra.mxu0 0.0
        %7778 = vmatprep.subr.mxu0 0.0
        %7779 = vmatpush1.msra.mxu0 0.0
        %7780 = vmatprep.subr.mxu0 0.0
        %7781 = vmatpush1.msra.mxu0 0.0
        %7782 = vmatprep.subr.mxu0 0.0
        %7783 = vmatpush1.msra.mxu0 0.0
        %7784 = vmatprep.subr.mxu0 0.0
        %7785 = vmatpush1.msra.mxu0 0.0
        %7786 = vmatprep.subr.mxu0 0.0
        %7787 = vmatpush1.msra.mxu0 0.0
        %7788 = vmatprep.subr.mxu0 0.0
        %7789 = vmatpush1.msra.mxu0 %v7738
        %7790 = vmatprep.subr.mxu0 0.0
        %7791 = vmatpush1.msra.mxu0 %v7737
        %7792 = vmatprep.subr.mxu0 0.0
        %7793 = vmatpush2.msra.mxu0 0.0
        %7794 = vmatprep.subr.mxu0 0.0
        %7795 = vmatpush2.msra.mxu0 0.0
        %7796 = vmatprep.subr.mxu0 0.0
        %7797 = vmatpush2.msra.mxu0 0.0
        %7798 = vmatprep.subr.mxu0 0.0
        %7799 = vmatpush2.msra.mxu0 0.0
        %7800 = vmatprep.subr.mxu0 0.0
        %7801 = vmatpush2.msra.mxu0 0.0
        %7802 = vmatprep.subr.mxu0 0.0
        %7803 = vmatpush2.msra.mxu0 0.0
        %7804 = vmatprep.subr.mxu0 0.0
        %7805 = vmatpush2.msra.mxu0 0.0
        %7806 = vmatprep.subr.mxu0 0.0
        %7807 = vmatpush2.msra.mxu0 0.0
        %7808 = vmatprep.subr.mxu0 0.0
        %7809 = vmatpush2.msra.mxu0 0.0
        %7810 = vmatprep.subr.mxu0 0.0
        %7811 = vmatpush2.msra.mxu0 0.0
        %7812 = vmatprep.subr.mxu0 0.0
        %7813 = vmatpush2.msra.mxu0 0.0
        %7814 = vmatprep.subr.mxu0 0.0
        %7815 = vmatpush2.msra.mxu0 0.0
        %7816 = vmatprep.subr.mxu0 0.0
        %7817 = vmatpush2.msra.mxu0 0.0
        %7818 = vmatprep.subr.mxu0 0.0
        %7819 = vmatpush2.msra.mxu0 0.0
        %7820 = vmatprep.subr.mxu0 0.0
        %7821 = vmatpush2.msra.mxu0 0.0
        %7822 = vmatprep.subr.mxu0 0.0
        %7823 = vmatpush2.msra.mxu0 0.0
        %7824 = vmatprep.mubr.f32.mxu0 0.0
        %7825 = vmatmul.mubr.f32.gmra.mxu0 %v7740
        %v7826 = vpop.f32.mrf.mxu0
        %v7827 = vadd.f32 0.0, %v7826
        %v7828 = vpop.f32.mrf.mxu0
        %7829 = vmatprep.mubr.f32.mxu0 0.0
        %7830 = vmatmul.mubr.f32.gmra.mxu0 %v7743
        %v7831 = vpop.f32.mrf.mxu0
        %v7832 = vadd.f32 0.0, %v7831
        %v7833 = vpop.f32.mrf.mxu0
        %7834 = vmatprep.mubr.f32.mxu0 0.0
        %7835 = vmatmul.mubr.f32.gmra.mxu0 %v7746
        %v7836 = vpop.f32.mrf.mxu0
        %v7837 = vadd.f32 0.0, %v7836
        %v7838 = vpop.f32.mrf.mxu0
        %7839 = vmatprep.mubr.f32.mxu0 0.0
        %7840 = vmatmul.mubr.f32.gmra.mxu0 %v7749
        %v7841 = vpop.f32.mrf.mxu0
        %v7842 = vadd.f32 0.0, %v7841
        %v7843 = vpop.f32.mrf.mxu0
        %7844 = vmatprep.mubr.f32.mxu0 0.0
        %7845 = vmatmul.mubr.f32.gmra.mxu0 %v7752
        %v7846 = vpop.f32.mrf.mxu0
        %v7847 = vadd.f32 0.0, %v7846
        %v7848 = vpop.f32.mrf.mxu0
        %7849 = vmatprep.mubr.f32.mxu0 0.0
        %7850 = vmatmul.mubr.f32.gmra.mxu0 %v7755
        %v7851 = vpop.f32.mrf.mxu0
        %v7852 = vadd.f32 0.0, %v7851
        %v7853 = vpop.f32.mrf.mxu0
        %7854 = vmatprep.mubr.f32.mxu0 0.0
        %7855 = vmatmul.mubr.f32.gmra.mxu0 %v7758
        %v7856 = vpop.f32.mrf.mxu0
        %v7857 = vadd.f32 0.0, %v7856
        %v7858 = vpop.f32.mrf.mxu0
        %7859 = vdwg.mxu0
        %v7860 = vadd.f32 %v7722, %v7827
        %v7861 = vadd.f32 %v7723, %v7832
        %v7862 = vadd.f32 %v7724, %v7837
        %v7863 = vadd.f32 %v7725, %v7842
        %v7864 = vadd.f32 %v7726, %v7847
        %v7865 = vadd.f32 %v7727, %v7852
        %v7866 = vadd.f32 %v7728, %v7857
        %v7867 = vld [vmem:[%s694 + $0xa] sm:$0xff]
        %v7868 = vld [vmem:[%s694 + $0x12] sm:$0xff]
        %v7869 = vld [vmem:[%s694 + $0x1a] sm:$0xff]
        %v7870 = vld [vmem:[%s694 + $0x22] sm:$0xff]
        %v7871 = vld [vmem:[%s694 + $0x2a] sm:$0xff]
        %v7872 = vld [vmem:[%s694 + $0x32] sm:$0xff]
        %v7873 = vld [vmem:[%s694 + $0x3a] sm:$0xff]
        %s7874 = scalar_lea.vmem %s17, 80
        %v7875 = vld [vmem:[%s7874] sm:$0xff]
        %v7876 = vld [vmem:[%s7874 + $0x8] sm:$0xff]
        %v7878 = vsel %vm804, %v7867, 0
        %v7881 = vsel %vm804, %v7868, 0
        %v7884 = vsel %vm804, %v7869, 0
        %v7887 = vsel %vm804, %v7870, 0
        %v7890 = vsel %vm804, %v7871, 0
        %v7893 = vsel %vm804, %v7872, 0
        %v7896 = vsel %vm804, %v7873, 0
        %7898 = vmatprep.subr.mxu0 0.0
        %7899 = vmatpush1.msra.mxu0 0.0
        %7900 = vmatprep.subr.mxu0 0.0
        %7901 = vmatpush1.msra.mxu0 0.0
        %7902 = vmatprep.subr.mxu0 0.0
        %7903 = vmatpush1.msra.mxu0 0.0
        %7904 = vmatprep.subr.mxu0 0.0
        %7905 = vmatpush1.msra.mxu0 0.0
        %7906 = vmatprep.subr.mxu0 0.0
        %7907 = vmatpush1.msra.mxu0 0.0
        %7908 = vmatprep.subr.mxu0 0.0
        %7909 = vmatpush1.msra.mxu0 0.0
        %7910 = vmatprep.subr.mxu0 0.0
        %7911 = vmatpush1.msra.mxu0 0.0
        %7912 = vmatprep.subr.mxu0 0.0
        %7913 = vmatpush1.msra.mxu0 0.0
        %7914 = vmatprep.subr.mxu0 0.0
        %7915 = vmatpush1.msra.mxu0 0.0
        %7916 = vmatprep.subr.mxu0 0.0
        %7917 = vmatpush1.msra.mxu0 0.0
        %7918 = vmatprep.subr.mxu0 0.0
        %7919 = vmatpush1.msra.mxu0 0.0
        %7920 = vmatprep.subr.mxu0 0.0
        %7921 = vmatpush1.msra.mxu0 0.0
        %7922 = vmatprep.subr.mxu0 0.0
        %7923 = vmatpush1.msra.mxu0 0.0
        %7924 = vmatprep.subr.mxu0 0.0
        %7925 = vmatpush1.msra.mxu0 0.0
        %7926 = vmatprep.subr.mxu0 0.0
        %7927 = vmatpush1.msra.mxu0 %v7876
        %7928 = vmatprep.subr.mxu0 0.0
        %7929 = vmatpush1.msra.mxu0 %v7875
        %7930 = vmatprep.subr.mxu0 0.0
        %7931 = vmatpush2.msra.mxu0 0.0
        %7932 = vmatprep.subr.mxu0 0.0
        %7933 = vmatpush2.msra.mxu0 0.0
        %7934 = vmatprep.subr.mxu0 0.0
        %7935 = vmatpush2.msra.mxu0 0.0
        %7936 = vmatprep.subr.mxu0 0.0
        %7937 = vmatpush2.msra.mxu0 0.0
        %7938 = vmatprep.subr.mxu0 0.0
        %7939 = vmatpush2.msra.mxu0 0.0
        %7940 = vmatprep.subr.mxu0 0.0
        %7941 = vmatpush2.msra.mxu0 0.0
        %7942 = vmatprep.subr.mxu0 0.0
        %7943 = vmatpush2.msra.mxu0 0.0
        %7944 = vmatprep.subr.mxu0 0.0
        %7945 = vmatpush2.msra.mxu0 0.0
        %7946 = vmatprep.subr.mxu0 0.0
        %7947 = vmatpush2.msra.mxu0 0.0
        %7948 = vmatprep.subr.mxu0 0.0
        %7949 = vmatpush2.msra.mxu0 0.0
        %7950 = vmatprep.subr.mxu0 0.0
        %7951 = vmatpush2.msra.mxu0 0.0
        %7952 = vmatprep.subr.mxu0 0.0
        %7953 = vmatpush2.msra.mxu0 0.0
        %7954 = vmatprep.subr.mxu0 0.0
        %7955 = vmatpush2.msra.mxu0 0.0
        %7956 = vmatprep.subr.mxu0 0.0
        %7957 = vmatpush2.msra.mxu0 0.0
        %7958 = vmatprep.subr.mxu0 0.0
        %7959 = vmatpush2.msra.mxu0 0.0
        %7960 = vmatprep.subr.mxu0 0.0
        %7961 = vmatpush2.msra.mxu0 0.0
        %7962 = vmatprep.mubr.f32.mxu0 0.0
        %7963 = vmatmul.mubr.f32.gmra.mxu0 %v7878
        %v7964 = vpop.f32.mrf.mxu0
        %v7965 = vadd.f32 0.0, %v7964
        %v7966 = vpop.f32.mrf.mxu0
        %7967 = vmatprep.mubr.f32.mxu0 0.0
        %7968 = vmatmul.mubr.f32.gmra.mxu0 %v7881
        %v7969 = vpop.f32.mrf.mxu0
        %v7970 = vadd.f32 0.0, %v7969
        %v7971 = vpop.f32.mrf.mxu0
        %7972 = vmatprep.mubr.f32.mxu0 0.0
        %7973 = vmatmul.mubr.f32.gmra.mxu0 %v7884
        %v7974 = vpop.f32.mrf.mxu0
        %v7975 = vadd.f32 0.0, %v7974
        %v7976 = vpop.f32.mrf.mxu0
        %7977 = vmatprep.mubr.f32.mxu0 0.0
        %7978 = vmatmul.mubr.f32.gmra.mxu0 %v7887
        %v7979 = vpop.f32.mrf.mxu0
        %v7980 = vadd.f32 0.0, %v7979
        %v7981 = vpop.f32.mrf.mxu0
        %7982 = vmatprep.mubr.f32.mxu0 0.0
        %7983 = vmatmul.mubr.f32.gmra.mxu0 %v7890
        %v7984 = vpop.f32.mrf.mxu0
        %v7985 = vadd.f32 0.0, %v7984
        %v7986 = vpop.f32.mrf.mxu0
        %7987 = vmatprep.mubr.f32.mxu0 0.0
        %7988 = vmatmul.mubr.f32.gmra.mxu0 %v7893
        %v7989 = vpop.f32.mrf.mxu0
        %v7990 = vadd.f32 0.0, %v7989
        %v7991 = vpop.f32.mrf.mxu0
        %7992 = vmatprep.mubr.f32.mxu0 0.0
        %7993 = vmatmul.mubr.f32.gmra.mxu0 %v7896
        %v7994 = vpop.f32.mrf.mxu0
        %v7995 = vadd.f32 0.0, %v7994
        %v7996 = vpop.f32.mrf.mxu0
        %7997 = vdwg.mxu0
        %v7998 = vadd.f32 %v7860, %v7965
        %v7999 = vadd.f32 %v7861, %v7970
        %v8000 = vadd.f32 %v7862, %v7975
        %v8001 = vadd.f32 %v7863, %v7980
        %v8002 = vadd.f32 %v7864, %v7985
        %v8003 = vadd.f32 %v7865, %v7990
        %v8004 = vadd.f32 %v7866, %v7995
        %v8005 = vld [vmem:[#allocation4 + $0x10] sm:$0xff]
        %v8006 = vld [vmem:[#allocation4 + $0x18] sm:$0xff]
        %v8007 = vld [vmem:[#allocation4 + $0x20] sm:$0xff]
        %v8008 = vld [vmem:[#allocation4 + $0x28] sm:$0xff]
        %v8009 = vld [vmem:[#allocation4 + $0x30] sm:$0xff]
        %v8010 = vld [vmem:[#allocation4 + $0x38] sm:$0xff]
        %v8011 = vld [vmem:[#allocation4 + $0x40] sm:$0xff]
        %s8012 = scalar_lea.vmem %s16, 96
        %v8013 = vld [vmem:[%s8012] sm:$0xff]
        %v8014 = vld [vmem:[%s8012 + $0x8] sm:$0xff]
        %v8016 = vsel %vm804, %v8005, 0
        %v8019 = vsel %vm804, %v8006, 0
        %v8022 = vsel %vm804, %v8007, 0
        %v8025 = vsel %vm804, %v8008, 0
        %v8028 = vsel %vm804, %v8009, 0
        %v8031 = vsel %vm804, %v8010, 0
        %v8034 = vsel %vm804, %v8011, 0
        %8036 = vmatprep.subr.mxu0 0.0
        %8037 = vmatpush1.msra.mxu0 0.0
        %8038 = vmatprep.subr.mxu0 0.0
        %8039 = vmatpush1.msra.mxu0 0.0
        %8040 = vmatprep.subr.mxu0 0.0
        %8041 = vmatpush1.msra.mxu0 0.0
        %8042 = vmatprep.subr.mxu0 0.0
        %8043 = vmatpush1.msra.mxu0 0.0
        %8044 = vmatprep.subr.mxu0 0.0
        %8045 = vmatpush1.msra.mxu0 0.0
        %8046 = vmatprep.subr.mxu0 0.0
        %8047 = vmatpush1.msra.mxu0 0.0
        %8048 = vmatprep.subr.mxu0 0.0
        %8049 = vmatpush1.msra.mxu0 0.0
        %8050 = vmatprep.subr.mxu0 0.0
        %8051 = vmatpush1.msra.mxu0 0.0
        %8052 = vmatprep.subr.mxu0 0.0
        %8053 = vmatpush1.msra.mxu0 0.0
        %8054 = vmatprep.subr.mxu0 0.0
        %8055 = vmatpush1.msra.mxu0 0.0
        %8056 = vmatprep.subr.mxu0 0.0
        %8057 = vmatpush1.msra.mxu0 0.0
        %8058 = vmatprep.subr.mxu0 0.0
        %8059 = vmatpush1.msra.mxu0 0.0
        %8060 = vmatprep.subr.mxu0 0.0
        %8061 = vmatpush1.msra.mxu0 0.0
        %8062 = vmatprep.subr.mxu0 0.0
        %8063 = vmatpush1.msra.mxu0 0.0
        %8064 = vmatprep.subr.mxu0 0.0
        %8065 = vmatpush1.msra.mxu0 %v8014
        %8066 = vmatprep.subr.mxu0 0.0
        %8067 = vmatpush1.msra.mxu0 %v8013
        %8068 = vmatprep.subr.mxu0 0.0
        %8069 = vmatpush2.msra.mxu0 0.0
        %8070 = vmatprep.subr.mxu0 0.0
        %8071 = vmatpush2.msra.mxu0 0.0
        %8072 = vmatprep.subr.mxu0 0.0
        %8073 = vmatpush2.msra.mxu0 0.0
        %8074 = vmatprep.subr.mxu0 0.0
        %8075 = vmatpush2.msra.mxu0 0.0
        %8076 = vmatprep.subr.mxu0 0.0
        %8077 = vmatpush2.msra.mxu0 0.0
        %8078 = vmatprep.subr.mxu0 0.0
        %8079 = vmatpush2.msra.mxu0 0.0
        %8080 = vmatprep.subr.mxu0 0.0
        %8081 = vmatpush2.msra.mxu0 0.0
        %8082 = vmatprep.subr.mxu0 0.0
        %8083 = vmatpush2.msra.mxu0 0.0
        %8084 = vmatprep.subr.mxu0 0.0
        %8085 = vmatpush2.msra.mxu0 0.0
        %8086 = vmatprep.subr.mxu0 0.0
        %8087 = vmatpush2.msra.mxu0 0.0
        %8088 = vmatprep.subr.mxu0 0.0
        %8089 = vmatpush2.msra.mxu0 0.0
        %8090 = vmatprep.subr.mxu0 0.0
        %8091 = vmatpush2.msra.mxu0 0.0
        %8092 = vmatprep.subr.mxu0 0.0
        %8093 = vmatpush2.msra.mxu0 0.0
        %8094 = vmatprep.subr.mxu0 0.0
        %8095 = vmatpush2.msra.mxu0 0.0
        %8096 = vmatprep.subr.mxu0 0.0
        %8097 = vmatpush2.msra.mxu0 0.0
        %8098 = vmatprep.subr.mxu0 0.0
        %8099 = vmatpush2.msra.mxu0 0.0
        %8100 = vmatprep.mubr.f32.mxu0 0.0
        %8101 = vmatmul.mubr.f32.gmra.mxu0 %v8016
        %v8102 = vpop.f32.mrf.mxu0
        %v8103 = vadd.f32 0.0, %v8102
        %v8104 = vpop.f32.mrf.mxu0
        %8105 = vmatprep.mubr.f32.mxu0 0.0
        %8106 = vmatmul.mubr.f32.gmra.mxu0 %v8019
        %v8107 = vpop.f32.mrf.mxu0
        %v8108 = vadd.f32 0.0, %v8107
        %v8109 = vpop.f32.mrf.mxu0
        %8110 = vmatprep.mubr.f32.mxu0 0.0
        %8111 = vmatmul.mubr.f32.gmra.mxu0 %v8022
        %v8112 = vpop.f32.mrf.mxu0
        %v8113 = vadd.f32 0.0, %v8112
        %v8114 = vpop.f32.mrf.mxu0
        %8115 = vmatprep.mubr.f32.mxu0 0.0
        %8116 = vmatmul.mubr.f32.gmra.mxu0 %v8025
        %v8117 = vpop.f32.mrf.mxu0
        %v8118 = vadd.f32 0.0, %v8117
        %v8119 = vpop.f32.mrf.mxu0
        %8120 = vmatprep.mubr.f32.mxu0 0.0
        %8121 = vmatmul.mubr.f32.gmra.mxu0 %v8028
        %v8122 = vpop.f32.mrf.mxu0
        %v8123 = vadd.f32 0.0, %v8122
        %v8124 = vpop.f32.mrf.mxu0
        %8125 = vmatprep.mubr.f32.mxu0 0.0
        %8126 = vmatmul.mubr.f32.gmra.mxu0 %v8031
        %v8127 = vpop.f32.mrf.mxu0
        %v8128 = vadd.f32 0.0, %v8127
        %v8129 = vpop.f32.mrf.mxu0
        %8130 = vmatprep.mubr.f32.mxu0 0.0
        %8131 = vmatmul.mubr.f32.gmra.mxu0 %v8034
        %v8132 = vpop.f32.mrf.mxu0
        %v8133 = vadd.f32 0.0, %v8132
        %v8134 = vpop.f32.mrf.mxu0
        %8135 = vdwg.mxu0
        %v8136 = vadd.f32 %v7998, %v8103
        %v8137 = vadd.f32 %v7999, %v8108
        %v8138 = vadd.f32 %v8000, %v8113
        %v8139 = vadd.f32 %v8001, %v8118
        %v8140 = vadd.f32 %v8002, %v8123
        %v8141 = vadd.f32 %v8003, %v8128
        %v8142 = vadd.f32 %v8004, %v8133
        %v8143 = vld [vmem:[%s694 + $0x10] sm:$0xff]
        %v8144 = vld [vmem:[%s694 + $0x18] sm:$0xff]
        %v8145 = vld [vmem:[%s694 + $0x20] sm:$0xff]
        %v8146 = vld [vmem:[%s694 + $0x28] sm:$0xff]
        %v8147 = vld [vmem:[%s694 + $0x30] sm:$0xff]
        %v8148 = vld [vmem:[%s694 + $0x38] sm:$0xff]
        %v8149 = vld [vmem:[%s694 + $0x40] sm:$0xff]
        %s8150 = scalar_lea.vmem %s17, 96
        %v8151 = vld [vmem:[%s8150] sm:$0xff]
        %v8152 = vld [vmem:[%s8150 + $0x8] sm:$0xff]
        %v8154 = vsel %vm804, %v8143, 0
        %v8157 = vsel %vm804, %v8144, 0
        %v8160 = vsel %vm804, %v8145, 0
        %v8163 = vsel %vm804, %v8146, 0
        %v8166 = vsel %vm804, %v8147, 0
        %v8169 = vsel %vm804, %v8148, 0
        %v8172 = vsel %vm804, %v8149, 0
        %8174 = vmatprep.subr.mxu0 0.0
        %8175 = vmatpush1.msra.mxu0 0.0
        %8176 = vmatprep.subr.mxu0 0.0
        %8177 = vmatpush1.msra.mxu0 0.0
        %8178 = vmatprep.subr.mxu0 0.0
        %8179 = vmatpush1.msra.mxu0 0.0
        %8180 = vmatprep.subr.mxu0 0.0
        %8181 = vmatpush1.msra.mxu0 0.0
        %8182 = vmatprep.subr.mxu0 0.0
        %8183 = vmatpush1.msra.mxu0 0.0
        %8184 = vmatprep.subr.mxu0 0.0
        %8185 = vmatpush1.msra.mxu0 0.0
        %8186 = vmatprep.subr.mxu0 0.0
        %8187 = vmatpush1.msra.mxu0 0.0
        %8188 = vmatprep.subr.mxu0 0.0
        %8189 = vmatpush1.msra.mxu0 0.0
        %8190 = vmatprep.subr.mxu0 0.0
        %8191 = vmatpush1.msra.mxu0 0.0
        %8192 = vmatprep.subr.mxu0 0.0
        %8193 = vmatpush1.msra.mxu0 0.0
        %8194 = vmatprep.subr.mxu0 0.0
        %8195 = vmatpush1.msra.mxu0 0.0
        %8196 = vmatprep.subr.mxu0 0.0
        %8197 = vmatpush1.msra.mxu0 0.0
        %8198 = vmatprep.subr.mxu0 0.0
        %8199 = vmatpush1.msra.mxu0 0.0
        %8200 = vmatprep.subr.mxu0 0.0
        %8201 = vmatpush1.msra.mxu0 0.0
        %8202 = vmatprep.subr.mxu0 0.0
        %8203 = vmatpush1.msra.mxu0 %v8152
        %8204 = vmatprep.subr.mxu0 0.0
        %8205 = vmatpush1.msra.mxu0 %v8151
        %8206 = vmatprep.subr.mxu0 0.0
        %8207 = vmatpush2.msra.mxu0 0.0
        %8208 = vmatprep.subr.mxu0 0.0
        %8209 = vmatpush2.msra.mxu0 0.0
        %8210 = vmatprep.subr.mxu0 0.0
        %8211 = vmatpush2.msra.mxu0 0.0
        %8212 = vmatprep.subr.mxu0 0.0
        %8213 = vmatpush2.msra.mxu0 0.0
        %8214 = vmatprep.subr.mxu0 0.0
        %8215 = vmatpush2.msra.mxu0 0.0
        %8216 = vmatprep.subr.mxu0 0.0
        %8217 = vmatpush2.msra.mxu0 0.0
        %8218 = vmatprep.subr.mxu0 0.0
        %8219 = vmatpush2.msra.mxu0 0.0
        %8220 = vmatprep.subr.mxu0 0.0
        %8221 = vmatpush2.msra.mxu0 0.0
        %8222 = vmatprep.subr.mxu0 0.0
        %8223 = vmatpush2.msra.mxu0 0.0
        %8224 = vmatprep.subr.mxu0 0.0
        %8225 = vmatpush2.msra.mxu0 0.0
        %8226 = vmatprep.subr.mxu0 0.0
        %8227 = vmatpush2.msra.mxu0 0.0
        %8228 = vmatprep.subr.mxu0 0.0
        %8229 = vmatpush2.msra.mxu0 0.0
        %8230 = vmatprep.subr.mxu0 0.0
        %8231 = vmatpush2.msra.mxu0 0.0
        %8232 = vmatprep.subr.mxu0 0.0
        %8233 = vmatpush2.msra.mxu0 0.0
        %8234 = vmatprep.subr.mxu0 0.0
        %8235 = vmatpush2.msra.mxu0 0.0
        %8236 = vmatprep.subr.mxu0 0.0
        %8237 = vmatpush2.msra.mxu0 0.0
        %8238 = vmatprep.mubr.f32.mxu0 0.0
        %8239 = vmatmul.mubr.f32.gmra.mxu0 %v8154
        %v8240 = vpop.f32.mrf.mxu0
        %v8241 = vadd.f32 0.0, %v8240
        %v8242 = vpop.f32.mrf.mxu0
        %8243 = vmatprep.mubr.f32.mxu0 0.0
        %8244 = vmatmul.mubr.f32.gmra.mxu0 %v8157
        %v8245 = vpop.f32.mrf.mxu0
        %v8246 = vadd.f32 0.0, %v8245
        %v8247 = vpop.f32.mrf.mxu0
        %8248 = vmatprep.mubr.f32.mxu0 0.0
        %8249 = vmatmul.mubr.f32.gmra.mxu0 %v8160
        %v8250 = vpop.f32.mrf.mxu0
        %v8251 = vadd.f32 0.0, %v8250
        %v8252 = vpop.f32.mrf.mxu0
        %8253 = vmatprep.mubr.f32.mxu0 0.0
        %8254 = vmatmul.mubr.f32.gmra.mxu0 %v8163
        %v8255 = vpop.f32.mrf.mxu0
        %v8256 = vadd.f32 0.0, %v8255
        %v8257 = vpop.f32.mrf.mxu0
        %8258 = vmatprep.mubr.f32.mxu0 0.0
        %8259 = vmatmul.mubr.f32.gmra.mxu0 %v8166
        %v8260 = vpop.f32.mrf.mxu0
        %v8261 = vadd.f32 0.0, %v8260
        %v8262 = vpop.f32.mrf.mxu0
        %8263 = vmatprep.mubr.f32.mxu0 0.0
        %8264 = vmatmul.mubr.f32.gmra.mxu0 %v8169
        %v8265 = vpop.f32.mrf.mxu0
        %v8266 = vadd.f32 0.0, %v8265
        %v8267 = vpop.f32.mrf.mxu0
        %8268 = vmatprep.mubr.f32.mxu0 0.0
        %8269 = vmatmul.mubr.f32.gmra.mxu0 %v8172
        %v8270 = vpop.f32.mrf.mxu0
        %v8271 = vadd.f32 0.0, %v8270
        %v8272 = vpop.f32.mrf.mxu0
        %8273 = vdwg.mxu0
        %v8274 = vadd.f32 %v8136, %v8241
        %v8275 = vadd.f32 %v8137, %v8246
        %v8276 = vadd.f32 %v8138, %v8251
        %v8277 = vadd.f32 %v8139, %v8256
        %v8278 = vadd.f32 %v8140, %v8261
        %v8279 = vadd.f32 %v8141, %v8266
        %v8280 = vadd.f32 %v8142, %v8271
        %v8281 = vld [vmem:[#allocation4 + $0x11] sm:$0xff]
        %v8282 = vld [vmem:[#allocation4 + $0x19] sm:$0xff]
        %v8283 = vld [vmem:[#allocation4 + $0x21] sm:$0xff]
        %v8284 = vld [vmem:[#allocation4 + $0x29] sm:$0xff]
        %v8285 = vld [vmem:[#allocation4 + $0x31] sm:$0xff]
        %v8286 = vld [vmem:[#allocation4 + $0x39] sm:$0xff]
        %v8287 = vld [vmem:[#allocation4 + $0x41] sm:$0xff]
        %s8288 = scalar_lea.vmem %s16, 112
        %v8289 = vld [vmem:[%s8288] sm:$0xff]
        %v8290 = vld [vmem:[%s8288 + $0x8] sm:$0xff]
        %v8292 = vsel %vm804, %v8281, 0
        %v8295 = vsel %vm804, %v8282, 0
        %v8298 = vsel %vm804, %v8283, 0
        %v8301 = vsel %vm804, %v8284, 0
        %v8304 = vsel %vm804, %v8285, 0
        %v8307 = vsel %vm804, %v8286, 0
        %v8310 = vsel %vm804, %v8287, 0
        %8312 = vmatprep.subr.mxu0 0.0
        %8313 = vmatpush1.msra.mxu0 0.0
        %8314 = vmatprep.subr.mxu0 0.0
        %8315 = vmatpush1.msra.mxu0 0.0
        %8316 = vmatprep.subr.mxu0 0.0
        %8317 = vmatpush1.msra.mxu0 0.0
        %8318 = vmatprep.subr.mxu0 0.0
        %8319 = vmatpush1.msra.mxu0 0.0
        %8320 = vmatprep.subr.mxu0 0.0
        %8321 = vmatpush1.msra.mxu0 0.0
        %8322 = vmatprep.subr.mxu0 0.0
        %8323 = vmatpush1.msra.mxu0 0.0
        %8324 = vmatprep.subr.mxu0 0.0
        %8325 = vmatpush1.msra.mxu0 0.0
        %8326 = vmatprep.subr.mxu0 0.0
        %8327 = vmatpush1.msra.mxu0 0.0
        %8328 = vmatprep.subr.mxu0 0.0
        %8329 = vmatpush1.msra.mxu0 0.0
        %8330 = vmatprep.subr.mxu0 0.0
        %8331 = vmatpush1.msra.mxu0 0.0
        %8332 = vmatprep.subr.mxu0 0.0
        %8333 = vmatpush1.msra.mxu0 0.0
        %8334 = vmatprep.subr.mxu0 0.0
        %8335 = vmatpush1.msra.mxu0 0.0
        %8336 = vmatprep.subr.mxu0 0.0
        %8337 = vmatpush1.msra.mxu0 0.0
        %8338 = vmatprep.subr.mxu0 0.0
        %8339 = vmatpush1.msra.mxu0 0.0
        %8340 = vmatprep.subr.mxu0 0.0
        %8341 = vmatpush1.msra.mxu0 %v8290
        %8342 = vmatprep.subr.mxu0 0.0
        %8343 = vmatpush1.msra.mxu0 %v8289
        %8344 = vmatprep.subr.mxu0 0.0
        %8345 = vmatpush2.msra.mxu0 0.0
        %8346 = vmatprep.subr.mxu0 0.0
        %8347 = vmatpush2.msra.mxu0 0.0
        %8348 = vmatprep.subr.mxu0 0.0
        %8349 = vmatpush2.msra.mxu0 0.0
        %8350 = vmatprep.subr.mxu0 0.0
        %8351 = vmatpush2.msra.mxu0 0.0
        %8352 = vmatprep.subr.mxu0 0.0
        %8353 = vmatpush2.msra.mxu0 0.0
        %8354 = vmatprep.subr.mxu0 0.0
        %8355 = vmatpush2.msra.mxu0 0.0
        %8356 = vmatprep.subr.mxu0 0.0
        %8357 = vmatpush2.msra.mxu0 0.0
        %8358 = vmatprep.subr.mxu0 0.0
        %8359 = vmatpush2.msra.mxu0 0.0
        %8360 = vmatprep.subr.mxu0 0.0
        %8361 = vmatpush2.msra.mxu0 0.0
        %8362 = vmatprep.subr.mxu0 0.0
        %8363 = vmatpush2.msra.mxu0 0.0
        %8364 = vmatprep.subr.mxu0 0.0
        %8365 = vmatpush2.msra.mxu0 0.0
        %8366 = vmatprep.subr.mxu0 0.0
        %8367 = vmatpush2.msra.mxu0 0.0
        %8368 = vmatprep.subr.mxu0 0.0
        %8369 = vmatpush2.msra.mxu0 0.0
        %8370 = vmatprep.subr.mxu0 0.0
        %8371 = vmatpush2.msra.mxu0 0.0
        %8372 = vmatprep.subr.mxu0 0.0
        %8373 = vmatpush2.msra.mxu0 0.0
        %8374 = vmatprep.subr.mxu0 0.0
        %8375 = vmatpush2.msra.mxu0 0.0
        %8376 = vmatprep.mubr.f32.mxu0 0.0
        %8377 = vmatmul.mubr.f32.gmra.mxu0 %v8292
        %v8378 = vpop.f32.mrf.mxu0
        %v8379 = vadd.f32 0.0, %v8378
        %v8380 = vpop.f32.mrf.mxu0
        %8381 = vmatprep.mubr.f32.mxu0 0.0
        %8382 = vmatmul.mubr.f32.gmra.mxu0 %v8295
        %v8383 = vpop.f32.mrf.mxu0
        %v8384 = vadd.f32 0.0, %v8383
        %v8385 = vpop.f32.mrf.mxu0
        %8386 = vmatprep.mubr.f32.mxu0 0.0
        %8387 = vmatmul.mubr.f32.gmra.mxu0 %v8298
        %v8388 = vpop.f32.mrf.mxu0
        %v8389 = vadd.f32 0.0, %v8388
        %v8390 = vpop.f32.mrf.mxu0
        %8391 = vmatprep.mubr.f32.mxu0 0.0
        %8392 = vmatmul.mubr.f32.gmra.mxu0 %v8301
        %v8393 = vpop.f32.mrf.mxu0
        %v8394 = vadd.f32 0.0, %v8393
        %v8395 = vpop.f32.mrf.mxu0
        %8396 = vmatprep.mubr.f32.mxu0 0.0
        %8397 = vmatmul.mubr.f32.gmra.mxu0 %v8304
        %v8398 = vpop.f32.mrf.mxu0
        %v8399 = vadd.f32 0.0, %v8398
        %v8400 = vpop.f32.mrf.mxu0
        %8401 = vmatprep.mubr.f32.mxu0 0.0
        %8402 = vmatmul.mubr.f32.gmra.mxu0 %v8307
        %v8403 = vpop.f32.mrf.mxu0
        %v8404 = vadd.f32 0.0, %v8403
        %v8405 = vpop.f32.mrf.mxu0
        %8406 = vmatprep.mubr.f32.mxu0 0.0
        %8407 = vmatmul.mubr.f32.gmra.mxu0 %v8310
        %v8408 = vpop.f32.mrf.mxu0
        %v8409 = vadd.f32 0.0, %v8408
        %v8410 = vpop.f32.mrf.mxu0
        %8411 = vdwg.mxu0
        %v8412 = vadd.f32 %v8274, %v8379
        %v8413 = vadd.f32 %v8275, %v8384
        %v8414 = vadd.f32 %v8276, %v8389
        %v8415 = vadd.f32 %v8277, %v8394
        %v8416 = vadd.f32 %v8278, %v8399
        %v8417 = vadd.f32 %v8279, %v8404
        %v8418 = vadd.f32 %v8280, %v8409
        %v8419 = vld [vmem:[%s694 + $0x11] sm:$0xff]
        %v8420 = vld [vmem:[%s694 + $0x19] sm:$0xff]
        %v8421 = vld [vmem:[%s694 + $0x21] sm:$0xff]
        %v8422 = vld [vmem:[%s694 + $0x29] sm:$0xff]
        %v8423 = vld [vmem:[%s694 + $0x31] sm:$0xff]
        %v8424 = vld [vmem:[%s694 + $0x39] sm:$0xff]
        %v8425 = vld [vmem:[%s694 + $0x41] sm:$0xff]
        %s8426 = scalar_lea.vmem %s17, 112
        %v8427 = vld [vmem:[%s8426] sm:$0xff]
        %v8428 = vld [vmem:[%s8426 + $0x8] sm:$0xff]
        %v8430 = vsel %vm804, %v8419, 0
        %v8433 = vsel %vm804, %v8420, 0
        %v8436 = vsel %vm804, %v8421, 0
        %v8439 = vsel %vm804, %v8422, 0
        %v8442 = vsel %vm804, %v8423, 0
        %v8445 = vsel %vm804, %v8424, 0
        %v8448 = vsel %vm804, %v8425, 0
        %8450 = vmatprep.subr.mxu0 0.0
        %8451 = vmatpush1.msra.mxu0 0.0
        %8452 = vmatprep.subr.mxu0 0.0
        %8453 = vmatpush1.msra.mxu0 0.0
        %8454 = vmatprep.subr.mxu0 0.0
        %8455 = vmatpush1.msra.mxu0 0.0
        %8456 = vmatprep.subr.mxu0 0.0
        %8457 = vmatpush1.msra.mxu0 0.0
        %8458 = vmatprep.subr.mxu0 0.0
        %8459 = vmatpush1.msra.mxu0 0.0
        %8460 = vmatprep.subr.mxu0 0.0
        %8461 = vmatpush1.msra.mxu0 0.0
        %8462 = vmatprep.subr.mxu0 0.0
        %8463 = vmatpush1.msra.mxu0 0.0
        %8464 = vmatprep.subr.mxu0 0.0
        %8465 = vmatpush1.msra.mxu0 0.0
        %8466 = vmatprep.subr.mxu0 0.0
        %8467 = vmatpush1.msra.mxu0 0.0
        %8468 = vmatprep.subr.mxu0 0.0
        %8469 = vmatpush1.msra.mxu0 0.0
        %8470 = vmatprep.subr.mxu0 0.0
        %8471 = vmatpush1.msra.mxu0 0.0
        %8472 = vmatprep.subr.mxu0 0.0
        %8473 = vmatpush1.msra.mxu0 0.0
        %8474 = vmatprep.subr.mxu0 0.0
        %8475 = vmatpush1.msra.mxu0 0.0
        %8476 = vmatprep.subr.mxu0 0.0
        %8477 = vmatpush1.msra.mxu0 0.0
        %8478 = vmatprep.subr.mxu0 0.0
        %8479 = vmatpush1.msra.mxu0 %v8428
        %8480 = vmatprep.subr.mxu0 0.0
        %8481 = vmatpush1.msra.mxu0 %v8427
        %8482 = vmatprep.subr.mxu0 0.0
        %8483 = vmatpush2.msra.mxu0 0.0
        %8484 = vmatprep.subr.mxu0 0.0
        %8485 = vmatpush2.msra.mxu0 0.0
        %8486 = vmatprep.subr.mxu0 0.0
        %8487 = vmatpush2.msra.mxu0 0.0
        %8488 = vmatprep.subr.mxu0 0.0
        %8489 = vmatpush2.msra.mxu0 0.0
        %8490 = vmatprep.subr.mxu0 0.0
        %8491 = vmatpush2.msra.mxu0 0.0
        %8492 = vmatprep.subr.mxu0 0.0
        %8493 = vmatpush2.msra.mxu0 0.0
        %8494 = vmatprep.subr.mxu0 0.0
        %8495 = vmatpush2.msra.mxu0 0.0
        %8496 = vmatprep.subr.mxu0 0.0
        %8497 = vmatpush2.msra.mxu0 0.0
        %8498 = vmatprep.subr.mxu0 0.0
        %8499 = vmatpush2.msra.mxu0 0.0
        %8500 = vmatprep.subr.mxu0 0.0
        %8501 = vmatpush2.msra.mxu0 0.0
        %8502 = vmatprep.subr.mxu0 0.0
        %8503 = vmatpush2.msra.mxu0 0.0
        %8504 = vmatprep.subr.mxu0 0.0
        %8505 = vmatpush2.msra.mxu0 0.0
        %8506 = vmatprep.subr.mxu0 0.0
        %8507 = vmatpush2.msra.mxu0 0.0
        %8508 = vmatprep.subr.mxu0 0.0
        %8509 = vmatpush2.msra.mxu0 0.0
        %8510 = vmatprep.subr.mxu0 0.0
        %8511 = vmatpush2.msra.mxu0 0.0
        %8512 = vmatprep.subr.mxu0 0.0
        %8513 = vmatpush2.msra.mxu0 0.0
        %8514 = vmatprep.mubr.f32.mxu0 0.0
        %8515 = vmatmul.mubr.f32.gmra.mxu0 %v8430
        %v8516 = vpop.f32.mrf.mxu0
        %v8517 = vadd.f32 0.0, %v8516
        %v8518 = vpop.f32.mrf.mxu0
        %8519 = vmatprep.mubr.f32.mxu0 0.0
        %8520 = vmatmul.mubr.f32.gmra.mxu0 %v8433
        %v8521 = vpop.f32.mrf.mxu0
        %v8522 = vadd.f32 0.0, %v8521
        %v8523 = vpop.f32.mrf.mxu0
        %8524 = vmatprep.mubr.f32.mxu0 0.0
        %8525 = vmatmul.mubr.f32.gmra.mxu0 %v8436
        %v8526 = vpop.f32.mrf.mxu0
        %v8527 = vadd.f32 0.0, %v8526
        %v8528 = vpop.f32.mrf.mxu0
        %8529 = vmatprep.mubr.f32.mxu0 0.0
        %8530 = vmatmul.mubr.f32.gmra.mxu0 %v8439
        %v8531 = vpop.f32.mrf.mxu0
        %v8532 = vadd.f32 0.0, %v8531
        %v8533 = vpop.f32.mrf.mxu0
        %8534 = vmatprep.mubr.f32.mxu0 0.0
        %8535 = vmatmul.mubr.f32.gmra.mxu0 %v8442
        %v8536 = vpop.f32.mrf.mxu0
        %v8537 = vadd.f32 0.0, %v8536
        %v8538 = vpop.f32.mrf.mxu0
        %8539 = vmatprep.mubr.f32.mxu0 0.0
        %8540 = vmatmul.mubr.f32.gmra.mxu0 %v8445
        %v8541 = vpop.f32.mrf.mxu0
        %v8542 = vadd.f32 0.0, %v8541
        %v8543 = vpop.f32.mrf.mxu0
        %8544 = vmatprep.mubr.f32.mxu0 0.0
        %8545 = vmatmul.mubr.f32.gmra.mxu0 %v8448
        %v8546 = vpop.f32.mrf.mxu0
        %v8547 = vadd.f32 0.0, %v8546
        %v8548 = vpop.f32.mrf.mxu0
        %8549 = vdwg.mxu0
        %v8550 = vadd.f32 %v8412, %v8517
        %v8551 = vadd.f32 %v8413, %v8522
        %v8552 = vadd.f32 %v8414, %v8527
        %v8553 = vadd.f32 %v8415, %v8532
        %v8554 = vadd.f32 %v8416, %v8537
        %v8555 = vadd.f32 %v8417, %v8542
        %v8556 = vadd.f32 %v8418, %v8547
        %v8557 = vld [vmem:[#allocation4 + $0x12] sm:$0xff]
        %v8558 = vld [vmem:[#allocation4 + $0x1a] sm:$0xff]
        %v8559 = vld [vmem:[#allocation4 + $0x22] sm:$0xff]
        %v8560 = vld [vmem:[#allocation4 + $0x2a] sm:$0xff]
        %v8561 = vld [vmem:[#allocation4 + $0x32] sm:$0xff]
        %v8562 = vld [vmem:[#allocation4 + $0x3a] sm:$0xff]
        %v8563 = vld [vmem:[#allocation4 + $0x42] sm:$0xff]
        %s8564 = scalar_lea.vmem %s16, 128
        %v8565 = vld [vmem:[%s8564] sm:$0xff]
        %v8566 = vld [vmem:[%s8564 + $0x8] sm:$0xff]
        %v8568 = vsel %vm804, %v8557, 0
        %v8571 = vsel %vm804, %v8558, 0
        %v8574 = vsel %vm804, %v8559, 0
        %v8577 = vsel %vm804, %v8560, 0
        %v8580 = vsel %vm804, %v8561, 0
        %v8583 = vsel %vm804, %v8562, 0
        %v8586 = vsel %vm804, %v8563, 0
        %8588 = vmatprep.subr.mxu0 0.0
        %8589 = vmatpush1.msra.mxu0 0.0
        %8590 = vmatprep.subr.mxu0 0.0
        %8591 = vmatpush1.msra.mxu0 0.0
        %8592 = vmatprep.subr.mxu0 0.0
        %8593 = vmatpush1.msra.mxu0 0.0
        %8594 = vmatprep.subr.mxu0 0.0
        %8595 = vmatpush1.msra.mxu0 0.0
        %8596 = vmatprep.subr.mxu0 0.0
        %8597 = vmatpush1.msra.mxu0 0.0
        %8598 = vmatprep.subr.mxu0 0.0
        %8599 = vmatpush1.msra.mxu0 0.0
        %8600 = vmatprep.subr.mxu0 0.0
        %8601 = vmatpush1.msra.mxu0 0.0
        %8602 = vmatprep.subr.mxu0 0.0
        %8603 = vmatpush1.msra.mxu0 0.0
        %8604 = vmatprep.subr.mxu0 0.0
        %8605 = vmatpush1.msra.mxu0 0.0
        %8606 = vmatprep.subr.mxu0 0.0
        %8607 = vmatpush1.msra.mxu0 0.0
        %8608 = vmatprep.subr.mxu0 0.0
        %8609 = vmatpush1.msra.mxu0 0.0
        %8610 = vmatprep.subr.mxu0 0.0
        %8611 = vmatpush1.msra.mxu0 0.0
        %8612 = vmatprep.subr.mxu0 0.0
        %8613 = vmatpush1.msra.mxu0 0.0
        %8614 = vmatprep.subr.mxu0 0.0
        %8615 = vmatpush1.msra.mxu0 0.0
        %8616 = vmatprep.subr.mxu0 0.0
        %8617 = vmatpush1.msra.mxu0 %v8566
        %8618 = vmatprep.subr.mxu0 0.0
        %8619 = vmatpush1.msra.mxu0 %v8565
        %8620 = vmatprep.subr.mxu0 0.0
        %8621 = vmatpush2.msra.mxu0 0.0
        %8622 = vmatprep.subr.mxu0 0.0
        %8623 = vmatpush2.msra.mxu0 0.0
        %8624 = vmatprep.subr.mxu0 0.0
        %8625 = vmatpush2.msra.mxu0 0.0
        %8626 = vmatprep.subr.mxu0 0.0
        %8627 = vmatpush2.msra.mxu0 0.0
        %8628 = vmatprep.subr.mxu0 0.0
        %8629 = vmatpush2.msra.mxu0 0.0
        %8630 = vmatprep.subr.mxu0 0.0
        %8631 = vmatpush2.msra.mxu0 0.0
        %8632 = vmatprep.subr.mxu0 0.0
        %8633 = vmatpush2.msra.mxu0 0.0
        %8634 = vmatprep.subr.mxu0 0.0
        %8635 = vmatpush2.msra.mxu0 0.0
        %8636 = vmatprep.subr.mxu0 0.0
        %8637 = vmatpush2.msra.mxu0 0.0
        %8638 = vmatprep.subr.mxu0 0.0
        %8639 = vmatpush2.msra.mxu0 0.0
        %8640 = vmatprep.subr.mxu0 0.0
        %8641 = vmatpush2.msra.mxu0 0.0
        %8642 = vmatprep.subr.mxu0 0.0
        %8643 = vmatpush2.msra.mxu0 0.0
        %8644 = vmatprep.subr.mxu0 0.0
        %8645 = vmatpush2.msra.mxu0 0.0
        %8646 = vmatprep.subr.mxu0 0.0
        %8647 = vmatpush2.msra.mxu0 0.0
        %8648 = vmatprep.subr.mxu0 0.0
        %8649 = vmatpush2.msra.mxu0 0.0
        %8650 = vmatprep.subr.mxu0 0.0
        %8651 = vmatpush2.msra.mxu0 0.0
        %8652 = vmatprep.mubr.f32.mxu0 0.0
        %8653 = vmatmul.mubr.f32.gmra.mxu0 %v8568
        %v8654 = vpop.f32.mrf.mxu0
        %v8655 = vadd.f32 0.0, %v8654
        %v8656 = vpop.f32.mrf.mxu0
        %8657 = vmatprep.mubr.f32.mxu0 0.0
        %8658 = vmatmul.mubr.f32.gmra.mxu0 %v8571
        %v8659 = vpop.f32.mrf.mxu0
        %v8660 = vadd.f32 0.0, %v8659
        %v8661 = vpop.f32.mrf.mxu0
        %8662 = vmatprep.mubr.f32.mxu0 0.0
        %8663 = vmatmul.mubr.f32.gmra.mxu0 %v8574
        %v8664 = vpop.f32.mrf.mxu0
        %v8665 = vadd.f32 0.0, %v8664
        %v8666 = vpop.f32.mrf.mxu0
        %8667 = vmatprep.mubr.f32.mxu0 0.0
        %8668 = vmatmul.mubr.f32.gmra.mxu0 %v8577
        %v8669 = vpop.f32.mrf.mxu0
        %v8670 = vadd.f32 0.0, %v8669
        %v8671 = vpop.f32.mrf.mxu0
        %8672 = vmatprep.mubr.f32.mxu0 0.0
        %8673 = vmatmul.mubr.f32.gmra.mxu0 %v8580
        %v8674 = vpop.f32.mrf.mxu0
        %v8675 = vadd.f32 0.0, %v8674
        %v8676 = vpop.f32.mrf.mxu0
        %8677 = vmatprep.mubr.f32.mxu0 0.0
        %8678 = vmatmul.mubr.f32.gmra.mxu0 %v8583
        %v8679 = vpop.f32.mrf.mxu0
        %v8680 = vadd.f32 0.0, %v8679
        %v8681 = vpop.f32.mrf.mxu0
        %8682 = vmatprep.mubr.f32.mxu0 0.0
        %8683 = vmatmul.mubr.f32.gmra.mxu0 %v8586
        %v8684 = vpop.f32.mrf.mxu0
        %v8685 = vadd.f32 0.0, %v8684
        %v8686 = vpop.f32.mrf.mxu0
        %8687 = vdwg.mxu0
        %v8688 = vadd.f32 %v8550, %v8655
        %v8689 = vadd.f32 %v8551, %v8660
        %v8690 = vadd.f32 %v8552, %v8665
        %v8691 = vadd.f32 %v8553, %v8670
        %v8692 = vadd.f32 %v8554, %v8675
        %v8693 = vadd.f32 %v8555, %v8680
        %v8694 = vadd.f32 %v8556, %v8685
        %v8695 = vld [vmem:[%s694 + $0x12] sm:$0xff]
        %v8696 = vld [vmem:[%s694 + $0x1a] sm:$0xff]
        %v8697 = vld [vmem:[%s694 + $0x22] sm:$0xff]
        %v8698 = vld [vmem:[%s694 + $0x2a] sm:$0xff]
        %v8699 = vld [vmem:[%s694 + $0x32] sm:$0xff]
        %v8700 = vld [vmem:[%s694 + $0x3a] sm:$0xff]
        %v8701 = vld [vmem:[%s694 + $0x42] sm:$0xff]
        %s8702 = scalar_lea.vmem %s17, 128
        %v8703 = vld [vmem:[%s8702] sm:$0xff]
        %v8704 = vld [vmem:[%s8702 + $0x8] sm:$0xff]
        %v8706 = vsel %vm804, %v8695, 0
        %v8709 = vsel %vm804, %v8696, 0
        %v8712 = vsel %vm804, %v8697, 0
        %v8715 = vsel %vm804, %v8698, 0
        %v8718 = vsel %vm804, %v8699, 0
        %v8721 = vsel %vm804, %v8700, 0
        %v8724 = vsel %vm804, %v8701, 0
        %8726 = vmatprep.subr.mxu0 0.0
        %8727 = vmatpush1.msra.mxu0 0.0
        %8728 = vmatprep.subr.mxu0 0.0
        %8729 = vmatpush1.msra.mxu0 0.0
        %8730 = vmatprep.subr.mxu0 0.0
        %8731 = vmatpush1.msra.mxu0 0.0
        %8732 = vmatprep.subr.mxu0 0.0
        %8733 = vmatpush1.msra.mxu0 0.0
        %8734 = vmatprep.subr.mxu0 0.0
        %8735 = vmatpush1.msra.mxu0 0.0
        %8736 = vmatprep.subr.mxu0 0.0
        %8737 = vmatpush1.msra.mxu0 0.0
        %8738 = vmatprep.subr.mxu0 0.0
        %8739 = vmatpush1.msra.mxu0 0.0
        %8740 = vmatprep.subr.mxu0 0.0
        %8741 = vmatpush1.msra.mxu0 0.0
        %8742 = vmatprep.subr.mxu0 0.0
        %8743 = vmatpush1.msra.mxu0 0.0
        %8744 = vmatprep.subr.mxu0 0.0
        %8745 = vmatpush1.msra.mxu0 0.0
        %8746 = vmatprep.subr.mxu0 0.0
        %8747 = vmatpush1.msra.mxu0 0.0
        %8748 = vmatprep.subr.mxu0 0.0
        %8749 = vmatpush1.msra.mxu0 0.0
        %8750 = vmatprep.subr.mxu0 0.0
        %8751 = vmatpush1.msra.mxu0 0.0
        %8752 = vmatprep.subr.mxu0 0.0
        %8753 = vmatpush1.msra.mxu0 0.0
        %8754 = vmatprep.subr.mxu0 0.0
        %8755 = vmatpush1.msra.mxu0 %v8704
        %8756 = vmatprep.subr.mxu0 0.0
        %8757 = vmatpush1.msra.mxu0 %v8703
        %8758 = vmatprep.subr.mxu0 0.0
        %8759 = vmatpush2.msra.mxu0 0.0
        %8760 = vmatprep.subr.mxu0 0.0
        %8761 = vmatpush2.msra.mxu0 0.0
        %8762 = vmatprep.subr.mxu0 0.0
        %8763 = vmatpush2.msra.mxu0 0.0
        %8764 = vmatprep.subr.mxu0 0.0
        %8765 = vmatpush2.msra.mxu0 0.0
        %8766 = vmatprep.subr.mxu0 0.0
        %8767 = vmatpush2.msra.mxu0 0.0
        %8768 = vmatprep.subr.mxu0 0.0
        %8769 = vmatpush2.msra.mxu0 0.0
        %8770 = vmatprep.subr.mxu0 0.0
        %8771 = vmatpush2.msra.mxu0 0.0
        %8772 = vmatprep.subr.mxu0 0.0
        %8773 = vmatpush2.msra.mxu0 0.0
        %8774 = vmatprep.subr.mxu0 0.0
        %8775 = vmatpush2.msra.mxu0 0.0
        %8776 = vmatprep.subr.mxu0 0.0
        %8777 = vmatpush2.msra.mxu0 0.0
        %8778 = vmatprep.subr.mxu0 0.0
        %8779 = vmatpush2.msra.mxu0 0.0
        %8780 = vmatprep.subr.mxu0 0.0
        %8781 = vmatpush2.msra.mxu0 0.0
        %8782 = vmatprep.subr.mxu0 0.0
        %8783 = vmatpush2.msra.mxu0 0.0
        %8784 = vmatprep.subr.mxu0 0.0
        %8785 = vmatpush2.msra.mxu0 0.0
        %8786 = vmatprep.subr.mxu0 0.0
        %8787 = vmatpush2.msra.mxu0 0.0
        %8788 = vmatprep.subr.mxu0 0.0
        %8789 = vmatpush2.msra.mxu0 0.0
        %8790 = vmatprep.mubr.f32.mxu0 0.0
        %8791 = vmatmul.mubr.f32.gmra.mxu0 %v8706
        %v8792 = vpop.f32.mrf.mxu0
        %v8793 = vadd.f32 0.0, %v8792
        %v8794 = vpop.f32.mrf.mxu0
        %8795 = vmatprep.mubr.f32.mxu0 0.0
        %8796 = vmatmul.mubr.f32.gmra.mxu0 %v8709
        %v8797 = vpop.f32.mrf.mxu0
        %v8798 = vadd.f32 0.0, %v8797
        %v8799 = vpop.f32.mrf.mxu0
        %8800 = vmatprep.mubr.f32.mxu0 0.0
        %8801 = vmatmul.mubr.f32.gmra.mxu0 %v8712
        %v8802 = vpop.f32.mrf.mxu0
        %v8803 = vadd.f32 0.0, %v8802
        %v8804 = vpop.f32.mrf.mxu0
        %8805 = vmatprep.mubr.f32.mxu0 0.0
        %8806 = vmatmul.mubr.f32.gmra.mxu0 %v8715
        %v8807 = vpop.f32.mrf.mxu0
        %v8808 = vadd.f32 0.0, %v8807
        %v8809 = vpop.f32.mrf.mxu0
        %8810 = vmatprep.mubr.f32.mxu0 0.0
        %8811 = vmatmul.mubr.f32.gmra.mxu0 %v8718
        %v8812 = vpop.f32.mrf.mxu0
        %v8813 = vadd.f32 0.0, %v8812
        %v8814 = vpop.f32.mrf.mxu0
        %8815 = vmatprep.mubr.f32.mxu0 0.0
        %8816 = vmatmul.mubr.f32.gmra.mxu0 %v8721
        %v8817 = vpop.f32.mrf.mxu0
        %v8818 = vadd.f32 0.0, %v8817
        %v8819 = vpop.f32.mrf.mxu0
        %8820 = vmatprep.mubr.f32.mxu0 0.0
        %8821 = vmatmul.mubr.f32.gmra.mxu0 %v8724
        %v8822 = vpop.f32.mrf.mxu0
        %v8823 = vadd.f32 0.0, %v8822
        %v8824 = vpop.f32.mrf.mxu0
        %8825 = vdwg.mxu0
        %v8826 = vadd.f32 %v8688, %v8793
        %v8827 = vadd.f32 %v8689, %v8798
        %v8828 = vadd.f32 %v8690, %v8803
        %v8829 = vadd.f32 %v8691, %v8808
        %v8830 = vadd.f32 %v8692, %v8813
        %v8831 = vadd.f32 %v8693, %v8818
        %v8832 = vadd.f32 %v8694, %v8823
        %v8833 = vmax.f32 %v8826, 0.0
        %v8834 = vmax.f32 %v8827, 0.0
        %v8835 = vmax.f32 %v8828, 0.0
        %v8836 = vmax.f32 %v8829, 0.0
        %v8837 = vmax.f32 %v8830, 0.0
        %v8838 = vmax.f32 %v8831, 0.0
        %v8839 = vmax.f32 %v8832, 0.0
        %8840 = vst.msk [vmem:[#allocation5] sm:$0xff] %vm804, %v8833
        %8841 = vst.msk [vmem:[#allocation5 + $0x8] sm:$0xff] %vm804, %v8834
        %8842 = vst.msk [vmem:[#allocation5 + $0x10] sm:$0xff] %vm804, %v8835
        %8843 = vst.msk [vmem:[#allocation5 + $0x18] sm:$0xff] %vm804, %v8836
        %8844 = vst.msk [vmem:[#allocation5 + $0x20] sm:$0xff] %vm804, %v8837
        %8845 = vst.msk [vmem:[#allocation5 + $0x28] sm:$0xff] %vm804, %v8838
        %8846 = vst.msk [vmem:[#allocation5 + $0x30] sm:$0xff] %vm804, %v8839
        %v8847 = vld [vmem:[%s20] sm:$0x1]
        %v8849 = vlaneseq
        %v8850 = vshrl.u32 %v8849, 7
        %v8851 = vsub.s32 0, %v8850
        %v8852 = vrot.slane %v8847, %v8851
        %v8854 = vld [vmem:[#allocation5] sm:$0xff]
        %v8855 = vld [vmem:[#allocation5 + $0x8] sm:$0xff]
        %v8856 = vld [vmem:[#allocation5 + $0x10] sm:$0xff]
        %v8857 = vld [vmem:[#allocation5 + $0x18] sm:$0xff]
        %v8858 = vld [vmem:[%s19] sm:$0xff]
        %v8859 = vld [vmem:[%s19 + $0x8] sm:$0xff]
        %v8861 = vsel %vm804, %v8854, 0
        %v8864 = vsel %vm804, %v8855, 0
        %v8867 = vsel %vm804, %v8856, 0
        %v8870 = vsel %vm804, %v8857, 0
        %8872 = vmatprep.subr.mxu0 0.0
        %8873 = vmatpush1.msra.mxu0 0.0
        %8874 = vmatprep.subr.mxu0 0.0
        %8875 = vmatpush1.msra.mxu0 0.0
        %8876 = vmatprep.subr.mxu0 0.0
        %8877 = vmatpush1.msra.mxu0 0.0
        %8878 = vmatprep.subr.mxu0 0.0
        %8879 = vmatpush1.msra.mxu0 0.0
        %8880 = vmatprep.subr.mxu0 0.0
        %8881 = vmatpush1.msra.mxu0 0.0
        %8882 = vmatprep.subr.mxu0 0.0
        %8883 = vmatpush1.msra.mxu0 0.0
        %8884 = vmatprep.subr.mxu0 0.0
        %8885 = vmatpush1.msra.mxu0 0.0
        %8886 = vmatprep.subr.mxu0 0.0
        %8887 = vmatpush1.msra.mxu0 0.0
        %8888 = vmatprep.subr.mxu0 0.0
        %8889 = vmatpush1.msra.mxu0 0.0
        %8890 = vmatprep.subr.mxu0 0.0
        %8891 = vmatpush1.msra.mxu0 0.0
        %8892 = vmatprep.subr.mxu0 0.0
        %8893 = vmatpush1.msra.mxu0 0.0
        %8894 = vmatprep.subr.mxu0 0.0
        %8895 = vmatpush1.msra.mxu0 0.0
        %8896 = vmatprep.subr.mxu0 0.0
        %8897 = vmatpush1.msra.mxu0 0.0
        %8898 = vmatprep.subr.mxu0 0.0
        %8899 = vmatpush1.msra.mxu0 0.0
        %8900 = vmatprep.subr.mxu0 0.0
        %8901 = vmatpush1.msra.mxu0 %v8859
        %8902 = vmatprep.subr.mxu0 0.0
        %8903 = vmatpush1.msra.mxu0 %v8858
        %8904 = vmatprep.subr.mxu0 0.0
        %8905 = vmatpush2.msra.mxu0 0.0
        %8906 = vmatprep.subr.mxu0 0.0
        %8907 = vmatpush2.msra.mxu0 0.0
        %8908 = vmatprep.subr.mxu0 0.0
        %8909 = vmatpush2.msra.mxu0 0.0
        %8910 = vmatprep.subr.mxu0 0.0
        %8911 = vmatpush2.msra.mxu0 0.0
        %8912 = vmatprep.subr.mxu0 0.0
        %8913 = vmatpush2.msra.mxu0 0.0
        %8914 = vmatprep.subr.mxu0 0.0
        %8915 = vmatpush2.msra.mxu0 0.0
        %8916 = vmatprep.subr.mxu0 0.0
        %8917 = vmatpush2.msra.mxu0 0.0
        %8918 = vmatprep.subr.mxu0 0.0
        %8919 = vmatpush2.msra.mxu0 0.0
        %8920 = vmatprep.subr.mxu0 0.0
        %8921 = vmatpush2.msra.mxu0 0.0
        %8922 = vmatprep.subr.mxu0 0.0
        %8923 = vmatpush2.msra.mxu0 0.0
        %8924 = vmatprep.subr.mxu0 0.0
        %8925 = vmatpush2.msra.mxu0 0.0
        %8926 = vmatprep.subr.mxu0 0.0
        %8927 = vmatpush2.msra.mxu0 0.0
        %8928 = vmatprep.subr.mxu0 0.0
        %8929 = vmatpush2.msra.mxu0 0.0
        %8930 = vmatprep.subr.mxu0 0.0
        %8931 = vmatpush2.msra.mxu0 0.0
        %8932 = vmatprep.subr.mxu0 0.0
        %8933 = vmatpush2.msra.mxu0 0.0
        %8934 = vmatprep.subr.mxu0 0.0
        %8935 = vmatpush2.msra.mxu0 0.0
        %8936 = vmatprep.mubr.f32.mxu0 0.0
        %8937 = vmatmul.mubr.f32.gmra.mxu0 %v8861
        %v8938 = vpop.f32.mrf.mxu0
        %v8939 = vadd.f32 0.0, %v8938
        %v8940 = vpop.f32.mrf.mxu0
        %8941 = vmatprep.mubr.f32.mxu0 0.0
        %8942 = vmatmul.mubr.f32.gmra.mxu0 %v8864
        %v8943 = vpop.f32.mrf.mxu0
        %v8944 = vadd.f32 0.0, %v8943
        %v8945 = vpop.f32.mrf.mxu0
        %8946 = vmatprep.mubr.f32.mxu0 0.0
        %8947 = vmatmul.mubr.f32.gmra.mxu0 %v8867
        %v8948 = vpop.f32.mrf.mxu0
        %v8949 = vadd.f32 0.0, %v8948
        %v8950 = vpop.f32.mrf.mxu0
        %8951 = vmatprep.mubr.f32.mxu0 0.0
        %8952 = vmatmul.mubr.f32.gmra.mxu0 %v8870
        %v8953 = vpop.f32.mrf.mxu0
        %v8954 = vadd.f32 0.0, %v8953
        %v8955 = vpop.f32.mrf.mxu0
        %8956 = vdwg.mxu0
        %v8957 = vadd.f32 %v8852, %v8939
        %v8958 = vadd.f32 %v8852, %v8944
        %v8959 = vadd.f32 %v8852, %v8949
        %v8960 = vadd.f32 %v8852, %v8954
        %v8961 = vld [vmem:[#allocation5 + $0x1] sm:$0xff]
        %v8962 = vld [vmem:[#allocation5 + $0x9] sm:$0xff]
        %v8963 = vld [vmem:[#allocation5 + $0x11] sm:$0xff]
        %v8964 = vld [vmem:[#allocation5 + $0x19] sm:$0xff]
        %s8965 = scalar_lea.vmem %s19, 16
        %v8966 = vld [vmem:[%s8965] sm:$0xff]
        %v8967 = vld [vmem:[%s8965 + $0x8] sm:$0xff]
        %v8969 = vsel %vm804, %v8961, 0
        %v8972 = vsel %vm804, %v8962, 0
        %v8975 = vsel %vm804, %v8963, 0
        %v8978 = vsel %vm804, %v8964, 0
        %8980 = vmatprep.subr.mxu0 0.0
        %8981 = vmatpush1.msra.mxu0 0.0
        %8982 = vmatprep.subr.mxu0 0.0
        %8983 = vmatpush1.msra.mxu0 0.0
        %8984 = vmatprep.subr.mxu0 0.0
        %8985 = vmatpush1.msra.mxu0 0.0
        %8986 = vmatprep.subr.mxu0 0.0
        %8987 = vmatpush1.msra.mxu0 0.0
        %8988 = vmatprep.subr.mxu0 0.0
        %8989 = vmatpush1.msra.mxu0 0.0
        %8990 = vmatprep.subr.mxu0 0.0
        %8991 = vmatpush1.msra.mxu0 0.0
        %8992 = vmatprep.subr.mxu0 0.0
        %8993 = vmatpush1.msra.mxu0 0.0
        %8994 = vmatprep.subr.mxu0 0.0
        %8995 = vmatpush1.msra.mxu0 0.0
        %8996 = vmatprep.subr.mxu0 0.0
        %8997 = vmatpush1.msra.mxu0 0.0
        %8998 = vmatprep.subr.mxu0 0.0
        %8999 = vmatpush1.msra.mxu0 0.0
        %9000 = vmatprep.subr.mxu0 0.0
        %9001 = vmatpush1.msra.mxu0 0.0
        %9002 = vmatprep.subr.mxu0 0.0
        %9003 = vmatpush1.msra.mxu0 0.0
        %9004 = vmatprep.subr.mxu0 0.0
        %9005 = vmatpush1.msra.mxu0 0.0
        %9006 = vmatprep.subr.mxu0 0.0
        %9007 = vmatpush1.msra.mxu0 0.0
        %9008 = vmatprep.subr.mxu0 0.0
        %9009 = vmatpush1.msra.mxu0 %v8967
        %9010 = vmatprep.subr.mxu0 0.0
        %9011 = vmatpush1.msra.mxu0 %v8966
        %9012 = vmatprep.subr.mxu0 0.0
        %9013 = vmatpush2.msra.mxu0 0.0
        %9014 = vmatprep.subr.mxu0 0.0
        %9015 = vmatpush2.msra.mxu0 0.0
        %9016 = vmatprep.subr.mxu0 0.0
        %9017 = vmatpush2.msra.mxu0 0.0
        %9018 = vmatprep.subr.mxu0 0.0
        %9019 = vmatpush2.msra.mxu0 0.0
        %9020 = vmatprep.subr.mxu0 0.0
        %9021 = vmatpush2.msra.mxu0 0.0
        %9022 = vmatprep.subr.mxu0 0.0
        %9023 = vmatpush2.msra.mxu0 0.0
        %9024 = vmatprep.subr.mxu0 0.0
        %9025 = vmatpush2.msra.mxu0 0.0
        %9026 = vmatprep.subr.mxu0 0.0
        %9027 = vmatpush2.msra.mxu0 0.0
        %9028 = vmatprep.subr.mxu0 0.0
        %9029 = vmatpush2.msra.mxu0 0.0
        %9030 = vmatprep.subr.mxu0 0.0
        %9031 = vmatpush2.msra.mxu0 0.0
        %9032 = vmatprep.subr.mxu0 0.0
        %9033 = vmatpush2.msra.mxu0 0.0
        %9034 = vmatprep.subr.mxu0 0.0
        %9035 = vmatpush2.msra.mxu0 0.0
        %9036 = vmatprep.subr.mxu0 0.0
        %9037 = vmatpush2.msra.mxu0 0.0
        %9038 = vmatprep.subr.mxu0 0.0
        %9039 = vmatpush2.msra.mxu0 0.0
        %9040 = vmatprep.subr.mxu0 0.0
        %9041 = vmatpush2.msra.mxu0 0.0
        %9042 = vmatprep.subr.mxu0 0.0
        %9043 = vmatpush2.msra.mxu0 0.0
        %9044 = vmatprep.mubr.f32.mxu0 0.0
        %9045 = vmatmul.mubr.f32.gmra.mxu0 %v8969
        %v9046 = vpop.f32.mrf.mxu0
        %v9047 = vadd.f32 0.0, %v9046
        %v9048 = vpop.f32.mrf.mxu0
        %9049 = vmatprep.mubr.f32.mxu0 0.0
        %9050 = vmatmul.mubr.f32.gmra.mxu0 %v8972
        %v9051 = vpop.f32.mrf.mxu0
        %v9052 = vadd.f32 0.0, %v9051
        %v9053 = vpop.f32.mrf.mxu0
        %9054 = vmatprep.mubr.f32.mxu0 0.0
        %9055 = vmatmul.mubr.f32.gmra.mxu0 %v8975
        %v9056 = vpop.f32.mrf.mxu0
        %v9057 = vadd.f32 0.0, %v9056
        %v9058 = vpop.f32.mrf.mxu0
        %9059 = vmatprep.mubr.f32.mxu0 0.0
        %9060 = vmatmul.mubr.f32.gmra.mxu0 %v8978
        %v9061 = vpop.f32.mrf.mxu0
        %v9062 = vadd.f32 0.0, %v9061
        %v9063 = vpop.f32.mrf.mxu0
        %9064 = vdwg.mxu0
        %v9065 = vadd.f32 %v8957, %v9047
        %v9066 = vadd.f32 %v8958, %v9052
        %v9067 = vadd.f32 %v8959, %v9057
        %v9068 = vadd.f32 %v8960, %v9062
        %v9069 = vld [vmem:[#allocation5 + $0x2] sm:$0xff]
        %v9070 = vld [vmem:[#allocation5 + $0xa] sm:$0xff]
        %v9071 = vld [vmem:[#allocation5 + $0x12] sm:$0xff]
        %v9072 = vld [vmem:[#allocation5 + $0x1a] sm:$0xff]
        %s9073 = scalar_lea.vmem %s19, 32
        %v9074 = vld [vmem:[%s9073] sm:$0xff]
        %v9075 = vld [vmem:[%s9073 + $0x8] sm:$0xff]
        %v9077 = vsel %vm804, %v9069, 0
        %v9080 = vsel %vm804, %v9070, 0
        %v9083 = vsel %vm804, %v9071, 0
        %v9086 = vsel %vm804, %v9072, 0
        %9088 = vmatprep.subr.mxu0 0.0
        %9089 = vmatpush1.msra.mxu0 0.0
        %9090 = vmatprep.subr.mxu0 0.0
        %9091 = vmatpush1.msra.mxu0 0.0
        %9092 = vmatprep.subr.mxu0 0.0
        %9093 = vmatpush1.msra.mxu0 0.0
        %9094 = vmatprep.subr.mxu0 0.0
        %9095 = vmatpush1.msra.mxu0 0.0
        %9096 = vmatprep.subr.mxu0 0.0
        %9097 = vmatpush1.msra.mxu0 0.0
        %9098 = vmatprep.subr.mxu0 0.0
        %9099 = vmatpush1.msra.mxu0 0.0
        %9100 = vmatprep.subr.mxu0 0.0
        %9101 = vmatpush1.msra.mxu0 0.0
        %9102 = vmatprep.subr.mxu0 0.0
        %9103 = vmatpush1.msra.mxu0 0.0
        %9104 = vmatprep.subr.mxu0 0.0
        %9105 = vmatpush1.msra.mxu0 0.0
        %9106 = vmatprep.subr.mxu0 0.0
        %9107 = vmatpush1.msra.mxu0 0.0
        %9108 = vmatprep.subr.mxu0 0.0
        %9109 = vmatpush1.msra.mxu0 0.0
        %9110 = vmatprep.subr.mxu0 0.0
        %9111 = vmatpush1.msra.mxu0 0.0
        %9112 = vmatprep.subr.mxu0 0.0
        %9113 = vmatpush1.msra.mxu0 0.0
        %9114 = vmatprep.subr.mxu0 0.0
        %9115 = vmatpush1.msra.mxu0 0.0
        %9116 = vmatprep.subr.mxu0 0.0
        %9117 = vmatpush1.msra.mxu0 %v9075
        %9118 = vmatprep.subr.mxu0 0.0
        %9119 = vmatpush1.msra.mxu0 %v9074
        %9120 = vmatprep.subr.mxu0 0.0
        %9121 = vmatpush2.msra.mxu0 0.0
        %9122 = vmatprep.subr.mxu0 0.0
        %9123 = vmatpush2.msra.mxu0 0.0
        %9124 = vmatprep.subr.mxu0 0.0
        %9125 = vmatpush2.msra.mxu0 0.0
        %9126 = vmatprep.subr.mxu0 0.0
        %9127 = vmatpush2.msra.mxu0 0.0
        %9128 = vmatprep.subr.mxu0 0.0
        %9129 = vmatpush2.msra.mxu0 0.0
        %9130 = vmatprep.subr.mxu0 0.0
        %9131 = vmatpush2.msra.mxu0 0.0
        %9132 = vmatprep.subr.mxu0 0.0
        %9133 = vmatpush2.msra.mxu0 0.0
        %9134 = vmatprep.subr.mxu0 0.0
        %9135 = vmatpush2.msra.mxu0 0.0
        %9136 = vmatprep.subr.mxu0 0.0
        %9137 = vmatpush2.msra.mxu0 0.0
        %9138 = vmatprep.subr.mxu0 0.0
        %9139 = vmatpush2.msra.mxu0 0.0
        %9140 = vmatprep.subr.mxu0 0.0
        %9141 = vmatpush2.msra.mxu0 0.0
        %9142 = vmatprep.subr.mxu0 0.0
        %9143 = vmatpush2.msra.mxu0 0.0
        %9144 = vmatprep.subr.mxu0 0.0
        %9145 = vmatpush2.msra.mxu0 0.0
        %9146 = vmatprep.subr.mxu0 0.0
        %9147 = vmatpush2.msra.mxu0 0.0
        %9148 = vmatprep.subr.mxu0 0.0
        %9149 = vmatpush2.msra.mxu0 0.0
        %9150 = vmatprep.subr.mxu0 0.0
        %9151 = vmatpush2.msra.mxu0 0.0
        %9152 = vmatprep.mubr.f32.mxu0 0.0
        %9153 = vmatmul.mubr.f32.gmra.mxu0 %v9077
        %v9154 = vpop.f32.mrf.mxu0
        %v9155 = vadd.f32 0.0, %v9154
        %v9156 = vpop.f32.mrf.mxu0
        %9157 = vmatprep.mubr.f32.mxu0 0.0
        %9158 = vmatmul.mubr.f32.gmra.mxu0 %v9080
        %v9159 = vpop.f32.mrf.mxu0
        %v9160 = vadd.f32 0.0, %v9159
        %v9161 = vpop.f32.mrf.mxu0
        %9162 = vmatprep.mubr.f32.mxu0 0.0
        %9163 = vmatmul.mubr.f32.gmra.mxu0 %v9083
        %v9164 = vpop.f32.mrf.mxu0
        %v9165 = vadd.f32 0.0, %v9164
        %v9166 = vpop.f32.mrf.mxu0
        %9167 = vmatprep.mubr.f32.mxu0 0.0
        %9168 = vmatmul.mubr.f32.gmra.mxu0 %v9086
        %v9169 = vpop.f32.mrf.mxu0
        %v9170 = vadd.f32 0.0, %v9169
        %v9171 = vpop.f32.mrf.mxu0
        %9172 = vdwg.mxu0
        %v9173 = vadd.f32 %v9065, %v9155
        %v9174 = vadd.f32 %v9066, %v9160
        %v9175 = vadd.f32 %v9067, %v9165
        %v9176 = vadd.f32 %v9068, %v9170
        %v9177 = vld [vmem:[#allocation5 + $0x8] sm:$0xff]
        %v9178 = vld [vmem:[#allocation5 + $0x10] sm:$0xff]
        %v9179 = vld [vmem:[#allocation5 + $0x18] sm:$0xff]
        %v9180 = vld [vmem:[#allocation5 + $0x20] sm:$0xff]
        %s9181 = scalar_lea.vmem %s19, 48
        %v9182 = vld [vmem:[%s9181] sm:$0xff]
        %v9183 = vld [vmem:[%s9181 + $0x8] sm:$0xff]
        %v9185 = vsel %vm804, %v9177, 0
        %v9188 = vsel %vm804, %v9178, 0
        %v9191 = vsel %vm804, %v9179, 0
        %v9194 = vsel %vm804, %v9180, 0
        %9196 = vmatprep.subr.mxu0 0.0
        %9197 = vmatpush1.msra.mxu0 0.0
        %9198 = vmatprep.subr.mxu0 0.0
        %9199 = vmatpush1.msra.mxu0 0.0
        %9200 = vmatprep.subr.mxu0 0.0
        %9201 = vmatpush1.msra.mxu0 0.0
        %9202 = vmatprep.subr.mxu0 0.0
        %9203 = vmatpush1.msra.mxu0 0.0
        %9204 = vmatprep.subr.mxu0 0.0
        %9205 = vmatpush1.msra.mxu0 0.0
        %9206 = vmatprep.subr.mxu0 0.0
        %9207 = vmatpush1.msra.mxu0 0.0
        %9208 = vmatprep.subr.mxu0 0.0
        %9209 = vmatpush1.msra.mxu0 0.0
        %9210 = vmatprep.subr.mxu0 0.0
        %9211 = vmatpush1.msra.mxu0 0.0
        %9212 = vmatprep.subr.mxu0 0.0
        %9213 = vmatpush1.msra.mxu0 0.0
        %9214 = vmatprep.subr.mxu0 0.0
        %9215 = vmatpush1.msra.mxu0 0.0
        %9216 = vmatprep.subr.mxu0 0.0
        %9217 = vmatpush1.msra.mxu0 0.0
        %9218 = vmatprep.subr.mxu0 0.0
        %9219 = vmatpush1.msra.mxu0 0.0
        %9220 = vmatprep.subr.mxu0 0.0
        %9221 = vmatpush1.msra.mxu0 0.0
        %9222 = vmatprep.subr.mxu0 0.0
        %9223 = vmatpush1.msra.mxu0 0.0
        %9224 = vmatprep.subr.mxu0 0.0
        %9225 = vmatpush1.msra.mxu0 %v9183
        %9226 = vmatprep.subr.mxu0 0.0
        %9227 = vmatpush1.msra.mxu0 %v9182
        %9228 = vmatprep.subr.mxu0 0.0
        %9229 = vmatpush2.msra.mxu0 0.0
        %9230 = vmatprep.subr.mxu0 0.0
        %9231 = vmatpush2.msra.mxu0 0.0
        %9232 = vmatprep.subr.mxu0 0.0
        %9233 = vmatpush2.msra.mxu0 0.0
        %9234 = vmatprep.subr.mxu0 0.0
        %9235 = vmatpush2.msra.mxu0 0.0
        %9236 = vmatprep.subr.mxu0 0.0
        %9237 = vmatpush2.msra.mxu0 0.0
        %9238 = vmatprep.subr.mxu0 0.0
        %9239 = vmatpush2.msra.mxu0 0.0
        %9240 = vmatprep.subr.mxu0 0.0
        %9241 = vmatpush2.msra.mxu0 0.0
        %9242 = vmatprep.subr.mxu0 0.0
        %9243 = vmatpush2.msra.mxu0 0.0
        %9244 = vmatprep.subr.mxu0 0.0
        %9245 = vmatpush2.msra.mxu0 0.0
        %9246 = vmatprep.subr.mxu0 0.0
        %9247 = vmatpush2.msra.mxu0 0.0
        %9248 = vmatprep.subr.mxu0 0.0
        %9249 = vmatpush2.msra.mxu0 0.0
        %9250 = vmatprep.subr.mxu0 0.0
        %9251 = vmatpush2.msra.mxu0 0.0
        %9252 = vmatprep.subr.mxu0 0.0
        %9253 = vmatpush2.msra.mxu0 0.0
        %9254 = vmatprep.subr.mxu0 0.0
        %9255 = vmatpush2.msra.mxu0 0.0
        %9256 = vmatprep.subr.mxu0 0.0
        %9257 = vmatpush2.msra.mxu0 0.0
        %9258 = vmatprep.subr.mxu0 0.0
        %9259 = vmatpush2.msra.mxu0 0.0
        %9260 = vmatprep.mubr.f32.mxu0 0.0
        %9261 = vmatmul.mubr.f32.gmra.mxu0 %v9185
        %v9262 = vpop.f32.mrf.mxu0
        %v9263 = vadd.f32 0.0, %v9262
        %v9264 = vpop.f32.mrf.mxu0
        %9265 = vmatprep.mubr.f32.mxu0 0.0
        %9266 = vmatmul.mubr.f32.gmra.mxu0 %v9188
        %v9267 = vpop.f32.mrf.mxu0
        %v9268 = vadd.f32 0.0, %v9267
        %v9269 = vpop.f32.mrf.mxu0
        %9270 = vmatprep.mubr.f32.mxu0 0.0
        %9271 = vmatmul.mubr.f32.gmra.mxu0 %v9191
        %v9272 = vpop.f32.mrf.mxu0
        %v9273 = vadd.f32 0.0, %v9272
        %v9274 = vpop.f32.mrf.mxu0
        %9275 = vmatprep.mubr.f32.mxu0 0.0
        %9276 = vmatmul.mubr.f32.gmra.mxu0 %v9194
        %v9277 = vpop.f32.mrf.mxu0
        %v9278 = vadd.f32 0.0, %v9277
        %v9279 = vpop.f32.mrf.mxu0
        %9280 = vdwg.mxu0
        %v9281 = vadd.f32 %v9173, %v9263
        %v9282 = vadd.f32 %v9174, %v9268
        %v9283 = vadd.f32 %v9175, %v9273
        %v9284 = vadd.f32 %v9176, %v9278
        %v9285 = vld [vmem:[#allocation5 + $0x9] sm:$0xff]
        %v9286 = vld [vmem:[#allocation5 + $0x11] sm:$0xff]
        %v9287 = vld [vmem:[#allocation5 + $0x19] sm:$0xff]
        %v9288 = vld [vmem:[#allocation5 + $0x21] sm:$0xff]
        %s9289 = scalar_lea.vmem %s19, 64
        %v9290 = vld [vmem:[%s9289] sm:$0xff]
        %v9291 = vld [vmem:[%s9289 + $0x8] sm:$0xff]
        %v9293 = vsel %vm804, %v9285, 0
        %v9296 = vsel %vm804, %v9286, 0
        %v9299 = vsel %vm804, %v9287, 0
        %v9302 = vsel %vm804, %v9288, 0
        %9304 = vmatprep.subr.mxu0 0.0
        %9305 = vmatpush1.msra.mxu0 0.0
        %9306 = vmatprep.subr.mxu0 0.0
        %9307 = vmatpush1.msra.mxu0 0.0
        %9308 = vmatprep.subr.mxu0 0.0
        %9309 = vmatpush1.msra.mxu0 0.0
        %9310 = vmatprep.subr.mxu0 0.0
        %9311 = vmatpush1.msra.mxu0 0.0
        %9312 = vmatprep.subr.mxu0 0.0
        %9313 = vmatpush1.msra.mxu0 0.0
        %9314 = vmatprep.subr.mxu0 0.0
        %9315 = vmatpush1.msra.mxu0 0.0
        %9316 = vmatprep.subr.mxu0 0.0
        %9317 = vmatpush1.msra.mxu0 0.0
        %9318 = vmatprep.subr.mxu0 0.0
        %9319 = vmatpush1.msra.mxu0 0.0
        %9320 = vmatprep.subr.mxu0 0.0
        %9321 = vmatpush1.msra.mxu0 0.0
        %9322 = vmatprep.subr.mxu0 0.0
        %9323 = vmatpush1.msra.mxu0 0.0
        %9324 = vmatprep.subr.mxu0 0.0
        %9325 = vmatpush1.msra.mxu0 0.0
        %9326 = vmatprep.subr.mxu0 0.0
        %9327 = vmatpush1.msra.mxu0 0.0
        %9328 = vmatprep.subr.mxu0 0.0
        %9329 = vmatpush1.msra.mxu0 0.0
        %9330 = vmatprep.subr.mxu0 0.0
        %9331 = vmatpush1.msra.mxu0 0.0
        %9332 = vmatprep.subr.mxu0 0.0
        %9333 = vmatpush1.msra.mxu0 %v9291
        %9334 = vmatprep.subr.mxu0 0.0
        %9335 = vmatpush1.msra.mxu0 %v9290
        %9336 = vmatprep.subr.mxu0 0.0
        %9337 = vmatpush2.msra.mxu0 0.0
        %9338 = vmatprep.subr.mxu0 0.0
        %9339 = vmatpush2.msra.mxu0 0.0
        %9340 = vmatprep.subr.mxu0 0.0
        %9341 = vmatpush2.msra.mxu0 0.0
        %9342 = vmatprep.subr.mxu0 0.0
        %9343 = vmatpush2.msra.mxu0 0.0
        %9344 = vmatprep.subr.mxu0 0.0
        %9345 = vmatpush2.msra.mxu0 0.0
        %9346 = vmatprep.subr.mxu0 0.0
        %9347 = vmatpush2.msra.mxu0 0.0
        %9348 = vmatprep.subr.mxu0 0.0
        %9349 = vmatpush2.msra.mxu0 0.0
        %9350 = vmatprep.subr.mxu0 0.0
        %9351 = vmatpush2.msra.mxu0 0.0
        %9352 = vmatprep.subr.mxu0 0.0
        %9353 = vmatpush2.msra.mxu0 0.0
        %9354 = vmatprep.subr.mxu0 0.0
        %9355 = vmatpush2.msra.mxu0 0.0
        %9356 = vmatprep.subr.mxu0 0.0
        %9357 = vmatpush2.msra.mxu0 0.0
        %9358 = vmatprep.subr.mxu0 0.0
        %9359 = vmatpush2.msra.mxu0 0.0
        %9360 = vmatprep.subr.mxu0 0.0
        %9361 = vmatpush2.msra.mxu0 0.0
        %9362 = vmatprep.subr.mxu0 0.0
        %9363 = vmatpush2.msra.mxu0 0.0
        %9364 = vmatprep.subr.mxu0 0.0
        %9365 = vmatpush2.msra.mxu0 0.0
        %9366 = vmatprep.subr.mxu0 0.0
        %9367 = vmatpush2.msra.mxu0 0.0
        %9368 = vmatprep.mubr.f32.mxu0 0.0
        %9369 = vmatmul.mubr.f32.gmra.mxu0 %v9293
        %v9370 = vpop.f32.mrf.mxu0
        %v9371 = vadd.f32 0.0, %v9370
        %v9372 = vpop.f32.mrf.mxu0
        %9373 = vmatprep.mubr.f32.mxu0 0.0
        %9374 = vmatmul.mubr.f32.gmra.mxu0 %v9296
        %v9375 = vpop.f32.mrf.mxu0
        %v9376 = vadd.f32 0.0, %v9375
        %v9377 = vpop.f32.mrf.mxu0
        %9378 = vmatprep.mubr.f32.mxu0 0.0
        %9379 = vmatmul.mubr.f32.gmra.mxu0 %v9299
        %v9380 = vpop.f32.mrf.mxu0
        %v9381 = vadd.f32 0.0, %v9380
        %v9382 = vpop.f32.mrf.mxu0
        %9383 = vmatprep.mubr.f32.mxu0 0.0
        %9384 = vmatmul.mubr.f32.gmra.mxu0 %v9302
        %v9385 = vpop.f32.mrf.mxu0
        %v9386 = vadd.f32 0.0, %v9385
        %v9387 = vpop.f32.mrf.mxu0
        %9388 = vdwg.mxu0
        %v9389 = vadd.f32 %v9281, %v9371
        %v9390 = vadd.f32 %v9282, %v9376
        %v9391 = vadd.f32 %v9283, %v9381
        %v9392 = vadd.f32 %v9284, %v9386
        %v9393 = vld [vmem:[#allocation5 + $0xa] sm:$0xff]
        %v9394 = vld [vmem:[#allocation5 + $0x12] sm:$0xff]
        %v9395 = vld [vmem:[#allocation5 + $0x1a] sm:$0xff]
        %v9396 = vld [vmem:[#allocation5 + $0x22] sm:$0xff]
        %s9397 = scalar_lea.vmem %s19, 80
        %v9398 = vld [vmem:[%s9397] sm:$0xff]
        %v9399 = vld [vmem:[%s9397 + $0x8] sm:$0xff]
        %v9401 = vsel %vm804, %v9393, 0
        %v9404 = vsel %vm804, %v9394, 0
        %v9407 = vsel %vm804, %v9395, 0
        %v9410 = vsel %vm804, %v9396, 0
        %9412 = vmatprep.subr.mxu0 0.0
        %9413 = vmatpush1.msra.mxu0 0.0
        %9414 = vmatprep.subr.mxu0 0.0
        %9415 = vmatpush1.msra.mxu0 0.0
        %9416 = vmatprep.subr.mxu0 0.0
        %9417 = vmatpush1.msra.mxu0 0.0
        %9418 = vmatprep.subr.mxu0 0.0
        %9419 = vmatpush1.msra.mxu0 0.0
        %9420 = vmatprep.subr.mxu0 0.0
        %9421 = vmatpush1.msra.mxu0 0.0
        %9422 = vmatprep.subr.mxu0 0.0
        %9423 = vmatpush1.msra.mxu0 0.0
        %9424 = vmatprep.subr.mxu0 0.0
        %9425 = vmatpush1.msra.mxu0 0.0
        %9426 = vmatprep.subr.mxu0 0.0
        %9427 = vmatpush1.msra.mxu0 0.0
        %9428 = vmatprep.subr.mxu0 0.0
        %9429 = vmatpush1.msra.mxu0 0.0
        %9430 = vmatprep.subr.mxu0 0.0
        %9431 = vmatpush1.msra.mxu0 0.0
        %9432 = vmatprep.subr.mxu0 0.0
        %9433 = vmatpush1.msra.mxu0 0.0
        %9434 = vmatprep.subr.mxu0 0.0
        %9435 = vmatpush1.msra.mxu0 0.0
        %9436 = vmatprep.subr.mxu0 0.0
        %9437 = vmatpush1.msra.mxu0 0.0
        %9438 = vmatprep.subr.mxu0 0.0
        %9439 = vmatpush1.msra.mxu0 0.0
        %9440 = vmatprep.subr.mxu0 0.0
        %9441 = vmatpush1.msra.mxu0 %v9399
        %9442 = vmatprep.subr.mxu0 0.0
        %9443 = vmatpush1.msra.mxu0 %v9398
        %9444 = vmatprep.subr.mxu0 0.0
        %9445 = vmatpush2.msra.mxu0 0.0
        %9446 = vmatprep.subr.mxu0 0.0
        %9447 = vmatpush2.msra.mxu0 0.0
        %9448 = vmatprep.subr.mxu0 0.0
        %9449 = vmatpush2.msra.mxu0 0.0
        %9450 = vmatprep.subr.mxu0 0.0
        %9451 = vmatpush2.msra.mxu0 0.0
        %9452 = vmatprep.subr.mxu0 0.0
        %9453 = vmatpush2.msra.mxu0 0.0
        %9454 = vmatprep.subr.mxu0 0.0
        %9455 = vmatpush2.msra.mxu0 0.0
        %9456 = vmatprep.subr.mxu0 0.0
        %9457 = vmatpush2.msra.mxu0 0.0
        %9458 = vmatprep.subr.mxu0 0.0
        %9459 = vmatpush2.msra.mxu0 0.0
        %9460 = vmatprep.subr.mxu0 0.0
        %9461 = vmatpush2.msra.mxu0 0.0
        %9462 = vmatprep.subr.mxu0 0.0
        %9463 = vmatpush2.msra.mxu0 0.0
        %9464 = vmatprep.subr.mxu0 0.0
        %9465 = vmatpush2.msra.mxu0 0.0
        %9466 = vmatprep.subr.mxu0 0.0
        %9467 = vmatpush2.msra.mxu0 0.0
        %9468 = vmatprep.subr.mxu0 0.0
        %9469 = vmatpush2.msra.mxu0 0.0
        %9470 = vmatprep.subr.mxu0 0.0
        %9471 = vmatpush2.msra.mxu0 0.0
        %9472 = vmatprep.subr.mxu0 0.0
        %9473 = vmatpush2.msra.mxu0 0.0
        %9474 = vmatprep.subr.mxu0 0.0
        %9475 = vmatpush2.msra.mxu0 0.0
        %9476 = vmatprep.mubr.f32.mxu0 0.0
        %9477 = vmatmul.mubr.f32.gmra.mxu0 %v9401
        %v9478 = vpop.f32.mrf.mxu0
        %v9479 = vadd.f32 0.0, %v9478
        %v9480 = vpop.f32.mrf.mxu0
        %9481 = vmatprep.mubr.f32.mxu0 0.0
        %9482 = vmatmul.mubr.f32.gmra.mxu0 %v9404
        %v9483 = vpop.f32.mrf.mxu0
        %v9484 = vadd.f32 0.0, %v9483
        %v9485 = vpop.f32.mrf.mxu0
        %9486 = vmatprep.mubr.f32.mxu0 0.0
        %9487 = vmatmul.mubr.f32.gmra.mxu0 %v9407
        %v9488 = vpop.f32.mrf.mxu0
        %v9489 = vadd.f32 0.0, %v9488
        %v9490 = vpop.f32.mrf.mxu0
        %9491 = vmatprep.mubr.f32.mxu0 0.0
        %9492 = vmatmul.mubr.f32.gmra.mxu0 %v9410
        %v9493 = vpop.f32.mrf.mxu0
        %v9494 = vadd.f32 0.0, %v9493
        %v9495 = vpop.f32.mrf.mxu0
        %9496 = vdwg.mxu0
        %v9497 = vadd.f32 %v9389, %v9479
        %v9498 = vadd.f32 %v9390, %v9484
        %v9499 = vadd.f32 %v9391, %v9489
        %v9500 = vadd.f32 %v9392, %v9494
        %v9501 = vld [vmem:[#allocation5 + $0x10] sm:$0xff]
        %v9502 = vld [vmem:[#allocation5 + $0x18] sm:$0xff]
        %v9503 = vld [vmem:[#allocation5 + $0x20] sm:$0xff]
        %v9504 = vld [vmem:[#allocation5 + $0x28] sm:$0xff]
        %s9505 = scalar_lea.vmem %s19, 96
        %v9506 = vld [vmem:[%s9505] sm:$0xff]
        %v9507 = vld [vmem:[%s9505 + $0x8] sm:$0xff]
        %v9509 = vsel %vm804, %v9501, 0
        %v9512 = vsel %vm804, %v9502, 0
        %v9515 = vsel %vm804, %v9503, 0
        %v9518 = vsel %vm804, %v9504, 0
        %9520 = vmatprep.subr.mxu0 0.0
        %9521 = vmatpush1.msra.mxu0 0.0
        %9522 = vmatprep.subr.mxu0 0.0
        %9523 = vmatpush1.msra.mxu0 0.0
        %9524 = vmatprep.subr.mxu0 0.0
        %9525 = vmatpush1.msra.mxu0 0.0
        %9526 = vmatprep.subr.mxu0 0.0
        %9527 = vmatpush1.msra.mxu0 0.0
        %9528 = vmatprep.subr.mxu0 0.0
        %9529 = vmatpush1.msra.mxu0 0.0
        %9530 = vmatprep.subr.mxu0 0.0
        %9531 = vmatpush1.msra.mxu0 0.0
        %9532 = vmatprep.subr.mxu0 0.0
        %9533 = vmatpush1.msra.mxu0 0.0
        %9534 = vmatprep.subr.mxu0 0.0
        %9535 = vmatpush1.msra.mxu0 0.0
        %9536 = vmatprep.subr.mxu0 0.0
        %9537 = vmatpush1.msra.mxu0 0.0
        %9538 = vmatprep.subr.mxu0 0.0
        %9539 = vmatpush1.msra.mxu0 0.0
        %9540 = vmatprep.subr.mxu0 0.0
        %9541 = vmatpush1.msra.mxu0 0.0
        %9542 = vmatprep.subr.mxu0 0.0
        %9543 = vmatpush1.msra.mxu0 0.0
        %9544 = vmatprep.subr.mxu0 0.0
        %9545 = vmatpush1.msra.mxu0 0.0
        %9546 = vmatprep.subr.mxu0 0.0
        %9547 = vmatpush1.msra.mxu0 0.0
        %9548 = vmatprep.subr.mxu0 0.0
        %9549 = vmatpush1.msra.mxu0 %v9507
        %9550 = vmatprep.subr.mxu0 0.0
        %9551 = vmatpush1.msra.mxu0 %v9506
        %9552 = vmatprep.subr.mxu0 0.0
        %9553 = vmatpush2.msra.mxu0 0.0
        %9554 = vmatprep.subr.mxu0 0.0
        %9555 = vmatpush2.msra.mxu0 0.0
        %9556 = vmatprep.subr.mxu0 0.0
        %9557 = vmatpush2.msra.mxu0 0.0
        %9558 = vmatprep.subr.mxu0 0.0
        %9559 = vmatpush2.msra.mxu0 0.0
        %9560 = vmatprep.subr.mxu0 0.0
        %9561 = vmatpush2.msra.mxu0 0.0
        %9562 = vmatprep.subr.mxu0 0.0
        %9563 = vmatpush2.msra.mxu0 0.0
        %9564 = vmatprep.subr.mxu0 0.0
        %9565 = vmatpush2.msra.mxu0 0.0
        %9566 = vmatprep.subr.mxu0 0.0
        %9567 = vmatpush2.msra.mxu0 0.0
        %9568 = vmatprep.subr.mxu0 0.0
        %9569 = vmatpush2.msra.mxu0 0.0
        %9570 = vmatprep.subr.mxu0 0.0
        %9571 = vmatpush2.msra.mxu0 0.0
        %9572 = vmatprep.subr.mxu0 0.0
        %9573 = vmatpush2.msra.mxu0 0.0
        %9574 = vmatprep.subr.mxu0 0.0
        %9575 = vmatpush2.msra.mxu0 0.0
        %9576 = vmatprep.subr.mxu0 0.0
        %9577 = vmatpush2.msra.mxu0 0.0
        %9578 = vmatprep.subr.mxu0 0.0
        %9579 = vmatpush2.msra.mxu0 0.0
        %9580 = vmatprep.subr.mxu0 0.0
        %9581 = vmatpush2.msra.mxu0 0.0
        %9582 = vmatprep.subr.mxu0 0.0
        %9583 = vmatpush2.msra.mxu0 0.0
        %9584 = vmatprep.mubr.f32.mxu0 0.0
        %9585 = vmatmul.mubr.f32.gmra.mxu0 %v9509
        %v9586 = vpop.f32.mrf.mxu0
        %v9587 = vadd.f32 0.0, %v9586
        %v9588 = vpop.f32.mrf.mxu0
        %9589 = vmatprep.mubr.f32.mxu0 0.0
        %9590 = vmatmul.mubr.f32.gmra.mxu0 %v9512
        %v9591 = vpop.f32.mrf.mxu0
        %v9592 = vadd.f32 0.0, %v9591
        %v9593 = vpop.f32.mrf.mxu0
        %9594 = vmatprep.mubr.f32.mxu0 0.0
        %9595 = vmatmul.mubr.f32.gmra.mxu0 %v9515
        %v9596 = vpop.f32.mrf.mxu0
        %v9597 = vadd.f32 0.0, %v9596
        %v9598 = vpop.f32.mrf.mxu0
        %9599 = vmatprep.mubr.f32.mxu0 0.0
        %9600 = vmatmul.mubr.f32.gmra.mxu0 %v9518
        %v9601 = vpop.f32.mrf.mxu0
        %v9602 = vadd.f32 0.0, %v9601
        %v9603 = vpop.f32.mrf.mxu0
        %9604 = vdwg.mxu0
        %v9605 = vadd.f32 %v9497, %v9587
        %v9606 = vadd.f32 %v9498, %v9592
        %v9607 = vadd.f32 %v9499, %v9597
        %v9608 = vadd.f32 %v9500, %v9602
        %v9609 = vld [vmem:[#allocation5 + $0x11] sm:$0xff]
        %v9610 = vld [vmem:[#allocation5 + $0x19] sm:$0xff]
        %v9611 = vld [vmem:[#allocation5 + $0x21] sm:$0xff]
        %v9612 = vld [vmem:[#allocation5 + $0x29] sm:$0xff]
        %s9613 = scalar_lea.vmem %s19, 112
        %v9614 = vld [vmem:[%s9613] sm:$0xff]
        %v9615 = vld [vmem:[%s9613 + $0x8] sm:$0xff]
        %v9617 = vsel %vm804, %v9609, 0
        %v9620 = vsel %vm804, %v9610, 0
        %v9623 = vsel %vm804, %v9611, 0
        %v9626 = vsel %vm804, %v9612, 0
        %9628 = vmatprep.subr.mxu0 0.0
        %9629 = vmatpush1.msra.mxu0 0.0
        %9630 = vmatprep.subr.mxu0 0.0
        %9631 = vmatpush1.msra.mxu0 0.0
        %9632 = vmatprep.subr.mxu0 0.0
        %9633 = vmatpush1.msra.mxu0 0.0
        %9634 = vmatprep.subr.mxu0 0.0
        %9635 = vmatpush1.msra.mxu0 0.0
        %9636 = vmatprep.subr.mxu0 0.0
        %9637 = vmatpush1.msra.mxu0 0.0
        %9638 = vmatprep.subr.mxu0 0.0
        %9639 = vmatpush1.msra.mxu0 0.0
        %9640 = vmatprep.subr.mxu0 0.0
        %9641 = vmatpush1.msra.mxu0 0.0
        %9642 = vmatprep.subr.mxu0 0.0
        %9643 = vmatpush1.msra.mxu0 0.0
        %9644 = vmatprep.subr.mxu0 0.0
        %9645 = vmatpush1.msra.mxu0 0.0
        %9646 = vmatprep.subr.mxu0 0.0
        %9647 = vmatpush1.msra.mxu0 0.0
        %9648 = vmatprep.subr.mxu0 0.0
        %9649 = vmatpush1.msra.mxu0 0.0
        %9650 = vmatprep.subr.mxu0 0.0
        %9651 = vmatpush1.msra.mxu0 0.0
        %9652 = vmatprep.subr.mxu0 0.0
        %9653 = vmatpush1.msra.mxu0 0.0
        %9654 = vmatprep.subr.mxu0 0.0
        %9655 = vmatpush1.msra.mxu0 0.0
        %9656 = vmatprep.subr.mxu0 0.0
        %9657 = vmatpush1.msra.mxu0 %v9615
        %9658 = vmatprep.subr.mxu0 0.0
        %9659 = vmatpush1.msra.mxu0 %v9614
        %9660 = vmatprep.subr.mxu0 0.0
        %9661 = vmatpush2.msra.mxu0 0.0
        %9662 = vmatprep.subr.mxu0 0.0
        %9663 = vmatpush2.msra.mxu0 0.0
        %9664 = vmatprep.subr.mxu0 0.0
        %9665 = vmatpush2.msra.mxu0 0.0
        %9666 = vmatprep.subr.mxu0 0.0
        %9667 = vmatpush2.msra.mxu0 0.0
        %9668 = vmatprep.subr.mxu0 0.0
        %9669 = vmatpush2.msra.mxu0 0.0
        %9670 = vmatprep.subr.mxu0 0.0
        %9671 = vmatpush2.msra.mxu0 0.0
        %9672 = vmatprep.subr.mxu0 0.0
        %9673 = vmatpush2.msra.mxu0 0.0
        %9674 = vmatprep.subr.mxu0 0.0
        %9675 = vmatpush2.msra.mxu0 0.0
        %9676 = vmatprep.subr.mxu0 0.0
        %9677 = vmatpush2.msra.mxu0 0.0
        %9678 = vmatprep.subr.mxu0 0.0
        %9679 = vmatpush2.msra.mxu0 0.0
        %9680 = vmatprep.subr.mxu0 0.0
        %9681 = vmatpush2.msra.mxu0 0.0
        %9682 = vmatprep.subr.mxu0 0.0
        %9683 = vmatpush2.msra.mxu0 0.0
        %9684 = vmatprep.subr.mxu0 0.0
        %9685 = vmatpush2.msra.mxu0 0.0
        %9686 = vmatprep.subr.mxu0 0.0
        %9687 = vmatpush2.msra.mxu0 0.0
        %9688 = vmatprep.subr.mxu0 0.0
        %9689 = vmatpush2.msra.mxu0 0.0
        %9690 = vmatprep.subr.mxu0 0.0
        %9691 = vmatpush2.msra.mxu0 0.0
        %9692 = vmatprep.mubr.f32.mxu0 0.0
        %9693 = vmatmul.mubr.f32.gmra.mxu0 %v9617
        %v9694 = vpop.f32.mrf.mxu0
        %v9695 = vadd.f32 0.0, %v9694
        %v9696 = vpop.f32.mrf.mxu0
        %9697 = vmatprep.mubr.f32.mxu0 0.0
        %9698 = vmatmul.mubr.f32.gmra.mxu0 %v9620
        %v9699 = vpop.f32.mrf.mxu0
        %v9700 = vadd.f32 0.0, %v9699
        %v9701 = vpop.f32.mrf.mxu0
        %9702 = vmatprep.mubr.f32.mxu0 0.0
        %9703 = vmatmul.mubr.f32.gmra.mxu0 %v9623
        %v9704 = vpop.f32.mrf.mxu0
        %v9705 = vadd.f32 0.0, %v9704
        %v9706 = vpop.f32.mrf.mxu0
        %9707 = vmatprep.mubr.f32.mxu0 0.0
        %9708 = vmatmul.mubr.f32.gmra.mxu0 %v9626
        %v9709 = vpop.f32.mrf.mxu0
        %v9710 = vadd.f32 0.0, %v9709
        %v9711 = vpop.f32.mrf.mxu0
        %9712 = vdwg.mxu0
        %v9713 = vadd.f32 %v9605, %v9695
        %v9714 = vadd.f32 %v9606, %v9700
        %v9715 = vadd.f32 %v9607, %v9705
        %v9716 = vadd.f32 %v9608, %v9710
        %v9717 = vld [vmem:[#allocation5 + $0x12] sm:$0xff]
        %v9718 = vld [vmem:[#allocation5 + $0x1a] sm:$0xff]
        %v9719 = vld [vmem:[#allocation5 + $0x22] sm:$0xff]
        %v9720 = vld [vmem:[#allocation5 + $0x2a] sm:$0xff]
        %s9721 = scalar_lea.vmem %s19, 128
        %v9722 = vld [vmem:[%s9721] sm:$0xff]
        %v9723 = vld [vmem:[%s9721 + $0x8] sm:$0xff]
        %v9725 = vsel %vm804, %v9717, 0
        %v9728 = vsel %vm804, %v9718, 0
        %v9731 = vsel %vm804, %v9719, 0
        %v9734 = vsel %vm804, %v9720, 0
        %9736 = vmatprep.subr.mxu0 0.0
        %9737 = vmatpush1.msra.mxu0 0.0
        %9738 = vmatprep.subr.mxu0 0.0
        %9739 = vmatpush1.msra.mxu0 0.0
        %9740 = vmatprep.subr.mxu0 0.0
        %9741 = vmatpush1.msra.mxu0 0.0
        %9742 = vmatprep.subr.mxu0 0.0
        %9743 = vmatpush1.msra.mxu0 0.0
        %9744 = vmatprep.subr.mxu0 0.0
        %9745 = vmatpush1.msra.mxu0 0.0
        %9746 = vmatprep.subr.mxu0 0.0
        %9747 = vmatpush1.msra.mxu0 0.0
        %9748 = vmatprep.subr.mxu0 0.0
        %9749 = vmatpush1.msra.mxu0 0.0
        %9750 = vmatprep.subr.mxu0 0.0
        %9751 = vmatpush1.msra.mxu0 0.0
        %9752 = vmatprep.subr.mxu0 0.0
        %9753 = vmatpush1.msra.mxu0 0.0
        %9754 = vmatprep.subr.mxu0 0.0
        %9755 = vmatpush1.msra.mxu0 0.0
        %9756 = vmatprep.subr.mxu0 0.0
        %9757 = vmatpush1.msra.mxu0 0.0
        %9758 = vmatprep.subr.mxu0 0.0
        %9759 = vmatpush1.msra.mxu0 0.0
        %9760 = vmatprep.subr.mxu0 0.0
        %9761 = vmatpush1.msra.mxu0 0.0
        %9762 = vmatprep.subr.mxu0 0.0
        %9763 = vmatpush1.msra.mxu0 0.0
        %9764 = vmatprep.subr.mxu0 0.0
        %9765 = vmatpush1.msra.mxu0 %v9723
        %9766 = vmatprep.subr.mxu0 0.0
        %9767 = vmatpush1.msra.mxu0 %v9722
        %9768 = vmatprep.subr.mxu0 0.0
        %9769 = vmatpush2.msra.mxu0 0.0
        %9770 = vmatprep.subr.mxu0 0.0
        %9771 = vmatpush2.msra.mxu0 0.0
        %9772 = vmatprep.subr.mxu0 0.0
        %9773 = vmatpush2.msra.mxu0 0.0
        %9774 = vmatprep.subr.mxu0 0.0
        %9775 = vmatpush2.msra.mxu0 0.0
        %9776 = vmatprep.subr.mxu0 0.0
        %9777 = vmatpush2.msra.mxu0 0.0
        %9778 = vmatprep.subr.mxu0 0.0
        %9779 = vmatpush2.msra.mxu0 0.0
        %9780 = vmatprep.subr.mxu0 0.0
        %9781 = vmatpush2.msra.mxu0 0.0
        %9782 = vmatprep.subr.mxu0 0.0
        %9783 = vmatpush2.msra.mxu0 0.0
        %9784 = vmatprep.subr.mxu0 0.0
        %9785 = vmatpush2.msra.mxu0 0.0
        %9786 = vmatprep.subr.mxu0 0.0
        %9787 = vmatpush2.msra.mxu0 0.0
        %9788 = vmatprep.subr.mxu0 0.0
        %9789 = vmatpush2.msra.mxu0 0.0
        %9790 = vmatprep.subr.mxu0 0.0
        %9791 = vmatpush2.msra.mxu0 0.0
        %9792 = vmatprep.subr.mxu0 0.0
        %9793 = vmatpush2.msra.mxu0 0.0
        %9794 = vmatprep.subr.mxu0 0.0
        %9795 = vmatpush2.msra.mxu0 0.0
        %9796 = vmatprep.subr.mxu0 0.0
        %9797 = vmatpush2.msra.mxu0 0.0
        %9798 = vmatprep.subr.mxu0 0.0
        %9799 = vmatpush2.msra.mxu0 0.0
        %9800 = vmatprep.mubr.f32.mxu0 0.0
        %9801 = vmatmul.mubr.f32.gmra.mxu0 %v9725
        %v9802 = vpop.f32.mrf.mxu0
        %v9803 = vadd.f32 0.0, %v9802
        %v9804 = vpop.f32.mrf.mxu0
        %9805 = vmatprep.mubr.f32.mxu0 0.0
        %9806 = vmatmul.mubr.f32.gmra.mxu0 %v9728
        %v9807 = vpop.f32.mrf.mxu0
        %v9808 = vadd.f32 0.0, %v9807
        %v9809 = vpop.f32.mrf.mxu0
        %9810 = vmatprep.mubr.f32.mxu0 0.0
        %9811 = vmatmul.mubr.f32.gmra.mxu0 %v9731
        %v9812 = vpop.f32.mrf.mxu0
        %v9813 = vadd.f32 0.0, %v9812
        %v9814 = vpop.f32.mrf.mxu0
        %9815 = vmatprep.mubr.f32.mxu0 0.0
        %9816 = vmatmul.mubr.f32.gmra.mxu0 %v9734
        %v9817 = vpop.f32.mrf.mxu0
        %v9818 = vadd.f32 0.0, %v9817
        %v9819 = vpop.f32.mrf.mxu0
        %9820 = vdwg.mxu0
        %v9821 = vadd.f32 %v9713, %v9803
        %v9822 = vadd.f32 %v9714, %v9808
        %v9823 = vadd.f32 %v9715, %v9813
        %v9824 = vadd.f32 %v9716, %v9818
        %v9825 = vld [vmem:[%s13] sm:$0xff]
        %v9826 = vld [vmem:[%s13 + $0x8] sm:$0xff]
        %v9828 = vsel %vm1710, %v9825, 0
        %v9831 = vsel %vm1710, %v9826, 0
        %9833 = vmatprep.subr.mxu0 0.0
        %9834 = vmatpush1.msra.mxu0 0.0
        %9835 = vmatprep.subr.mxu0 0.0
        %9836 = vmatpush1.msra.mxu0 0.0
        %9837 = vmatprep.subr.mxu0 0.0
        %9838 = vmatpush1.msra.mxu0 0.0
        %9839 = vmatprep.subr.mxu0 0.0
        %9840 = vmatpush1.msra.mxu0 0.0
        %9841 = vmatprep.subr.mxu0 0.0
        %9842 = vmatpush1.msra.mxu0 0.0
        %9843 = vmatprep.subr.mxu0 0.0
        %9844 = vmatpush1.msra.mxu0 0.0
        %9845 = vmatprep.subr.mxu0 0.0
        %9846 = vmatpush1.msra.mxu0 0.0
        %9847 = vmatprep.subr.mxu0 0.0
        %9848 = vmatpush1.msra.mxu0 0.0
        %9849 = vmatprep.subr.mxu0 0.0
        %9850 = vmatpush1.msra.mxu0 0.0
        %9851 = vmatprep.subr.mxu0 0.0
        %9852 = vmatpush1.msra.mxu0 0.0
        %9853 = vmatprep.subr.mxu0 0.0
        %9854 = vmatpush1.msra.mxu0 0.0
        %9855 = vmatprep.subr.mxu0 0.0
        %9856 = vmatpush1.msra.mxu0 0.0
        %9857 = vmatprep.subr.mxu0 0.0
        %9858 = vmatpush1.msra.mxu0 %v9824
        %9859 = vmatprep.subr.mxu0 0.0
        %9860 = vmatpush1.msra.mxu0 %v9823
        %9861 = vmatprep.subr.mxu0 0.0
        %9862 = vmatpush1.msra.mxu0 %v9822
        %9863 = vmatprep.subr.mxu0 0.0
        %9864 = vmatpush1.msra.mxu0 %v9821
        %9865 = vmatprep.subr.mxu0 0.0
        %9866 = vmatpush2.msra.mxu0 0.0
        %9867 = vmatprep.subr.mxu0 0.0
        %9868 = vmatpush2.msra.mxu0 0.0
        %9869 = vmatprep.subr.mxu0 0.0
        %9870 = vmatpush2.msra.mxu0 0.0
        %9871 = vmatprep.subr.mxu0 0.0
        %9872 = vmatpush2.msra.mxu0 0.0
        %9873 = vmatprep.subr.mxu0 0.0
        %9874 = vmatpush2.msra.mxu0 0.0
        %9875 = vmatprep.subr.mxu0 0.0
        %9876 = vmatpush2.msra.mxu0 0.0
        %9877 = vmatprep.subr.mxu0 0.0
        %9878 = vmatpush2.msra.mxu0 0.0
        %9879 = vmatprep.subr.mxu0 0.0
        %9880 = vmatpush2.msra.mxu0 0.0
        %9881 = vmatprep.subr.mxu0 0.0
        %9882 = vmatpush2.msra.mxu0 0.0
        %9883 = vmatprep.subr.mxu0 0.0
        %9884 = vmatpush2.msra.mxu0 0.0
        %9885 = vmatprep.subr.mxu0 0.0
        %9886 = vmatpush2.msra.mxu0 0.0
        %9887 = vmatprep.subr.mxu0 0.0
        %9888 = vmatpush2.msra.mxu0 0.0
        %9889 = vmatprep.subr.mxu0 0.0
        %9890 = vmatpush2.msra.mxu0 0.0
        %9891 = vmatprep.subr.mxu0 0.0
        %9892 = vmatpush2.msra.mxu0 0.0
        %9893 = vmatprep.subr.mxu0 0.0
        %9894 = vmatpush2.msra.mxu0 0.0
        %9895 = vmatprep.subr.mxu0 0.0
        %9896 = vmatpush2.msra.mxu0 0.0
        %9897 = vmatprep.mubr.f32.mxu0 0.0
        %9898 = vmatmul.mubr.f32.gmra.mxu0 %v9828
        %v9899 = vpop.f32.mrf.mxu0
        %v9900 = vadd.f32 0.0, %v9899
        %v9901 = vpop.f32.mrf.mxu0
        %9902 = vmatprep.mubr.f32.mxu0 0.0
        %9903 = vmatmul.mubr.f32.gmra.mxu0 %v9831
        %v9904 = vpop.f32.mrf.mxu0
        %v9905 = vadd.f32 0.0, %v9904
        %v9906 = vpop.f32.mrf.mxu0
        %9907 = vdwg.mxu0
        %9908 = vst.msk [vmem:[%s679] sm:$0xff] %vm804, %v9900
        %9909 = vst.msk [vmem:[%s679 + $0x8] sm:$0xff] %vm804, %v9905
        %s9910 = sand.u32 %s499, 1
        %s9911 = scalar_lea.sflag [#allocation7], %s9910
        %s9912 = sand.u32 %s499, 1
        %s9913 = smul.addr %s9912, 16
        %s9914 = scalar_lea.vmem [#allocation6], %s9913
        // Predicated region
        $region105: #{decoder_forward_nchw.1} parent=103 // pred_check
          %p9915 = pneg %p509
        $region106: #{decoder_forward_nchw.1} parent=103 // pred_check_branch
          %9917 = sbr.rel (%p9915) target = $region108
        $region107: #{decoder_forward_nchw.1} parent=103 // pred_region
          %s9919 = ssub.s32 256, 256
          %9920 = vsyncadd %s9911, %s9919
          %s9921 = smul.addr %s35, 2
          %s9922 = smul.addr %s9921, 128
          %s9923 = scalar_lea.hbm %s21, %s9922
          %s9924 = sshll.u32 %s9914, 4
          %s9925 = int_to_ptr.vmem [resolvable:$true] %s9924
          %9930 = dma.vmem_to_hbm [thread:$0]  %s9925, 256, %s9923, %s9911, 128, 128, 8
        $region108: #{decoder_forward_nchw.1} parent=103 // pred_fallthru
          _
      $region104: #{decoder_forward_nchw.1} parent=5 // pred_fallthru
        _
      %p9931 = scmp.le.s32.totalorder 2, %s30
      // Predicated region
      $region109: #{decoder_forward_nchw.1} parent=5 // pred_check
        %p9932 = pneg %p9931
      $region110: #{decoder_forward_nchw.1} parent=5 // pred_check_branch
        %9934 = sbr.rel (%p9932) target = $region112
      $region111: #{decoder_forward_nchw.1} parent=5 // pred_region
        %s9935 = ssub.s32 %s30, 2
        // Predicated region
        $region113: #{decoder_forward_nchw.1} parent=111 // pred_check
          %p9936 = pneg %p515
        $region114: #{decoder_forward_nchw.1} parent=111 // pred_check_branch
          %9938 = sbr.rel (%p9936) target = $region116
        $region115: #{decoder_forward_nchw.1} parent=111 // pred_region
          %s9939 = sand.u32 %s500, 1
          %s9940 = scalar_lea.sflag [#allocation7], %s9939
          %s9941 = sand.u32 %s500, 1
          %s9942 = smul.addr %s9941, 16
          %s9943 = scalar_lea.vmem [#allocation6], %s9942
          %9944 = dma.done %s9940, 256
        $region116: #{decoder_forward_nchw.1} parent=111 // pred_fallthru
          _
      $region112: #{decoder_forward_nchw.1} parent=5 // pred_fallthru
        _
    $region6: #{decoder_forward_nchw.1} parent=1 // loop_footer
      %s34 = sadd.s32 1, %s30
    $region7: #{decoder_forward_nchw.1} parent=1 // loop_footer_branch
      %29 = sbr.rel target = $region3
    $region8: #{decoder_forward_nchw.1} parent=1 // loop_exit
      _
    %9945 = vsyncpa [#allocation7], 1
    %s9946 = scalar_lea.sflag [#allocation7], 1
    %9947 = vsyncpa %s9946, 1

</llo_original>
